<compile_context>
chip_gen: v6e
topology: v6e:2x2x1
jax: 0.10.0
libtpu: 0.0.40
codegen_flags: <defaults>
</compile_context>

<pallas_src>
import jax
import jax.numpy as jnp
from jax import lax
from jax.experimental import pallas as pl
from jax.experimental.pallas import tpu as pltpu

# channel_scale is an empty global in the source file; define a reasonable one.
channel_scale = [0.25, 0.5, 0.75, 1.0]


# ----------------------------------------------------------------------------
# Kernel: 7x7 conv (single K=196 bf16 MXU dot, f32 accum) + per-sample BN
# partial sums + fused raw-value MaxPool2d(3, stride=2, pad=1).
# Grid = (N,), both outputs written once per sample.
# ----------------------------------------------------------------------------
def _make_kernel(stride, Cin, Co, OH, OW, PH, PW):
    s = stride
    K = 49 * Cin

    def kernel(x_ref, w_ref, pooled_ref, stats_ref, patch3_ref, patch2_ref, y_ref):
        # x_ref:      (1, s*s*Cin, Hq, Wq)  phase-split zero-padded input, bf16
        # w_ref:      (Co, K)               tap-major conv weights, bf16 (resident)
        # pooled_ref: (1, Co, PH, PW)       raw-value max-pooled conv output, f32
        # stats_ref:  (1, Co, 2)            per-sample [sum, sum_sq] over OH*OW, f32
        # patch3_ref: (K, OH, OW) bf16      in-VMEM im2col buffer
        # patch2_ref: (K, OH*OW)  bf16      flattened patch (dot rhs)
        # y_ref:      (Co, OH, OW) f32      conv output staging for the pool taps

        # 1) im2col in VMEM: 49 contiguous tap copies.  The conv stride is folded
        #    into the wrapper's phase split, so no strided ref indexing is needed.
        for kh in range(7):
            a, qh = kh % s, kh // s
            for kw in range(7):
                b, qw = kw % s, kw // s
                pidx = a * s + b
                t = kh * 7 + kw
                patch3_ref[pl.ds(t * Cin, Cin), :, :] = x_ref[
                    0, pl.ds(pidx * Cin, Cin), pl.ds(qh, OH), pl.ds(qw, OW)]

        # 2) Flatten (K, OH, OW) -> (K, OH*OW) through VMEM row copies (avoids a
        #    cross-lane value reshape).
        for oh in range(OH):
            patch2_ref[:, pl.ds(oh * OW, OW)] = patch3_ref[:, oh, :]

        # 3) One MXU matmul: (Co, 196) x (196, OH*OW), bf16 operands, f32 accum.
        acc = jnp.dot(w_ref[...], patch2_ref[...],
                      preferred_element_type=jnp.float32)            # (Co, P) f32

        # 4) BatchNorm partial statistics from the f32 accumulator.
        ssum = jnp.sum(acc, axis=1, keepdims=True)                    # (Co, 1)
        ssq = jnp.sum(acc * acc, axis=1, keepdims=True)               # (Co, 1)
        stats_ref[0, :, :] = jnp.concatenate([ssum, ssq], axis=1)     # (Co, 2)

        # 5) Un-flatten to (Co, OH, OW) through VMEM for the pool taps.
        for oh in range(OH):
            y_ref[:, oh, :] = acc[:, oh * OW:(oh + 1) * OW]

        # 6) Raw-value MaxPool2d(kernel=3, stride=2, pad=1).  Valid to pool the
        #    raw conv values because (x - mu) * inv_std (inv_std > 0) followed by
        #    ReLU is monotone; window clipping at the border is exactly the -inf
        #    padding semantics (every window contains at least one real value).
        cols = []
        for pw in range(PW):
            lo = max(2 * pw - 1, 0)
            hi = min(2 * pw + 1, OW - 1)
            cols.append(jnp.max(y_ref[:, :, pl.ds(lo, hi - lo + 1)],
                                axis=2, keepdims=True))
        cw = jnp.concatenate(cols, axis=2)                            # (Co, OH, PW)
        rows = []
        for pr in range(PH):
            lo = max(2 * pr - 1, 0)
            hi = min(2 * pr + 1, OH - 1)
            rows.append(jnp.max(cw[:, lo:hi + 1, :], axis=1, keepdims=True))
        pooled_ref[0, :, :, :] = jnp.concatenate(rows, axis=1)        # (Co, PH, PW)

    return kernel


# ----------------------------------------------------------------------------
# Module parameters (weight-generating MLP fc11 -> relu -> fc12)
# ----------------------------------------------------------------------------
def init_params(key, base_inplanes, base_planes):
    k1, k2, k3, k4 = jax.random.split(key, 4)
    n_out = base_planes * base_inplanes * 7 * 7
    return {
        "max_inp": base_inplanes,
        "max_oup": base_planes,
        "W11": jax.random.normal(k1, (32, 1), jnp.float32) * 0.5,       # fc11
        "b11": jax.random.normal(k2, (32,), jnp.float32) * 0.1,
        "W12": jax.random.normal(k3, (n_out, 32), jnp.float32) * 0.05,  # fc12
        "b12": jax.random.normal(k4, (n_out,), jnp.float32) * 0.05,
    }


# ----------------------------------------------------------------------------
# Module forward: thin glue + one Pallas kernel
# ----------------------------------------------------------------------------
def first_conv_block_forward(params, x_nchw, oup_scale_id, stride):
    max_oup, max_inp = params["max_oup"], params["max_inp"]
    oup_scale = channel_scale[oup_scale_id]
    oup = int(max_oup * oup_scale)

    # ---- weight-generating MLP (tiny; plain JAX glue) ----
    sv = jnp.array([oup_scale], jnp.float32)
    fc11_out = jax.nn.relu(params["W11"] @ sv + params["b11"])          # (32,)
    w_flat = params["W12"] @ fc11_out + params["b12"]
    w_conv = w_flat.reshape(max_oup, max_inp, 7, 7)[:oup]               # (Co, Cin, 7, 7)

    N, Cin, H, W = x_nchw.shape
    s = stride
    OH = (H + 2 * 3 - 7) // s + 1
    OW = (W + 2 * 3 - 7) // s + 1
    PH = (OH - 1) // 2 + 1
    PW = (OW - 1) // 2 + 1
    Co = oup
    K = 49 * Cin
    qmax = 6 // s                       # max (kh // s)
    Hq, Wq = OH + qmax, OW + qmax       # per-phase image extent needed by the taps
    PC = s * s * Cin

    # ---- zero-pad(3) + stride-phase split + bf16 cast (one pass over the input).
    # TODO(synk): fold this into the kernel with edge-tap masking at real scale.
    xp = jnp.pad(x_nchw, ((0, 0), (0, 0), (3, 3), (3, 3)))
    phases = []
    for a in range(s):
        for b in range(s):
            ph_img = xp[:, :, a::s, b::s][:, :, :Hq, :Wq]
            pad_h = Hq - ph_img.shape[2]
            pad_w = Wq - ph_img.shape[3]
            if pad_h or pad_w:
                ph_img = jnp.pad(ph_img, ((0, 0), (0, 0), (0, pad_h), (0, pad_w)))
            phases.append(ph_img)
    xph = jnp.concatenate(phases, axis=1).astype(jnp.bfloat16)          # (N, PC, Hq, Wq)

    # Tap-major weights: k = (kh*7 + kw)*Cin + ci  ->  (Co, K), bf16.
    w2 = jnp.transpose(w_conv, (0, 2, 3, 1)).reshape(Co, K).astype(jnp.bfloat16)

    kernel = _make_kernel(s, Cin, Co, OH, OW, PH, PW)
    pooled_raw, stats = pl.pallas_call(
        kernel,
        grid=(N,),
        in_specs=[
            pl.BlockSpec((1, PC, Hq, Wq), lambda n: (n, 0, 0, 0)),
            pl.BlockSpec((Co, K), lambda n: (0, 0)),                    # resident
        ],
        out_specs=[
            pl.BlockSpec((1, Co, PH, PW), lambda n: (n, 0, 0, 0)),
            pl.BlockSpec((1, Co, 2), lambda n: (n, 0, 0)),
        ],
        out_shape=[
            jax.ShapeDtypeStruct((N, Co, PH, PW), jnp.float32),
            jax.ShapeDtypeStruct((N, Co, 2), jnp.float32),
        ],
        scratch_shapes=[
            pltpu.VMEM((K, OH, OW), jnp.bfloat16),
            pltpu.VMEM((K, OH * OW), jnp.bfloat16),
            pltpu.VMEM((Co, OH, OW), jnp.float32),
        ],
        compiler_params=pltpu.CompilerParams(
            dimension_semantics=("parallel",),
        ),
    )(xph, w2)

    # ---- finalize BN batch stats (biased var, eps=1e-5) and apply the monotone
    # normalize + ReLU to the tiny pooled tensor (review-sanctioned glue). ----
    tot = stats.sum(axis=0)                                             # (Co, 2)
    cnt = float(N * OH * OW)
    mean = tot[:, 0] / cnt
    var = jnp.maximum(tot[:, 1] / cnt - mean * mean, 0.0)
    inv_std = lax.rsqrt(var + 1e-5)
    out = jnp.maximum(
        (pooled_raw - mean[None, :, None, None]) * inv_std[None, :, None, None],
        0.0,
    )
    return out                                                          # NCHW


# ----------------------------------------------------------------------------
# Pure-JAX reference (mirrors the PyTorch forward) for the correctness check
# ----------------------------------------------------------------------------
def reference_forward(params, x_nchw, oup_scale_id, stride):
    max_oup, max_inp = params["max_oup"], params["max_inp"]
    oup_scale = channel_scale[oup_scale_id]
    oup = int(max_oup * oup_scale)
    sv = jnp.array([oup_scale], jnp.float32)
    h = jax.nn.relu(params["W11"] @ sv + params["b11"])
    w_flat = params["W12"] @ h + params["b12"]
    w_conv = w_flat.reshape(max_oup, max_inp, 7, 7)[:oup]
    out = lax.conv_general_dilated(
        x_nchw, w_conv, window_strides=(stride, stride), padding=((3, 3), (3, 3)),
        dimension_numbers=("NCHW", "OIHW", "NCHW"), precision=lax.Precision.HIGHEST)
    mean = out.mean(axis=(0, 2, 3), keepdims=True)
    var = ((out - mean) ** 2).mean(axis=(0, 2, 3), keepdims=True)
    out = jax.nn.relu((out - mean) / jnp.sqrt(var + 1e-5))
    out = lax.reduce_window(out, -jnp.inf, lax.max,
                            (1, 1, 3, 3), (1, 1, 2, 2),
                            ((0, 0), (0, 0), (1, 1), (1, 1)))
    return out


if __name__ == "__main__":
    base_inplanes, base_planes, stride = 4, 8, 2
    key = jax.random.PRNGKey(0)
    pkey, xkey = jax.random.split(key)
    params = init_params(pkey, base_inplanes, base_planes)
    x = jax.random.normal(xkey, (2, base_inplanes, 16, 16), jnp.float32)
    oup_scale_id = 2  # scale 0.75 -> oup = int(8 * 0.75) = 6

    out = first_conv_block_forward(params, x, oup_scale_id, stride)
    out = jax.block_until_ready(out)

    ref = reference_forward(params, x, oup_scale_id, stride)
    assert out.shape == ref.shape == (2, 6, 4, 4), (out.shape, ref.shape)
    max_err = float(jnp.max(jnp.abs(out - ref)))
    # bf16 MXU operands -> tolerance loosened vs f32-HIGHEST reference.
    assert jnp.allclose(out, ref, rtol=3e-2, atol=3e-2), max_err
    print("KERNEL_OK")
</pallas_src>

<mosaic_0001>
module attributes {stable_mosaic.version = 11 : i64} {
  func.func @kernel(%arg0: i32, %arg1: memref<1x16x11x11xbf16, #tpu.memory_space<vmem>>, %arg2: memref<6x196xbf16, #tpu.memory_space<vmem>>, %arg3: memref<1x6x4x4xf32, #tpu.memory_space<vmem>>, %arg4: memref<1x6x2xf32, #tpu.memory_space<vmem>>, %arg5: memref<196x8x8xbf16, #tpu.memory_space<vmem>>, %arg6: memref<196x64xbf16, #tpu.memory_space<vmem>>, %arg7: memref<6x8x8xf32, #tpu.memory_space<vmem>>) attributes {dimension_semantics = [#tpu.dimension_semantics<parallel>], iteration_bounds = array<i64: 2>, scalar_prefetch = 0 : i64, scratch_operands = 3 : i64, tpu.core_type = #tpu.core_type<tc>, window_params = [{transform_indices = @transform_0, window_bounds = array<i64: 1, 16, 11, 11>}, {pipeline_mode = #tpu.pipeline_mode<synchronous>, transform_indices = @transform_1, window_bounds = array<i64: 6, 196>}, {transform_indices = @transform_2, window_bounds = array<i64: 1, 6, 4, 4>}, {transform_indices = @transform_3, window_bounds = array<i64: 1, 6, 2>}]} {
    %c0 = arith.constant 0 : index
    %c0_0 = arith.constant 0 : index
    %c0_1 = arith.constant 0 : index
    %c0_2 = arith.constant 0 : index
    %0 = vector.load %arg1[%c0, %c0_0, %c0_1, %c0_2] : memref<1x16x11x11xbf16, #tpu.memory_space<vmem>>, vector<1x4x8x8xbf16>
    %1 = vector.shape_cast %0 : vector<1x4x8x8xbf16> to vector<4x8x8xbf16>
    %c0_3 = arith.constant 0 : index
    %c0_4 = arith.constant 0 : index
    %c0_5 = arith.constant 0 : index
    %2 = vector.load %arg5[%c0_3, %c0_4, %c0_5] : memref<196x8x8xbf16, #tpu.memory_space<vmem>>, vector<4x8x8xbf16>
    tpu.vector_store %arg5[%c0_3, %c0_4, %c0_5], %1 {strides = array<i32>} : memref<196x8x8xbf16, #tpu.memory_space<vmem>>, vector<4x8x8xbf16>,
    %c0_6 = arith.constant 0 : index
    %c4 = arith.constant 4 : index
    %c0_7 = arith.constant 0 : index
    %c0_8 = arith.constant 0 : index
    %3 = vector.load %arg1[%c0_6, %c4, %c0_7, %c0_8] : memref<1x16x11x11xbf16, #tpu.memory_space<vmem>>, vector<1x4x8x8xbf16>
    %4 = vector.shape_cast %3 : vector<1x4x8x8xbf16> to vector<4x8x8xbf16>
    %c4_9 = arith.constant 4 : index
    %c0_10 = arith.constant 0 : index
    %c0_11 = arith.constant 0 : index
    %5 = vector.load %arg5[%c4_9, %c0_10, %c0_11] : memref<196x8x8xbf16, #tpu.memory_space<vmem>>, vector<4x8x8xbf16>
    tpu.vector_store %arg5[%c4_9, %c0_10, %c0_11], %4 {strides = array<i32>} : memref<196x8x8xbf16, #tpu.memory_space<vmem>>, vector<4x8x8xbf16>,
    %c0_12 = arith.constant 0 : index
    %c0_13 = arith.constant 0 : index
    %c0_14 = arith.constant 0 : index
    %c1 = arith.constant 1 : index
    %6 = vector.load %arg1[%c0_12, %c0_13, %c0_14, %c1] : memref<1x16x11x11xbf16, #tpu.memory_space<vmem>>, vector<1x4x8x8xbf16>
    %7 = vector.shape_cast %6 : vector<1x4x8x8xbf16> to vector<4x8x8xbf16>
    %c8 = arith.constant 8 : index
    %c0_15 = arith.constant 0 : index
    %c0_16 = arith.constant 0 : index
    %8 = vector.load %arg5[%c8, %c0_15, %c0_16] : memref<196x8x8xbf16, #tpu.memory_space<vmem>>, vector<4x8x8xbf16>
    tpu.vector_store %arg5[%c8, %c0_15, %c0_16], %7 {strides = array<i32>} : memref<196x8x8xbf16, #tpu.memory_space<vmem>>, vector<4x8x8xbf16>,
    %c0_17 = arith.constant 0 : index
    %c4_18 = arith.constant 4 : index
    %c0_19 = arith.constant 0 : index
    %c1_20 = arith.constant 1 : index
    %9 = vector.load %arg1[%c0_17, %c4_18, %c0_19, %c1_20] : memref<1x16x11x11xbf16, #tpu.memory_space<vmem>>, vector<1x4x8x8xbf16>
    %10 = vector.shape_cast %9 : vector<1x4x8x8xbf16> to vector<4x8x8xbf16>
    %c12 = arith.constant 12 : index
    %c0_21 = arith.constant 0 : index
    %c0_22 = arith.constant 0 : index
    %11 = vector.load %arg5[%c12, %c0_21, %c0_22] : memref<196x8x8xbf16, #tpu.memory_space<vmem>>, vector<4x8x8xbf16>
    tpu.vector_store %arg5[%c12, %c0_21, %c0_22], %10 {strides = array<i32>} : memref<196x8x8xbf16, #tpu.memory_space<vmem>>, vector<4x8x8xbf16>,
    %c0_23 = arith.constant 0 : index
    %c0_24 = arith.constant 0 : index
    %c0_25 = arith.constant 0 : index
    %c2 = arith.constant 2 : index
    %12 = vector.load %arg1[%c0_23, %c0_24, %c0_25, %c2] : memref<1x16x11x11xbf16, #tpu.memory_space<vmem>>, vector<1x4x8x8xbf16>
    %13 = vector.shape_cast %12 : vector<1x4x8x8xbf16> to vector<4x8x8xbf16>
    %c16 = arith.constant 16 : index
    %c0_26 = arith.constant 0 : index
    %c0_27 = arith.constant 0 : index
    %14 = vector.load %arg5[%c16, %c0_26, %c0_27] : memref<196x8x8xbf16, #tpu.memory_space<vmem>>, vector<4x8x8xbf16>
    tpu.vector_store %arg5[%c16, %c0_26, %c0_27], %13 {strides = array<i32>} : memref<196x8x8xbf16, #tpu.memory_space<vmem>>, vector<4x8x8xbf16>,
    %c0_28 = arith.constant 0 : index
    %c4_29 = arith.constant 4 : index
    %c0_30 = arith.constant 0 : index
    %c2_31 = arith.constant 2 : index
    %15 = vector.load %arg1[%c0_28, %c4_29, %c0_30, %c2_31] : memref<1x16x11x11xbf16, #tpu.memory_space<vmem>>, vector<1x4x8x8xbf16>
    %16 = vector.shape_cast %15 : vector<1x4x8x8xbf16> to vector<4x8x8xbf16>
    %c20 = arith.constant 20 : index
    %c0_32 = arith.constant 0 : index
    %c0_33 = arith.constant 0 : index
    %17 = vector.load %arg5[%c20, %c0_32, %c0_33] : memref<196x8x8xbf16, #tpu.memory_space<vmem>>, vector<4x8x8xbf16>
    tpu.vector_store %arg5[%c20, %c0_32, %c0_33], %16 {strides = array<i32>} : memref<196x8x8xbf16, #tpu.memory_space<vmem>>, vector<4x8x8xbf16>,
    %c0_34 = arith.constant 0 : index
    %c0_35 = arith.constant 0 : index
    %c0_36 = arith.constant 0 : index
    %c3 = arith.constant 3 : index
    %18 = vector.load %arg1[%c0_34, %c0_35, %c0_36, %c3] : memref<1x16x11x11xbf16, #tpu.memory_space<vmem>>, vector<1x4x8x8xbf16>
    %19 = vector.shape_cast %18 : vector<1x4x8x8xbf16> to vector<4x8x8xbf16>
    %c24 = arith.constant 24 : index
    %c0_37 = arith.constant 0 : index
    %c0_38 = arith.constant 0 : index
    %20 = vector.load %arg5[%c24, %c0_37, %c0_38] : memref<196x8x8xbf16, #tpu.memory_space<vmem>>, vector<4x8x8xbf16>
    tpu.vector_store %arg5[%c24, %c0_37, %c0_38], %19 {strides = array<i32>} : memref<196x8x8xbf16, #tpu.memory_space<vmem>>, vector<4x8x8xbf16>,
    %c0_39 = arith.constant 0 : index
    %c8_40 = arith.constant 8 : index
    %c0_41 = arith.constant 0 : index
    %c0_42 = arith.constant 0 : index
    %21 = vector.load %arg1[%c0_39, %c8_40, %c0_41, %c0_42] : memref<1x16x11x11xbf16, #tpu.memory_space<vmem>>, vector<1x4x8x8xbf16>
    %22 = vector.shape_cast %21 : vector<1x4x8x8xbf16> to vector<4x8x8xbf16>
    %c28 = arith.constant 28 : index
    %c0_43 = arith.constant 0 : index
    %c0_44 = arith.constant 0 : index
    %23 = vector.load %arg5[%c28, %c0_43, %c0_44] : memref<196x8x8xbf16, #tpu.memory_space<vmem>>, vector<4x8x8xbf16>
    tpu.vector_store %arg5[%c28, %c0_43, %c0_44], %22 {strides = array<i32>} : memref<196x8x8xbf16, #tpu.memory_space<vmem>>, vector<4x8x8xbf16>,
    %c0_45 = arith.constant 0 : index
    %c12_46 = arith.constant 12 : index
    %c0_47 = arith.constant 0 : index
    %c0_48 = arith.constant 0 : index
    %24 = vector.load %arg1[%c0_45, %c12_46, %c0_47, %c0_48] : memref<1x16x11x11xbf16, #tpu.memory_space<vmem>>, vector<1x4x8x8xbf16>
    %25 = vector.shape_cast %24 : vector<1x4x8x8xbf16> to vector<4x8x8xbf16>
    %c32 = arith.constant 32 : index
    %c0_49 = arith.constant 0 : index
    %c0_50 = arith.constant 0 : index
    %26 = vector.load %arg5[%c32, %c0_49, %c0_50] : memref<196x8x8xbf16, #tpu.memory_space<vmem>>, vector<4x8x8xbf16>
    tpu.vector_store %arg5[%c32, %c0_49, %c0_50], %25 {strides = array<i32>} : memref<196x8x8xbf16, #tpu.memory_space<vmem>>, vector<4x8x8xbf16>,
    %c0_51 = arith.constant 0 : index
    %c8_52 = arith.constant 8 : index
    %c0_53 = arith.constant 0 : index
    %c1_54 = arith.constant 1 : index
    %27 = vector.load %arg1[%c0_51, %c8_52, %c0_53, %c1_54] : memref<1x16x11x11xbf16, #tpu.memory_space<vmem>>, vector<1x4x8x8xbf16>
    %28 = vector.shape_cast %27 : vector<1x4x8x8xbf16> to vector<4x8x8xbf16>
    %c36 = arith.constant 36 : index
    %c0_55 = arith.constant 0 : index
    %c0_56 = arith.constant 0 : index
    %29 = vector.load %arg5[%c36, %c0_55, %c0_56] : memref<196x8x8xbf16, #tpu.memory_space<vmem>>, vector<4x8x8xbf16>
    tpu.vector_store %arg5[%c36, %c0_55, %c0_56], %28 {strides = array<i32>} : memref<196x8x8xbf16, #tpu.memory_space<vmem>>, vector<4x8x8xbf16>,
    %c0_57 = arith.constant 0 : index
    %c12_58 = arith.constant 12 : index
    %c0_59 = arith.constant 0 : index
    %c1_60 = arith.constant 1 : index
    %30 = vector.load %arg1[%c0_57, %c12_58, %c0_59, %c1_60] : memref<1x16x11x11xbf16, #tpu.memory_space<vmem>>, vector<1x4x8x8xbf16>
    %31 = vector.shape_cast %30 : vector<1x4x8x8xbf16> to vector<4x8x8xbf16>
    %c40 = arith.constant 40 : index
    %c0_61 = arith.constant 0 : index
    %c0_62 = arith.constant 0 : index
    %32 = vector.load %arg5[%c40, %c0_61, %c0_62] : memref<196x8x8xbf16, #tpu.memory_space<vmem>>, vector<4x8x8xbf16>
    tpu.vector_store %arg5[%c40, %c0_61, %c0_62], %31 {strides = array<i32>} : memref<196x8x8xbf16, #tpu.memory_space<vmem>>, vector<4x8x8xbf16>,
    %c0_63 = arith.constant 0 : index
    %c8_64 = arith.constant 8 : index
    %c0_65 = arith.constant 0 : index
    %c2_66 = arith.constant 2 : index
    %33 = vector.load %arg1[%c0_63, %c8_64, %c0_65, %c2_66] : memref<1x16x11x11xbf16, #tpu.memory_space<vmem>>, vector<1x4x8x8xbf16>
    %34 = vector.shape_cast %33 : vector<1x4x8x8xbf16> to vector<4x8x8xbf16>
    %c44 = arith.constant 44 : index
    %c0_67 = arith.constant 0 : index
    %c0_68 = arith.constant 0 : index
    %35 = vector.load %arg5[%c44, %c0_67, %c0_68] : memref<196x8x8xbf16, #tpu.memory_space<vmem>>, vector<4x8x8xbf16>
    tpu.vector_store %arg5[%c44, %c0_67, %c0_68], %34 {strides = array<i32>} : memref<196x8x8xbf16, #tpu.memory_space<vmem>>, vector<4x8x8xbf16>,
    %c0_69 = arith.constant 0 : index
    %c12_70 = arith.constant 12 : index
    %c0_71 = arith.constant 0 : index
    %c2_72 = arith.constant 2 : index
    %36 = vector.load %arg1[%c0_69, %c12_70, %c0_71, %c2_72] : memref<1x16x11x11xbf16, #tpu.memory_space<vmem>>, vector<1x4x8x8xbf16>
    %37 = vector.shape_cast %36 : vector<1x4x8x8xbf16> to vector<4x8x8xbf16>
    %c48 = arith.constant 48 : index
    %c0_73 = arith.constant 0 : index
    %c0_74 = arith.constant 0 : index
    %38 = vector.load %arg5[%c48, %c0_73, %c0_74] : memref<196x8x8xbf16, #tpu.memory_space<vmem>>, vector<4x8x8xbf16>
    tpu.vector_store %arg5[%c48, %c0_73, %c0_74], %37 {strides = array<i32>} : memref<196x8x8xbf16, #tpu.memory_space<vmem>>, vector<4x8x8xbf16>,
    %c0_75 = arith.constant 0 : index
    %c8_76 = arith.constant 8 : index
    %c0_77 = arith.constant 0 : index
    %c3_78 = arith.constant 3 : index
    %39 = vector.load %arg1[%c0_75, %c8_76, %c0_77, %c3_78] : memref<1x16x11x11xbf16, #tpu.memory_space<vmem>>, vector<1x4x8x8xbf16>
    %40 = vector.shape_cast %39 : vector<1x4x8x8xbf16> to vector<4x8x8xbf16>
    %c52 = arith.constant 52 : index
    %c0_79 = arith.constant 0 : index
    %c0_80 = arith.constant 0 : index
    %41 = vector.load %arg5[%c52, %c0_79, %c0_80] : memref<196x8x8xbf16, #tpu.memory_space<vmem>>, vector<4x8x8xbf16>
    tpu.vector_store %arg5[%c52, %c0_79, %c0_80], %40 {strides = array<i32>} : memref<196x8x8xbf16, #tpu.memory_space<vmem>>, vector<4x8x8xbf16>,
    %c0_81 = arith.constant 0 : index
    %c0_82 = arith.constant 0 : index
    %c1_83 = arith.constant 1 : index
    %c0_84 = arith.constant 0 : index
    %42 = vector.load %arg1[%c0_81, %c0_82, %c1_83, %c0_84] : memref<1x16x11x11xbf16, #tpu.memory_space<vmem>>, vector<1x4x8x8xbf16>
    %43 = vector.shape_cast %42 : vector<1x4x8x8xbf16> to vector<4x8x8xbf16>
    %c56 = arith.constant 56 : index
    %c0_85 = arith.constant 0 : index
    %c0_86 = arith.constant 0 : index
    %44 = vector.load %arg5[%c56, %c0_85, %c0_86] : memref<196x8x8xbf16, #tpu.memory_space<vmem>>, vector<4x8x8xbf16>
    tpu.vector_store %arg5[%c56, %c0_85, %c0_86], %43 {strides = array<i32>} : memref<196x8x8xbf16, #tpu.memory_space<vmem>>, vector<4x8x8xbf16>,
    %c0_87 = arith.constant 0 : index
    %c4_88 = arith.constant 4 : index
    %c1_89 = arith.constant 1 : index
    %c0_90 = arith.constant 0 : index
    %45 = vector.load %arg1[%c0_87, %c4_88, %c1_89, %c0_90] : memref<1x16x11x11xbf16, #tpu.memory_space<vmem>>, vector<1x4x8x8xbf16>
    %46 = vector.shape_cast %45 : vector<1x4x8x8xbf16> to vector<4x8x8xbf16>
    %c60 = arith.constant 60 : index
    %c0_91 = arith.constant 0 : index
    %c0_92 = arith.constant 0 : index
    %47 = vector.load %arg5[%c60, %c0_91, %c0_92] : memref<196x8x8xbf16, #tpu.memory_space<vmem>>, vector<4x8x8xbf16>
    tpu.vector_store %arg5[%c60, %c0_91, %c0_92], %46 {strides = array<i32>} : memref<196x8x8xbf16, #tpu.memory_space<vmem>>, vector<4x8x8xbf16>,
    %c0_93 = arith.constant 0 : index
    %c0_94 = arith.constant 0 : index
    %c1_95 = arith.constant 1 : index
    %c1_96 = arith.constant 1 : index
    %48 = vector.load %arg1[%c0_93, %c0_94, %c1_95, %c1_96] : memref<1x16x11x11xbf16, #tpu.memory_space<vmem>>, vector<1x4x8x8xbf16>
    %49 = vector.shape_cast %48 : vector<1x4x8x8xbf16> to vector<4x8x8xbf16>
    %c64 = arith.constant 64 : index
    %c0_97 = arith.constant 0 : index
    %c0_98 = arith.constant 0 : index
    %50 = vector.load %arg5[%c64, %c0_97, %c0_98] : memref<196x8x8xbf16, #tpu.memory_space<vmem>>, vector<4x8x8xbf16>
    tpu.vector_store %arg5[%c64, %c0_97, %c0_98], %49 {strides = array<i32>} : memref<196x8x8xbf16, #tpu.memory_space<vmem>>, vector<4x8x8xbf16>,
    %c0_99 = arith.constant 0 : index
    %c4_100 = arith.constant 4 : index
    %c1_101 = arith.constant 1 : index
    %c1_102 = arith.constant 1 : index
    %51 = vector.load %arg1[%c0_99, %c4_100, %c1_101, %c1_102] : memref<1x16x11x11xbf16, #tpu.memory_space<vmem>>, vector<1x4x8x8xbf16>
    %52 = vector.shape_cast %51 : vector<1x4x8x8xbf16> to vector<4x8x8xbf16>
    %c68 = arith.constant 68 : index
    %c0_103 = arith.constant 0 : index
    %c0_104 = arith.constant 0 : index
    %53 = vector.load %arg5[%c68, %c0_103, %c0_104] : memref<196x8x8xbf16, #tpu.memory_space<vmem>>, vector<4x8x8xbf16>
    tpu.vector_store %arg5[%c68, %c0_103, %c0_104], %52 {strides = array<i32>} : memref<196x8x8xbf16, #tpu.memory_space<vmem>>, vector<4x8x8xbf16>,
    %c0_105 = arith.constant 0 : index
    %c0_106 = arith.constant 0 : index
    %c1_107 = arith.constant 1 : index
    %c2_108 = arith.constant 2 : index
    %54 = vector.load %arg1[%c0_105, %c0_106, %c1_107, %c2_108] : memref<1x16x11x11xbf16, #tpu.memory_space<vmem>>, vector<1x4x8x8xbf16>
    %55 = vector.shape_cast %54 : vector<1x4x8x8xbf16> to vector<4x8x8xbf16>
    %c72 = arith.constant 72 : index
    %c0_109 = arith.constant 0 : index
    %c0_110 = arith.constant 0 : index
    %56 = vector.load %arg5[%c72, %c0_109, %c0_110] : memref<196x8x8xbf16, #tpu.memory_space<vmem>>, vector<4x8x8xbf16>
    tpu.vector_store %arg5[%c72, %c0_109, %c0_110], %55 {strides = array<i32>} : memref<196x8x8xbf16, #tpu.memory_space<vmem>>, vector<4x8x8xbf16>,
    %c0_111 = arith.constant 0 : index
    %c4_112 = arith.constant 4 : index
    %c1_113 = arith.constant 1 : index
    %c2_114 = arith.constant 2 : index
    %57 = vector.load %arg1[%c0_111, %c4_112, %c1_113, %c2_114] : memref<1x16x11x11xbf16, #tpu.memory_space<vmem>>, vector<1x4x8x8xbf16>
    %58 = vector.shape_cast %57 : vector<1x4x8x8xbf16> to vector<4x8x8xbf16>
    %c76 = arith.constant 76 : index
    %c0_115 = arith.constant 0 : index
    %c0_116 = arith.constant 0 : index
    %59 = vector.load %arg5[%c76, %c0_115, %c0_116] : memref<196x8x8xbf16, #tpu.memory_space<vmem>>, vector<4x8x8xbf16>
    tpu.vector_store %arg5[%c76, %c0_115, %c0_116], %58 {strides = array<i32>} : memref<196x8x8xbf16, #tpu.memory_space<vmem>>, vector<4x8x8xbf16>,
    %c0_117 = arith.constant 0 : index
    %c0_118 = arith.constant 0 : index
    %c1_119 = arith.constant 1 : index
    %c3_120 = arith.constant 3 : index
    %60 = vector.load %arg1[%c0_117, %c0_118, %c1_119, %c3_120] : memref<1x16x11x11xbf16, #tpu.memory_space<vmem>>, vector<1x4x8x8xbf16>
    %61 = vector.shape_cast %60 : vector<1x4x8x8xbf16> to vector<4x8x8xbf16>
    %c80 = arith.constant 80 : index
    %c0_121 = arith.constant 0 : index
    %c0_122 = arith.constant 0 : index
    %62 = vector.load %arg5[%c80, %c0_121, %c0_122] : memref<196x8x8xbf16, #tpu.memory_space<vmem>>, vector<4x8x8xbf16>
    tpu.vector_store %arg5[%c80, %c0_121, %c0_122], %61 {strides = array<i32>} : memref<196x8x8xbf16, #tpu.memory_space<vmem>>, vector<4x8x8xbf16>,
    %c0_123 = arith.constant 0 : index
    %c8_124 = arith.constant 8 : index
    %c1_125 = arith.constant 1 : index
    %c0_126 = arith.constant 0 : index
    %63 = vector.load %arg1[%c0_123, %c8_124, %c1_125, %c0_126] : memref<1x16x11x11xbf16, #tpu.memory_space<vmem>>, vector<1x4x8x8xbf16>
    %64 = vector.shape_cast %63 : vector<1x4x8x8xbf16> to vector<4x8x8xbf16>
    %c84 = arith.constant 84 : index
    %c0_127 = arith.constant 0 : index
    %c0_128 = arith.constant 0 : index
    %65 = vector.load %arg5[%c84, %c0_127, %c0_128] : memref<196x8x8xbf16, #tpu.memory_space<vmem>>, vector<4x8x8xbf16>
    tpu.vector_store %arg5[%c84, %c0_127, %c0_128], %64 {strides = array<i32>} : memref<196x8x8xbf16, #tpu.memory_space<vmem>>, vector<4x8x8xbf16>,
    %c0_129 = arith.constant 0 : index
    %c12_130 = arith.constant 12 : index
    %c1_131 = arith.constant 1 : index
    %c0_132 = arith.constant 0 : index
    %66 = vector.load %arg1[%c0_129, %c12_130, %c1_131, %c0_132] : memref<1x16x11x11xbf16, #tpu.memory_space<vmem>>, vector<1x4x8x8xbf16>
    %67 = vector.shape_cast %66 : vector<1x4x8x8xbf16> to vector<4x8x8xbf16>
    %c88 = arith.constant 88 : index
    %c0_133 = arith.constant 0 : index
    %c0_134 = arith.constant 0 : index
    %68 = vector.load %arg5[%c88, %c0_133, %c0_134] : memref<196x8x8xbf16, #tpu.memory_space<vmem>>, vector<4x8x8xbf16>
    tpu.vector_store %arg5[%c88, %c0_133, %c0_134], %67 {strides = array<i32>} : memref<196x8x8xbf16, #tpu.memory_space<vmem>>, vector<4x8x8xbf16>,
    %c0_135 = arith.constant 0 : index
    %c8_136 = arith.constant 8 : index
    %c1_137 = arith.constant 1 : index
    %c1_138 = arith.constant 1 : index
    %69 = vector.load %arg1[%c0_135, %c8_136, %c1_137, %c1_138] : memref<1x16x11x11xbf16, #tpu.memory_space<vmem>>, vector<1x4x8x8xbf16>
    %70 = vector.shape_cast %69 : vector<1x4x8x8xbf16> to vector<4x8x8xbf16>
    %c92 = arith.constant 92 : index
    %c0_139 = arith.constant 0 : index
    %c0_140 = arith.constant 0 : index
    %71 = vector.load %arg5[%c92, %c0_139, %c0_140] : memref<196x8x8xbf16, #tpu.memory_space<vmem>>, vector<4x8x8xbf16>
    tpu.vector_store %arg5[%c92, %c0_139, %c0_140], %70 {strides = array<i32>} : memref<196x8x8xbf16, #tpu.memory_space<vmem>>, vector<4x8x8xbf16>,
    %c0_141 = arith.constant 0 : index
    %c12_142 = arith.constant 12 : index
    %c1_143 = arith.constant 1 : index
    %c1_144 = arith.constant 1 : index
    %72 = vector.load %arg1[%c0_141, %c12_142, %c1_143, %c1_144] : memref<1x16x11x11xbf16, #tpu.memory_space<vmem>>, vector<1x4x8x8xbf16>
    %73 = vector.shape_cast %72 : vector<1x4x8x8xbf16> to vector<4x8x8xbf16>
    %c96 = arith.constant 96 : index
    %c0_145 = arith.constant 0 : index
    %c0_146 = arith.constant 0 : index
    %74 = vector.load %arg5[%c96, %c0_145, %c0_146] : memref<196x8x8xbf16, #tpu.memory_space<vmem>>, vector<4x8x8xbf16>
    tpu.vector_store %arg5[%c96, %c0_145, %c0_146], %73 {strides = array<i32>} : memref<196x8x8xbf16, #tpu.memory_space<vmem>>, vector<4x8x8xbf16>,
    %c0_147 = arith.constant 0 : index
    %c8_148 = arith.constant 8 : index
    %c1_149 = arith.constant 1 : index
    %c2_150 = arith.constant 2 : index
    %75 = vector.load %arg1[%c0_147, %c8_148, %c1_149, %c2_150] : memref<1x16x11x11xbf16, #tpu.memory_space<vmem>>, vector<1x4x8x8xbf16>
    %76 = vector.shape_cast %75 : vector<1x4x8x8xbf16> to vector<4x8x8xbf16>
    %c100 = arith.constant 100 : index
    %c0_151 = arith.constant 0 : index
    %c0_152 = arith.constant 0 : index
    %77 = vector.load %arg5[%c100, %c0_151, %c0_152] : memref<196x8x8xbf16, #tpu.memory_space<vmem>>, vector<4x8x8xbf16>
    tpu.vector_store %arg5[%c100, %c0_151, %c0_152], %76 {strides = array<i32>} : memref<196x8x8xbf16, #tpu.memory_space<vmem>>, vector<4x8x8xbf16>,
    %c0_153 = arith.constant 0 : index
    %c12_154 = arith.constant 12 : index
    %c1_155 = arith.constant 1 : index
    %c2_156 = arith.constant 2 : index
    %78 = vector.load %arg1[%c0_153, %c12_154, %c1_155, %c2_156] : memref<1x16x11x11xbf16, #tpu.memory_space<vmem>>, vector<1x4x8x8xbf16>
    %79 = vector.shape_cast %78 : vector<1x4x8x8xbf16> to vector<4x8x8xbf16>
    %c104 = arith.constant 104 : index
    %c0_157 = arith.constant 0 : index
    %c0_158 = arith.constant 0 : index
    %80 = vector.load %arg5[%c104, %c0_157, %c0_158] : memref<196x8x8xbf16, #tpu.memory_space<vmem>>, vector<4x8x8xbf16>
    tpu.vector_store %arg5[%c104, %c0_157, %c0_158], %79 {strides = array<i32>} : memref<196x8x8xbf16, #tpu.memory_space<vmem>>, vector<4x8x8xbf16>,
    %c0_159 = arith.constant 0 : index
    %c8_160 = arith.constant 8 : index
    %c1_161 = arith.constant 1 : index
    %c3_162 = arith.constant 3 : index
    %81 = vector.load %arg1[%c0_159, %c8_160, %c1_161, %c3_162] : memref<1x16x11x11xbf16, #tpu.memory_space<vmem>>, vector<1x4x8x8xbf16>
    %82 = vector.shape_cast %81 : vector<1x4x8x8xbf16> to vector<4x8x8xbf16>
    %c108 = arith.constant 108 : index
    %c0_163 = arith.constant 0 : index
    %c0_164 = arith.constant 0 : index
    %83 = vector.load %arg5[%c108, %c0_163, %c0_164] : memref<196x8x8xbf16, #tpu.memory_space<vmem>>, vector<4x8x8xbf16>
    tpu.vector_store %arg5[%c108, %c0_163, %c0_164], %82 {strides = array<i32>} : memref<196x8x8xbf16, #tpu.memory_space<vmem>>, vector<4x8x8xbf16>,
    %c0_165 = arith.constant 0 : index
    %c0_166 = arith.constant 0 : index
    %c2_167 = arith.constant 2 : index
    %c0_168 = arith.constant 0 : index
    %84 = vector.load %arg1[%c0_165, %c0_166, %c2_167, %c0_168] : memref<1x16x11x11xbf16, #tpu.memory_space<vmem>>, vector<1x4x8x8xbf16>
    %85 = vector.shape_cast %84 : vector<1x4x8x8xbf16> to vector<4x8x8xbf16>
    %c112 = arith.constant 112 : index
    %c0_169 = arith.constant 0 : index
    %c0_170 = arith.constant 0 : index
    %86 = vector.load %arg5[%c112, %c0_169, %c0_170] : memref<196x8x8xbf16, #tpu.memory_space<vmem>>, vector<4x8x8xbf16>
    tpu.vector_store %arg5[%c112, %c0_169, %c0_170], %85 {strides = array<i32>} : memref<196x8x8xbf16, #tpu.memory_space<vmem>>, vector<4x8x8xbf16>,
    %c0_171 = arith.constant 0 : index
    %c4_172 = arith.constant 4 : index
    %c2_173 = arith.constant 2 : index
    %c0_174 = arith.constant 0 : index
    %87 = vector.load %arg1[%c0_171, %c4_172, %c2_173, %c0_174] : memref<1x16x11x11xbf16, #tpu.memory_space<vmem>>, vector<1x4x8x8xbf16>
    %88 = vector.shape_cast %87 : vector<1x4x8x8xbf16> to vector<4x8x8xbf16>
    %c116 = arith.constant 116 : index
    %c0_175 = arith.constant 0 : index
    %c0_176 = arith.constant 0 : index
    %89 = vector.load %arg5[%c116, %c0_175, %c0_176] : memref<196x8x8xbf16, #tpu.memory_space<vmem>>, vector<4x8x8xbf16>
    tpu.vector_store %arg5[%c116, %c0_175, %c0_176], %88 {strides = array<i32>} : memref<196x8x8xbf16, #tpu.memory_space<vmem>>, vector<4x8x8xbf16>,
    %c0_177 = arith.constant 0 : index
    %c0_178 = arith.constant 0 : index
    %c2_179 = arith.constant 2 : index
    %c1_180 = arith.constant 1 : index
    %90 = vector.load %arg1[%c0_177, %c0_178, %c2_179, %c1_180] : memref<1x16x11x11xbf16, #tpu.memory_space<vmem>>, vector<1x4x8x8xbf16>
    %91 = vector.shape_cast %90 : vector<1x4x8x8xbf16> to vector<4x8x8xbf16>
    %c120 = arith.constant 120 : index
    %c0_181 = arith.constant 0 : index
    %c0_182 = arith.constant 0 : index
    %92 = vector.load %arg5[%c120, %c0_181, %c0_182] : memref<196x8x8xbf16, #tpu.memory_space<vmem>>, vector<4x8x8xbf16>
    tpu.vector_store %arg5[%c120, %c0_181, %c0_182], %91 {strides = array<i32>} : memref<196x8x8xbf16, #tpu.memory_space<vmem>>, vector<4x8x8xbf16>,
    %c0_183 = arith.constant 0 : index
    %c4_184 = arith.constant 4 : index
    %c2_185 = arith.constant 2 : index
    %c1_186 = arith.constant 1 : index
    %93 = vector.load %arg1[%c0_183, %c4_184, %c2_185, %c1_186] : memref<1x16x11x11xbf16, #tpu.memory_space<vmem>>, vector<1x4x8x8xbf16>
    %94 = vector.shape_cast %93 : vector<1x4x8x8xbf16> to vector<4x8x8xbf16>
    %c124 = arith.constant 124 : index
    %c0_187 = arith.constant 0 : index
    %c0_188 = arith.constant 0 : index
    %95 = vector.load %arg5[%c124, %c0_187, %c0_188] : memref<196x8x8xbf16, #tpu.memory_space<vmem>>, vector<4x8x8xbf16>
    tpu.vector_store %arg5[%c124, %c0_187, %c0_188], %94 {strides = array<i32>} : memref<196x8x8xbf16, #tpu.memory_space<vmem>>, vector<4x8x8xbf16>,
    %c0_189 = arith.constant 0 : index
    %c0_190 = arith.constant 0 : index
    %c2_191 = arith.constant 2 : index
    %c2_192 = arith.constant 2 : index
    %96 = vector.load %arg1[%c0_189, %c0_190, %c2_191, %c2_192] : memref<1x16x11x11xbf16, #tpu.memory_space<vmem>>, vector<1x4x8x8xbf16>
    %97 = vector.shape_cast %96 : vector<1x4x8x8xbf16> to vector<4x8x8xbf16>
    %c128 = arith.constant 128 : index
    %c0_193 = arith.constant 0 : index
    %c0_194 = arith.constant 0 : index
    %98 = vector.load %arg5[%c128, %c0_193, %c0_194] : memref<196x8x8xbf16, #tpu.memory_space<vmem>>, vector<4x8x8xbf16>
    tpu.vector_store %arg5[%c128, %c0_193, %c0_194], %97 {strides = array<i32>} : memref<196x8x8xbf16, #tpu.memory_space<vmem>>, vector<4x8x8xbf16>,
    %c0_195 = arith.constant 0 : index
    %c4_196 = arith.constant 4 : index
    %c2_197 = arith.constant 2 : index
    %c2_198 = arith.constant 2 : index
    %99 = vector.load %arg1[%c0_195, %c4_196, %c2_197, %c2_198] : memref<1x16x11x11xbf16, #tpu.memory_space<vmem>>, vector<1x4x8x8xbf16>
    %100 = vector.shape_cast %99 : vector<1x4x8x8xbf16> to vector<4x8x8xbf16>
    %c132 = arith.constant 132 : index
    %c0_199 = arith.constant 0 : index
    %c0_200 = arith.constant 0 : index
    %101 = vector.load %arg5[%c132, %c0_199, %c0_200] : memref<196x8x8xbf16, #tpu.memory_space<vmem>>, vector<4x8x8xbf16>
    tpu.vector_store %arg5[%c132, %c0_199, %c0_200], %100 {strides = array<i32>} : memref<196x8x8xbf16, #tpu.memory_space<vmem>>, vector<4x8x8xbf16>,
    %c0_201 = arith.constant 0 : index
    %c0_202 = arith.constant 0 : index
    %c2_203 = arith.constant 2 : index
    %c3_204 = arith.constant 3 : index
    %102 = vector.load %arg1[%c0_201, %c0_202, %c2_203, %c3_204] : memref<1x16x11x11xbf16, #tpu.memory_space<vmem>>, vector<1x4x8x8xbf16>
    %103 = vector.shape_cast %102 : vector<1x4x8x8xbf16> to vector<4x8x8xbf16>
    %c136 = arith.constant 136 : index
    %c0_205 = arith.constant 0 : index
    %c0_206 = arith.constant 0 : index
    %104 = vector.load %arg5[%c136, %c0_205, %c0_206] : memref<196x8x8xbf16, #tpu.memory_space<vmem>>, vector<4x8x8xbf16>
    tpu.vector_store %arg5[%c136, %c0_205, %c0_206], %103 {strides = array<i32>} : memref<196x8x8xbf16, #tpu.memory_space<vmem>>, vector<4x8x8xbf16>,
    %c0_207 = arith.constant 0 : index
    %c8_208 = arith.constant 8 : index
    %c2_209 = arith.constant 2 : index
    %c0_210 = arith.constant 0 : index
    %105 = vector.load %arg1[%c0_207, %c8_208, %c2_209, %c0_210] : memref<1x16x11x11xbf16, #tpu.memory_space<vmem>>, vector<1x4x8x8xbf16>
    %106 = vector.shape_cast %105 : vector<1x4x8x8xbf16> to vector<4x8x8xbf16>
    %c140 = arith.constant 140 : index
    %c0_211 = arith.constant 0 : index
    %c0_212 = arith.constant 0 : index
    %107 = vector.load %arg5[%c140, %c0_211, %c0_212] : memref<196x8x8xbf16, #tpu.memory_space<vmem>>, vector<4x8x8xbf16>
    tpu.vector_store %arg5[%c140, %c0_211, %c0_212], %106 {strides = array<i32>} : memref<196x8x8xbf16, #tpu.memory_space<vmem>>, vector<4x8x8xbf16>,
    %c0_213 = arith.constant 0 : index
    %c12_214 = arith.constant 12 : index
    %c2_215 = arith.constant 2 : index
    %c0_216 = arith.constant 0 : index
    %108 = vector.load %arg1[%c0_213, %c12_214, %c2_215, %c0_216] : memref<1x16x11x11xbf16, #tpu.memory_space<vmem>>, vector<1x4x8x8xbf16>
    %109 = vector.shape_cast %108 : vector<1x4x8x8xbf16> to vector<4x8x8xbf16>
    %c144 = arith.constant 144 : index
    %c0_217 = arith.constant 0 : index
    %c0_218 = arith.constant 0 : index
    %110 = vector.load %arg5[%c144, %c0_217, %c0_218] : memref<196x8x8xbf16, #tpu.memory_space<vmem>>, vector<4x8x8xbf16>
    tpu.vector_store %arg5[%c144, %c0_217, %c0_218], %109 {strides = array<i32>} : memref<196x8x8xbf16, #tpu.memory_space<vmem>>, vector<4x8x8xbf16>,
    %c0_219 = arith.constant 0 : index
    %c8_220 = arith.constant 8 : index
    %c2_221 = arith.constant 2 : index
    %c1_222 = arith.constant 1 : index
    %111 = vector.load %arg1[%c0_219, %c8_220, %c2_221, %c1_222] : memref<1x16x11x11xbf16, #tpu.memory_space<vmem>>, vector<1x4x8x8xbf16>
    %112 = vector.shape_cast %111 : vector<1x4x8x8xbf16> to vector<4x8x8xbf16>
    %c148 = arith.constant 148 : index
    %c0_223 = arith.constant 0 : index
    %c0_224 = arith.constant 0 : index
    %113 = vector.load %arg5[%c148, %c0_223, %c0_224] : memref<196x8x8xbf16, #tpu.memory_space<vmem>>, vector<4x8x8xbf16>
    tpu.vector_store %arg5[%c148, %c0_223, %c0_224], %112 {strides = array<i32>} : memref<196x8x8xbf16, #tpu.memory_space<vmem>>, vector<4x8x8xbf16>,
    %c0_225 = arith.constant 0 : index
    %c12_226 = arith.constant 12 : index
    %c2_227 = arith.constant 2 : index
    %c1_228 = arith.constant 1 : index
    %114 = vector.load %arg1[%c0_225, %c12_226, %c2_227, %c1_228] : memref<1x16x11x11xbf16, #tpu.memory_space<vmem>>, vector<1x4x8x8xbf16>
    %115 = vector.shape_cast %114 : vector<1x4x8x8xbf16> to vector<4x8x8xbf16>
    %c152 = arith.constant 152 : index
    %c0_229 = arith.constant 0 : index
    %c0_230 = arith.constant 0 : index
    %116 = vector.load %arg5[%c152, %c0_229, %c0_230] : memref<196x8x8xbf16, #tpu.memory_space<vmem>>, vector<4x8x8xbf16>
    tpu.vector_store %arg5[%c152, %c0_229, %c0_230], %115 {strides = array<i32>} : memref<196x8x8xbf16, #tpu.memory_space<vmem>>, vector<4x8x8xbf16>,
    %c0_231 = arith.constant 0 : index
    %c8_232 = arith.constant 8 : index
    %c2_233 = arith.constant 2 : index
    %c2_234 = arith.constant 2 : index
    %117 = vector.load %arg1[%c0_231, %c8_232, %c2_233, %c2_234] : memref<1x16x11x11xbf16, #tpu.memory_space<vmem>>, vector<1x4x8x8xbf16>
    %118 = vector.shape_cast %117 : vector<1x4x8x8xbf16> to vector<4x8x8xbf16>
    %c156 = arith.constant 156 : index
    %c0_235 = arith.constant 0 : index
    %c0_236 = arith.constant 0 : index
    %119 = vector.load %arg5[%c156, %c0_235, %c0_236] : memref<196x8x8xbf16, #tpu.memory_space<vmem>>, vector<4x8x8xbf16>
    tpu.vector_store %arg5[%c156, %c0_235, %c0_236], %118 {strides = array<i32>} : memref<196x8x8xbf16, #tpu.memory_space<vmem>>, vector<4x8x8xbf16>,
    %c0_237 = arith.constant 0 : index
    %c12_238 = arith.constant 12 : index
    %c2_239 = arith.constant 2 : index
    %c2_240 = arith.constant 2 : index
    %120 = vector.load %arg1[%c0_237, %c12_238, %c2_239, %c2_240] : memref<1x16x11x11xbf16, #tpu.memory_space<vmem>>, vector<1x4x8x8xbf16>
    %121 = vector.shape_cast %120 : vector<1x4x8x8xbf16> to vector<4x8x8xbf16>
    %c160 = arith.constant 160 : index
    %c0_241 = arith.constant 0 : index
    %c0_242 = arith.constant 0 : index
    %122 = vector.load %arg5[%c160, %c0_241, %c0_242] : memref<196x8x8xbf16, #tpu.memory_space<vmem>>, vector<4x8x8xbf16>
    tpu.vector_store %arg5[%c160, %c0_241, %c0_242], %121 {strides = array<i32>} : memref<196x8x8xbf16, #tpu.memory_space<vmem>>, vector<4x8x8xbf16>,
    %c0_243 = arith.constant 0 : index
    %c8_244 = arith.constant 8 : index
    %c2_245 = arith.constant 2 : index
    %c3_246 = arith.constant 3 : index
    %123 = vector.load %arg1[%c0_243, %c8_244, %c2_245, %c3_246] : memref<1x16x11x11xbf16, #tpu.memory_space<vmem>>, vector<1x4x8x8xbf16>
    %124 = vector.shape_cast %123 : vector<1x4x8x8xbf16> to vector<4x8x8xbf16>
    %c164 = arith.constant 164 : index
    %c0_247 = arith.constant 0 : index
    %c0_248 = arith.constant 0 : index
    %125 = vector.load %arg5[%c164, %c0_247, %c0_248] : memref<196x8x8xbf16, #tpu.memory_space<vmem>>, vector<4x8x8xbf16>
    tpu.vector_store %arg5[%c164, %c0_247, %c0_248], %124 {strides = array<i32>} : memref<196x8x8xbf16, #tpu.memory_space<vmem>>, vector<4x8x8xbf16>,
    %c0_249 = arith.constant 0 : index
    %c0_250 = arith.constant 0 : index
    %c3_251 = arith.constant 3 : index
    %c0_252 = arith.constant 0 : index
    %126 = vector.load %arg1[%c0_249, %c0_250, %c3_251, %c0_252] : memref<1x16x11x11xbf16, #tpu.memory_space<vmem>>, vector<1x4x8x8xbf16>
    %127 = vector.shape_cast %126 : vector<1x4x8x8xbf16> to vector<4x8x8xbf16>
    %c168 = arith.constant 168 : index
    %c0_253 = arith.constant 0 : index
    %c0_254 = arith.constant 0 : index
    %128 = vector.load %arg5[%c168, %c0_253, %c0_254] : memref<196x8x8xbf16, #tpu.memory_space<vmem>>, vector<4x8x8xbf16>
    tpu.vector_store %arg5[%c168, %c0_253, %c0_254], %127 {strides = array<i32>} : memref<196x8x8xbf16, #tpu.memory_space<vmem>>, vector<4x8x8xbf16>,
    %c0_255 = arith.constant 0 : index
    %c4_256 = arith.constant 4 : index
    %c3_257 = arith.constant 3 : index
    %c0_258 = arith.constant 0 : index
    %129 = vector.load %arg1[%c0_255, %c4_256, %c3_257, %c0_258] : memref<1x16x11x11xbf16, #tpu.memory_space<vmem>>, vector<1x4x8x8xbf16>
    %130 = vector.shape_cast %129 : vector<1x4x8x8xbf16> to vector<4x8x8xbf16>
    %c172 = arith.constant 172 : index
    %c0_259 = arith.constant 0 : index
    %c0_260 = arith.constant 0 : index
    %131 = vector.load %arg5[%c172, %c0_259, %c0_260] : memref<196x8x8xbf16, #tpu.memory_space<vmem>>, vector<4x8x8xbf16>
    tpu.vector_store %arg5[%c172, %c0_259, %c0_260], %130 {strides = array<i32>} : memref<196x8x8xbf16, #tpu.memory_space<vmem>>, vector<4x8x8xbf16>,
    %c0_261 = arith.constant 0 : index
    %c0_262 = arith.constant 0 : index
    %c3_263 = arith.constant 3 : index
    %c1_264 = arith.constant 1 : index
    %132 = vector.load %arg1[%c0_261, %c0_262, %c3_263, %c1_264] : memref<1x16x11x11xbf16, #tpu.memory_space<vmem>>, vector<1x4x8x8xbf16>
    %133 = vector.shape_cast %132 : vector<1x4x8x8xbf16> to vector<4x8x8xbf16>
    %c176 = arith.constant 176 : index
    %c0_265 = arith.constant 0 : index
    %c0_266 = arith.constant 0 : index
    %134 = vector.load %arg5[%c176, %c0_265, %c0_266] : memref<196x8x8xbf16, #tpu.memory_space<vmem>>, vector<4x8x8xbf16>
    tpu.vector_store %arg5[%c176, %c0_265, %c0_266], %133 {strides = array<i32>} : memref<196x8x8xbf16, #tpu.memory_space<vmem>>, vector<4x8x8xbf16>,
    %c0_267 = arith.constant 0 : index
    %c4_268 = arith.constant 4 : index
    %c3_269 = arith.constant 3 : index
    %c1_270 = arith.constant 1 : index
    %135 = vector.load %arg1[%c0_267, %c4_268, %c3_269, %c1_270] : memref<1x16x11x11xbf16, #tpu.memory_space<vmem>>, vector<1x4x8x8xbf16>
    %136 = vector.shape_cast %135 : vector<1x4x8x8xbf16> to vector<4x8x8xbf16>
    %c180 = arith.constant 180 : index
    %c0_271 = arith.constant 0 : index
    %c0_272 = arith.constant 0 : index
    %137 = vector.load %arg5[%c180, %c0_271, %c0_272] : memref<196x8x8xbf16, #tpu.memory_space<vmem>>, vector<4x8x8xbf16>
    tpu.vector_store %arg5[%c180, %c0_271, %c0_272], %136 {strides = array<i32>} : memref<196x8x8xbf16, #tpu.memory_space<vmem>>, vector<4x8x8xbf16>,
    %c0_273 = arith.constant 0 : index
    %c0_274 = arith.constant 0 : index
    %c3_275 = arith.constant 3 : index
    %c2_276 = arith.constant 2 : index
    %138 = vector.load %arg1[%c0_273, %c0_274, %c3_275, %c2_276] : memref<1x16x11x11xbf16, #tpu.memory_space<vmem>>, vector<1x4x8x8xbf16>
    %139 = vector.shape_cast %138 : vector<1x4x8x8xbf16> to vector<4x8x8xbf16>
    %c184 = arith.constant 184 : index
    %c0_277 = arith.constant 0 : index
    %c0_278 = arith.constant 0 : index
    %140 = vector.load %arg5[%c184, %c0_277, %c0_278] : memref<196x8x8xbf16, #tpu.memory_space<vmem>>, vector<4x8x8xbf16>
    tpu.vector_store %arg5[%c184, %c0_277, %c0_278], %139 {strides = array<i32>} : memref<196x8x8xbf16, #tpu.memory_space<vmem>>, vector<4x8x8xbf16>,
    %c0_279 = arith.constant 0 : index
    %c4_280 = arith.constant 4 : index
    %c3_281 = arith.constant 3 : index
    %c2_282 = arith.constant 2 : index
    %141 = vector.load %arg1[%c0_279, %c4_280, %c3_281, %c2_282] : memref<1x16x11x11xbf16, #tpu.memory_space<vmem>>, vector<1x4x8x8xbf16>
    %142 = vector.shape_cast %141 : vector<1x4x8x8xbf16> to vector<4x8x8xbf16>
    %c188 = arith.constant 188 : index
    %c0_283 = arith.constant 0 : index
    %c0_284 = arith.constant 0 : index
    %143 = vector.load %arg5[%c188, %c0_283, %c0_284] : memref<196x8x8xbf16, #tpu.memory_space<vmem>>, vector<4x8x8xbf16>
    tpu.vector_store %arg5[%c188, %c0_283, %c0_284], %142 {strides = array<i32>} : memref<196x8x8xbf16, #tpu.memory_space<vmem>>, vector<4x8x8xbf16>,
    %c0_285 = arith.constant 0 : index
    %c0_286 = arith.constant 0 : index
    %c3_287 = arith.constant 3 : index
    %c3_288 = arith.constant 3 : index
    %144 = vector.load %arg1[%c0_285, %c0_286, %c3_287, %c3_288] : memref<1x16x11x11xbf16, #tpu.memory_space<vmem>>, vector<1x4x8x8xbf16>
    %145 = vector.shape_cast %144 : vector<1x4x8x8xbf16> to vector<4x8x8xbf16>
    %c192 = arith.constant 192 : index
    %c0_289 = arith.constant 0 : index
    %c0_290 = arith.constant 0 : index
    %146 = vector.load %arg5[%c192, %c0_289, %c0_290] : memref<196x8x8xbf16, #tpu.memory_space<vmem>>, vector<4x8x8xbf16>
    tpu.vector_store %arg5[%c192, %c0_289, %c0_290], %145 {strides = array<i32>} : memref<196x8x8xbf16, #tpu.memory_space<vmem>>, vector<4x8x8xbf16>,
    %c0_291 = arith.constant 0 : index
    %c0_292 = arith.constant 0 : index
    %c0_293 = arith.constant 0 : index
    %147 = vector.load %arg5[%c0_291, %c0_292, %c0_293] : memref<196x8x8xbf16, #tpu.memory_space<vmem>>, vector<196x1x8xbf16>
    %148 = vector.shape_cast %147 : vector<196x1x8xbf16> to vector<196x8xbf16>
    %c0_294 = arith.constant 0 : index
    %c0_295 = arith.constant 0 : index
    %149 = vector.load %arg6[%c0_294, %c0_295] : memref<196x64xbf16, #tpu.memory_space<vmem>>, vector<196x8xbf16>
    tpu.vector_store %arg6[%c0_294, %c0_295], %148 {strides = array<i32>} : memref<196x64xbf16, #tpu.memory_space<vmem>>, vector<196x8xbf16>,
    %c0_296 = arith.constant 0 : index
    %c1_297 = arith.constant 1 : index
    %c0_298 = arith.constant 0 : index
    %150 = vector.load %arg5[%c0_296, %c1_297, %c0_298] : memref<196x8x8xbf16, #tpu.memory_space<vmem>>, vector<196x1x8xbf16>
    %151 = vector.shape_cast %150 : vector<196x1x8xbf16> to vector<196x8xbf16>
    %c0_299 = arith.constant 0 : index
    %c8_300 = arith.constant 8 : index
    %152 = vector.load %arg6[%c0_299, %c8_300] : memref<196x64xbf16, #tpu.memory_space<vmem>>, vector<196x8xbf16>
    tpu.vector_store %arg6[%c0_299, %c8_300], %151 {strides = array<i32>} : memref<196x64xbf16, #tpu.memory_space<vmem>>, vector<196x8xbf16>,
    %c0_301 = arith.constant 0 : index
    %c2_302 = arith.constant 2 : index
    %c0_303 = arith.constant 0 : index
    %153 = vector.load %arg5[%c0_301, %c2_302, %c0_303] : memref<196x8x8xbf16, #tpu.memory_space<vmem>>, vector<196x1x8xbf16>
    %154 = vector.shape_cast %153 : vector<196x1x8xbf16> to vector<196x8xbf16>
    %c0_304 = arith.constant 0 : index
    %c16_305 = arith.constant 16 : index
    %155 = vector.load %arg6[%c0_304, %c16_305] : memref<196x64xbf16, #tpu.memory_space<vmem>>, vector<196x8xbf16>
    tpu.vector_store %arg6[%c0_304, %c16_305], %154 {strides = array<i32>} : memref<196x64xbf16, #tpu.memory_space<vmem>>, vector<196x8xbf16>,
    %c0_306 = arith.constant 0 : index
    %c3_307 = arith.constant 3 : index
    %c0_308 = arith.constant 0 : index
    %156 = vector.load %arg5[%c0_306, %c3_307, %c0_308] : memref<196x8x8xbf16, #tpu.memory_space<vmem>>, vector<196x1x8xbf16>
    %157 = vector.shape_cast %156 : vector<196x1x8xbf16> to vector<196x8xbf16>
    %c0_309 = arith.constant 0 : index
    %c24_310 = arith.constant 24 : index
    %158 = vector.load %arg6[%c0_309, %c24_310] : memref<196x64xbf16, #tpu.memory_space<vmem>>, vector<196x8xbf16>
    tpu.vector_store %arg6[%c0_309, %c24_310], %157 {strides = array<i32>} : memref<196x64xbf16, #tpu.memory_space<vmem>>, vector<196x8xbf16>,
    %c0_311 = arith.constant 0 : index
    %c4_312 = arith.constant 4 : index
    %c0_313 = arith.constant 0 : index
    %159 = vector.load %arg5[%c0_311, %c4_312, %c0_313] : memref<196x8x8xbf16, #tpu.memory_space<vmem>>, vector<196x1x8xbf16>
    %160 = vector.shape_cast %159 : vector<196x1x8xbf16> to vector<196x8xbf16>
    %c0_314 = arith.constant 0 : index
    %c32_315 = arith.constant 32 : index
    %161 = vector.load %arg6[%c0_314, %c32_315] : memref<196x64xbf16, #tpu.memory_space<vmem>>, vector<196x8xbf16>
    tpu.vector_store %arg6[%c0_314, %c32_315], %160 {strides = array<i32>} : memref<196x64xbf16, #tpu.memory_space<vmem>>, vector<196x8xbf16>,
    %c0_316 = arith.constant 0 : index
    %c5 = arith.constant 5 : index
    %c0_317 = arith.constant 0 : index
    %162 = vector.load %arg5[%c0_316, %c5, %c0_317] : memref<196x8x8xbf16, #tpu.memory_space<vmem>>, vector<196x1x8xbf16>
    %163 = vector.shape_cast %162 : vector<196x1x8xbf16> to vector<196x8xbf16>
    %c0_318 = arith.constant 0 : index
    %c40_319 = arith.constant 40 : index
    %164 = vector.load %arg6[%c0_318, %c40_319] : memref<196x64xbf16, #tpu.memory_space<vmem>>, vector<196x8xbf16>
    tpu.vector_store %arg6[%c0_318, %c40_319], %163 {strides = array<i32>} : memref<196x64xbf16, #tpu.memory_space<vmem>>, vector<196x8xbf16>,
    %c0_320 = arith.constant 0 : index
    %c6 = arith.constant 6 : index
    %c0_321 = arith.constant 0 : index
    %165 = vector.load %arg5[%c0_320, %c6, %c0_321] : memref<196x8x8xbf16, #tpu.memory_space<vmem>>, vector<196x1x8xbf16>
    %166 = vector.shape_cast %165 : vector<196x1x8xbf16> to vector<196x8xbf16>
    %c0_322 = arith.constant 0 : index
    %c48_323 = arith.constant 48 : index
    %167 = vector.load %arg6[%c0_322, %c48_323] : memref<196x64xbf16, #tpu.memory_space<vmem>>, vector<196x8xbf16>
    tpu.vector_store %arg6[%c0_322, %c48_323], %166 {strides = array<i32>} : memref<196x64xbf16, #tpu.memory_space<vmem>>, vector<196x8xbf16>,
    %c0_324 = arith.constant 0 : index
    %c7 = arith.constant 7 : index
    %c0_325 = arith.constant 0 : index
    %168 = vector.load %arg5[%c0_324, %c7, %c0_325] : memref<196x8x8xbf16, #tpu.memory_space<vmem>>, vector<196x1x8xbf16>
    %169 = vector.shape_cast %168 : vector<196x1x8xbf16> to vector<196x8xbf16>
    %c0_326 = arith.constant 0 : index
    %c56_327 = arith.constant 56 : index
    %170 = vector.load %arg6[%c0_326, %c56_327] : memref<196x64xbf16, #tpu.memory_space<vmem>>, vector<196x8xbf16>
    tpu.vector_store %arg6[%c0_326, %c56_327], %169 {strides = array<i32>} : memref<196x64xbf16, #tpu.memory_space<vmem>>, vector<196x8xbf16>,
    %c0_328 = arith.constant 0 : index
    %c0_329 = arith.constant 0 : index
    %171 = vector.load %arg2[%c0_328, %c0_329] : memref<6x196xbf16, #tpu.memory_space<vmem>>, vector<6x196xbf16>
    %c0_330 = arith.constant 0 : index
    %c0_331 = arith.constant 0 : index
    %172 = vector.load %arg6[%c0_330, %c0_331] : memref<196x64xbf16, #tpu.memory_space<vmem>>, vector<196x64xbf16>
    %cst = arith.constant dense<0.000000e+00> : vector<6x64xf32>
    %173 = tpu.matmul %171, %172, %cst {dimension_numbers = #tpu.dot_dimension_numbers<[1], [0], [0], [1], [0, 0, 1, 1], [], []>} : vector<6x196xbf16>, vector<196x64xbf16>, vector<6x64xf32> -> vector<6x64xf32>
    %cst_332 = arith.constant dense<0.000000e+00> : vector<6xf32>
    %174 = vector.multi_reduction <add>, %173, %cst_332 [1] : vector<6x64xf32> to vector<6xf32>
    %175 = vector.shape_cast %174 : vector<6xf32> to vector<6x1xf32>
    %176 = arith.mulf %173, %173 : vector<6x64xf32>
    %cst_333 = arith.constant dense<0.000000e+00> : vector<6xf32>
    %177 = vector.multi_reduction <add>, %176, %cst_333 [1] : vector<6x64xf32> to vector<6xf32>
    %178 = vector.shape_cast %177 : vector<6xf32> to vector<6x1xf32>
    %179 = tpu.concatenate %175, %178 in 1 : vector<6x1xf32>, vector<6x1xf32> -> vector<6x2xf32>
    %c0_334 = arith.constant 0 : index
    %c0_335 = arith.constant 0 : index
    %c0_336 = arith.constant 0 : index
    %180 = vector.load %arg4[%c0_334, %c0_335, %c0_336] : memref<1x6x2xf32, #tpu.memory_space<vmem>>, vector<1x6x2xf32>
    %181 = vector.shape_cast %180 : vector<1x6x2xf32> to vector<6x2xf32>
    %182 = vector.shape_cast %179 : vector<6x2xf32> to vector<1x6x2xf32>
    tpu.vector_store %arg4[%c0_334, %c0_335, %c0_336], %182 {strides = array<i32>} : memref<1x6x2xf32, #tpu.memory_space<vmem>>, vector<1x6x2xf32>,
    %183 = vector.extract_strided_slice %173 {offsets = [0, 0], sizes = [6, 8], strides = [1, 1]} : vector<6x64xf32> to vector<6x8xf32>
    %c0_337 = arith.constant 0 : index
    %c0_338 = arith.constant 0 : index
    %c0_339 = arith.constant 0 : index
    %184 = vector.load %arg7[%c0_337, %c0_338, %c0_339] : memref<6x8x8xf32, #tpu.memory_space<vmem>>, vector<6x1x8xf32>
    %185 = vector.shape_cast %184 : vector<6x1x8xf32> to vector<6x8xf32>
    %186 = vector.shape_cast %183 : vector<6x8xf32> to vector<6x1x8xf32>
    tpu.vector_store %arg7[%c0_337, %c0_338, %c0_339], %186 {strides = array<i32>} : memref<6x8x8xf32, #tpu.memory_space<vmem>>, vector<6x1x8xf32>,
    %187 = vector.extract_strided_slice %173 {offsets = [0, 8], sizes = [6, 8], strides = [1, 1]} : vector<6x64xf32> to vector<6x8xf32>
    %c0_340 = arith.constant 0 : index
    %c1_341 = arith.constant 1 : index
    %c0_342 = arith.constant 0 : index
    %188 = vector.load %arg7[%c0_340, %c1_341, %c0_342] : memref<6x8x8xf32, #tpu.memory_space<vmem>>, vector<6x1x8xf32>
    %189 = vector.shape_cast %188 : vector<6x1x8xf32> to vector<6x8xf32>
    %190 = vector.shape_cast %187 : vector<6x8xf32> to vector<6x1x8xf32>
    tpu.vector_store %arg7[%c0_340, %c1_341, %c0_342], %190 {strides = array<i32>} : memref<6x8x8xf32, #tpu.memory_space<vmem>>, vector<6x1x8xf32>,
    %191 = vector.extract_strided_slice %173 {offsets = [0, 16], sizes = [6, 8], strides = [1, 1]} : vector<6x64xf32> to vector<6x8xf32>
    %c0_343 = arith.constant 0 : index
    %c2_344 = arith.constant 2 : index
    %c0_345 = arith.constant 0 : index
    %192 = vector.load %arg7[%c0_343, %c2_344, %c0_345] : memref<6x8x8xf32, #tpu.memory_space<vmem>>, vector<6x1x8xf32>
    %193 = vector.shape_cast %192 : vector<6x1x8xf32> to vector<6x8xf32>
    %194 = vector.shape_cast %191 : vector<6x8xf32> to vector<6x1x8xf32>
    tpu.vector_store %arg7[%c0_343, %c2_344, %c0_345], %194 {strides = array<i32>} : memref<6x8x8xf32, #tpu.memory_space<vmem>>, vector<6x1x8xf32>,
    %195 = vector.extract_strided_slice %173 {offsets = [0, 24], sizes = [6, 8], strides = [1, 1]} : vector<6x64xf32> to vector<6x8xf32>
    %c0_346 = arith.constant 0 : index
    %c3_347 = arith.constant 3 : index
    %c0_348 = arith.constant 0 : index
    %196 = vector.load %arg7[%c0_346, %c3_347, %c0_348] : memref<6x8x8xf32, #tpu.memory_space<vmem>>, vector<6x1x8xf32>
    %197 = vector.shape_cast %196 : vector<6x1x8xf32> to vector<6x8xf32>
    %198 = vector.shape_cast %195 : vector<6x8xf32> to vector<6x1x8xf32>
    tpu.vector_store %arg7[%c0_346, %c3_347, %c0_348], %198 {strides = array<i32>} : memref<6x8x8xf32, #tpu.memory_space<vmem>>, vector<6x1x8xf32>,
    %199 = vector.extract_strided_slice %173 {offsets = [0, 32], sizes = [6, 8], strides = [1, 1]} : vector<6x64xf32> to vector<6x8xf32>
    %c0_349 = arith.constant 0 : index
    %c4_350 = arith.constant 4 : index
    %c0_351 = arith.constant 0 : index
    %200 = vector.load %arg7[%c0_349, %c4_350, %c0_351] : memref<6x8x8xf32, #tpu.memory_space<vmem>>, vector<6x1x8xf32>
    %201 = vector.shape_cast %200 : vector<6x1x8xf32> to vector<6x8xf32>
    %202 = vector.shape_cast %199 : vector<6x8xf32> to vector<6x1x8xf32>
    tpu.vector_store %arg7[%c0_349, %c4_350, %c0_351], %202 {strides = array<i32>} : memref<6x8x8xf32, #tpu.memory_space<vmem>>, vector<6x1x8xf32>,
    %203 = vector.extract_strided_slice %173 {offsets = [0, 40], sizes = [6, 8], strides = [1, 1]} : vector<6x64xf32> to vector<6x8xf32>
    %c0_352 = arith.constant 0 : index
    %c5_353 = arith.constant 5 : index
    %c0_354 = arith.constant 0 : index
    %204 = vector.load %arg7[%c0_352, %c5_353, %c0_354] : memref<6x8x8xf32, #tpu.memory_space<vmem>>, vector<6x1x8xf32>
    %205 = vector.shape_cast %204 : vector<6x1x8xf32> to vector<6x8xf32>
    %206 = vector.shape_cast %203 : vector<6x8xf32> to vector<6x1x8xf32>
    tpu.vector_store %arg7[%c0_352, %c5_353, %c0_354], %206 {strides = array<i32>} : memref<6x8x8xf32, #tpu.memory_space<vmem>>, vector<6x1x8xf32>,
    %207 = vector.extract_strided_slice %173 {offsets = [0, 48], sizes = [6, 8], strides = [1, 1]} : vector<6x64xf32> to vector<6x8xf32>
    %c0_355 = arith.constant 0 : index
    %c6_356 = arith.constant 6 : index
    %c0_357 = arith.constant 0 : index
    %208 = vector.load %arg7[%c0_355, %c6_356, %c0_357] : memref<6x8x8xf32, #tpu.memory_space<vmem>>, vector<6x1x8xf32>
    %209 = vector.shape_cast %208 : vector<6x1x8xf32> to vector<6x8xf32>
    %210 = vector.shape_cast %207 : vector<6x8xf32> to vector<6x1x8xf32>
    tpu.vector_store %arg7[%c0_355, %c6_356, %c0_357], %210 {strides = array<i32>} : memref<6x8x8xf32, #tpu.memory_space<vmem>>, vector<6x1x8xf32>,
    %211 = vector.extract_strided_slice %173 {offsets = [0, 56], sizes = [6, 8], strides = [1, 1]} : vector<6x64xf32> to vector<6x8xf32>
    %c0_358 = arith.constant 0 : index
    %c7_359 = arith.constant 7 : index
    %c0_360 = arith.constant 0 : index
    %212 = vector.load %arg7[%c0_358, %c7_359, %c0_360] : memref<6x8x8xf32, #tpu.memory_space<vmem>>, vector<6x1x8xf32>
    %213 = vector.shape_cast %212 : vector<6x1x8xf32> to vector<6x8xf32>
    %214 = vector.shape_cast %211 : vector<6x8xf32> to vector<6x1x8xf32>
    tpu.vector_store %arg7[%c0_358, %c7_359, %c0_360], %214 {strides = array<i32>} : memref<6x8x8xf32, #tpu.memory_space<vmem>>, vector<6x1x8xf32>,
    %c0_361 = arith.constant 0 : index
    %c0_362 = arith.constant 0 : index
    %c0_363 = arith.constant 0 : index
    %215 = vector.load %arg7[%c0_361, %c0_362, %c0_363] : memref<6x8x8xf32, #tpu.memory_space<vmem>>, vector<6x8x2xf32>
    %cst_364 = arith.constant dense<0xFF800000> : vector<6x8xf32>
    %216 = vector.multi_reduction <maximumf>, %215, %cst_364 [2] : vector<6x8x2xf32> to vector<6x8xf32>
    %217 = vector.shape_cast %216 : vector<6x8xf32> to vector<6x8x1xf32>
    %c0_365 = arith.constant 0 : index
    %c0_366 = arith.constant 0 : index
    %c1_367 = arith.constant 1 : index
    %218 = vector.load %arg7[%c0_365, %c0_366, %c1_367] : memref<6x8x8xf32, #tpu.memory_space<vmem>>, vector<6x8x3xf32>
    %cst_368 = arith.constant dense<0xFF800000> : vector<6x8xf32>
    %219 = vector.multi_reduction <maximumf>, %218, %cst_368 [2] : vector<6x8x3xf32> to vector<6x8xf32>
    %220 = vector.shape_cast %219 : vector<6x8xf32> to vector<6x8x1xf32>
    %c0_369 = arith.constant 0 : index
    %c0_370 = arith.constant 0 : index
    %c3_371 = arith.constant 3 : index
    %221 = vector.load %arg7[%c0_369, %c0_370, %c3_371] : memref<6x8x8xf32, #tpu.memory_space<vmem>>, vector<6x8x3xf32>
    %cst_372 = arith.constant dense<0xFF800000> : vector<6x8xf32>
    %222 = vector.multi_reduction <maximumf>, %221, %cst_372 [2] : vector<6x8x3xf32> to vector<6x8xf32>
    %223 = vector.shape_cast %222 : vector<6x8xf32> to vector<6x8x1xf32>
    %c0_373 = arith.constant 0 : index
    %c0_374 = arith.constant 0 : index
    %c5_375 = arith.constant 5 : index
    %224 = vector.load %arg7[%c0_373, %c0_374, %c5_375] : memref<6x8x8xf32, #tpu.memory_space<vmem>>, vector<6x8x3xf32>
    %cst_376 = arith.constant dense<0xFF800000> : vector<6x8xf32>
    %225 = vector.multi_reduction <maximumf>, %224, %cst_376 [2] : vector<6x8x3xf32> to vector<6x8xf32>
    %226 = vector.shape_cast %225 : vector<6x8xf32> to vector<6x8x1xf32>
    %227 = tpu.concatenate %217, %220, %223, %226 in 2 : vector<6x8x1xf32>, vector<6x8x1xf32>, vector<6x8x1xf32>, vector<6x8x1xf32> -> vector<6x8x4xf32>
    %228 = vector.extract_strided_slice %227 {offsets = [0, 0, 0], sizes = [6, 2, 4], strides = [1, 1, 1]} : vector<6x8x4xf32> to vector<6x2x4xf32>
    %cst_377 = arith.constant dense<0xFF800000> : vector<6x4xf32>
    %229 = vector.multi_reduction <maximumf>, %228, %cst_377 [1] : vector<6x2x4xf32> to vector<6x4xf32>
    %230 = vector.shape_cast %229 : vector<6x4xf32> to vector<6x1x4xf32>
    %231 = vector.extract_strided_slice %227 {offsets = [0, 1, 0], sizes = [6, 3, 4], strides = [1, 1, 1]} : vector<6x8x4xf32> to vector<6x3x4xf32>
    %cst_378 = arith.constant dense<0xFF800000> : vector<6x4xf32>
    %232 = vector.multi_reduction <maximumf>, %231, %cst_378 [1] : vector<6x3x4xf32> to vector<6x4xf32>
    %233 = vector.shape_cast %232 : vector<6x4xf32> to vector<6x1x4xf32>
    %234 = vector.extract_strided_slice %227 {offsets = [0, 3, 0], sizes = [6, 3, 4], strides = [1, 1, 1]} : vector<6x8x4xf32> to vector<6x3x4xf32>
    %cst_379 = arith.constant dense<0xFF800000> : vector<6x4xf32>
    %235 = vector.multi_reduction <maximumf>, %234, %cst_379 [1] : vector<6x3x4xf32> to vector<6x4xf32>
    %236 = vector.shape_cast %235 : vector<6x4xf32> to vector<6x1x4xf32>
    %237 = vector.extract_strided_slice %227 {offsets = [0, 5, 0], sizes = [6, 3, 4], strides = [1, 1, 1]} : vector<6x8x4xf32> to vector<6x3x4xf32>
    %cst_380 = arith.constant dense<0xFF800000> : vector<6x4xf32>
    %238 = vector.multi_reduction <maximumf>, %237, %cst_380 [1] : vector<6x3x4xf32> to vector<6x4xf32>
    %239 = vector.shape_cast %238 : vector<6x4xf32> to vector<6x1x4xf32>
    %240 = tpu.concatenate %230, %233, %236, %239 in 1 : vector<6x1x4xf32>, vector<6x1x4xf32>, vector<6x1x4xf32>, vector<6x1x4xf32> -> vector<6x4x4xf32>
    %c0_381 = arith.constant 0 : index
    %c0_382 = arith.constant 0 : index
    %c0_383 = arith.constant 0 : index
    %c0_384 = arith.constant 0 : index
    %241 = vector.load %arg3[%c0_381, %c0_382, %c0_383, %c0_384] : memref<1x6x4x4xf32, #tpu.memory_space<vmem>>, vector<1x6x4x4xf32>
    %242 = vector.shape_cast %241 : vector<1x6x4x4xf32> to vector<6x4x4xf32>
    %243 = vector.shape_cast %240 : vector<6x4x4xf32> to vector<1x6x4x4xf32>
    tpu.vector_store %arg3[%c0_381, %c0_382, %c0_383, %c0_384], %243 {strides = array<i32>} : memref<1x6x4x4xf32, #tpu.memory_space<vmem>>, vector<1x6x4x4xf32>,
    return
  }
  func.func @transform_0(%arg0: i32) -> (i32, i32, i32, i32) {
    %c0_i32 = arith.constant 0 : i32
    %c0_i32_0 = arith.constant 0 : i32
    %c0_i32_1 = arith.constant 0 : i32
    %c0_i32_2 = arith.constant 0 : i32
    return %arg0, %c0_i32, %c0_i32_0, %c0_i32_1 : i32, i32, i32, i32
  }
  func.func @transform_1(%arg0: i32) -> (i32, i32) {
    %c0_i32 = arith.constant 0 : i32
    %c0_i32_0 = arith.constant 0 : i32
    %c0_i32_1 = arith.constant 0 : i32
    return %c0_i32, %c0_i32_0 : i32, i32
  }
  func.func @transform_2(%arg0: i32) -> (i32, i32, i32, i32) {
    %c0_i32 = arith.constant 0 : i32
    %c0_i32_0 = arith.constant 0 : i32
    %c0_i32_1 = arith.constant 0 : i32
    %c0_i32_2 = arith.constant 0 : i32
    return %arg0, %c0_i32, %c0_i32_0, %c0_i32_1 : i32, i32, i32, i32
  }
  func.func @transform_3(%arg0: i32) -> (i32, i32, i32) {
    %c0_i32 = arith.constant 0 : i32
    %c0_i32_0 = arith.constant 0 : i32
    %c0_i32_1 = arith.constant 0 : i32
    return %arg0, %c0_i32, %c0_i32_0 : i32, i32, i32
  }
}

</mosaic_0001>

<llo_original>
// kernel: tpu_custom_call.1
$region0: #{tpu_custom_call.1}
  #allocation0 [shape = 'u32[]', space=smem, size = 0x4, offset = 0x4, fixed_abs, tag = 'smem constant byte address 0x4 - core index']
  #allocation1 [shape = 'u32[144,128]{1,0:T(1,128)}', space=vmem, size = 0x12000, scoped, tag = 'internal scratch']
  #allocation2 [shape = 'bf16[196,8,8]{2,1,0:T(8,128)(2,1)}', space=vmem, size = 0x62000, scoped, tag = 'scratch operand']
  #allocation3 [shape = 'bf16[196,64]{1,0:T(8,128)(2,1)}', space=vmem, size = 0xc800, scoped, tag = 'scratch operand']
  #allocation4 [shape = 'f32[6,8,8]{2,1,0:T(8,128)}', space=vmem, size = 0x6000, scoped, tag = 'scratch operand']
  %s0 = inlined_call_operand.vmem [shape: bf16[2,16,11,11], index: 0, kind: input, shape index: {}]
  %s1 = inlined_call_operand.vmem [shape: bf16[6,196], index: 1, kind: input, shape index: {}]
  %s2 = inlined_call_operand.vmem [shape: f32[2,6,4,4], index: 2, kind: output, shape index: {0}]
  %s3 = inlined_call_operand.vmem [shape: f32[2,6,2], index: 3, kind: output, shape index: {1}]
  %4 = xla_tuple %s2, %s3
  %s5 = sld [smem:[#allocation0]]
  $region49: #{tpu_custom_call.1} parent=0
    _
  %s7 = ssub.s32 1, %s5
  %s8 = scalar_select 0, %s7, %s5
  loop: start=0, step=1, limit=4
  $region2: #{tpu_custom_call.1} parent=0 // loop_pre_header
    _
  $region3: #{tpu_custom_call.1} parent=0 // loop_header
    %s10 = sphi 0, %s14
    %p11 = scmp.ge.s32.totalorder %s10, 4
    %s20 = sphi 0, %s22
    %s23 = sphi 0, %s20
    %s24 = sphi 0, %s23
    %s40 = sphi 0, %s24
    %s44 = sphi 0, %s44
    %s46 = sphi 0, %s44
    %s47 = sphi 0, %s46
    %s61 = sphi 0, %s47
    %s67 = sphi 0, %s69
    %s70 = sphi 0, %s67
    %s71 = sphi 0, %s70
    %s87 = sphi 0, %s71
    %s93 = sphi 0, %s95
    %s96 = sphi 0, %s93
    %s97 = sphi 0, %s96
    %s113 = sphi 0, %s97
  $region4: #{tpu_custom_call.1} parent=0 // loop_header_branch
    %13 = sbr.rel (%p11) target = $region8
  $region5: #{tpu_custom_call.1} parent=0 // loop_body
    %s15 = ssub.s32 %s10, 1
    %s16 = ssub.s32 %s10, 2
    %s17 = sadd.s32 %s10, 1
    %s18 = ssub.s32 %s10, %s17
    %p19 = scmp.eq.s32.totalorder %s18, 0
    %s21 = sadd.s32 %s20, 1
    %s22 = scalar_select %p19, %s20, %s21
    %p25 = pneg %p19
    %p26 = scmp.eq.s32.totalorder %s10, 1
    %p27 = por %p25, %p26
    %p28 = scmp.ne.s32.totalorder %s20, %s23
    %p29 = scmp.eq.s32.totalorder %s10, 0
    %p30 = por %p28, %p29
    %p31 = scmp.ne.s32.totalorder %s20, %s23
    %p32 = scmp.eq.s32.totalorder %s15, 1
    %p33 = por %p31, %p32
    %p34 = scmp.ne.s32.totalorder %s23, %s24
    %p35 = scmp.eq.s32.totalorder %s15, 0
    %p36 = por %p34, %p35
    %p37 = scmp.ne.s32.totalorder %s23, %s24
    %p38 = scmp.eq.s32.totalorder %s16, 1
    %p39 = por %p37, %p38
    %p41 = scmp.ne.s32.totalorder %s24, %s40
    %p42 = scmp.eq.s32.totalorder %s16, 0
    %p43 = por %p41, %p42
    %s45 = sadd.s32 %s44, 1
    %p48 = scmp.eq.s32.totalorder %s10, 1
    %p49 = scmp.ne.s32.totalorder %s44, %s46
    %p50 = scmp.eq.s32.totalorder %s10, 0
    %p51 = por %p49, %p50
    %p52 = scmp.ne.s32.totalorder %s44, %s46
    %p53 = scmp.eq.s32.totalorder %s15, 1
    %p54 = por %p52, %p53
    %p55 = scmp.ne.s32.totalorder %s46, %s47
    %p56 = scmp.eq.s32.totalorder %s15, 0
    %p57 = por %p55, %p56
    %p58 = scmp.ne.s32.totalorder %s46, %s47
    %p59 = scmp.eq.s32.totalorder %s16, 1
    %p60 = por %p58, %p59
    %p62 = scmp.ne.s32.totalorder %s47, %s61
    %p63 = scmp.eq.s32.totalorder %s16, 0
    %p64 = por %p62, %p63
    %s65 = ssub.s32 %s10, %s17
    %p66 = scmp.eq.s32.totalorder %s65, 0
    %s68 = sadd.s32 %s67, 1
    %s69 = scalar_select %p66, %s67, %s68
    %p72 = pneg %p66
    %p73 = scmp.eq.s32.totalorder %s10, 1
    %p74 = por %p72, %p73
    %p75 = scmp.ne.s32.totalorder %s67, %s70
    %p76 = scmp.eq.s32.totalorder %s10, 0
    %p77 = por %p75, %p76
    %p78 = scmp.ne.s32.totalorder %s67, %s70
    %p79 = scmp.eq.s32.totalorder %s15, 1
    %p80 = por %p78, %p79
    %p81 = scmp.ne.s32.totalorder %s70, %s71
    %p82 = scmp.eq.s32.totalorder %s15, 0
    %p83 = por %p81, %p82
    %p84 = scmp.ne.s32.totalorder %s70, %s71
    %p85 = scmp.eq.s32.totalorder %s16, 1
    %p86 = por %p84, %p85
    %p88 = scmp.ne.s32.totalorder %s71, %s87
    %p89 = scmp.eq.s32.totalorder %s16, 0
    %p90 = por %p88, %p89
    %s91 = ssub.s32 %s10, %s17
    %p92 = scmp.eq.s32.totalorder %s91, 0
    %s94 = sadd.s32 %s93, 1
    %s95 = scalar_select %p92, %s93, %s94
    %p98 = pneg %p92
    %p99 = scmp.eq.s32.totalorder %s10, 1
    %p100 = por %p98, %p99
    %p101 = scmp.ne.s32.totalorder %s93, %s96
    %p102 = scmp.eq.s32.totalorder %s10, 0
    %p103 = por %p101, %p102
    %p104 = scmp.ne.s32.totalorder %s93, %s96
    %p105 = scmp.eq.s32.totalorder %s15, 1
    %p106 = por %p104, %p105
    %p107 = scmp.ne.s32.totalorder %s96, %s97
    %p108 = scmp.eq.s32.totalorder %s15, 0
    %p109 = por %p107, %p108
    %p110 = scmp.ne.s32.totalorder %s96, %s97
    %p111 = scmp.eq.s32.totalorder %s16, 1
    %p112 = por %p110, %p111
    %p114 = scmp.ne.s32.totalorder %s97, %s113
    %p115 = scmp.eq.s32.totalorder %s16, 0
    %p116 = por %p114, %p115
    %p117 = scmp.le.s32.totalorder 1, %s10
    %p118 = scmp.lt.s32.totalorder %s10, 3
    %p119 = pnand %p117, %p118
    %p120 = pneg %p119
    // Predicated region
    $region9: #{tpu_custom_call.1} parent=5 // pred_check
      _
    $region10: #{tpu_custom_call.1} parent=5 // pred_check_branch
      %122 = sbr.rel (%p119) target = $region12
    $region11: #{tpu_custom_call.1} parent=5 // pred_region
      %s123 = ssub.s32 %s10, 1
      // Predicated region
      $region13: #{tpu_custom_call.1} parent=11 // pred_check
        %p124 = pneg %p57
      $region14: #{tpu_custom_call.1} parent=11 // pred_check_branch
        %126 = sbr.rel (%p124) target = $region16
      $region15: #{tpu_custom_call.1} parent=11 // pred_region
        _
      $region16: #{tpu_custom_call.1} parent=11 // pred_fallthru
        _
    $region12: #{tpu_custom_call.1} parent=5 // pred_fallthru
      _
    %p127 = scmp.lt.s32.totalorder %s10, 2
    // Predicated region
    $region17: #{tpu_custom_call.1} parent=5 // pred_check
      %p128 = pneg %p127
    $region18: #{tpu_custom_call.1} parent=5 // pred_check_branch
      %130 = sbr.rel (%p128) target = $region20
    $region19: #{tpu_custom_call.1} parent=5 // pred_region
      // Predicated region
      $region21: #{tpu_custom_call.1} parent=19 // pred_check
        %p131 = pneg %p30
      $region22: #{tpu_custom_call.1} parent=19 // pred_check_branch
        %133 = sbr.rel (%p131) target = $region24
      $region23: #{tpu_custom_call.1} parent=19 // pred_region
        %p134 = scmp.lt.s32.totalorder %s10, 1
        %s135 = scalar_select %p134, %s10, 1
        %s136 = smul.addr %s135, 32
        %s137 = smul.addr %s136, 4
        %s138 = scalar_lea.vmem %s0, %s137
      $region24: #{tpu_custom_call.1} parent=19 // pred_fallthru
        _
    $region20: #{tpu_custom_call.1} parent=5 // pred_fallthru
      _
    %p139 = scmp.le.s32.totalorder 1, %s10
    %p140 = scmp.lt.s32.totalorder %s10, 3
    %p141 = pnand %p139, %p140
    %p142 = pneg %p141
    // Predicated region
    $region25: #{tpu_custom_call.1} parent=5 // pred_check
      _
    $region26: #{tpu_custom_call.1} parent=5 // pred_check_branch
      %144 = sbr.rel (%p141) target = $region28
    $region27: #{tpu_custom_call.1} parent=5 // pred_region
      %s145 = ssub.s32 %s10, 1
      %p146 = scmp.lt.s32.totalorder %s15, 1
      %s147 = scalar_select %p146, %s15, 1
      %s148 = smul.addr %s147, 32
      %s149 = smul.addr %s148, 4
      %s150 = scalar_lea.vmem %s0, %s149
      %p151 = pneg %p36
      %p152 = pneg %p33
      %p153 = pneg %p57
      %p154 = pneg %p54
      %p155 = pneg %p83
      %p156 = pneg %p80
      %p157 = scmp.lt.s32.totalorder %s15, 1
      %s158 = scalar_select %p157, %s15, 1
      %s159 = smul.addr %s158, 6
      %s160 = smul.addr %s159, 4
      %s161 = scalar_lea.vmem %s2, %s160
      %p162 = pneg %p109
      %p163 = pneg %p106
      %p164 = scmp.lt.s32.totalorder %s15, 1
      %s165 = scalar_select %p164, %s15, 1
      %s166 = smul.addr %s165, 8
      %s167 = scalar_lea.vmem %s3, %s166
      %p168 = scmp.lt.s32.totalorder %s15, 1
      %s169 = scalar_select %p168, %s15, 1
      %s170 = smul.addr %s169, 32
      %s171 = smul.addr %s170, 4
      %s172 = scalar_lea.vmem %s0, %s171
      %p173 = scmp.lt.s32.totalorder %s15, 1
      %s174 = scalar_select %p173, %s15, 1
      %s175 = smul.addr %s174, 6
      %s176 = smul.addr %s175, 4
      %s177 = scalar_lea.vmem %s2, %s176
      %p178 = scmp.lt.s32.totalorder %s15, 1
      %s179 = scalar_select %p178, %s15, 1
      %s180 = smul.addr %s179, 8
      %s181 = scalar_lea.vmem %s3, %s180
      %v183 = vld [vmem:[%s172] sm:$0xf]
      %v184 = vld [vmem:[%s172 + $0x8] sm:$0xf]
      %v185 = vld [vmem:[%s172 + $0x10] sm:$0xf]
      %v186 = vld [vmem:[%s172 + $0x18] sm:$0xf]
      %vm187 = vcmask 60416
      %188 = vst.msk [vmem:[#allocation2] sm:$0xf] %vm187, %v183
      %189 = vst.msk [vmem:[#allocation2 + $0x4] sm:$0xf] %vm187, %v184
      %190 = vst.msk [vmem:[#allocation2 + $0x8] sm:$0xf] %vm187, %v185
      %191 = vst.msk [vmem:[#allocation2 + $0xc] sm:$0xf] %vm187, %v186
      %s192 = scalar_lea.vmem %s172, 32
      %v193 = vld [vmem:[%s192] sm:$0xf]
      %v194 = vld [vmem:[%s192 + $0x8] sm:$0xf]
      %v195 = vld [vmem:[%s192 + $0x10] sm:$0xf]
      %v196 = vld [vmem:[%s192 + $0x18] sm:$0xf]
      %s197 = scalar_lea.vmem [#allocation2], 16
      %198 = vst.msk [vmem:[%s197] sm:$0xf] %vm187, %v193
      %199 = vst.msk [vmem:[%s197 + $0x4] sm:$0xf] %vm187, %v194
      %200 = vst.msk [vmem:[%s197 + $0x8] sm:$0xf] %vm187, %v195
      %201 = vst.msk [vmem:[%s197 + $0xc] sm:$0xf] %vm187, %v196
      %v202 = vld [vmem:[%s172] sm:$0xf]
      %v203 = vld [vmem:[%s172 + $0x8] sm:$0xf]
      %v204 = vld [vmem:[%s172 + $0x10] sm:$0xf]
      %v205 = vld [vmem:[%s172 + $0x18] sm:$0xf]
      %210 = vrot.lane.b32.xlu0 %v202, 127
      %v211 = vpop.permute.xlu0 %210
      %212 = vrot.lane.b32.xlu0 %v203, 127
      %v213 = vpop.permute.xlu0 %212
      %214 = vrot.lane.b32.xlu0 %v204, 127
      %v215 = vpop.permute.xlu0 %214
      %216 = vrot.lane.b32.xlu0 %v205, 127
      %v217 = vpop.permute.xlu0 %216
      %s222 = scalar_lea.vmem [#allocation2], 32
      %223 = vst.msk [vmem:[%s222] sm:$0xf] %vm187, %v211
      %224 = vst.msk [vmem:[%s222 + $0x4] sm:$0xf] %vm187, %v213
      %225 = vst.msk [vmem:[%s222 + $0x8] sm:$0xf] %vm187, %v215
      %226 = vst.msk [vmem:[%s222 + $0xc] sm:$0xf] %vm187, %v217
      %v227 = vld [vmem:[%s192] sm:$0xf]
      %v228 = vld [vmem:[%s192 + $0x8] sm:$0xf]
      %v229 = vld [vmem:[%s192 + $0x10] sm:$0xf]
      %v230 = vld [vmem:[%s192 + $0x18] sm:$0xf]
      %235 = vrot.lane.b32.xlu0 %v227, 127
      %v236 = vpop.permute.xlu0 %235
      %237 = vrot.lane.b32.xlu0 %v228, 127
      %v238 = vpop.permute.xlu0 %237
      %239 = vrot.lane.b32.xlu0 %v229, 127
      %v240 = vpop.permute.xlu0 %239
      %241 = vrot.lane.b32.xlu0 %v230, 127
      %v242 = vpop.permute.xlu0 %241
      %s247 = scalar_lea.vmem [#allocation2], 48
      %248 = vst.msk [vmem:[%s247] sm:$0xf] %vm187, %v236
      %249 = vst.msk [vmem:[%s247 + $0x4] sm:$0xf] %vm187, %v238
      %250 = vst.msk [vmem:[%s247 + $0x8] sm:$0xf] %vm187, %v240
      %251 = vst.msk [vmem:[%s247 + $0xc] sm:$0xf] %vm187, %v242
      %v252 = vld [vmem:[%s172] sm:$0xf]
      %v253 = vld [vmem:[%s172 + $0x8] sm:$0xf]
      %v254 = vld [vmem:[%s172 + $0x10] sm:$0xf]
      %v255 = vld [vmem:[%s172 + $0x18] sm:$0xf]
      %260 = vrot.lane.b32.xlu0 %v252, 126
      %v261 = vpop.permute.xlu0 %260
      %262 = vrot.lane.b32.xlu0 %v253, 126
      %v263 = vpop.permute.xlu0 %262
      %264 = vrot.lane.b32.xlu0 %v254, 126
      %v265 = vpop.permute.xlu0 %264
      %266 = vrot.lane.b32.xlu0 %v255, 126
      %v267 = vpop.permute.xlu0 %266
      %s272 = scalar_lea.vmem [#allocation2], 64
      %273 = vst.msk [vmem:[%s272] sm:$0xf] %vm187, %v261
      %274 = vst.msk [vmem:[%s272 + $0x4] sm:$0xf] %vm187, %v263
      %275 = vst.msk [vmem:[%s272 + $0x8] sm:$0xf] %vm187, %v265
      %276 = vst.msk [vmem:[%s272 + $0xc] sm:$0xf] %vm187, %v267
      %v277 = vld [vmem:[%s192] sm:$0xf]
      %v278 = vld [vmem:[%s192 + $0x8] sm:$0xf]
      %v279 = vld [vmem:[%s192 + $0x10] sm:$0xf]
      %v280 = vld [vmem:[%s192 + $0x18] sm:$0xf]
      %285 = vrot.lane.b32.xlu0 %v277, 126
      %v286 = vpop.permute.xlu0 %285
      %287 = vrot.lane.b32.xlu0 %v278, 126
      %v288 = vpop.permute.xlu0 %287
      %289 = vrot.lane.b32.xlu0 %v279, 126
      %v290 = vpop.permute.xlu0 %289
      %291 = vrot.lane.b32.xlu0 %v280, 126
      %v292 = vpop.permute.xlu0 %291
      %s297 = scalar_lea.vmem [#allocation2], 80
      %298 = vst.msk [vmem:[%s297] sm:$0xf] %vm187, %v286
      %299 = vst.msk [vmem:[%s297 + $0x4] sm:$0xf] %vm187, %v288
      %300 = vst.msk [vmem:[%s297 + $0x8] sm:$0xf] %vm187, %v290
      %301 = vst.msk [vmem:[%s297 + $0xc] sm:$0xf] %vm187, %v292
      %v302 = vld [vmem:[%s172] sm:$0xf]
      %v303 = vld [vmem:[%s172 + $0x8] sm:$0xf]
      %v304 = vld [vmem:[%s172 + $0x10] sm:$0xf]
      %v305 = vld [vmem:[%s172 + $0x18] sm:$0xf]
      %310 = vrot.lane.b32.xlu0 %v302, 125
      %v311 = vpop.permute.xlu0 %310
      %312 = vrot.lane.b32.xlu0 %v303, 125
      %v313 = vpop.permute.xlu0 %312
      %314 = vrot.lane.b32.xlu0 %v304, 125
      %v315 = vpop.permute.xlu0 %314
      %316 = vrot.lane.b32.xlu0 %v305, 125
      %v317 = vpop.permute.xlu0 %316
      %s322 = scalar_lea.vmem [#allocation2], 96
      %323 = vst.msk [vmem:[%s322] sm:$0xf] %vm187, %v311
      %324 = vst.msk [vmem:[%s322 + $0x4] sm:$0xf] %vm187, %v313
      %325 = vst.msk [vmem:[%s322 + $0x8] sm:$0xf] %vm187, %v315
      %326 = vst.msk [vmem:[%s322 + $0xc] sm:$0xf] %vm187, %v317
      %s327 = scalar_lea.vmem %s172, 64
      %v328 = vld [vmem:[%s327] sm:$0xf]
      %v329 = vld [vmem:[%s327 + $0x8] sm:$0xf]
      %v330 = vld [vmem:[%s327 + $0x10] sm:$0xf]
      %v331 = vld [vmem:[%s327 + $0x18] sm:$0xf]
      %s332 = scalar_lea.vmem [#allocation2], 112
      %333 = vst.msk [vmem:[%s332] sm:$0xf] %vm187, %v328
      %334 = vst.msk [vmem:[%s332 + $0x4] sm:$0xf] %vm187, %v329
      %335 = vst.msk [vmem:[%s332 + $0x8] sm:$0xf] %vm187, %v330
      %336 = vst.msk [vmem:[%s332 + $0xc] sm:$0xf] %vm187, %v331
      %s337 = scalar_lea.vmem %s172, 96
      %v338 = vld [vmem:[%s337] sm:$0xf]
      %v339 = vld [vmem:[%s337 + $0x8] sm:$0xf]
      %v340 = vld [vmem:[%s337 + $0x10] sm:$0xf]
      %v341 = vld [vmem:[%s337 + $0x18] sm:$0xf]
      %s342 = scalar_lea.vmem [#allocation2], 128
      %343 = vst.msk [vmem:[%s342] sm:$0xf] %vm187, %v338
      %344 = vst.msk [vmem:[%s342 + $0x4] sm:$0xf] %vm187, %v339
      %345 = vst.msk [vmem:[%s342 + $0x8] sm:$0xf] %vm187, %v340
      %346 = vst.msk [vmem:[%s342 + $0xc] sm:$0xf] %vm187, %v341
      %v347 = vld [vmem:[%s327] sm:$0xf]
      %v348 = vld [vmem:[%s327 + $0x8] sm:$0xf]
      %v349 = vld [vmem:[%s327 + $0x10] sm:$0xf]
      %v350 = vld [vmem:[%s327 + $0x18] sm:$0xf]
      %355 = vrot.lane.b32.xlu0 %v347, 127
      %v356 = vpop.permute.xlu0 %355
      %357 = vrot.lane.b32.xlu0 %v348, 127
      %v358 = vpop.permute.xlu0 %357
      %359 = vrot.lane.b32.xlu0 %v349, 127
      %v360 = vpop.permute.xlu0 %359
      %361 = vrot.lane.b32.xlu0 %v350, 127
      %v362 = vpop.permute.xlu0 %361
      %s367 = scalar_lea.vmem [#allocation2], 144
      %368 = vst.msk [vmem:[%s367] sm:$0xf] %vm187, %v356
      %369 = vst.msk [vmem:[%s367 + $0x4] sm:$0xf] %vm187, %v358
      %370 = vst.msk [vmem:[%s367 + $0x8] sm:$0xf] %vm187, %v360
      %371 = vst.msk [vmem:[%s367 + $0xc] sm:$0xf] %vm187, %v362
      %v372 = vld [vmem:[%s337] sm:$0xf]
      %v373 = vld [vmem:[%s337 + $0x8] sm:$0xf]
      %v374 = vld [vmem:[%s337 + $0x10] sm:$0xf]
      %v375 = vld [vmem:[%s337 + $0x18] sm:$0xf]
      %380 = vrot.lane.b32.xlu0 %v372, 127
      %v381 = vpop.permute.xlu0 %380
      %382 = vrot.lane.b32.xlu0 %v373, 127
      %v383 = vpop.permute.xlu0 %382
      %384 = vrot.lane.b32.xlu0 %v374, 127
      %v385 = vpop.permute.xlu0 %384
      %386 = vrot.lane.b32.xlu0 %v375, 127
      %v387 = vpop.permute.xlu0 %386
      %s392 = scalar_lea.vmem [#allocation2], 160
      %393 = vst.msk [vmem:[%s392] sm:$0xf] %vm187, %v381
      %394 = vst.msk [vmem:[%s392 + $0x4] sm:$0xf] %vm187, %v383
      %395 = vst.msk [vmem:[%s392 + $0x8] sm:$0xf] %vm187, %v385
      %396 = vst.msk [vmem:[%s392 + $0xc] sm:$0xf] %vm187, %v387
      %v397 = vld [vmem:[%s327] sm:$0xf]
      %v398 = vld [vmem:[%s327 + $0x8] sm:$0xf]
      %v399 = vld [vmem:[%s327 + $0x10] sm:$0xf]
      %v400 = vld [vmem:[%s327 + $0x18] sm:$0xf]
      %405 = vrot.lane.b32.xlu0 %v397, 126
      %v406 = vpop.permute.xlu0 %405
      %407 = vrot.lane.b32.xlu0 %v398, 126
      %v408 = vpop.permute.xlu0 %407
      %409 = vrot.lane.b32.xlu0 %v399, 126
      %v410 = vpop.permute.xlu0 %409
      %411 = vrot.lane.b32.xlu0 %v400, 126
      %v412 = vpop.permute.xlu0 %411
      %s417 = scalar_lea.vmem [#allocation2], 176
      %418 = vst.msk [vmem:[%s417] sm:$0xf] %vm187, %v406
      %419 = vst.msk [vmem:[%s417 + $0x4] sm:$0xf] %vm187, %v408
      %420 = vst.msk [vmem:[%s417 + $0x8] sm:$0xf] %vm187, %v410
      %421 = vst.msk [vmem:[%s417 + $0xc] sm:$0xf] %vm187, %v412
      %v422 = vld [vmem:[%s337] sm:$0xf]
      %v423 = vld [vmem:[%s337 + $0x8] sm:$0xf]
      %v424 = vld [vmem:[%s337 + $0x10] sm:$0xf]
      %v425 = vld [vmem:[%s337 + $0x18] sm:$0xf]
      %430 = vrot.lane.b32.xlu0 %v422, 126
      %v431 = vpop.permute.xlu0 %430
      %432 = vrot.lane.b32.xlu0 %v423, 126
      %v433 = vpop.permute.xlu0 %432
      %434 = vrot.lane.b32.xlu0 %v424, 126
      %v435 = vpop.permute.xlu0 %434
      %436 = vrot.lane.b32.xlu0 %v425, 126
      %v437 = vpop.permute.xlu0 %436
      %s442 = scalar_lea.vmem [#allocation2], 192
      %443 = vst.msk [vmem:[%s442] sm:$0xf] %vm187, %v431
      %444 = vst.msk [vmem:[%s442 + $0x4] sm:$0xf] %vm187, %v433
      %445 = vst.msk [vmem:[%s442 + $0x8] sm:$0xf] %vm187, %v435
      %446 = vst.msk [vmem:[%s442 + $0xc] sm:$0xf] %vm187, %v437
      %v447 = vld [vmem:[%s327] sm:$0xf]
      %v448 = vld [vmem:[%s327 + $0x8] sm:$0xf]
      %v449 = vld [vmem:[%s327 + $0x10] sm:$0xf]
      %v450 = vld [vmem:[%s327 + $0x18] sm:$0xf]
      %455 = vrot.lane.b32.xlu0 %v447, 125
      %v456 = vpop.permute.xlu0 %455
      %457 = vrot.lane.b32.xlu0 %v448, 125
      %v458 = vpop.permute.xlu0 %457
      %459 = vrot.lane.b32.xlu0 %v449, 125
      %v460 = vpop.permute.xlu0 %459
      %461 = vrot.lane.b32.xlu0 %v450, 125
      %v462 = vpop.permute.xlu0 %461
      %s467 = scalar_lea.vmem [#allocation2], 208
      %468 = vst.msk [vmem:[%s467] sm:$0xf] %vm187, %v456
      %469 = vst.msk [vmem:[%s467 + $0x4] sm:$0xf] %vm187, %v458
      %470 = vst.msk [vmem:[%s467 + $0x8] sm:$0xf] %vm187, %v460
      %471 = vst.msk [vmem:[%s467 + $0xc] sm:$0xf] %vm187, %v462
      %v472 = vld [vmem:[%s172] sm:$0xf]
      %v473 = vld [vmem:[%s172 + $0x4] sm:$0x1]
      %v474 = vld [vmem:[%s172 + $0x8] sm:$0xf]
      %v475 = vld [vmem:[%s172 + $0xc] sm:$0x1]
      %v476 = vld [vmem:[%s172 + $0x10] sm:$0xf]
      %v477 = vld [vmem:[%s172 + $0x14] sm:$0x1]
      %v478 = vld [vmem:[%s172 + $0x18] sm:$0xf]
      %v479 = vld [vmem:[%s172 + $0x1c] sm:$0x1]
      %vm480 = vsmask.f32 3328
      %vm481 = vsmask.f32 7440
      %vm482 = vmor %vm480, %vm481
      %v484 = vshrl.u32 %v472, 16
      %v486 = vrot.slane %v484, 4
      %v487 = vshll.u32 %v472, 16
      %v489 = vrot.slane %v487, 5
      %v490 = vor.u32 %v486, %v489
      %v491 = vrot.slane %v490, 4
      %v493 = vshll.u32 %v473, 16
      %v495 = vrot.slane %v493, 5
      %v496 = vsel %vm482, %v491, %v495
      %v498 = vshrl.u32 %v474, 16
      %v500 = vrot.slane %v498, 4
      %v501 = vshll.u32 %v474, 16
      %v503 = vrot.slane %v501, 5
      %v504 = vor.u32 %v500, %v503
      %v505 = vrot.slane %v504, 4
      %v507 = vshll.u32 %v475, 16
      %v509 = vrot.slane %v507, 5
      %v510 = vsel %vm482, %v505, %v509
      %v512 = vshrl.u32 %v476, 16
      %v514 = vrot.slane %v512, 4
      %v515 = vshll.u32 %v476, 16
      %v517 = vrot.slane %v515, 5
      %v518 = vor.u32 %v514, %v517
      %v519 = vrot.slane %v518, 4
      %v521 = vshll.u32 %v477, 16
      %v523 = vrot.slane %v521, 5
      %v524 = vsel %vm482, %v519, %v523
      %v526 = vshrl.u32 %v478, 16
      %v528 = vrot.slane %v526, 4
      %v529 = vshll.u32 %v478, 16
      %v531 = vrot.slane %v529, 5
      %v532 = vor.u32 %v528, %v531
      %v533 = vrot.slane %v532, 4
      %v535 = vshll.u32 %v479, 16
      %v537 = vrot.slane %v535, 5
      %v538 = vsel %vm482, %v533, %v537
      %s543 = scalar_lea.vmem [#allocation2], 224
      %544 = vst.msk [vmem:[%s543] sm:$0xf] %vm187, %v496
      %545 = vst.msk [vmem:[%s543 + $0x4] sm:$0xf] %vm187, %v510
      %546 = vst.msk [vmem:[%s543 + $0x8] sm:$0xf] %vm187, %v524
      %547 = vst.msk [vmem:[%s543 + $0xc] sm:$0xf] %vm187, %v538
      %v548 = vld [vmem:[%s192] sm:$0xf]
      %v549 = vld [vmem:[%s192 + $0x4] sm:$0x1]
      %v550 = vld [vmem:[%s192 + $0x8] sm:$0xf]
      %v551 = vld [vmem:[%s192 + $0xc] sm:$0x1]
      %v552 = vld [vmem:[%s192 + $0x10] sm:$0xf]
      %v553 = vld [vmem:[%s192 + $0x14] sm:$0x1]
      %v554 = vld [vmem:[%s192 + $0x18] sm:$0xf]
      %v555 = vld [vmem:[%s192 + $0x1c] sm:$0x1]
      %v557 = vshrl.u32 %v548, 16
      %v559 = vrot.slane %v557, 4
      %v560 = vshll.u32 %v548, 16
      %v562 = vrot.slane %v560, 5
      %v563 = vor.u32 %v559, %v562
      %v564 = vrot.slane %v563, 4
      %v566 = vshll.u32 %v549, 16
      %v568 = vrot.slane %v566, 5
      %v569 = vsel %vm482, %v564, %v568
      %v571 = vshrl.u32 %v550, 16
      %v573 = vrot.slane %v571, 4
      %v574 = vshll.u32 %v550, 16
      %v576 = vrot.slane %v574, 5
      %v577 = vor.u32 %v573, %v576
      %v578 = vrot.slane %v577, 4
      %v580 = vshll.u32 %v551, 16
      %v582 = vrot.slane %v580, 5
      %v583 = vsel %vm482, %v578, %v582
      %v585 = vshrl.u32 %v552, 16
      %v587 = vrot.slane %v585, 4
      %v588 = vshll.u32 %v552, 16
      %v590 = vrot.slane %v588, 5
      %v591 = vor.u32 %v587, %v590
      %v592 = vrot.slane %v591, 4
      %v594 = vshll.u32 %v553, 16
      %v596 = vrot.slane %v594, 5
      %v597 = vsel %vm482, %v592, %v596
      %v599 = vshrl.u32 %v554, 16
      %v601 = vrot.slane %v599, 4
      %v602 = vshll.u32 %v554, 16
      %v604 = vrot.slane %v602, 5
      %v605 = vor.u32 %v601, %v604
      %v606 = vrot.slane %v605, 4
      %v608 = vshll.u32 %v555, 16
      %v610 = vrot.slane %v608, 5
      %v611 = vsel %vm482, %v606, %v610
      %s616 = scalar_lea.vmem [#allocation2], 240
      %617 = vst.msk [vmem:[%s616] sm:$0xf] %vm187, %v569
      %618 = vst.msk [vmem:[%s616 + $0x4] sm:$0xf] %vm187, %v583
      %619 = vst.msk [vmem:[%s616 + $0x8] sm:$0xf] %vm187, %v597
      %620 = vst.msk [vmem:[%s616 + $0xc] sm:$0xf] %vm187, %v611
      %v621 = vld [vmem:[%s172] sm:$0xf]
      %v622 = vld [vmem:[%s172 + $0x4] sm:$0x1]
      %v623 = vld [vmem:[%s172 + $0x8] sm:$0xf]
      %v624 = vld [vmem:[%s172 + $0xc] sm:$0x1]
      %v625 = vld [vmem:[%s172 + $0x10] sm:$0xf]
      %v626 = vld [vmem:[%s172 + $0x14] sm:$0x1]
      %v627 = vld [vmem:[%s172 + $0x18] sm:$0xf]
      %v628 = vld [vmem:[%s172 + $0x1c] sm:$0x1]
      %v630 = vshrl.u32 %v621, 16
      %v632 = vrot.slane %v630, 4
      %v633 = vshll.u32 %v621, 16
      %v635 = vrot.slane %v633, 5
      %v636 = vor.u32 %v632, %v635
      %v637 = vrot.slane %v636, 4
      %v639 = vshll.u32 %v622, 16
      %v641 = vrot.slane %v639, 5
      %v642 = vsel %vm482, %v637, %v641
      %v644 = vshrl.u32 %v623, 16
      %v646 = vrot.slane %v644, 4
      %v647 = vshll.u32 %v623, 16
      %v649 = vrot.slane %v647, 5
      %v650 = vor.u32 %v646, %v649
      %v651 = vrot.slane %v650, 4
      %v653 = vshll.u32 %v624, 16
      %v655 = vrot.slane %v653, 5
      %v656 = vsel %vm482, %v651, %v655
      %v658 = vshrl.u32 %v625, 16
      %v660 = vrot.slane %v658, 4
      %v661 = vshll.u32 %v625, 16
      %v663 = vrot.slane %v661, 5
      %v664 = vor.u32 %v660, %v663
      %v665 = vrot.slane %v664, 4
      %v667 = vshll.u32 %v626, 16
      %v669 = vrot.slane %v667, 5
      %v670 = vsel %vm482, %v665, %v669
      %v672 = vshrl.u32 %v627, 16
      %v674 = vrot.slane %v672, 4
      %v675 = vshll.u32 %v627, 16
      %v677 = vrot.slane %v675, 5
      %v678 = vor.u32 %v674, %v677
      %v679 = vrot.slane %v678, 4
      %v681 = vshll.u32 %v628, 16
      %v683 = vrot.slane %v681, 5
      %v684 = vsel %vm482, %v679, %v683
      %685 = vrot.lane.b32.xlu0 %v642, 127
      %v686 = vpop.permute.xlu0 %685
      %687 = vrot.lane.b32.xlu0 %v656, 127
      %v688 = vpop.permute.xlu0 %687
      %689 = vrot.lane.b32.xlu0 %v670, 127
      %v690 = vpop.permute.xlu0 %689
      %691 = vrot.lane.b32.xlu0 %v684, 127
      %v692 = vpop.permute.xlu0 %691
      %s697 = scalar_lea.vmem [#allocation2], 256
      %698 = vst.msk [vmem:[%s697] sm:$0xf] %vm187, %v686
      %699 = vst.msk [vmem:[%s697 + $0x4] sm:$0xf] %vm187, %v688
      %700 = vst.msk [vmem:[%s697 + $0x8] sm:$0xf] %vm187, %v690
      %701 = vst.msk [vmem:[%s697 + $0xc] sm:$0xf] %vm187, %v692
      %v702 = vld [vmem:[%s192] sm:$0xf]
      %v703 = vld [vmem:[%s192 + $0x4] sm:$0x1]
      %v704 = vld [vmem:[%s192 + $0x8] sm:$0xf]
      %v705 = vld [vmem:[%s192 + $0xc] sm:$0x1]
      %v706 = vld [vmem:[%s192 + $0x10] sm:$0xf]
      %v707 = vld [vmem:[%s192 + $0x14] sm:$0x1]
      %v708 = vld [vmem:[%s192 + $0x18] sm:$0xf]
      %v709 = vld [vmem:[%s192 + $0x1c] sm:$0x1]
      %v711 = vshrl.u32 %v702, 16
      %v713 = vrot.slane %v711, 4
      %v714 = vshll.u32 %v702, 16
      %v716 = vrot.slane %v714, 5
      %v717 = vor.u32 %v713, %v716
      %v718 = vrot.slane %v717, 4
      %v720 = vshll.u32 %v703, 16
      %v722 = vrot.slane %v720, 5
      %v723 = vsel %vm482, %v718, %v722
      %v725 = vshrl.u32 %v704, 16
      %v727 = vrot.slane %v725, 4
      %v728 = vshll.u32 %v704, 16
      %v730 = vrot.slane %v728, 5
      %v731 = vor.u32 %v727, %v730
      %v732 = vrot.slane %v731, 4
      %v734 = vshll.u32 %v705, 16
      %v736 = vrot.slane %v734, 5
      %v737 = vsel %vm482, %v732, %v736
      %v739 = vshrl.u32 %v706, 16
      %v741 = vrot.slane %v739, 4
      %v742 = vshll.u32 %v706, 16
      %v744 = vrot.slane %v742, 5
      %v745 = vor.u32 %v741, %v744
      %v746 = vrot.slane %v745, 4
      %v748 = vshll.u32 %v707, 16
      %v750 = vrot.slane %v748, 5
      %v751 = vsel %vm482, %v746, %v750
      %v753 = vshrl.u32 %v708, 16
      %v755 = vrot.slane %v753, 4
      %v756 = vshll.u32 %v708, 16
      %v758 = vrot.slane %v756, 5
      %v759 = vor.u32 %v755, %v758
      %v760 = vrot.slane %v759, 4
      %v762 = vshll.u32 %v709, 16
      %v764 = vrot.slane %v762, 5
      %v765 = vsel %vm482, %v760, %v764
      %766 = vrot.lane.b32.xlu0 %v723, 127
      %v767 = vpop.permute.xlu0 %766
      %768 = vrot.lane.b32.xlu0 %v737, 127
      %v769 = vpop.permute.xlu0 %768
      %770 = vrot.lane.b32.xlu0 %v751, 127
      %v771 = vpop.permute.xlu0 %770
      %772 = vrot.lane.b32.xlu0 %v765, 127
      %v773 = vpop.permute.xlu0 %772
      %s778 = scalar_lea.vmem [#allocation2], 272
      %779 = vst.msk [vmem:[%s778] sm:$0xf] %vm187, %v767
      %780 = vst.msk [vmem:[%s778 + $0x4] sm:$0xf] %vm187, %v769
      %781 = vst.msk [vmem:[%s778 + $0x8] sm:$0xf] %vm187, %v771
      %782 = vst.msk [vmem:[%s778 + $0xc] sm:$0xf] %vm187, %v773
      %v783 = vld [vmem:[%s172] sm:$0xf]
      %v784 = vld [vmem:[%s172 + $0x4] sm:$0x1]
      %v785 = vld [vmem:[%s172 + $0x8] sm:$0xf]
      %v786 = vld [vmem:[%s172 + $0xc] sm:$0x1]
      %v787 = vld [vmem:[%s172 + $0x10] sm:$0xf]
      %v788 = vld [vmem:[%s172 + $0x14] sm:$0x1]
      %v789 = vld [vmem:[%s172 + $0x18] sm:$0xf]
      %v790 = vld [vmem:[%s172 + $0x1c] sm:$0x1]
      %v792 = vshrl.u32 %v783, 16
      %v794 = vrot.slane %v792, 4
      %v795 = vshll.u32 %v783, 16
      %v797 = vrot.slane %v795, 5
      %v798 = vor.u32 %v794, %v797
      %v799 = vrot.slane %v798, 4
      %v801 = vshll.u32 %v784, 16
      %v803 = vrot.slane %v801, 5
      %v804 = vsel %vm482, %v799, %v803
      %v806 = vshrl.u32 %v785, 16
      %v808 = vrot.slane %v806, 4
      %v809 = vshll.u32 %v785, 16
      %v811 = vrot.slane %v809, 5
      %v812 = vor.u32 %v808, %v811
      %v813 = vrot.slane %v812, 4
      %v815 = vshll.u32 %v786, 16
      %v817 = vrot.slane %v815, 5
      %v818 = vsel %vm482, %v813, %v817
      %v820 = vshrl.u32 %v787, 16
      %v822 = vrot.slane %v820, 4
      %v823 = vshll.u32 %v787, 16
      %v825 = vrot.slane %v823, 5
      %v826 = vor.u32 %v822, %v825
      %v827 = vrot.slane %v826, 4
      %v829 = vshll.u32 %v788, 16
      %v831 = vrot.slane %v829, 5
      %v832 = vsel %vm482, %v827, %v831
      %v834 = vshrl.u32 %v789, 16
      %v836 = vrot.slane %v834, 4
      %v837 = vshll.u32 %v789, 16
      %v839 = vrot.slane %v837, 5
      %v840 = vor.u32 %v836, %v839
      %v841 = vrot.slane %v840, 4
      %v843 = vshll.u32 %v790, 16
      %v845 = vrot.slane %v843, 5
      %v846 = vsel %vm482, %v841, %v845
      %847 = vrot.lane.b32.xlu0 %v804, 126
      %v848 = vpop.permute.xlu0 %847
      %849 = vrot.lane.b32.xlu0 %v818, 126
      %v850 = vpop.permute.xlu0 %849
      %851 = vrot.lane.b32.xlu0 %v832, 126
      %v852 = vpop.permute.xlu0 %851
      %853 = vrot.lane.b32.xlu0 %v846, 126
      %v854 = vpop.permute.xlu0 %853
      %s859 = scalar_lea.vmem [#allocation2], 288
      %860 = vst.msk [vmem:[%s859] sm:$0xf] %vm187, %v848
      %861 = vst.msk [vmem:[%s859 + $0x4] sm:$0xf] %vm187, %v850
      %862 = vst.msk [vmem:[%s859 + $0x8] sm:$0xf] %vm187, %v852
      %863 = vst.msk [vmem:[%s859 + $0xc] sm:$0xf] %vm187, %v854
      %v864 = vld [vmem:[%s192] sm:$0xf]
      %v865 = vld [vmem:[%s192 + $0x4] sm:$0x1]
      %v866 = vld [vmem:[%s192 + $0x8] sm:$0xf]
      %v867 = vld [vmem:[%s192 + $0xc] sm:$0x1]
      %v868 = vld [vmem:[%s192 + $0x10] sm:$0xf]
      %v869 = vld [vmem:[%s192 + $0x14] sm:$0x1]
      %v870 = vld [vmem:[%s192 + $0x18] sm:$0xf]
      %v871 = vld [vmem:[%s192 + $0x1c] sm:$0x1]
      %v873 = vshrl.u32 %v864, 16
      %v875 = vrot.slane %v873, 4
      %v876 = vshll.u32 %v864, 16
      %v878 = vrot.slane %v876, 5
      %v879 = vor.u32 %v875, %v878
      %v880 = vrot.slane %v879, 4
      %v882 = vshll.u32 %v865, 16
      %v884 = vrot.slane %v882, 5
      %v885 = vsel %vm482, %v880, %v884
      %v887 = vshrl.u32 %v866, 16
      %v889 = vrot.slane %v887, 4
      %v890 = vshll.u32 %v866, 16
      %v892 = vrot.slane %v890, 5
      %v893 = vor.u32 %v889, %v892
      %v894 = vrot.slane %v893, 4
      %v896 = vshll.u32 %v867, 16
      %v898 = vrot.slane %v896, 5
      %v899 = vsel %vm482, %v894, %v898
      %v901 = vshrl.u32 %v868, 16
      %v903 = vrot.slane %v901, 4
      %v904 = vshll.u32 %v868, 16
      %v906 = vrot.slane %v904, 5
      %v907 = vor.u32 %v903, %v906
      %v908 = vrot.slane %v907, 4
      %v910 = vshll.u32 %v869, 16
      %v912 = vrot.slane %v910, 5
      %v913 = vsel %vm482, %v908, %v912
      %v915 = vshrl.u32 %v870, 16
      %v917 = vrot.slane %v915, 4
      %v918 = vshll.u32 %v870, 16
      %v920 = vrot.slane %v918, 5
      %v921 = vor.u32 %v917, %v920
      %v922 = vrot.slane %v921, 4
      %v924 = vshll.u32 %v871, 16
      %v926 = vrot.slane %v924, 5
      %v927 = vsel %vm482, %v922, %v926
      %928 = vrot.lane.b32.xlu0 %v885, 126
      %v929 = vpop.permute.xlu0 %928
      %930 = vrot.lane.b32.xlu0 %v899, 126
      %v931 = vpop.permute.xlu0 %930
      %932 = vrot.lane.b32.xlu0 %v913, 126
      %v933 = vpop.permute.xlu0 %932
      %934 = vrot.lane.b32.xlu0 %v927, 126
      %v935 = vpop.permute.xlu0 %934
      %s940 = scalar_lea.vmem [#allocation2], 304
      %941 = vst.msk [vmem:[%s940] sm:$0xf] %vm187, %v929
      %942 = vst.msk [vmem:[%s940 + $0x4] sm:$0xf] %vm187, %v931
      %943 = vst.msk [vmem:[%s940 + $0x8] sm:$0xf] %vm187, %v933
      %944 = vst.msk [vmem:[%s940 + $0xc] sm:$0xf] %vm187, %v935
      %v945 = vld [vmem:[%s172] sm:$0xf]
      %v946 = vld [vmem:[%s172 + $0x4] sm:$0x1]
      %v947 = vld [vmem:[%s172 + $0x8] sm:$0xf]
      %v948 = vld [vmem:[%s172 + $0xc] sm:$0x1]
      %v949 = vld [vmem:[%s172 + $0x10] sm:$0xf]
      %v950 = vld [vmem:[%s172 + $0x14] sm:$0x1]
      %v951 = vld [vmem:[%s172 + $0x18] sm:$0xf]
      %v952 = vld [vmem:[%s172 + $0x1c] sm:$0x1]
      %v954 = vshrl.u32 %v945, 16
      %v956 = vrot.slane %v954, 4
      %v957 = vshll.u32 %v945, 16
      %v959 = vrot.slane %v957, 5
      %v960 = vor.u32 %v956, %v959
      %v961 = vrot.slane %v960, 4
      %v963 = vshll.u32 %v946, 16
      %v965 = vrot.slane %v963, 5
      %v966 = vsel %vm482, %v961, %v965
      %v968 = vshrl.u32 %v947, 16
      %v970 = vrot.slane %v968, 4
      %v971 = vshll.u32 %v947, 16
      %v973 = vrot.slane %v971, 5
      %v974 = vor.u32 %v970, %v973
      %v975 = vrot.slane %v974, 4
      %v977 = vshll.u32 %v948, 16
      %v979 = vrot.slane %v977, 5
      %v980 = vsel %vm482, %v975, %v979
      %v982 = vshrl.u32 %v949, 16
      %v984 = vrot.slane %v982, 4
      %v985 = vshll.u32 %v949, 16
      %v987 = vrot.slane %v985, 5
      %v988 = vor.u32 %v984, %v987
      %v989 = vrot.slane %v988, 4
      %v991 = vshll.u32 %v950, 16
      %v993 = vrot.slane %v991, 5
      %v994 = vsel %vm482, %v989, %v993
      %v996 = vshrl.u32 %v951, 16
      %v998 = vrot.slane %v996, 4
      %v999 = vshll.u32 %v951, 16
      %v1001 = vrot.slane %v999, 5
      %v1002 = vor.u32 %v998, %v1001
      %v1003 = vrot.slane %v1002, 4
      %v1005 = vshll.u32 %v952, 16
      %v1007 = vrot.slane %v1005, 5
      %v1008 = vsel %vm482, %v1003, %v1007
      %1009 = vrot.lane.b32.xlu0 %v966, 125
      %v1010 = vpop.permute.xlu0 %1009
      %1011 = vrot.lane.b32.xlu0 %v980, 125
      %v1012 = vpop.permute.xlu0 %1011
      %1013 = vrot.lane.b32.xlu0 %v994, 125
      %v1014 = vpop.permute.xlu0 %1013
      %1015 = vrot.lane.b32.xlu0 %v1008, 125
      %v1016 = vpop.permute.xlu0 %1015
      %s1021 = scalar_lea.vmem [#allocation2], 320
      %1022 = vst.msk [vmem:[%s1021] sm:$0xf] %vm187, %v1010
      %1023 = vst.msk [vmem:[%s1021 + $0x4] sm:$0xf] %vm187, %v1012
      %1024 = vst.msk [vmem:[%s1021 + $0x8] sm:$0xf] %vm187, %v1014
      %1025 = vst.msk [vmem:[%s1021 + $0xc] sm:$0xf] %vm187, %v1016
      %v1026 = vld [vmem:[%s327] sm:$0xf]
      %v1027 = vld [vmem:[%s327 + $0x4] sm:$0x1]
      %v1028 = vld [vmem:[%s327 + $0x8] sm:$0xf]
      %v1029 = vld [vmem:[%s327 + $0xc] sm:$0x1]
      %v1030 = vld [vmem:[%s327 + $0x10] sm:$0xf]
      %v1031 = vld [vmem:[%s327 + $0x14] sm:$0x1]
      %v1032 = vld [vmem:[%s327 + $0x18] sm:$0xf]
      %v1033 = vld [vmem:[%s327 + $0x1c] sm:$0x1]
      %v1035 = vshrl.u32 %v1026, 16
      %v1037 = vrot.slane %v1035, 4
      %v1038 = vshll.u32 %v1026, 16
      %v1040 = vrot.slane %v1038, 5
      %v1041 = vor.u32 %v1037, %v1040
      %v1042 = vrot.slane %v1041, 4
      %v1044 = vshll.u32 %v1027, 16
      %v1046 = vrot.slane %v1044, 5
      %v1047 = vsel %vm482, %v1042, %v1046
      %v1049 = vshrl.u32 %v1028, 16
      %v1051 = vrot.slane %v1049, 4
      %v1052 = vshll.u32 %v1028, 16
      %v1054 = vrot.slane %v1052, 5
      %v1055 = vor.u32 %v1051, %v1054
      %v1056 = vrot.slane %v1055, 4
      %v1058 = vshll.u32 %v1029, 16
      %v1060 = vrot.slane %v1058, 5
      %v1061 = vsel %vm482, %v1056, %v1060
      %v1063 = vshrl.u32 %v1030, 16
      %v1065 = vrot.slane %v1063, 4
      %v1066 = vshll.u32 %v1030, 16
      %v1068 = vrot.slane %v1066, 5
      %v1069 = vor.u32 %v1065, %v1068
      %v1070 = vrot.slane %v1069, 4
      %v1072 = vshll.u32 %v1031, 16
      %v1074 = vrot.slane %v1072, 5
      %v1075 = vsel %vm482, %v1070, %v1074
      %v1077 = vshrl.u32 %v1032, 16
      %v1079 = vrot.slane %v1077, 4
      %v1080 = vshll.u32 %v1032, 16
      %v1082 = vrot.slane %v1080, 5
      %v1083 = vor.u32 %v1079, %v1082
      %v1084 = vrot.slane %v1083, 4
      %v1086 = vshll.u32 %v1033, 16
      %v1088 = vrot.slane %v1086, 5
      %v1089 = vsel %vm482, %v1084, %v1088
      %s1094 = scalar_lea.vmem [#allocation2], 336
      %1095 = vst.msk [vmem:[%s1094] sm:$0xf] %vm187, %v1047
      %1096 = vst.msk [vmem:[%s1094 + $0x4] sm:$0xf] %vm187, %v1061
      %1097 = vst.msk [vmem:[%s1094 + $0x8] sm:$0xf] %vm187, %v1075
      %1098 = vst.msk [vmem:[%s1094 + $0xc] sm:$0xf] %vm187, %v1089
      %v1099 = vld [vmem:[%s337] sm:$0xf]
      %v1100 = vld [vmem:[%s337 + $0x4] sm:$0x1]
      %v1101 = vld [vmem:[%s337 + $0x8] sm:$0xf]
      %v1102 = vld [vmem:[%s337 + $0xc] sm:$0x1]
      %v1103 = vld [vmem:[%s337 + $0x10] sm:$0xf]
      %v1104 = vld [vmem:[%s337 + $0x14] sm:$0x1]
      %v1105 = vld [vmem:[%s337 + $0x18] sm:$0xf]
      %v1106 = vld [vmem:[%s337 + $0x1c] sm:$0x1]
      %v1108 = vshrl.u32 %v1099, 16
      %v1110 = vrot.slane %v1108, 4
      %v1111 = vshll.u32 %v1099, 16
      %v1113 = vrot.slane %v1111, 5
      %v1114 = vor.u32 %v1110, %v1113
      %v1115 = vrot.slane %v1114, 4
      %v1117 = vshll.u32 %v1100, 16
      %v1119 = vrot.slane %v1117, 5
      %v1120 = vsel %vm482, %v1115, %v1119
      %v1122 = vshrl.u32 %v1101, 16
      %v1124 = vrot.slane %v1122, 4
      %v1125 = vshll.u32 %v1101, 16
      %v1127 = vrot.slane %v1125, 5
      %v1128 = vor.u32 %v1124, %v1127
      %v1129 = vrot.slane %v1128, 4
      %v1131 = vshll.u32 %v1102, 16
      %v1133 = vrot.slane %v1131, 5
      %v1134 = vsel %vm482, %v1129, %v1133
      %v1136 = vshrl.u32 %v1103, 16
      %v1138 = vrot.slane %v1136, 4
      %v1139 = vshll.u32 %v1103, 16
      %v1141 = vrot.slane %v1139, 5
      %v1142 = vor.u32 %v1138, %v1141
      %v1143 = vrot.slane %v1142, 4
      %v1145 = vshll.u32 %v1104, 16
      %v1147 = vrot.slane %v1145, 5
      %v1148 = vsel %vm482, %v1143, %v1147
      %v1150 = vshrl.u32 %v1105, 16
      %v1152 = vrot.slane %v1150, 4
      %v1153 = vshll.u32 %v1105, 16
      %v1155 = vrot.slane %v1153, 5
      %v1156 = vor.u32 %v1152, %v1155
      %v1157 = vrot.slane %v1156, 4
      %v1159 = vshll.u32 %v1106, 16
      %v1161 = vrot.slane %v1159, 5
      %v1162 = vsel %vm482, %v1157, %v1161
      %s1167 = scalar_lea.vmem [#allocation2], 352
      %1168 = vst.msk [vmem:[%s1167] sm:$0xf] %vm187, %v1120
      %1169 = vst.msk [vmem:[%s1167 + $0x4] sm:$0xf] %vm187, %v1134
      %1170 = vst.msk [vmem:[%s1167 + $0x8] sm:$0xf] %vm187, %v1148
      %1171 = vst.msk [vmem:[%s1167 + $0xc] sm:$0xf] %vm187, %v1162
      %v1172 = vld [vmem:[%s327] sm:$0xf]
      %v1173 = vld [vmem:[%s327 + $0x4] sm:$0x1]
      %v1174 = vld [vmem:[%s327 + $0x8] sm:$0xf]
      %v1175 = vld [vmem:[%s327 + $0xc] sm:$0x1]
      %v1176 = vld [vmem:[%s327 + $0x10] sm:$0xf]
      %v1177 = vld [vmem:[%s327 + $0x14] sm:$0x1]
      %v1178 = vld [vmem:[%s327 + $0x18] sm:$0xf]
      %v1179 = vld [vmem:[%s327 + $0x1c] sm:$0x1]
      %v1181 = vshrl.u32 %v1172, 16
      %v1183 = vrot.slane %v1181, 4
      %v1184 = vshll.u32 %v1172, 16
      %v1186 = vrot.slane %v1184, 5
      %v1187 = vor.u32 %v1183, %v1186
      %v1188 = vrot.slane %v1187, 4
      %v1190 = vshll.u32 %v1173, 16
      %v1192 = vrot.slane %v1190, 5
      %v1193 = vsel %vm482, %v1188, %v1192
      %v1195 = vshrl.u32 %v1174, 16
      %v1197 = vrot.slane %v1195, 4
      %v1198 = vshll.u32 %v1174, 16
      %v1200 = vrot.slane %v1198, 5
      %v1201 = vor.u32 %v1197, %v1200
      %v1202 = vrot.slane %v1201, 4
      %v1204 = vshll.u32 %v1175, 16
      %v1206 = vrot.slane %v1204, 5
      %v1207 = vsel %vm482, %v1202, %v1206
      %v1209 = vshrl.u32 %v1176, 16
      %v1211 = vrot.slane %v1209, 4
      %v1212 = vshll.u32 %v1176, 16
      %v1214 = vrot.slane %v1212, 5
      %v1215 = vor.u32 %v1211, %v1214
      %v1216 = vrot.slane %v1215, 4
      %v1218 = vshll.u32 %v1177, 16
      %v1220 = vrot.slane %v1218, 5
      %v1221 = vsel %vm482, %v1216, %v1220
      %v1223 = vshrl.u32 %v1178, 16
      %v1225 = vrot.slane %v1223, 4
      %v1226 = vshll.u32 %v1178, 16
      %v1228 = vrot.slane %v1226, 5
      %v1229 = vor.u32 %v1225, %v1228
      %v1230 = vrot.slane %v1229, 4
      %v1232 = vshll.u32 %v1179, 16
      %v1234 = vrot.slane %v1232, 5
      %v1235 = vsel %vm482, %v1230, %v1234
      %1236 = vrot.lane.b32.xlu0 %v1193, 127
      %v1237 = vpop.permute.xlu0 %1236
      %1238 = vrot.lane.b32.xlu0 %v1207, 127
      %v1239 = vpop.permute.xlu0 %1238
      %1240 = vrot.lane.b32.xlu0 %v1221, 127
      %v1241 = vpop.permute.xlu0 %1240
      %1242 = vrot.lane.b32.xlu0 %v1235, 127
      %v1243 = vpop.permute.xlu0 %1242
      %s1248 = scalar_lea.vmem [#allocation2], 368
      %1249 = vst.msk [vmem:[%s1248] sm:$0xf] %vm187, %v1237
      %1250 = vst.msk [vmem:[%s1248 + $0x4] sm:$0xf] %vm187, %v1239
      %1251 = vst.msk [vmem:[%s1248 + $0x8] sm:$0xf] %vm187, %v1241
      %1252 = vst.msk [vmem:[%s1248 + $0xc] sm:$0xf] %vm187, %v1243
      %v1253 = vld [vmem:[%s337] sm:$0xf]
      %v1254 = vld [vmem:[%s337 + $0x4] sm:$0x1]
      %v1255 = vld [vmem:[%s337 + $0x8] sm:$0xf]
      %v1256 = vld [vmem:[%s337 + $0xc] sm:$0x1]
      %v1257 = vld [vmem:[%s337 + $0x10] sm:$0xf]
      %v1258 = vld [vmem:[%s337 + $0x14] sm:$0x1]
      %v1259 = vld [vmem:[%s337 + $0x18] sm:$0xf]
      %v1260 = vld [vmem:[%s337 + $0x1c] sm:$0x1]
      %v1262 = vshrl.u32 %v1253, 16
      %v1264 = vrot.slane %v1262, 4
      %v1265 = vshll.u32 %v1253, 16
      %v1267 = vrot.slane %v1265, 5
      %v1268 = vor.u32 %v1264, %v1267
      %v1269 = vrot.slane %v1268, 4
      %v1271 = vshll.u32 %v1254, 16
      %v1273 = vrot.slane %v1271, 5
      %v1274 = vsel %vm482, %v1269, %v1273
      %v1276 = vshrl.u32 %v1255, 16
      %v1278 = vrot.slane %v1276, 4
      %v1279 = vshll.u32 %v1255, 16
      %v1281 = vrot.slane %v1279, 5
      %v1282 = vor.u32 %v1278, %v1281
      %v1283 = vrot.slane %v1282, 4
      %v1285 = vshll.u32 %v1256, 16
      %v1287 = vrot.slane %v1285, 5
      %v1288 = vsel %vm482, %v1283, %v1287
      %v1290 = vshrl.u32 %v1257, 16
      %v1292 = vrot.slane %v1290, 4
      %v1293 = vshll.u32 %v1257, 16
      %v1295 = vrot.slane %v1293, 5
      %v1296 = vor.u32 %v1292, %v1295
      %v1297 = vrot.slane %v1296, 4
      %v1299 = vshll.u32 %v1258, 16
      %v1301 = vrot.slane %v1299, 5
      %v1302 = vsel %vm482, %v1297, %v1301
      %v1304 = vshrl.u32 %v1259, 16
      %v1306 = vrot.slane %v1304, 4
      %v1307 = vshll.u32 %v1259, 16
      %v1309 = vrot.slane %v1307, 5
      %v1310 = vor.u32 %v1306, %v1309
      %v1311 = vrot.slane %v1310, 4
      %v1313 = vshll.u32 %v1260, 16
      %v1315 = vrot.slane %v1313, 5
      %v1316 = vsel %vm482, %v1311, %v1315
      %1317 = vrot.lane.b32.xlu0 %v1274, 127
      %v1318 = vpop.permute.xlu0 %1317
      %1319 = vrot.lane.b32.xlu0 %v1288, 127
      %v1320 = vpop.permute.xlu0 %1319
      %1321 = vrot.lane.b32.xlu0 %v1302, 127
      %v1322 = vpop.permute.xlu0 %1321
      %1323 = vrot.lane.b32.xlu0 %v1316, 127
      %v1324 = vpop.permute.xlu0 %1323
      %s1329 = scalar_lea.vmem [#allocation2], 384
      %1330 = vst.msk [vmem:[%s1329] sm:$0xf] %vm187, %v1318
      %1331 = vst.msk [vmem:[%s1329 + $0x4] sm:$0xf] %vm187, %v1320
      %1332 = vst.msk [vmem:[%s1329 + $0x8] sm:$0xf] %vm187, %v1322
      %1333 = vst.msk [vmem:[%s1329 + $0xc] sm:$0xf] %vm187, %v1324
      %v1334 = vld [vmem:[%s327] sm:$0xf]
      %v1335 = vld [vmem:[%s327 + $0x4] sm:$0x1]
      %v1336 = vld [vmem:[%s327 + $0x8] sm:$0xf]
      %v1337 = vld [vmem:[%s327 + $0xc] sm:$0x1]
      %v1338 = vld [vmem:[%s327 + $0x10] sm:$0xf]
      %v1339 = vld [vmem:[%s327 + $0x14] sm:$0x1]
      %v1340 = vld [vmem:[%s327 + $0x18] sm:$0xf]
      %v1341 = vld [vmem:[%s327 + $0x1c] sm:$0x1]
      %v1343 = vshrl.u32 %v1334, 16
      %v1345 = vrot.slane %v1343, 4
      %v1346 = vshll.u32 %v1334, 16
      %v1348 = vrot.slane %v1346, 5
      %v1349 = vor.u32 %v1345, %v1348
      %v1350 = vrot.slane %v1349, 4
      %v1352 = vshll.u32 %v1335, 16
      %v1354 = vrot.slane %v1352, 5
      %v1355 = vsel %vm482, %v1350, %v1354
      %v1357 = vshrl.u32 %v1336, 16
      %v1359 = vrot.slane %v1357, 4
      %v1360 = vshll.u32 %v1336, 16
      %v1362 = vrot.slane %v1360, 5
      %v1363 = vor.u32 %v1359, %v1362
      %v1364 = vrot.slane %v1363, 4
      %v1366 = vshll.u32 %v1337, 16
      %v1368 = vrot.slane %v1366, 5
      %v1369 = vsel %vm482, %v1364, %v1368
      %v1371 = vshrl.u32 %v1338, 16
      %v1373 = vrot.slane %v1371, 4
      %v1374 = vshll.u32 %v1338, 16
      %v1376 = vrot.slane %v1374, 5
      %v1377 = vor.u32 %v1373, %v1376
      %v1378 = vrot.slane %v1377, 4
      %v1380 = vshll.u32 %v1339, 16
      %v1382 = vrot.slane %v1380, 5
      %v1383 = vsel %vm482, %v1378, %v1382
      %v1385 = vshrl.u32 %v1340, 16
      %v1387 = vrot.slane %v1385, 4
      %v1388 = vshll.u32 %v1340, 16
      %v1390 = vrot.slane %v1388, 5
      %v1391 = vor.u32 %v1387, %v1390
      %v1392 = vrot.slane %v1391, 4
      %v1394 = vshll.u32 %v1341, 16
      %v1396 = vrot.slane %v1394, 5
      %v1397 = vsel %vm482, %v1392, %v1396
      %1398 = vrot.lane.b32.xlu0 %v1355, 126
      %v1399 = vpop.permute.xlu0 %1398
      %1400 = vrot.lane.b32.xlu0 %v1369, 126
      %v1401 = vpop.permute.xlu0 %1400
      %1402 = vrot.lane.b32.xlu0 %v1383, 126
      %v1403 = vpop.permute.xlu0 %1402
      %1404 = vrot.lane.b32.xlu0 %v1397, 126
      %v1405 = vpop.permute.xlu0 %1404
      %s1410 = scalar_lea.vmem [#allocation2], 400
      %1411 = vst.msk [vmem:[%s1410] sm:$0xf] %vm187, %v1399
      %1412 = vst.msk [vmem:[%s1410 + $0x4] sm:$0xf] %vm187, %v1401
      %1413 = vst.msk [vmem:[%s1410 + $0x8] sm:$0xf] %vm187, %v1403
      %1414 = vst.msk [vmem:[%s1410 + $0xc] sm:$0xf] %vm187, %v1405
      %v1415 = vld [vmem:[%s337] sm:$0xf]
      %v1416 = vld [vmem:[%s337 + $0x4] sm:$0x1]
      %v1417 = vld [vmem:[%s337 + $0x8] sm:$0xf]
      %v1418 = vld [vmem:[%s337 + $0xc] sm:$0x1]
      %v1419 = vld [vmem:[%s337 + $0x10] sm:$0xf]
      %v1420 = vld [vmem:[%s337 + $0x14] sm:$0x1]
      %v1421 = vld [vmem:[%s337 + $0x18] sm:$0xf]
      %v1422 = vld [vmem:[%s337 + $0x1c] sm:$0x1]
      %v1424 = vshrl.u32 %v1415, 16
      %v1426 = vrot.slane %v1424, 4
      %v1427 = vshll.u32 %v1415, 16
      %v1429 = vrot.slane %v1427, 5
      %v1430 = vor.u32 %v1426, %v1429
      %v1431 = vrot.slane %v1430, 4
      %v1433 = vshll.u32 %v1416, 16
      %v1435 = vrot.slane %v1433, 5
      %v1436 = vsel %vm482, %v1431, %v1435
      %v1438 = vshrl.u32 %v1417, 16
      %v1440 = vrot.slane %v1438, 4
      %v1441 = vshll.u32 %v1417, 16
      %v1443 = vrot.slane %v1441, 5
      %v1444 = vor.u32 %v1440, %v1443
      %v1445 = vrot.slane %v1444, 4
      %v1447 = vshll.u32 %v1418, 16
      %v1449 = vrot.slane %v1447, 5
      %v1450 = vsel %vm482, %v1445, %v1449
      %v1452 = vshrl.u32 %v1419, 16
      %v1454 = vrot.slane %v1452, 4
      %v1455 = vshll.u32 %v1419, 16
      %v1457 = vrot.slane %v1455, 5
      %v1458 = vor.u32 %v1454, %v1457
      %v1459 = vrot.slane %v1458, 4
      %v1461 = vshll.u32 %v1420, 16
      %v1463 = vrot.slane %v1461, 5
      %v1464 = vsel %vm482, %v1459, %v1463
      %v1466 = vshrl.u32 %v1421, 16
      %v1468 = vrot.slane %v1466, 4
      %v1469 = vshll.u32 %v1421, 16
      %v1471 = vrot.slane %v1469, 5
      %v1472 = vor.u32 %v1468, %v1471
      %v1473 = vrot.slane %v1472, 4
      %v1475 = vshll.u32 %v1422, 16
      %v1477 = vrot.slane %v1475, 5
      %v1478 = vsel %vm482, %v1473, %v1477
      %1479 = vrot.lane.b32.xlu0 %v1436, 126
      %v1480 = vpop.permute.xlu0 %1479
      %1481 = vrot.lane.b32.xlu0 %v1450, 126
      %v1482 = vpop.permute.xlu0 %1481
      %1483 = vrot.lane.b32.xlu0 %v1464, 126
      %v1484 = vpop.permute.xlu0 %1483
      %1485 = vrot.lane.b32.xlu0 %v1478, 126
      %v1486 = vpop.permute.xlu0 %1485
      %s1491 = scalar_lea.vmem [#allocation2], 416
      %1492 = vst.msk [vmem:[%s1491] sm:$0xf] %vm187, %v1480
      %1493 = vst.msk [vmem:[%s1491 + $0x4] sm:$0xf] %vm187, %v1482
      %1494 = vst.msk [vmem:[%s1491 + $0x8] sm:$0xf] %vm187, %v1484
      %1495 = vst.msk [vmem:[%s1491 + $0xc] sm:$0xf] %vm187, %v1486
      %v1496 = vld [vmem:[%s327] sm:$0xf]
      %v1497 = vld [vmem:[%s327 + $0x4] sm:$0x1]
      %v1498 = vld [vmem:[%s327 + $0x8] sm:$0xf]
      %v1499 = vld [vmem:[%s327 + $0xc] sm:$0x1]
      %v1500 = vld [vmem:[%s327 + $0x10] sm:$0xf]
      %v1501 = vld [vmem:[%s327 + $0x14] sm:$0x1]
      %v1502 = vld [vmem:[%s327 + $0x18] sm:$0xf]
      %v1503 = vld [vmem:[%s327 + $0x1c] sm:$0x1]
      %v1505 = vshrl.u32 %v1496, 16
      %v1507 = vrot.slane %v1505, 4
      %v1508 = vshll.u32 %v1496, 16
      %v1510 = vrot.slane %v1508, 5
      %v1511 = vor.u32 %v1507, %v1510
      %v1512 = vrot.slane %v1511, 4
      %v1514 = vshll.u32 %v1497, 16
      %v1516 = vrot.slane %v1514, 5
      %v1517 = vsel %vm482, %v1512, %v1516
      %v1519 = vshrl.u32 %v1498, 16
      %v1521 = vrot.slane %v1519, 4
      %v1522 = vshll.u32 %v1498, 16
      %v1524 = vrot.slane %v1522, 5
      %v1525 = vor.u32 %v1521, %v1524
      %v1526 = vrot.slane %v1525, 4
      %v1528 = vshll.u32 %v1499, 16
      %v1530 = vrot.slane %v1528, 5
      %v1531 = vsel %vm482, %v1526, %v1530
      %v1533 = vshrl.u32 %v1500, 16
      %v1535 = vrot.slane %v1533, 4
      %v1536 = vshll.u32 %v1500, 16
      %v1538 = vrot.slane %v1536, 5
      %v1539 = vor.u32 %v1535, %v1538
      %v1540 = vrot.slane %v1539, 4
      %v1542 = vshll.u32 %v1501, 16
      %v1544 = vrot.slane %v1542, 5
      %v1545 = vsel %vm482, %v1540, %v1544
      %v1547 = vshrl.u32 %v1502, 16
      %v1549 = vrot.slane %v1547, 4
      %v1550 = vshll.u32 %v1502, 16
      %v1552 = vrot.slane %v1550, 5
      %v1553 = vor.u32 %v1549, %v1552
      %v1554 = vrot.slane %v1553, 4
      %v1556 = vshll.u32 %v1503, 16
      %v1558 = vrot.slane %v1556, 5
      %v1559 = vsel %vm482, %v1554, %v1558
      %1560 = vrot.lane.b32.xlu0 %v1517, 125
      %v1561 = vpop.permute.xlu0 %1560
      %1562 = vrot.lane.b32.xlu0 %v1531, 125
      %v1563 = vpop.permute.xlu0 %1562
      %1564 = vrot.lane.b32.xlu0 %v1545, 125
      %v1565 = vpop.permute.xlu0 %1564
      %1566 = vrot.lane.b32.xlu0 %v1559, 125
      %v1567 = vpop.permute.xlu0 %1566
      %s1572 = scalar_lea.vmem [#allocation2], 432
      %1573 = vst.msk [vmem:[%s1572] sm:$0xf] %vm187, %v1561
      %1574 = vst.msk [vmem:[%s1572 + $0x4] sm:$0xf] %vm187, %v1563
      %1575 = vst.msk [vmem:[%s1572 + $0x8] sm:$0xf] %vm187, %v1565
      %1576 = vst.msk [vmem:[%s1572 + $0xc] sm:$0xf] %vm187, %v1567
      %v1577 = vld [vmem:[%s172] sm:$0xe]
      %v1578 = vld [vmem:[%s172 + $0x4] sm:$0x1]
      %v1579 = vld [vmem:[%s172 + $0x8] sm:$0xe]
      %v1580 = vld [vmem:[%s172 + $0xc] sm:$0x1]
      %v1581 = vld [vmem:[%s172 + $0x10] sm:$0xe]
      %v1582 = vld [vmem:[%s172 + $0x14] sm:$0x1]
      %v1583 = vld [vmem:[%s172 + $0x18] sm:$0xe]
      %v1584 = vld [vmem:[%s172 + $0x1c] sm:$0x1]
      %vm1593 = vcmask 1042432
      %vm1594 = vcmask 1046532
      %vm1595 = vmor %vm1593, %vm1594
      %v1596 = vrot.slane %v1577, 5
      %v1597 = vrot.slane %v1596, 4
      %v1598 = vrot.slane %v1578, 5
      %v1599 = vsel %vm1595, %v1597, %v1598
      %v1600 = vrot.slane %v1579, 5
      %v1601 = vrot.slane %v1600, 4
      %v1602 = vrot.slane %v1580, 5
      %v1603 = vsel %vm1595, %v1601, %v1602
      %v1604 = vrot.slane %v1581, 5
      %v1605 = vrot.slane %v1604, 4
      %v1606 = vrot.slane %v1582, 5
      %v1607 = vsel %vm1595, %v1605, %v1606
      %v1608 = vrot.slane %v1583, 5
      %v1609 = vrot.slane %v1608, 4
      %v1610 = vrot.slane %v1584, 5
      %v1611 = vsel %vm1595, %v1609, %v1610
      %s1616 = scalar_lea.vmem [#allocation2], 448
      %1617 = vst.msk [vmem:[%s1616] sm:$0xf] %vm187, %v1599
      %1618 = vst.msk [vmem:[%s1616 + $0x4] sm:$0xf] %vm187, %v1603
      %1619 = vst.msk [vmem:[%s1616 + $0x8] sm:$0xf] %vm187, %v1607
      %1620 = vst.msk [vmem:[%s1616 + $0xc] sm:$0xf] %vm187, %v1611
      %v1621 = vld [vmem:[%s192] sm:$0xe]
      %v1622 = vld [vmem:[%s192 + $0x4] sm:$0x1]
      %v1623 = vld [vmem:[%s192 + $0x8] sm:$0xe]
      %v1624 = vld [vmem:[%s192 + $0xc] sm:$0x1]
      %v1625 = vld [vmem:[%s192 + $0x10] sm:$0xe]
      %v1626 = vld [vmem:[%s192 + $0x14] sm:$0x1]
      %v1627 = vld [vmem:[%s192 + $0x18] sm:$0xe]
      %v1628 = vld [vmem:[%s192 + $0x1c] sm:$0x1]
      %v1637 = vrot.slane %v1621, 5
      %v1638 = vrot.slane %v1637, 4
      %v1639 = vrot.slane %v1622, 5
      %v1640 = vsel %vm1595, %v1638, %v1639
      %v1641 = vrot.slane %v1623, 5
      %v1642 = vrot.slane %v1641, 4
      %v1643 = vrot.slane %v1624, 5
      %v1644 = vsel %vm1595, %v1642, %v1643
      %v1645 = vrot.slane %v1625, 5
      %v1646 = vrot.slane %v1645, 4
      %v1647 = vrot.slane %v1626, 5
      %v1648 = vsel %vm1595, %v1646, %v1647
      %v1649 = vrot.slane %v1627, 5
      %v1650 = vrot.slane %v1649, 4
      %v1651 = vrot.slane %v1628, 5
      %v1652 = vsel %vm1595, %v1650, %v1651
      %s1657 = scalar_lea.vmem [#allocation2], 464
      %1658 = vst.msk [vmem:[%s1657] sm:$0xf] %vm187, %v1640
      %1659 = vst.msk [vmem:[%s1657 + $0x4] sm:$0xf] %vm187, %v1644
      %1660 = vst.msk [vmem:[%s1657 + $0x8] sm:$0xf] %vm187, %v1648
      %1661 = vst.msk [vmem:[%s1657 + $0xc] sm:$0xf] %vm187, %v1652
      %v1662 = vld [vmem:[%s172] sm:$0xe]
      %v1663 = vld [vmem:[%s172 + $0x4] sm:$0x1]
      %v1664 = vld [vmem:[%s172 + $0x8] sm:$0xe]
      %v1665 = vld [vmem:[%s172 + $0xc] sm:$0x1]
      %v1666 = vld [vmem:[%s172 + $0x10] sm:$0xe]
      %v1667 = vld [vmem:[%s172 + $0x14] sm:$0x1]
      %v1668 = vld [vmem:[%s172 + $0x18] sm:$0xe]
      %v1669 = vld [vmem:[%s172 + $0x1c] sm:$0x1]
      %v1678 = vrot.slane %v1662, 5
      %v1679 = vrot.slane %v1678, 4
      %v1680 = vrot.slane %v1663, 5
      %v1681 = vsel %vm1595, %v1679, %v1680
      %v1682 = vrot.slane %v1664, 5
      %v1683 = vrot.slane %v1682, 4
      %v1684 = vrot.slane %v1665, 5
      %v1685 = vsel %vm1595, %v1683, %v1684
      %v1686 = vrot.slane %v1666, 5
      %v1687 = vrot.slane %v1686, 4
      %v1688 = vrot.slane %v1667, 5
      %v1689 = vsel %vm1595, %v1687, %v1688
      %v1690 = vrot.slane %v1668, 5
      %v1691 = vrot.slane %v1690, 4
      %v1692 = vrot.slane %v1669, 5
      %v1693 = vsel %vm1595, %v1691, %v1692
      %1694 = vrot.lane.b32.xlu0 %v1681, 127
      %v1695 = vpop.permute.xlu0 %1694
      %1696 = vrot.lane.b32.xlu0 %v1685, 127
      %v1697 = vpop.permute.xlu0 %1696
      %1698 = vrot.lane.b32.xlu0 %v1689, 127
      %v1699 = vpop.permute.xlu0 %1698
      %1700 = vrot.lane.b32.xlu0 %v1693, 127
      %v1701 = vpop.permute.xlu0 %1700
      %s1706 = scalar_lea.vmem [#allocation2], 480
      %1707 = vst.msk [vmem:[%s1706] sm:$0xf] %vm187, %v1695
      %1708 = vst.msk [vmem:[%s1706 + $0x4] sm:$0xf] %vm187, %v1697
      %1709 = vst.msk [vmem:[%s1706 + $0x8] sm:$0xf] %vm187, %v1699
      %1710 = vst.msk [vmem:[%s1706 + $0xc] sm:$0xf] %vm187, %v1701
      %v1711 = vld [vmem:[%s192] sm:$0xe]
      %v1712 = vld [vmem:[%s192 + $0x4] sm:$0x1]
      %v1713 = vld [vmem:[%s192 + $0x8] sm:$0xe]
      %v1714 = vld [vmem:[%s192 + $0xc] sm:$0x1]
      %v1715 = vld [vmem:[%s192 + $0x10] sm:$0xe]
      %v1716 = vld [vmem:[%s192 + $0x14] sm:$0x1]
      %v1717 = vld [vmem:[%s192 + $0x18] sm:$0xe]
      %v1718 = vld [vmem:[%s192 + $0x1c] sm:$0x1]
      %v1727 = vrot.slane %v1711, 5
      %v1728 = vrot.slane %v1727, 4
      %v1729 = vrot.slane %v1712, 5
      %v1730 = vsel %vm1595, %v1728, %v1729
      %v1731 = vrot.slane %v1713, 5
      %v1732 = vrot.slane %v1731, 4
      %v1733 = vrot.slane %v1714, 5
      %v1734 = vsel %vm1595, %v1732, %v1733
      %v1735 = vrot.slane %v1715, 5
      %v1736 = vrot.slane %v1735, 4
      %v1737 = vrot.slane %v1716, 5
      %v1738 = vsel %vm1595, %v1736, %v1737
      %v1739 = vrot.slane %v1717, 5
      %v1740 = vrot.slane %v1739, 4
      %v1741 = vrot.slane %v1718, 5
      %v1742 = vsel %vm1595, %v1740, %v1741
      %1743 = vrot.lane.b32.xlu0 %v1730, 127
      %v1744 = vpop.permute.xlu0 %1743
      %1745 = vrot.lane.b32.xlu0 %v1734, 127
      %v1746 = vpop.permute.xlu0 %1745
      %1747 = vrot.lane.b32.xlu0 %v1738, 127
      %v1748 = vpop.permute.xlu0 %1747
      %1749 = vrot.lane.b32.xlu0 %v1742, 127
      %v1750 = vpop.permute.xlu0 %1749
      %s1755 = scalar_lea.vmem [#allocation2], 496
      %1756 = vst.msk [vmem:[%s1755] sm:$0xf] %vm187, %v1744
      %1757 = vst.msk [vmem:[%s1755 + $0x4] sm:$0xf] %vm187, %v1746
      %1758 = vst.msk [vmem:[%s1755 + $0x8] sm:$0xf] %vm187, %v1748
      %1759 = vst.msk [vmem:[%s1755 + $0xc] sm:$0xf] %vm187, %v1750
      %v1760 = vld [vmem:[%s172] sm:$0xe]
      %v1761 = vld [vmem:[%s172 + $0x4] sm:$0x1]
      %v1762 = vld [vmem:[%s172 + $0x8] sm:$0xe]
      %v1763 = vld [vmem:[%s172 + $0xc] sm:$0x1]
      %v1764 = vld [vmem:[%s172 + $0x10] sm:$0xe]
      %v1765 = vld [vmem:[%s172 + $0x14] sm:$0x1]
      %v1766 = vld [vmem:[%s172 + $0x18] sm:$0xe]
      %v1767 = vld [vmem:[%s172 + $0x1c] sm:$0x1]
      %v1776 = vrot.slane %v1760, 5
      %v1777 = vrot.slane %v1776, 4
      %v1778 = vrot.slane %v1761, 5
      %v1779 = vsel %vm1595, %v1777, %v1778
      %v1780 = vrot.slane %v1762, 5
      %v1781 = vrot.slane %v1780, 4
      %v1782 = vrot.slane %v1763, 5
      %v1783 = vsel %vm1595, %v1781, %v1782
      %v1784 = vrot.slane %v1764, 5
      %v1785 = vrot.slane %v1784, 4
      %v1786 = vrot.slane %v1765, 5
      %v1787 = vsel %vm1595, %v1785, %v1786
      %v1788 = vrot.slane %v1766, 5
      %v1789 = vrot.slane %v1788, 4
      %v1790 = vrot.slane %v1767, 5
      %v1791 = vsel %vm1595, %v1789, %v1790
      %1792 = vrot.lane.b32.xlu0 %v1779, 126
      %v1793 = vpop.permute.xlu0 %1792
      %1794 = vrot.lane.b32.xlu0 %v1783, 126
      %v1795 = vpop.permute.xlu0 %1794
      %1796 = vrot.lane.b32.xlu0 %v1787, 126
      %v1797 = vpop.permute.xlu0 %1796
      %1798 = vrot.lane.b32.xlu0 %v1791, 126
      %v1799 = vpop.permute.xlu0 %1798
      %s1804 = scalar_lea.vmem [#allocation2], 512
      %1805 = vst.msk [vmem:[%s1804] sm:$0xf] %vm187, %v1793
      %1806 = vst.msk [vmem:[%s1804 + $0x4] sm:$0xf] %vm187, %v1795
      %1807 = vst.msk [vmem:[%s1804 + $0x8] sm:$0xf] %vm187, %v1797
      %1808 = vst.msk [vmem:[%s1804 + $0xc] sm:$0xf] %vm187, %v1799
      %v1809 = vld [vmem:[%s192] sm:$0xe]
      %v1810 = vld [vmem:[%s192 + $0x4] sm:$0x1]
      %v1811 = vld [vmem:[%s192 + $0x8] sm:$0xe]
      %v1812 = vld [vmem:[%s192 + $0xc] sm:$0x1]
      %v1813 = vld [vmem:[%s192 + $0x10] sm:$0xe]
      %v1814 = vld [vmem:[%s192 + $0x14] sm:$0x1]
      %v1815 = vld [vmem:[%s192 + $0x18] sm:$0xe]
      %v1816 = vld [vmem:[%s192 + $0x1c] sm:$0x1]
      %v1825 = vrot.slane %v1809, 5
      %v1826 = vrot.slane %v1825, 4
      %v1827 = vrot.slane %v1810, 5
      %v1828 = vsel %vm1595, %v1826, %v1827
      %v1829 = vrot.slane %v1811, 5
      %v1830 = vrot.slane %v1829, 4
      %v1831 = vrot.slane %v1812, 5
      %v1832 = vsel %vm1595, %v1830, %v1831
      %v1833 = vrot.slane %v1813, 5
      %v1834 = vrot.slane %v1833, 4
      %v1835 = vrot.slane %v1814, 5
      %v1836 = vsel %vm1595, %v1834, %v1835
      %v1837 = vrot.slane %v1815, 5
      %v1838 = vrot.slane %v1837, 4
      %v1839 = vrot.slane %v1816, 5
      %v1840 = vsel %vm1595, %v1838, %v1839
      %1841 = vrot.lane.b32.xlu0 %v1828, 126
      %v1842 = vpop.permute.xlu0 %1841
      %1843 = vrot.lane.b32.xlu0 %v1832, 126
      %v1844 = vpop.permute.xlu0 %1843
      %1845 = vrot.lane.b32.xlu0 %v1836, 126
      %v1846 = vpop.permute.xlu0 %1845
      %1847 = vrot.lane.b32.xlu0 %v1840, 126
      %v1848 = vpop.permute.xlu0 %1847
      %s1853 = scalar_lea.vmem [#allocation2], 528
      %1854 = vst.msk [vmem:[%s1853] sm:$0xf] %vm187, %v1842
      %1855 = vst.msk [vmem:[%s1853 + $0x4] sm:$0xf] %vm187, %v1844
      %1856 = vst.msk [vmem:[%s1853 + $0x8] sm:$0xf] %vm187, %v1846
      %1857 = vst.msk [vmem:[%s1853 + $0xc] sm:$0xf] %vm187, %v1848
      %v1858 = vld [vmem:[%s172] sm:$0xe]
      %v1859 = vld [vmem:[%s172 + $0x4] sm:$0x1]
      %v1860 = vld [vmem:[%s172 + $0x8] sm:$0xe]
      %v1861 = vld [vmem:[%s172 + $0xc] sm:$0x1]
      %v1862 = vld [vmem:[%s172 + $0x10] sm:$0xe]
      %v1863 = vld [vmem:[%s172 + $0x14] sm:$0x1]
      %v1864 = vld [vmem:[%s172 + $0x18] sm:$0xe]
      %v1865 = vld [vmem:[%s172 + $0x1c] sm:$0x1]
      %v1874 = vrot.slane %v1858, 5
      %v1875 = vrot.slane %v1874, 4
      %v1876 = vrot.slane %v1859, 5
      %v1877 = vsel %vm1595, %v1875, %v1876
      %v1878 = vrot.slane %v1860, 5
      %v1879 = vrot.slane %v1878, 4
      %v1880 = vrot.slane %v1861, 5
      %v1881 = vsel %vm1595, %v1879, %v1880
      %v1882 = vrot.slane %v1862, 5
      %v1883 = vrot.slane %v1882, 4
      %v1884 = vrot.slane %v1863, 5
      %v1885 = vsel %vm1595, %v1883, %v1884
      %v1886 = vrot.slane %v1864, 5
      %v1887 = vrot.slane %v1886, 4
      %v1888 = vrot.slane %v1865, 5
      %v1889 = vsel %vm1595, %v1887, %v1888
      %1890 = vrot.lane.b32.xlu0 %v1877, 125
      %v1891 = vpop.permute.xlu0 %1890
      %1892 = vrot.lane.b32.xlu0 %v1881, 125
      %v1893 = vpop.permute.xlu0 %1892
      %1894 = vrot.lane.b32.xlu0 %v1885, 125
      %v1895 = vpop.permute.xlu0 %1894
      %1896 = vrot.lane.b32.xlu0 %v1889, 125
      %v1897 = vpop.permute.xlu0 %1896
      %s1902 = scalar_lea.vmem [#allocation2], 544
      %1903 = vst.msk [vmem:[%s1902] sm:$0xf] %vm187, %v1891
      %1904 = vst.msk [vmem:[%s1902 + $0x4] sm:$0xf] %vm187, %v1893
      %1905 = vst.msk [vmem:[%s1902 + $0x8] sm:$0xf] %vm187, %v1895
      %1906 = vst.msk [vmem:[%s1902 + $0xc] sm:$0xf] %vm187, %v1897
      %v1907 = vld [vmem:[%s327] sm:$0xe]
      %v1908 = vld [vmem:[%s327 + $0x4] sm:$0x1]
      %v1909 = vld [vmem:[%s327 + $0x8] sm:$0xe]
      %v1910 = vld [vmem:[%s327 + $0xc] sm:$0x1]
      %v1911 = vld [vmem:[%s327 + $0x10] sm:$0xe]
      %v1912 = vld [vmem:[%s327 + $0x14] sm:$0x1]
      %v1913 = vld [vmem:[%s327 + $0x18] sm:$0xe]
      %v1914 = vld [vmem:[%s327 + $0x1c] sm:$0x1]
      %v1923 = vrot.slane %v1907, 5
      %v1924 = vrot.slane %v1923, 4
      %v1925 = vrot.slane %v1908, 5
      %v1926 = vsel %vm1595, %v1924, %v1925
      %v1927 = vrot.slane %v1909, 5
      %v1928 = vrot.slane %v1927, 4
      %v1929 = vrot.slane %v1910, 5
      %v1930 = vsel %vm1595, %v1928, %v1929
      %v1931 = vrot.slane %v1911, 5
      %v1932 = vrot.slane %v1931, 4
      %v1933 = vrot.slane %v1912, 5
      %v1934 = vsel %vm1595, %v1932, %v1933
      %v1935 = vrot.slane %v1913, 5
      %v1936 = vrot.slane %v1935, 4
      %v1937 = vrot.slane %v1914, 5
      %v1938 = vsel %vm1595, %v1936, %v1937
      %s1943 = scalar_lea.vmem [#allocation2], 560
      %1944 = vst.msk [vmem:[%s1943] sm:$0xf] %vm187, %v1926
      %1945 = vst.msk [vmem:[%s1943 + $0x4] sm:$0xf] %vm187, %v1930
      %1946 = vst.msk [vmem:[%s1943 + $0x8] sm:$0xf] %vm187, %v1934
      %1947 = vst.msk [vmem:[%s1943 + $0xc] sm:$0xf] %vm187, %v1938
      %v1948 = vld [vmem:[%s337] sm:$0xe]
      %v1949 = vld [vmem:[%s337 + $0x4] sm:$0x1]
      %v1950 = vld [vmem:[%s337 + $0x8] sm:$0xe]
      %v1951 = vld [vmem:[%s337 + $0xc] sm:$0x1]
      %v1952 = vld [vmem:[%s337 + $0x10] sm:$0xe]
      %v1953 = vld [vmem:[%s337 + $0x14] sm:$0x1]
      %v1954 = vld [vmem:[%s337 + $0x18] sm:$0xe]
      %v1955 = vld [vmem:[%s337 + $0x1c] sm:$0x1]
      %v1964 = vrot.slane %v1948, 5
      %v1965 = vrot.slane %v1964, 4
      %v1966 = vrot.slane %v1949, 5
      %v1967 = vsel %vm1595, %v1965, %v1966
      %v1968 = vrot.slane %v1950, 5
      %v1969 = vrot.slane %v1968, 4
      %v1970 = vrot.slane %v1951, 5
      %v1971 = vsel %vm1595, %v1969, %v1970
      %v1972 = vrot.slane %v1952, 5
      %v1973 = vrot.slane %v1972, 4
      %v1974 = vrot.slane %v1953, 5
      %v1975 = vsel %vm1595, %v1973, %v1974
      %v1976 = vrot.slane %v1954, 5
      %v1977 = vrot.slane %v1976, 4
      %v1978 = vrot.slane %v1955, 5
      %v1979 = vsel %vm1595, %v1977, %v1978
      %s1984 = scalar_lea.vmem [#allocation2], 576
      %1985 = vst.msk [vmem:[%s1984] sm:$0xf] %vm187, %v1967
      %1986 = vst.msk [vmem:[%s1984 + $0x4] sm:$0xf] %vm187, %v1971
      %1987 = vst.msk [vmem:[%s1984 + $0x8] sm:$0xf] %vm187, %v1975
      %1988 = vst.msk [vmem:[%s1984 + $0xc] sm:$0xf] %vm187, %v1979
      %v1989 = vld [vmem:[%s327] sm:$0xe]
      %v1990 = vld [vmem:[%s327 + $0x4] sm:$0x1]
      %v1991 = vld [vmem:[%s327 + $0x8] sm:$0xe]
      %v1992 = vld [vmem:[%s327 + $0xc] sm:$0x1]
      %v1993 = vld [vmem:[%s327 + $0x10] sm:$0xe]
      %v1994 = vld [vmem:[%s327 + $0x14] sm:$0x1]
      %v1995 = vld [vmem:[%s327 + $0x18] sm:$0xe]
      %v1996 = vld [vmem:[%s327 + $0x1c] sm:$0x1]
      %v2005 = vrot.slane %v1989, 5
      %v2006 = vrot.slane %v2005, 4
      %v2007 = vrot.slane %v1990, 5
      %v2008 = vsel %vm1595, %v2006, %v2007
      %v2009 = vrot.slane %v1991, 5
      %v2010 = vrot.slane %v2009, 4
      %v2011 = vrot.slane %v1992, 5
      %v2012 = vsel %vm1595, %v2010, %v2011
      %v2013 = vrot.slane %v1993, 5
      %v2014 = vrot.slane %v2013, 4
      %v2015 = vrot.slane %v1994, 5
      %v2016 = vsel %vm1595, %v2014, %v2015
      %v2017 = vrot.slane %v1995, 5
      %v2018 = vrot.slane %v2017, 4
      %v2019 = vrot.slane %v1996, 5
      %v2020 = vsel %vm1595, %v2018, %v2019
      %2021 = vrot.lane.b32.xlu0 %v2008, 127
      %v2022 = vpop.permute.xlu0 %2021
      %2023 = vrot.lane.b32.xlu0 %v2012, 127
      %v2024 = vpop.permute.xlu0 %2023
      %2025 = vrot.lane.b32.xlu0 %v2016, 127
      %v2026 = vpop.permute.xlu0 %2025
      %2027 = vrot.lane.b32.xlu0 %v2020, 127
      %v2028 = vpop.permute.xlu0 %2027
      %s2033 = scalar_lea.vmem [#allocation2], 592
      %2034 = vst.msk [vmem:[%s2033] sm:$0xf] %vm187, %v2022
      %2035 = vst.msk [vmem:[%s2033 + $0x4] sm:$0xf] %vm187, %v2024
      %2036 = vst.msk [vmem:[%s2033 + $0x8] sm:$0xf] %vm187, %v2026
      %2037 = vst.msk [vmem:[%s2033 + $0xc] sm:$0xf] %vm187, %v2028
      %v2038 = vld [vmem:[%s337] sm:$0xe]
      %v2039 = vld [vmem:[%s337 + $0x4] sm:$0x1]
      %v2040 = vld [vmem:[%s337 + $0x8] sm:$0xe]
      %v2041 = vld [vmem:[%s337 + $0xc] sm:$0x1]
      %v2042 = vld [vmem:[%s337 + $0x10] sm:$0xe]
      %v2043 = vld [vmem:[%s337 + $0x14] sm:$0x1]
      %v2044 = vld [vmem:[%s337 + $0x18] sm:$0xe]
      %v2045 = vld [vmem:[%s337 + $0x1c] sm:$0x1]
      %v2054 = vrot.slane %v2038, 5
      %v2055 = vrot.slane %v2054, 4
      %v2056 = vrot.slane %v2039, 5
      %v2057 = vsel %vm1595, %v2055, %v2056
      %v2058 = vrot.slane %v2040, 5
      %v2059 = vrot.slane %v2058, 4
      %v2060 = vrot.slane %v2041, 5
      %v2061 = vsel %vm1595, %v2059, %v2060
      %v2062 = vrot.slane %v2042, 5
      %v2063 = vrot.slane %v2062, 4
      %v2064 = vrot.slane %v2043, 5
      %v2065 = vsel %vm1595, %v2063, %v2064
      %v2066 = vrot.slane %v2044, 5
      %v2067 = vrot.slane %v2066, 4
      %v2068 = vrot.slane %v2045, 5
      %v2069 = vsel %vm1595, %v2067, %v2068
      %2070 = vrot.lane.b32.xlu0 %v2057, 127
      %v2071 = vpop.permute.xlu0 %2070
      %2072 = vrot.lane.b32.xlu0 %v2061, 127
      %v2073 = vpop.permute.xlu0 %2072
      %2074 = vrot.lane.b32.xlu0 %v2065, 127
      %v2075 = vpop.permute.xlu0 %2074
      %2076 = vrot.lane.b32.xlu0 %v2069, 127
      %v2077 = vpop.permute.xlu0 %2076
      %s2082 = scalar_lea.vmem [#allocation2], 608
      %2083 = vst.msk [vmem:[%s2082] sm:$0xf] %vm187, %v2071
      %2084 = vst.msk [vmem:[%s2082 + $0x4] sm:$0xf] %vm187, %v2073
      %2085 = vst.msk [vmem:[%s2082 + $0x8] sm:$0xf] %vm187, %v2075
      %2086 = vst.msk [vmem:[%s2082 + $0xc] sm:$0xf] %vm187, %v2077
      %v2087 = vld [vmem:[%s327] sm:$0xe]
      %v2088 = vld [vmem:[%s327 + $0x4] sm:$0x1]
      %v2089 = vld [vmem:[%s327 + $0x8] sm:$0xe]
      %v2090 = vld [vmem:[%s327 + $0xc] sm:$0x1]
      %v2091 = vld [vmem:[%s327 + $0x10] sm:$0xe]
      %v2092 = vld [vmem:[%s327 + $0x14] sm:$0x1]
      %v2093 = vld [vmem:[%s327 + $0x18] sm:$0xe]
      %v2094 = vld [vmem:[%s327 + $0x1c] sm:$0x1]
      %v2103 = vrot.slane %v2087, 5
      %v2104 = vrot.slane %v2103, 4
      %v2105 = vrot.slane %v2088, 5
      %v2106 = vsel %vm1595, %v2104, %v2105
      %v2107 = vrot.slane %v2089, 5
      %v2108 = vrot.slane %v2107, 4
      %v2109 = vrot.slane %v2090, 5
      %v2110 = vsel %vm1595, %v2108, %v2109
      %v2111 = vrot.slane %v2091, 5
      %v2112 = vrot.slane %v2111, 4
      %v2113 = vrot.slane %v2092, 5
      %v2114 = vsel %vm1595, %v2112, %v2113
      %v2115 = vrot.slane %v2093, 5
      %v2116 = vrot.slane %v2115, 4
      %v2117 = vrot.slane %v2094, 5
      %v2118 = vsel %vm1595, %v2116, %v2117
      %2119 = vrot.lane.b32.xlu0 %v2106, 126
      %v2120 = vpop.permute.xlu0 %2119
      %2121 = vrot.lane.b32.xlu0 %v2110, 126
      %v2122 = vpop.permute.xlu0 %2121
      %2123 = vrot.lane.b32.xlu0 %v2114, 126
      %v2124 = vpop.permute.xlu0 %2123
      %2125 = vrot.lane.b32.xlu0 %v2118, 126
      %v2126 = vpop.permute.xlu0 %2125
      %s2131 = scalar_lea.vmem [#allocation2], 624
      %2132 = vst.msk [vmem:[%s2131] sm:$0xf] %vm187, %v2120
      %2133 = vst.msk [vmem:[%s2131 + $0x4] sm:$0xf] %vm187, %v2122
      %2134 = vst.msk [vmem:[%s2131 + $0x8] sm:$0xf] %vm187, %v2124
      %2135 = vst.msk [vmem:[%s2131 + $0xc] sm:$0xf] %vm187, %v2126
      %v2136 = vld [vmem:[%s337] sm:$0xe]
      %v2137 = vld [vmem:[%s337 + $0x4] sm:$0x1]
      %v2138 = vld [vmem:[%s337 + $0x8] sm:$0xe]
      %v2139 = vld [vmem:[%s337 + $0xc] sm:$0x1]
      %v2140 = vld [vmem:[%s337 + $0x10] sm:$0xe]
      %v2141 = vld [vmem:[%s337 + $0x14] sm:$0x1]
      %v2142 = vld [vmem:[%s337 + $0x18] sm:$0xe]
      %v2143 = vld [vmem:[%s337 + $0x1c] sm:$0x1]
      %v2152 = vrot.slane %v2136, 5
      %v2153 = vrot.slane %v2152, 4
      %v2154 = vrot.slane %v2137, 5
      %v2155 = vsel %vm1595, %v2153, %v2154
      %v2156 = vrot.slane %v2138, 5
      %v2157 = vrot.slane %v2156, 4
      %v2158 = vrot.slane %v2139, 5
      %v2159 = vsel %vm1595, %v2157, %v2158
      %v2160 = vrot.slane %v2140, 5
      %v2161 = vrot.slane %v2160, 4
      %v2162 = vrot.slane %v2141, 5
      %v2163 = vsel %vm1595, %v2161, %v2162
      %v2164 = vrot.slane %v2142, 5
      %v2165 = vrot.slane %v2164, 4
      %v2166 = vrot.slane %v2143, 5
      %v2167 = vsel %vm1595, %v2165, %v2166
      %2168 = vrot.lane.b32.xlu0 %v2155, 126
      %v2169 = vpop.permute.xlu0 %2168
      %2170 = vrot.lane.b32.xlu0 %v2159, 126
      %v2171 = vpop.permute.xlu0 %2170
      %2172 = vrot.lane.b32.xlu0 %v2163, 126
      %v2173 = vpop.permute.xlu0 %2172
      %2174 = vrot.lane.b32.xlu0 %v2167, 126
      %v2175 = vpop.permute.xlu0 %2174
      %s2180 = scalar_lea.vmem [#allocation2], 640
      %2181 = vst.msk [vmem:[%s2180] sm:$0xf] %vm187, %v2169
      %2182 = vst.msk [vmem:[%s2180 + $0x4] sm:$0xf] %vm187, %v2171
      %2183 = vst.msk [vmem:[%s2180 + $0x8] sm:$0xf] %vm187, %v2173
      %2184 = vst.msk [vmem:[%s2180 + $0xc] sm:$0xf] %vm187, %v2175
      %v2185 = vld [vmem:[%s327] sm:$0xe]
      %v2186 = vld [vmem:[%s327 + $0x4] sm:$0x1]
      %v2187 = vld [vmem:[%s327 + $0x8] sm:$0xe]
      %v2188 = vld [vmem:[%s327 + $0xc] sm:$0x1]
      %v2189 = vld [vmem:[%s327 + $0x10] sm:$0xe]
      %v2190 = vld [vmem:[%s327 + $0x14] sm:$0x1]
      %v2191 = vld [vmem:[%s327 + $0x18] sm:$0xe]
      %v2192 = vld [vmem:[%s327 + $0x1c] sm:$0x1]
      %v2201 = vrot.slane %v2185, 5
      %v2202 = vrot.slane %v2201, 4
      %v2203 = vrot.slane %v2186, 5
      %v2204 = vsel %vm1595, %v2202, %v2203
      %v2205 = vrot.slane %v2187, 5
      %v2206 = vrot.slane %v2205, 4
      %v2207 = vrot.slane %v2188, 5
      %v2208 = vsel %vm1595, %v2206, %v2207
      %v2209 = vrot.slane %v2189, 5
      %v2210 = vrot.slane %v2209, 4
      %v2211 = vrot.slane %v2190, 5
      %v2212 = vsel %vm1595, %v2210, %v2211
      %v2213 = vrot.slane %v2191, 5
      %v2214 = vrot.slane %v2213, 4
      %v2215 = vrot.slane %v2192, 5
      %v2216 = vsel %vm1595, %v2214, %v2215
      %2217 = vrot.lane.b32.xlu0 %v2204, 125
      %v2218 = vpop.permute.xlu0 %2217
      %2219 = vrot.lane.b32.xlu0 %v2208, 125
      %v2220 = vpop.permute.xlu0 %2219
      %2221 = vrot.lane.b32.xlu0 %v2212, 125
      %v2222 = vpop.permute.xlu0 %2221
      %2223 = vrot.lane.b32.xlu0 %v2216, 125
      %v2224 = vpop.permute.xlu0 %2223
      %s2229 = scalar_lea.vmem [#allocation2], 656
      %2230 = vst.msk [vmem:[%s2229] sm:$0xf] %vm187, %v2218
      %2231 = vst.msk [vmem:[%s2229 + $0x4] sm:$0xf] %vm187, %v2220
      %2232 = vst.msk [vmem:[%s2229 + $0x8] sm:$0xf] %vm187, %v2222
      %2233 = vst.msk [vmem:[%s2229 + $0xc] sm:$0xf] %vm187, %v2224
      %v2234 = vld [vmem:[%s172] sm:$0xe]
      %v2235 = vld [vmem:[%s172 + $0x4] sm:$0x3]
      %v2236 = vld [vmem:[%s172 + $0x8] sm:$0xe]
      %v2237 = vld [vmem:[%s172 + $0xc] sm:$0x3]
      %v2238 = vld [vmem:[%s172 + $0x10] sm:$0xe]
      %v2239 = vld [vmem:[%s172 + $0x14] sm:$0x3]
      %v2240 = vld [vmem:[%s172 + $0x18] sm:$0xe]
      %v2241 = vld [vmem:[%s172 + $0x1c] sm:$0x3]
      %vm2242 = vsmask.f32 2304
      %vm2243 = vsmask.f32 6416
      %vm2244 = vmor %vm2242, %vm2243
      %v2246 = vshrl.u32 %v2234, 16
      %v2248 = vrot.slane %v2246, 5
      %v2249 = vshll.u32 %v2234, 16
      %v2251 = vrot.slane %v2249, 6
      %v2252 = vor.u32 %v2248, %v2251
      %v2253 = vrot.slane %v2252, 4
      %v2255 = vshrl.u32 %v2235, 16
      %v2257 = vrot.slane %v2255, 5
      %v2258 = vshll.u32 %v2235, 16
      %v2260 = vrot.slane %v2258, 6
      %v2261 = vor.u32 %v2257, %v2260
      %v2262 = vsel %vm2244, %v2253, %v2261
      %v2264 = vshrl.u32 %v2236, 16
      %v2266 = vrot.slane %v2264, 5
      %v2267 = vshll.u32 %v2236, 16
      %v2269 = vrot.slane %v2267, 6
      %v2270 = vor.u32 %v2266, %v2269
      %v2271 = vrot.slane %v2270, 4
      %v2273 = vshrl.u32 %v2237, 16
      %v2275 = vrot.slane %v2273, 5
      %v2276 = vshll.u32 %v2237, 16
      %v2278 = vrot.slane %v2276, 6
      %v2279 = vor.u32 %v2275, %v2278
      %v2280 = vsel %vm2244, %v2271, %v2279
      %v2282 = vshrl.u32 %v2238, 16
      %v2284 = vrot.slane %v2282, 5
      %v2285 = vshll.u32 %v2238, 16
      %v2287 = vrot.slane %v2285, 6
      %v2288 = vor.u32 %v2284, %v2287
      %v2289 = vrot.slane %v2288, 4
      %v2291 = vshrl.u32 %v2239, 16
      %v2293 = vrot.slane %v2291, 5
      %v2294 = vshll.u32 %v2239, 16
      %v2296 = vrot.slane %v2294, 6
      %v2297 = vor.u32 %v2293, %v2296
      %v2298 = vsel %vm2244, %v2289, %v2297
      %v2300 = vshrl.u32 %v2240, 16
      %v2302 = vrot.slane %v2300, 5
      %v2303 = vshll.u32 %v2240, 16
      %v2305 = vrot.slane %v2303, 6
      %v2306 = vor.u32 %v2302, %v2305
      %v2307 = vrot.slane %v2306, 4
      %v2309 = vshrl.u32 %v2241, 16
      %v2311 = vrot.slane %v2309, 5
      %v2312 = vshll.u32 %v2241, 16
      %v2314 = vrot.slane %v2312, 6
      %v2315 = vor.u32 %v2311, %v2314
      %v2316 = vsel %vm2244, %v2307, %v2315
      %s2321 = scalar_lea.vmem [#allocation2], 672
      %2322 = vst.msk [vmem:[%s2321] sm:$0xf] %vm187, %v2262
      %2323 = vst.msk [vmem:[%s2321 + $0x4] sm:$0xf] %vm187, %v2280
      %2324 = vst.msk [vmem:[%s2321 + $0x8] sm:$0xf] %vm187, %v2298
      %2325 = vst.msk [vmem:[%s2321 + $0xc] sm:$0xf] %vm187, %v2316
      %v2326 = vld [vmem:[%s192] sm:$0xe]
      %v2327 = vld [vmem:[%s192 + $0x4] sm:$0x3]
      %v2328 = vld [vmem:[%s192 + $0x8] sm:$0xe]
      %v2329 = vld [vmem:[%s192 + $0xc] sm:$0x3]
      %v2330 = vld [vmem:[%s192 + $0x10] sm:$0xe]
      %v2331 = vld [vmem:[%s192 + $0x14] sm:$0x3]
      %v2332 = vld [vmem:[%s192 + $0x18] sm:$0xe]
      %v2333 = vld [vmem:[%s192 + $0x1c] sm:$0x3]
      %v2335 = vshrl.u32 %v2326, 16
      %v2337 = vrot.slane %v2335, 5
      %v2338 = vshll.u32 %v2326, 16
      %v2340 = vrot.slane %v2338, 6
      %v2341 = vor.u32 %v2337, %v2340
      %v2342 = vrot.slane %v2341, 4
      %v2344 = vshrl.u32 %v2327, 16
      %v2346 = vrot.slane %v2344, 5
      %v2347 = vshll.u32 %v2327, 16
      %v2349 = vrot.slane %v2347, 6
      %v2350 = vor.u32 %v2346, %v2349
      %v2351 = vsel %vm2244, %v2342, %v2350
      %v2353 = vshrl.u32 %v2328, 16
      %v2355 = vrot.slane %v2353, 5
      %v2356 = vshll.u32 %v2328, 16
      %v2358 = vrot.slane %v2356, 6
      %v2359 = vor.u32 %v2355, %v2358
      %v2360 = vrot.slane %v2359, 4
      %v2362 = vshrl.u32 %v2329, 16
      %v2364 = vrot.slane %v2362, 5
      %v2365 = vshll.u32 %v2329, 16
      %v2367 = vrot.slane %v2365, 6
      %v2368 = vor.u32 %v2364, %v2367
      %v2369 = vsel %vm2244, %v2360, %v2368
      %v2371 = vshrl.u32 %v2330, 16
      %v2373 = vrot.slane %v2371, 5
      %v2374 = vshll.u32 %v2330, 16
      %v2376 = vrot.slane %v2374, 6
      %v2377 = vor.u32 %v2373, %v2376
      %v2378 = vrot.slane %v2377, 4
      %v2380 = vshrl.u32 %v2331, 16
      %v2382 = vrot.slane %v2380, 5
      %v2383 = vshll.u32 %v2331, 16
      %v2385 = vrot.slane %v2383, 6
      %v2386 = vor.u32 %v2382, %v2385
      %v2387 = vsel %vm2244, %v2378, %v2386
      %v2389 = vshrl.u32 %v2332, 16
      %v2391 = vrot.slane %v2389, 5
      %v2392 = vshll.u32 %v2332, 16
      %v2394 = vrot.slane %v2392, 6
      %v2395 = vor.u32 %v2391, %v2394
      %v2396 = vrot.slane %v2395, 4
      %v2398 = vshrl.u32 %v2333, 16
      %v2400 = vrot.slane %v2398, 5
      %v2401 = vshll.u32 %v2333, 16
      %v2403 = vrot.slane %v2401, 6
      %v2404 = vor.u32 %v2400, %v2403
      %v2405 = vsel %vm2244, %v2396, %v2404
      %s2410 = scalar_lea.vmem [#allocation2], 688
      %2411 = vst.msk [vmem:[%s2410] sm:$0xf] %vm187, %v2351
      %2412 = vst.msk [vmem:[%s2410 + $0x4] sm:$0xf] %vm187, %v2369
      %2413 = vst.msk [vmem:[%s2410 + $0x8] sm:$0xf] %vm187, %v2387
      %2414 = vst.msk [vmem:[%s2410 + $0xc] sm:$0xf] %vm187, %v2405
      %v2415 = vld [vmem:[%s172] sm:$0xe]
      %v2416 = vld [vmem:[%s172 + $0x4] sm:$0x3]
      %v2417 = vld [vmem:[%s172 + $0x8] sm:$0xe]
      %v2418 = vld [vmem:[%s172 + $0xc] sm:$0x3]
      %v2419 = vld [vmem:[%s172 + $0x10] sm:$0xe]
      %v2420 = vld [vmem:[%s172 + $0x14] sm:$0x3]
      %v2421 = vld [vmem:[%s172 + $0x18] sm:$0xe]
      %v2422 = vld [vmem:[%s172 + $0x1c] sm:$0x3]
      %v2424 = vshrl.u32 %v2415, 16
      %v2426 = vrot.slane %v2424, 5
      %v2427 = vshll.u32 %v2415, 16
      %v2429 = vrot.slane %v2427, 6
      %v2430 = vor.u32 %v2426, %v2429
      %v2431 = vrot.slane %v2430, 4
      %v2433 = vshrl.u32 %v2416, 16
      %v2435 = vrot.slane %v2433, 5
      %v2436 = vshll.u32 %v2416, 16
      %v2438 = vrot.slane %v2436, 6
      %v2439 = vor.u32 %v2435, %v2438
      %v2440 = vsel %vm2244, %v2431, %v2439
      %v2442 = vshrl.u32 %v2417, 16
      %v2444 = vrot.slane %v2442, 5
      %v2445 = vshll.u32 %v2417, 16
      %v2447 = vrot.slane %v2445, 6
      %v2448 = vor.u32 %v2444, %v2447
      %v2449 = vrot.slane %v2448, 4
      %v2451 = vshrl.u32 %v2418, 16
      %v2453 = vrot.slane %v2451, 5
      %v2454 = vshll.u32 %v2418, 16
      %v2456 = vrot.slane %v2454, 6
      %v2457 = vor.u32 %v2453, %v2456
      %v2458 = vsel %vm2244, %v2449, %v2457
      %v2460 = vshrl.u32 %v2419, 16
      %v2462 = vrot.slane %v2460, 5
      %v2463 = vshll.u32 %v2419, 16
      %v2465 = vrot.slane %v2463, 6
      %v2466 = vor.u32 %v2462, %v2465
      %v2467 = vrot.slane %v2466, 4
      %v2469 = vshrl.u32 %v2420, 16
      %v2471 = vrot.slane %v2469, 5
      %v2472 = vshll.u32 %v2420, 16
      %v2474 = vrot.slane %v2472, 6
      %v2475 = vor.u32 %v2471, %v2474
      %v2476 = vsel %vm2244, %v2467, %v2475
      %v2478 = vshrl.u32 %v2421, 16
      %v2480 = vrot.slane %v2478, 5
      %v2481 = vshll.u32 %v2421, 16
      %v2483 = vrot.slane %v2481, 6
      %v2484 = vor.u32 %v2480, %v2483
      %v2485 = vrot.slane %v2484, 4
      %v2487 = vshrl.u32 %v2422, 16
      %v2489 = vrot.slane %v2487, 5
      %v2490 = vshll.u32 %v2422, 16
      %v2492 = vrot.slane %v2490, 6
      %v2493 = vor.u32 %v2489, %v2492
      %v2494 = vsel %vm2244, %v2485, %v2493
      %2495 = vrot.lane.b32.xlu0 %v2440, 127
      %v2496 = vpop.permute.xlu0 %2495
      %2497 = vrot.lane.b32.xlu0 %v2458, 127
      %v2498 = vpop.permute.xlu0 %2497
      %2499 = vrot.lane.b32.xlu0 %v2476, 127
      %v2500 = vpop.permute.xlu0 %2499
      %2501 = vrot.lane.b32.xlu0 %v2494, 127
      %v2502 = vpop.permute.xlu0 %2501
      %s2507 = scalar_lea.vmem [#allocation2], 704
      %2508 = vst.msk [vmem:[%s2507] sm:$0xf] %vm187, %v2496
      %2509 = vst.msk [vmem:[%s2507 + $0x4] sm:$0xf] %vm187, %v2498
      %2510 = vst.msk [vmem:[%s2507 + $0x8] sm:$0xf] %vm187, %v2500
      %2511 = vst.msk [vmem:[%s2507 + $0xc] sm:$0xf] %vm187, %v2502
      %v2512 = vld [vmem:[%s192] sm:$0xe]
      %v2513 = vld [vmem:[%s192 + $0x4] sm:$0x3]
      %v2514 = vld [vmem:[%s192 + $0x8] sm:$0xe]
      %v2515 = vld [vmem:[%s192 + $0xc] sm:$0x3]
      %v2516 = vld [vmem:[%s192 + $0x10] sm:$0xe]
      %v2517 = vld [vmem:[%s192 + $0x14] sm:$0x3]
      %v2518 = vld [vmem:[%s192 + $0x18] sm:$0xe]
      %v2519 = vld [vmem:[%s192 + $0x1c] sm:$0x3]
      %v2521 = vshrl.u32 %v2512, 16
      %v2523 = vrot.slane %v2521, 5
      %v2524 = vshll.u32 %v2512, 16
      %v2526 = vrot.slane %v2524, 6
      %v2527 = vor.u32 %v2523, %v2526
      %v2528 = vrot.slane %v2527, 4
      %v2530 = vshrl.u32 %v2513, 16
      %v2532 = vrot.slane %v2530, 5
      %v2533 = vshll.u32 %v2513, 16
      %v2535 = vrot.slane %v2533, 6
      %v2536 = vor.u32 %v2532, %v2535
      %v2537 = vsel %vm2244, %v2528, %v2536
      %v2539 = vshrl.u32 %v2514, 16
      %v2541 = vrot.slane %v2539, 5
      %v2542 = vshll.u32 %v2514, 16
      %v2544 = vrot.slane %v2542, 6
      %v2545 = vor.u32 %v2541, %v2544
      %v2546 = vrot.slane %v2545, 4
      %v2548 = vshrl.u32 %v2515, 16
      %v2550 = vrot.slane %v2548, 5
      %v2551 = vshll.u32 %v2515, 16
      %v2553 = vrot.slane %v2551, 6
      %v2554 = vor.u32 %v2550, %v2553
      %v2555 = vsel %vm2244, %v2546, %v2554
      %v2557 = vshrl.u32 %v2516, 16
      %v2559 = vrot.slane %v2557, 5
      %v2560 = vshll.u32 %v2516, 16
      %v2562 = vrot.slane %v2560, 6
      %v2563 = vor.u32 %v2559, %v2562
      %v2564 = vrot.slane %v2563, 4
      %v2566 = vshrl.u32 %v2517, 16
      %v2568 = vrot.slane %v2566, 5
      %v2569 = vshll.u32 %v2517, 16
      %v2571 = vrot.slane %v2569, 6
      %v2572 = vor.u32 %v2568, %v2571
      %v2573 = vsel %vm2244, %v2564, %v2572
      %v2575 = vshrl.u32 %v2518, 16
      %v2577 = vrot.slane %v2575, 5
      %v2578 = vshll.u32 %v2518, 16
      %v2580 = vrot.slane %v2578, 6
      %v2581 = vor.u32 %v2577, %v2580
      %v2582 = vrot.slane %v2581, 4
      %v2584 = vshrl.u32 %v2519, 16
      %v2586 = vrot.slane %v2584, 5
      %v2587 = vshll.u32 %v2519, 16
      %v2589 = vrot.slane %v2587, 6
      %v2590 = vor.u32 %v2586, %v2589
      %v2591 = vsel %vm2244, %v2582, %v2590
      %2592 = vrot.lane.b32.xlu0 %v2537, 127
      %v2593 = vpop.permute.xlu0 %2592
      %2594 = vrot.lane.b32.xlu0 %v2555, 127
      %v2595 = vpop.permute.xlu0 %2594
      %2596 = vrot.lane.b32.xlu0 %v2573, 127
      %v2597 = vpop.permute.xlu0 %2596
      %2598 = vrot.lane.b32.xlu0 %v2591, 127
      %v2599 = vpop.permute.xlu0 %2598
      %s2604 = scalar_lea.vmem [#allocation2], 720
      %2605 = vst.msk [vmem:[%s2604] sm:$0xf] %vm187, %v2593
      %2606 = vst.msk [vmem:[%s2604 + $0x4] sm:$0xf] %vm187, %v2595
      %2607 = vst.msk [vmem:[%s2604 + $0x8] sm:$0xf] %vm187, %v2597
      %2608 = vst.msk [vmem:[%s2604 + $0xc] sm:$0xf] %vm187, %v2599
      %v2609 = vld [vmem:[%s172] sm:$0xe]
      %v2610 = vld [vmem:[%s172 + $0x4] sm:$0x3]
      %v2611 = vld [vmem:[%s172 + $0x8] sm:$0xe]
      %v2612 = vld [vmem:[%s172 + $0xc] sm:$0x3]
      %v2613 = vld [vmem:[%s172 + $0x10] sm:$0xe]
      %v2614 = vld [vmem:[%s172 + $0x14] sm:$0x3]
      %v2615 = vld [vmem:[%s172 + $0x18] sm:$0xe]
      %v2616 = vld [vmem:[%s172 + $0x1c] sm:$0x3]
      %v2618 = vshrl.u32 %v2609, 16
      %v2620 = vrot.slane %v2618, 5
      %v2621 = vshll.u32 %v2609, 16
      %v2623 = vrot.slane %v2621, 6
      %v2624 = vor.u32 %v2620, %v2623
      %v2625 = vrot.slane %v2624, 4
      %v2627 = vshrl.u32 %v2610, 16
      %v2629 = vrot.slane %v2627, 5
      %v2630 = vshll.u32 %v2610, 16
      %v2632 = vrot.slane %v2630, 6
      %v2633 = vor.u32 %v2629, %v2632
      %v2634 = vsel %vm2244, %v2625, %v2633
      %v2636 = vshrl.u32 %v2611, 16
      %v2638 = vrot.slane %v2636, 5
      %v2639 = vshll.u32 %v2611, 16
      %v2641 = vrot.slane %v2639, 6
      %v2642 = vor.u32 %v2638, %v2641
      %v2643 = vrot.slane %v2642, 4
      %v2645 = vshrl.u32 %v2612, 16
      %v2647 = vrot.slane %v2645, 5
      %v2648 = vshll.u32 %v2612, 16
      %v2650 = vrot.slane %v2648, 6
      %v2651 = vor.u32 %v2647, %v2650
      %v2652 = vsel %vm2244, %v2643, %v2651
      %v2654 = vshrl.u32 %v2613, 16
      %v2656 = vrot.slane %v2654, 5
      %v2657 = vshll.u32 %v2613, 16
      %v2659 = vrot.slane %v2657, 6
      %v2660 = vor.u32 %v2656, %v2659
      %v2661 = vrot.slane %v2660, 4
      %v2663 = vshrl.u32 %v2614, 16
      %v2665 = vrot.slane %v2663, 5
      %v2666 = vshll.u32 %v2614, 16
      %v2668 = vrot.slane %v2666, 6
      %v2669 = vor.u32 %v2665, %v2668
      %v2670 = vsel %vm2244, %v2661, %v2669
      %v2672 = vshrl.u32 %v2615, 16
      %v2674 = vrot.slane %v2672, 5
      %v2675 = vshll.u32 %v2615, 16
      %v2677 = vrot.slane %v2675, 6
      %v2678 = vor.u32 %v2674, %v2677
      %v2679 = vrot.slane %v2678, 4
      %v2681 = vshrl.u32 %v2616, 16
      %v2683 = vrot.slane %v2681, 5
      %v2684 = vshll.u32 %v2616, 16
      %v2686 = vrot.slane %v2684, 6
      %v2687 = vor.u32 %v2683, %v2686
      %v2688 = vsel %vm2244, %v2679, %v2687
      %2689 = vrot.lane.b32.xlu0 %v2634, 126
      %v2690 = vpop.permute.xlu0 %2689
      %2691 = vrot.lane.b32.xlu0 %v2652, 126
      %v2692 = vpop.permute.xlu0 %2691
      %2693 = vrot.lane.b32.xlu0 %v2670, 126
      %v2694 = vpop.permute.xlu0 %2693
      %2695 = vrot.lane.b32.xlu0 %v2688, 126
      %v2696 = vpop.permute.xlu0 %2695
      %s2701 = scalar_lea.vmem [#allocation2], 736
      %2702 = vst.msk [vmem:[%s2701] sm:$0xf] %vm187, %v2690
      %2703 = vst.msk [vmem:[%s2701 + $0x4] sm:$0xf] %vm187, %v2692
      %2704 = vst.msk [vmem:[%s2701 + $0x8] sm:$0xf] %vm187, %v2694
      %2705 = vst.msk [vmem:[%s2701 + $0xc] sm:$0xf] %vm187, %v2696
      %v2706 = vld [vmem:[%s192] sm:$0xe]
      %v2707 = vld [vmem:[%s192 + $0x4] sm:$0x3]
      %v2708 = vld [vmem:[%s192 + $0x8] sm:$0xe]
      %v2709 = vld [vmem:[%s192 + $0xc] sm:$0x3]
      %v2710 = vld [vmem:[%s192 + $0x10] sm:$0xe]
      %v2711 = vld [vmem:[%s192 + $0x14] sm:$0x3]
      %v2712 = vld [vmem:[%s192 + $0x18] sm:$0xe]
      %v2713 = vld [vmem:[%s192 + $0x1c] sm:$0x3]
      %v2715 = vshrl.u32 %v2706, 16
      %v2717 = vrot.slane %v2715, 5
      %v2718 = vshll.u32 %v2706, 16
      %v2720 = vrot.slane %v2718, 6
      %v2721 = vor.u32 %v2717, %v2720
      %v2722 = vrot.slane %v2721, 4
      %v2724 = vshrl.u32 %v2707, 16
      %v2726 = vrot.slane %v2724, 5
      %v2727 = vshll.u32 %v2707, 16
      %v2729 = vrot.slane %v2727, 6
      %v2730 = vor.u32 %v2726, %v2729
      %v2731 = vsel %vm2244, %v2722, %v2730
      %v2733 = vshrl.u32 %v2708, 16
      %v2735 = vrot.slane %v2733, 5
      %v2736 = vshll.u32 %v2708, 16
      %v2738 = vrot.slane %v2736, 6
      %v2739 = vor.u32 %v2735, %v2738
      %v2740 = vrot.slane %v2739, 4
      %v2742 = vshrl.u32 %v2709, 16
      %v2744 = vrot.slane %v2742, 5
      %v2745 = vshll.u32 %v2709, 16
      %v2747 = vrot.slane %v2745, 6
      %v2748 = vor.u32 %v2744, %v2747
      %v2749 = vsel %vm2244, %v2740, %v2748
      %v2751 = vshrl.u32 %v2710, 16
      %v2753 = vrot.slane %v2751, 5
      %v2754 = vshll.u32 %v2710, 16
      %v2756 = vrot.slane %v2754, 6
      %v2757 = vor.u32 %v2753, %v2756
      %v2758 = vrot.slane %v2757, 4
      %v2760 = vshrl.u32 %v2711, 16
      %v2762 = vrot.slane %v2760, 5
      %v2763 = vshll.u32 %v2711, 16
      %v2765 = vrot.slane %v2763, 6
      %v2766 = vor.u32 %v2762, %v2765
      %v2767 = vsel %vm2244, %v2758, %v2766
      %v2769 = vshrl.u32 %v2712, 16
      %v2771 = vrot.slane %v2769, 5
      %v2772 = vshll.u32 %v2712, 16
      %v2774 = vrot.slane %v2772, 6
      %v2775 = vor.u32 %v2771, %v2774
      %v2776 = vrot.slane %v2775, 4
      %v2778 = vshrl.u32 %v2713, 16
      %v2780 = vrot.slane %v2778, 5
      %v2781 = vshll.u32 %v2713, 16
      %v2783 = vrot.slane %v2781, 6
      %v2784 = vor.u32 %v2780, %v2783
      %v2785 = vsel %vm2244, %v2776, %v2784
      %2786 = vrot.lane.b32.xlu0 %v2731, 126
      %v2787 = vpop.permute.xlu0 %2786
      %2788 = vrot.lane.b32.xlu0 %v2749, 126
      %v2789 = vpop.permute.xlu0 %2788
      %2790 = vrot.lane.b32.xlu0 %v2767, 126
      %v2791 = vpop.permute.xlu0 %2790
      %2792 = vrot.lane.b32.xlu0 %v2785, 126
      %v2793 = vpop.permute.xlu0 %2792
      %s2798 = scalar_lea.vmem [#allocation2], 752
      %2799 = vst.msk [vmem:[%s2798] sm:$0xf] %vm187, %v2787
      %2800 = vst.msk [vmem:[%s2798 + $0x4] sm:$0xf] %vm187, %v2789
      %2801 = vst.msk [vmem:[%s2798 + $0x8] sm:$0xf] %vm187, %v2791
      %2802 = vst.msk [vmem:[%s2798 + $0xc] sm:$0xf] %vm187, %v2793
      %v2803 = vld [vmem:[%s172] sm:$0xe]
      %v2804 = vld [vmem:[%s172 + $0x4] sm:$0x3]
      %v2805 = vld [vmem:[%s172 + $0x8] sm:$0xe]
      %v2806 = vld [vmem:[%s172 + $0xc] sm:$0x3]
      %v2807 = vld [vmem:[%s172 + $0x10] sm:$0xe]
      %v2808 = vld [vmem:[%s172 + $0x14] sm:$0x3]
      %v2809 = vld [vmem:[%s172 + $0x18] sm:$0xe]
      %v2810 = vld [vmem:[%s172 + $0x1c] sm:$0x3]
      %v2812 = vshrl.u32 %v2803, 16
      %v2814 = vrot.slane %v2812, 5
      %v2815 = vshll.u32 %v2803, 16
      %v2817 = vrot.slane %v2815, 6
      %v2818 = vor.u32 %v2814, %v2817
      %v2819 = vrot.slane %v2818, 4
      %v2821 = vshrl.u32 %v2804, 16
      %v2823 = vrot.slane %v2821, 5
      %v2824 = vshll.u32 %v2804, 16
      %v2826 = vrot.slane %v2824, 6
      %v2827 = vor.u32 %v2823, %v2826
      %v2828 = vsel %vm2244, %v2819, %v2827
      %v2830 = vshrl.u32 %v2805, 16
      %v2832 = vrot.slane %v2830, 5
      %v2833 = vshll.u32 %v2805, 16
      %v2835 = vrot.slane %v2833, 6
      %v2836 = vor.u32 %v2832, %v2835
      %v2837 = vrot.slane %v2836, 4
      %v2839 = vshrl.u32 %v2806, 16
      %v2841 = vrot.slane %v2839, 5
      %v2842 = vshll.u32 %v2806, 16
      %v2844 = vrot.slane %v2842, 6
      %v2845 = vor.u32 %v2841, %v2844
      %v2846 = vsel %vm2244, %v2837, %v2845
      %v2848 = vshrl.u32 %v2807, 16
      %v2850 = vrot.slane %v2848, 5
      %v2851 = vshll.u32 %v2807, 16
      %v2853 = vrot.slane %v2851, 6
      %v2854 = vor.u32 %v2850, %v2853
      %v2855 = vrot.slane %v2854, 4
      %v2857 = vshrl.u32 %v2808, 16
      %v2859 = vrot.slane %v2857, 5
      %v2860 = vshll.u32 %v2808, 16
      %v2862 = vrot.slane %v2860, 6
      %v2863 = vor.u32 %v2859, %v2862
      %v2864 = vsel %vm2244, %v2855, %v2863
      %v2866 = vshrl.u32 %v2809, 16
      %v2868 = vrot.slane %v2866, 5
      %v2869 = vshll.u32 %v2809, 16
      %v2871 = vrot.slane %v2869, 6
      %v2872 = vor.u32 %v2868, %v2871
      %v2873 = vrot.slane %v2872, 4
      %v2875 = vshrl.u32 %v2810, 16
      %v2877 = vrot.slane %v2875, 5
      %v2878 = vshll.u32 %v2810, 16
      %v2880 = vrot.slane %v2878, 6
      %v2881 = vor.u32 %v2877, %v2880
      %v2882 = vsel %vm2244, %v2873, %v2881
      %2883 = vrot.lane.b32.xlu0 %v2828, 125
      %v2884 = vpop.permute.xlu0 %2883
      %2885 = vrot.lane.b32.xlu0 %v2846, 125
      %v2886 = vpop.permute.xlu0 %2885
      %2887 = vrot.lane.b32.xlu0 %v2864, 125
      %v2888 = vpop.permute.xlu0 %2887
      %2889 = vrot.lane.b32.xlu0 %v2882, 125
      %v2890 = vpop.permute.xlu0 %2889
      %s2895 = scalar_lea.vmem [#allocation2], 768
      %2896 = vst.msk [vmem:[%s2895] sm:$0xf] %vm187, %v2884
      %2897 = vst.msk [vmem:[%s2895 + $0x4] sm:$0xf] %vm187, %v2886
      %2898 = vst.msk [vmem:[%s2895 + $0x8] sm:$0xf] %vm187, %v2888
      %2899 = vst.msk [vmem:[%s2895 + $0xc] sm:$0xf] %vm187, %v2890
      %v2900 = vld [vmem:[#allocation2] sm:$0x1]
      %v2901 = vld [vmem:[#allocation2 + $0x4] sm:$0x1]
      %v2902 = vld [vmem:[#allocation2 + $0x8] sm:$0x1]
      %v2903 = vld [vmem:[#allocation2 + $0xc] sm:$0x1]
      %v2904 = vld [vmem:[#allocation2 + $0x10] sm:$0x1]
      %v2905 = vld [vmem:[#allocation2 + $0x14] sm:$0x1]
      %v2906 = vld [vmem:[#allocation2 + $0x18] sm:$0x1]
      %v2907 = vld [vmem:[#allocation2 + $0x1c] sm:$0x1]
      %v2908 = vld [vmem:[#allocation2 + $0x20] sm:$0x1]
      %v2909 = vld [vmem:[#allocation2 + $0x24] sm:$0x1]
      %v2910 = vld [vmem:[#allocation2 + $0x28] sm:$0x1]
      %v2911 = vld [vmem:[#allocation2 + $0x2c] sm:$0x1]
      %v2912 = vld [vmem:[#allocation2 + $0x30] sm:$0x1]
      %v2913 = vld [vmem:[#allocation2 + $0x34] sm:$0x1]
      %v2914 = vld [vmem:[#allocation2 + $0x38] sm:$0x1]
      %v2915 = vld [vmem:[#allocation2 + $0x3c] sm:$0x1]
      %v2916 = vld [vmem:[#allocation2 + $0x40] sm:$0x1]
      %v2917 = vld [vmem:[#allocation2 + $0x44] sm:$0x1]
      %v2918 = vld [vmem:[#allocation2 + $0x48] sm:$0x1]
      %v2919 = vld [vmem:[#allocation2 + $0x4c] sm:$0x1]
      %v2920 = vld [vmem:[#allocation2 + $0x50] sm:$0x1]
      %v2921 = vld [vmem:[#allocation2 + $0x54] sm:$0x1]
      %v2922 = vld [vmem:[#allocation2 + $0x58] sm:$0x1]
      %v2923 = vld [vmem:[#allocation2 + $0x5c] sm:$0x1]
      %v2924 = vld [vmem:[#allocation2 + $0x60] sm:$0x1]
      %v2925 = vld [vmem:[#allocation2 + $0x64] sm:$0x1]
      %v2926 = vld [vmem:[#allocation2 + $0x68] sm:$0x1]
      %v2927 = vld [vmem:[#allocation2 + $0x6c] sm:$0x1]
      %v2928 = vld [vmem:[#allocation2 + $0x70] sm:$0x1]
      %v2929 = vld [vmem:[#allocation2 + $0x74] sm:$0x1]
      %v2930 = vld [vmem:[#allocation2 + $0x78] sm:$0x1]
      %v2931 = vld [vmem:[#allocation2 + $0x7c] sm:$0x1]
      %v2932 = vld [vmem:[#allocation2 + $0x80] sm:$0x1]
      %v2933 = vld [vmem:[#allocation2 + $0x84] sm:$0x1]
      %v2934 = vld [vmem:[#allocation2 + $0x88] sm:$0x1]
      %v2935 = vld [vmem:[#allocation2 + $0x8c] sm:$0x1]
      %v2936 = vld [vmem:[#allocation2 + $0x90] sm:$0x1]
      %v2937 = vld [vmem:[#allocation2 + $0x94] sm:$0x1]
      %v2938 = vld [vmem:[#allocation2 + $0x98] sm:$0x1]
      %v2939 = vld [vmem:[#allocation2 + $0x9c] sm:$0x1]
      %v2940 = vld [vmem:[#allocation2 + $0xa0] sm:$0x1]
      %v2941 = vld [vmem:[#allocation2 + $0xa4] sm:$0x1]
      %v2942 = vld [vmem:[#allocation2 + $0xa8] sm:$0x1]
      %v2943 = vld [vmem:[#allocation2 + $0xac] sm:$0x1]
      %v2944 = vld [vmem:[#allocation2 + $0xb0] sm:$0x1]
      %v2945 = vld [vmem:[#allocation2 + $0xb4] sm:$0x1]
      %v2946 = vld [vmem:[#allocation2 + $0xb8] sm:$0x1]
      %v2947 = vld [vmem:[#allocation2 + $0xbc] sm:$0x1]
      %v2948 = vld [vmem:[#allocation2 + $0xc0] sm:$0x1]
      %v2949 = vld [vmem:[#allocation2 + $0xc4] sm:$0x1]
      %v2950 = vld [vmem:[#allocation2 + $0xc8] sm:$0x1]
      %v2951 = vld [vmem:[#allocation2 + $0xcc] sm:$0x1]
      %v2952 = vld [vmem:[#allocation2 + $0xd0] sm:$0x1]
      %v2953 = vld [vmem:[#allocation2 + $0xd4] sm:$0x1]
      %v2954 = vld [vmem:[#allocation2 + $0xd8] sm:$0x1]
      %v2955 = vld [vmem:[#allocation2 + $0xdc] sm:$0x1]
      %v2956 = vld [vmem:[#allocation2 + $0xe0] sm:$0x1]
      %v2957 = vld [vmem:[#allocation2 + $0xe4] sm:$0x1]
      %v2958 = vld [vmem:[#allocation2 + $0xe8] sm:$0x1]
      %v2959 = vld [vmem:[#allocation2 + $0xec] sm:$0x1]
      %v2960 = vld [vmem:[#allocation2 + $0xf0] sm:$0x1]
      %v2961 = vld [vmem:[#allocation2 + $0xf4] sm:$0x1]
      %v2962 = vld [vmem:[#allocation2 + $0xf8] sm:$0x1]
      %v2963 = vld [vmem:[#allocation2 + $0xfc] sm:$0x1]
      %v2964 = vld [vmem:[#allocation2 + $0x100] sm:$0x1]
      %v2965 = vld [vmem:[#allocation2 + $0x104] sm:$0x1]
      %v2966 = vld [vmem:[#allocation2 + $0x108] sm:$0x1]
      %v2967 = vld [vmem:[#allocation2 + $0x10c] sm:$0x1]
      %v2968 = vld [vmem:[#allocation2 + $0x110] sm:$0x1]
      %v2969 = vld [vmem:[#allocation2 + $0x114] sm:$0x1]
      %v2970 = vld [vmem:[#allocation2 + $0x118] sm:$0x1]
      %v2971 = vld [vmem:[#allocation2 + $0x11c] sm:$0x1]
      %v2972 = vld [vmem:[#allocation2 + $0x120] sm:$0x1]
      %v2973 = vld [vmem:[#allocation2 + $0x124] sm:$0x1]
      %v2974 = vld [vmem:[#allocation2 + $0x128] sm:$0x1]
      %v2975 = vld [vmem:[#allocation2 + $0x12c] sm:$0x1]
      %v2976 = vld [vmem:[#allocation2 + $0x130] sm:$0x1]
      %v2977 = vld [vmem:[#allocation2 + $0x134] sm:$0x1]
      %v2978 = vld [vmem:[#allocation2 + $0x138] sm:$0x1]
      %v2979 = vld [vmem:[#allocation2 + $0x13c] sm:$0x1]
      %v2980 = vld [vmem:[#allocation2 + $0x140] sm:$0x1]
      %v2981 = vld [vmem:[#allocation2 + $0x144] sm:$0x1]
      %v2982 = vld [vmem:[#allocation2 + $0x148] sm:$0x1]
      %v2983 = vld [vmem:[#allocation2 + $0x14c] sm:$0x1]
      %v2984 = vld [vmem:[#allocation2 + $0x150] sm:$0x1]
      %v2985 = vld [vmem:[#allocation2 + $0x154] sm:$0x1]
      %v2986 = vld [vmem:[#allocation2 + $0x158] sm:$0x1]
      %v2987 = vld [vmem:[#allocation2 + $0x15c] sm:$0x1]
      %v2988 = vld [vmem:[#allocation2 + $0x160] sm:$0x1]
      %v2989 = vld [vmem:[#allocation2 + $0x164] sm:$0x1]
      %v2990 = vld [vmem:[#allocation2 + $0x168] sm:$0x1]
      %v2991 = vld [vmem:[#allocation2 + $0x16c] sm:$0x1]
      %v2992 = vld [vmem:[#allocation2 + $0x170] sm:$0x1]
      %v2993 = vld [vmem:[#allocation2 + $0x174] sm:$0x1]
      %v2994 = vld [vmem:[#allocation2 + $0x178] sm:$0x1]
      %v2995 = vld [vmem:[#allocation2 + $0x17c] sm:$0x1]
      %v2996 = vld [vmem:[#allocation2 + $0x180] sm:$0x1]
      %v2997 = vld [vmem:[#allocation2 + $0x184] sm:$0x1]
      %v2998 = vld [vmem:[#allocation2 + $0x188] sm:$0x1]
      %v2999 = vld [vmem:[#allocation2 + $0x18c] sm:$0x1]
      %v3000 = vld [vmem:[#allocation2 + $0x190] sm:$0x1]
      %v3001 = vld [vmem:[#allocation2 + $0x194] sm:$0x1]
      %v3002 = vld [vmem:[#allocation2 + $0x198] sm:$0x1]
      %v3003 = vld [vmem:[#allocation2 + $0x19c] sm:$0x1]
      %v3004 = vld [vmem:[#allocation2 + $0x1a0] sm:$0x1]
      %v3005 = vld [vmem:[#allocation2 + $0x1a4] sm:$0x1]
      %v3006 = vld [vmem:[#allocation2 + $0x1a8] sm:$0x1]
      %v3007 = vld [vmem:[#allocation2 + $0x1ac] sm:$0x1]
      %v3008 = vld [vmem:[#allocation2 + $0x1b0] sm:$0x1]
      %v3009 = vld [vmem:[#allocation2 + $0x1b4] sm:$0x1]
      %v3010 = vld [vmem:[#allocation2 + $0x1b8] sm:$0x1]
      %v3011 = vld [vmem:[#allocation2 + $0x1bc] sm:$0x1]
      %v3012 = vld [vmem:[#allocation2 + $0x1c0] sm:$0x1]
      %v3013 = vld [vmem:[#allocation2 + $0x1c4] sm:$0x1]
      %v3014 = vld [vmem:[#allocation2 + $0x1c8] sm:$0x1]
      %v3015 = vld [vmem:[#allocation2 + $0x1cc] sm:$0x1]
      %v3016 = vld [vmem:[#allocation2 + $0x1d0] sm:$0x1]
      %v3017 = vld [vmem:[#allocation2 + $0x1d4] sm:$0x1]
      %v3018 = vld [vmem:[#allocation2 + $0x1d8] sm:$0x1]
      %v3019 = vld [vmem:[#allocation2 + $0x1dc] sm:$0x1]
      %v3020 = vld [vmem:[#allocation2 + $0x1e0] sm:$0x1]
      %v3021 = vld [vmem:[#allocation2 + $0x1e4] sm:$0x1]
      %v3022 = vld [vmem:[#allocation2 + $0x1e8] sm:$0x1]
      %v3023 = vld [vmem:[#allocation2 + $0x1ec] sm:$0x1]
      %v3024 = vld [vmem:[#allocation2 + $0x1f0] sm:$0x1]
      %v3025 = vld [vmem:[#allocation2 + $0x1f4] sm:$0x1]
      %v3026 = vld [vmem:[#allocation2 + $0x1f8] sm:$0x1]
      %v3027 = vld [vmem:[#allocation2 + $0x1fc] sm:$0x1]
      %v3028 = vld [vmem:[#allocation2 + $0x200] sm:$0x1]
      %v3029 = vld [vmem:[#allocation2 + $0x204] sm:$0x1]
      %v3030 = vld [vmem:[#allocation2 + $0x208] sm:$0x1]
      %v3031 = vld [vmem:[#allocation2 + $0x20c] sm:$0x1]
      %v3032 = vld [vmem:[#allocation2 + $0x210] sm:$0x1]
      %v3033 = vld [vmem:[#allocation2 + $0x214] sm:$0x1]
      %v3034 = vld [vmem:[#allocation2 + $0x218] sm:$0x1]
      %v3035 = vld [vmem:[#allocation2 + $0x21c] sm:$0x1]
      %v3036 = vld [vmem:[#allocation2 + $0x220] sm:$0x1]
      %v3037 = vld [vmem:[#allocation2 + $0x224] sm:$0x1]
      %v3038 = vld [vmem:[#allocation2 + $0x228] sm:$0x1]
      %v3039 = vld [vmem:[#allocation2 + $0x22c] sm:$0x1]
      %v3040 = vld [vmem:[#allocation2 + $0x230] sm:$0x1]
      %v3041 = vld [vmem:[#allocation2 + $0x234] sm:$0x1]
      %v3042 = vld [vmem:[#allocation2 + $0x238] sm:$0x1]
      %v3043 = vld [vmem:[#allocation2 + $0x23c] sm:$0x1]
      %v3044 = vld [vmem:[#allocation2 + $0x240] sm:$0x1]
      %v3045 = vld [vmem:[#allocation2 + $0x244] sm:$0x1]
      %v3046 = vld [vmem:[#allocation2 + $0x248] sm:$0x1]
      %v3047 = vld [vmem:[#allocation2 + $0x24c] sm:$0x1]
      %v3048 = vld [vmem:[#allocation2 + $0x250] sm:$0x1]
      %v3049 = vld [vmem:[#allocation2 + $0x254] sm:$0x1]
      %v3050 = vld [vmem:[#allocation2 + $0x258] sm:$0x1]
      %v3051 = vld [vmem:[#allocation2 + $0x25c] sm:$0x1]
      %v3052 = vld [vmem:[#allocation2 + $0x260] sm:$0x1]
      %v3053 = vld [vmem:[#allocation2 + $0x264] sm:$0x1]
      %v3054 = vld [vmem:[#allocation2 + $0x268] sm:$0x1]
      %v3055 = vld [vmem:[#allocation2 + $0x26c] sm:$0x1]
      %v3056 = vld [vmem:[#allocation2 + $0x270] sm:$0x1]
      %v3057 = vld [vmem:[#allocation2 + $0x274] sm:$0x1]
      %v3058 = vld [vmem:[#allocation2 + $0x278] sm:$0x1]
      %v3059 = vld [vmem:[#allocation2 + $0x27c] sm:$0x1]
      %v3060 = vld [vmem:[#allocation2 + $0x280] sm:$0x1]
      %v3061 = vld [vmem:[#allocation2 + $0x284] sm:$0x1]
      %v3062 = vld [vmem:[#allocation2 + $0x288] sm:$0x1]
      %v3063 = vld [vmem:[#allocation2 + $0x28c] sm:$0x1]
      %v3064 = vld [vmem:[#allocation2 + $0x290] sm:$0x1]
      %v3065 = vld [vmem:[#allocation2 + $0x294] sm:$0x1]
      %v3066 = vld [vmem:[#allocation2 + $0x298] sm:$0x1]
      %v3067 = vld [vmem:[#allocation2 + $0x29c] sm:$0x1]
      %v3068 = vld [vmem:[#allocation2 + $0x2a0] sm:$0x1]
      %v3069 = vld [vmem:[#allocation2 + $0x2a4] sm:$0x1]
      %v3070 = vld [vmem:[#allocation2 + $0x2a8] sm:$0x1]
      %v3071 = vld [vmem:[#allocation2 + $0x2ac] sm:$0x1]
      %v3072 = vld [vmem:[#allocation2 + $0x2b0] sm:$0x1]
      %v3073 = vld [vmem:[#allocation2 + $0x2b4] sm:$0x1]
      %v3074 = vld [vmem:[#allocation2 + $0x2b8] sm:$0x1]
      %v3075 = vld [vmem:[#allocation2 + $0x2bc] sm:$0x1]
      %v3076 = vld [vmem:[#allocation2 + $0x2c0] sm:$0x1]
      %v3077 = vld [vmem:[#allocation2 + $0x2c4] sm:$0x1]
      %v3078 = vld [vmem:[#allocation2 + $0x2c8] sm:$0x1]
      %v3079 = vld [vmem:[#allocation2 + $0x2cc] sm:$0x1]
      %v3080 = vld [vmem:[#allocation2 + $0x2d0] sm:$0x1]
      %v3081 = vld [vmem:[#allocation2 + $0x2d4] sm:$0x1]
      %v3082 = vld [vmem:[#allocation2 + $0x2d8] sm:$0x1]
      %v3083 = vld [vmem:[#allocation2 + $0x2dc] sm:$0x1]
      %v3084 = vld [vmem:[#allocation2 + $0x2e0] sm:$0x1]
      %v3085 = vld [vmem:[#allocation2 + $0x2e4] sm:$0x1]
      %v3086 = vld [vmem:[#allocation2 + $0x2e8] sm:$0x1]
      %v3087 = vld [vmem:[#allocation2 + $0x2ec] sm:$0x1]
      %v3088 = vld [vmem:[#allocation2 + $0x2f0] sm:$0x1]
      %v3089 = vld [vmem:[#allocation2 + $0x2f4] sm:$0x1]
      %v3090 = vld [vmem:[#allocation2 + $0x2f8] sm:$0x1]
      %v3091 = vld [vmem:[#allocation2 + $0x2fc] sm:$0x1]
      %v3092 = vld [vmem:[#allocation2 + $0x300] sm:$0x1]
      %v3093 = vld [vmem:[#allocation2 + $0x304] sm:$0x1]
      %v3094 = vld [vmem:[#allocation2 + $0x308] sm:$0x1]
      %v3095 = vld [vmem:[#allocation2 + $0x30c] sm:$0x1]
      %v3292 = vunpack.c.l.b16 %v2900
      %v3293 = vunpack.c.l.b16 %v2901
      %v3294 = vunpack.c.l.b16 %v2902
      %v3295 = vunpack.c.l.b16 %v2903
      %v3296 = vunpack.c.l.b16 %v2904
      %v3297 = vunpack.c.l.b16 %v2905
      %v3298 = vunpack.c.l.b16 %v2906
      %v3299 = vunpack.c.l.b16 %v2907
      %v3300 = vunpack.c.l.b16 %v2908
      %v3301 = vunpack.c.l.b16 %v2909
      %v3302 = vunpack.c.l.b16 %v2910
      %v3303 = vunpack.c.l.b16 %v2911
      %v3304 = vunpack.c.l.b16 %v2912
      %v3305 = vunpack.c.l.b16 %v2913
      %v3306 = vunpack.c.l.b16 %v2914
      %v3307 = vunpack.c.l.b16 %v2915
      %v3308 = vunpack.c.l.b16 %v2916
      %v3309 = vunpack.c.l.b16 %v2917
      %v3310 = vunpack.c.l.b16 %v2918
      %v3311 = vunpack.c.l.b16 %v2919
      %v3312 = vunpack.c.l.b16 %v2920
      %v3313 = vunpack.c.l.b16 %v2921
      %v3314 = vunpack.c.l.b16 %v2922
      %v3315 = vunpack.c.l.b16 %v2923
      %v3316 = vunpack.c.l.b16 %v2924
      %v3317 = vunpack.c.l.b16 %v2925
      %v3318 = vunpack.c.l.b16 %v2926
      %v3319 = vunpack.c.l.b16 %v2927
      %v3320 = vunpack.c.l.b16 %v2928
      %v3321 = vunpack.c.l.b16 %v2929
      %v3322 = vunpack.c.l.b16 %v2930
      %v3323 = vunpack.c.l.b16 %v2931
      %v3324 = vunpack.c.l.b16 %v2932
      %v3325 = vunpack.c.l.b16 %v2933
      %v3326 = vunpack.c.l.b16 %v2934
      %v3327 = vunpack.c.l.b16 %v2935
      %v3328 = vunpack.c.l.b16 %v2936
      %v3329 = vunpack.c.l.b16 %v2937
      %v3330 = vunpack.c.l.b16 %v2938
      %v3331 = vunpack.c.l.b16 %v2939
      %v3332 = vunpack.c.l.b16 %v2940
      %v3333 = vunpack.c.l.b16 %v2941
      %v3334 = vunpack.c.l.b16 %v2942
      %v3335 = vunpack.c.l.b16 %v2943
      %v3336 = vunpack.c.l.b16 %v2944
      %v3337 = vunpack.c.l.b16 %v2945
      %v3338 = vunpack.c.l.b16 %v2946
      %v3339 = vunpack.c.l.b16 %v2947
      %v3340 = vunpack.c.l.b16 %v2948
      %v3341 = vunpack.c.l.b16 %v2949
      %v3342 = vunpack.c.l.b16 %v2950
      %v3343 = vunpack.c.l.b16 %v2951
      %v3344 = vunpack.c.l.b16 %v2952
      %v3345 = vunpack.c.l.b16 %v2953
      %v3346 = vunpack.c.l.b16 %v2954
      %v3347 = vunpack.c.l.b16 %v2955
      %v3348 = vunpack.c.l.b16 %v2956
      %v3349 = vunpack.c.l.b16 %v2957
      %v3350 = vunpack.c.l.b16 %v2958
      %v3351 = vunpack.c.l.b16 %v2959
      %v3352 = vunpack.c.l.b16 %v2960
      %v3353 = vunpack.c.l.b16 %v2961
      %v3354 = vunpack.c.l.b16 %v2962
      %v3355 = vunpack.c.l.b16 %v2963
      %v3356 = vunpack.c.l.b16 %v2964
      %v3357 = vunpack.c.l.b16 %v2965
      %v3358 = vunpack.c.l.b16 %v2966
      %v3359 = vunpack.c.l.b16 %v2967
      %v3360 = vunpack.c.l.b16 %v2968
      %v3361 = vunpack.c.l.b16 %v2969
      %v3362 = vunpack.c.l.b16 %v2970
      %v3363 = vunpack.c.l.b16 %v2971
      %v3364 = vunpack.c.l.b16 %v2972
      %v3365 = vunpack.c.l.b16 %v2973
      %v3366 = vunpack.c.l.b16 %v2974
      %v3367 = vunpack.c.l.b16 %v2975
      %v3368 = vunpack.c.l.b16 %v2976
      %v3369 = vunpack.c.l.b16 %v2977
      %v3370 = vunpack.c.l.b16 %v2978
      %v3371 = vunpack.c.l.b16 %v2979
      %v3372 = vunpack.c.l.b16 %v2980
      %v3373 = vunpack.c.l.b16 %v2981
      %v3374 = vunpack.c.l.b16 %v2982
      %v3375 = vunpack.c.l.b16 %v2983
      %v3376 = vunpack.c.l.b16 %v2984
      %v3377 = vunpack.c.l.b16 %v2985
      %v3378 = vunpack.c.l.b16 %v2986
      %v3379 = vunpack.c.l.b16 %v2987
      %v3380 = vunpack.c.l.b16 %v2988
      %v3381 = vunpack.c.l.b16 %v2989
      %v3382 = vunpack.c.l.b16 %v2990
      %v3383 = vunpack.c.l.b16 %v2991
      %v3384 = vunpack.c.l.b16 %v2992
      %v3385 = vunpack.c.l.b16 %v2993
      %v3386 = vunpack.c.l.b16 %v2994
      %v3387 = vunpack.c.l.b16 %v2995
      %v3388 = vunpack.c.l.b16 %v2996
      %v3389 = vunpack.c.l.b16 %v2997
      %v3390 = vunpack.c.l.b16 %v2998
      %v3391 = vunpack.c.l.b16 %v2999
      %v3392 = vunpack.c.l.b16 %v3000
      %v3393 = vunpack.c.l.b16 %v3001
      %v3394 = vunpack.c.l.b16 %v3002
      %v3395 = vunpack.c.l.b16 %v3003
      %v3396 = vunpack.c.l.b16 %v3004
      %v3397 = vunpack.c.l.b16 %v3005
      %v3398 = vunpack.c.l.b16 %v3006
      %v3399 = vunpack.c.l.b16 %v3007
      %v3400 = vunpack.c.l.b16 %v3008
      %v3401 = vunpack.c.l.b16 %v3009
      %v3402 = vunpack.c.l.b16 %v3010
      %v3403 = vunpack.c.l.b16 %v3011
      %v3404 = vunpack.c.l.b16 %v3012
      %v3405 = vunpack.c.l.b16 %v3013
      %v3406 = vunpack.c.l.b16 %v3014
      %v3407 = vunpack.c.l.b16 %v3015
      %v3408 = vunpack.c.l.b16 %v3016
      %v3409 = vunpack.c.l.b16 %v3017
      %v3410 = vunpack.c.l.b16 %v3018
      %v3411 = vunpack.c.l.b16 %v3019
      %v3412 = vunpack.c.l.b16 %v3020
      %v3413 = vunpack.c.l.b16 %v3021
      %v3414 = vunpack.c.l.b16 %v3022
      %v3415 = vunpack.c.l.b16 %v3023
      %v3416 = vunpack.c.l.b16 %v3024
      %v3417 = vunpack.c.l.b16 %v3025
      %v3418 = vunpack.c.l.b16 %v3026
      %v3419 = vunpack.c.l.b16 %v3027
      %v3420 = vunpack.c.l.b16 %v3028
      %v3421 = vunpack.c.l.b16 %v3029
      %v3422 = vunpack.c.l.b16 %v3030
      %v3423 = vunpack.c.l.b16 %v3031
      %v3424 = vunpack.c.l.b16 %v3032
      %v3425 = vunpack.c.l.b16 %v3033
      %v3426 = vunpack.c.l.b16 %v3034
      %v3427 = vunpack.c.l.b16 %v3035
      %v3428 = vunpack.c.l.b16 %v3036
      %v3429 = vunpack.c.l.b16 %v3037
      %v3430 = vunpack.c.l.b16 %v3038
      %v3431 = vunpack.c.l.b16 %v3039
      %v3432 = vunpack.c.l.b16 %v3040
      %v3433 = vunpack.c.l.b16 %v3041
      %v3434 = vunpack.c.l.b16 %v3042
      %v3435 = vunpack.c.l.b16 %v3043
      %v3436 = vunpack.c.l.b16 %v3044
      %v3437 = vunpack.c.l.b16 %v3045
      %v3438 = vunpack.c.l.b16 %v3046
      %v3439 = vunpack.c.l.b16 %v3047
      %v3440 = vunpack.c.l.b16 %v3048
      %v3441 = vunpack.c.l.b16 %v3049
      %v3442 = vunpack.c.l.b16 %v3050
      %v3443 = vunpack.c.l.b16 %v3051
      %v3444 = vunpack.c.l.b16 %v3052
      %v3445 = vunpack.c.l.b16 %v3053
      %v3446 = vunpack.c.l.b16 %v3054
      %v3447 = vunpack.c.l.b16 %v3055
      %v3448 = vunpack.c.l.b16 %v3056
      %v3449 = vunpack.c.l.b16 %v3057
      %v3450 = vunpack.c.l.b16 %v3058
      %v3451 = vunpack.c.l.b16 %v3059
      %v3452 = vunpack.c.l.b16 %v3060
      %v3453 = vunpack.c.l.b16 %v3061
      %v3454 = vunpack.c.l.b16 %v3062
      %v3455 = vunpack.c.l.b16 %v3063
      %v3456 = vunpack.c.l.b16 %v3064
      %v3457 = vunpack.c.l.b16 %v3065
      %v3458 = vunpack.c.l.b16 %v3066
      %v3459 = vunpack.c.l.b16 %v3067
      %v3460 = vunpack.c.l.b16 %v3068
      %v3461 = vunpack.c.l.b16 %v3069
      %v3462 = vunpack.c.l.b16 %v3070
      %v3463 = vunpack.c.l.b16 %v3071
      %v3464 = vunpack.c.l.b16 %v3072
      %v3465 = vunpack.c.l.b16 %v3073
      %v3466 = vunpack.c.l.b16 %v3074
      %v3467 = vunpack.c.l.b16 %v3075
      %v3468 = vunpack.c.l.b16 %v3076
      %v3469 = vunpack.c.l.b16 %v3077
      %v3470 = vunpack.c.l.b16 %v3078
      %v3471 = vunpack.c.l.b16 %v3079
      %v3472 = vunpack.c.l.b16 %v3080
      %v3473 = vunpack.c.l.b16 %v3081
      %v3474 = vunpack.c.l.b16 %v3082
      %v3475 = vunpack.c.l.b16 %v3083
      %v3476 = vunpack.c.l.b16 %v3084
      %v3477 = vunpack.c.l.b16 %v3085
      %v3478 = vunpack.c.l.b16 %v3086
      %v3479 = vunpack.c.l.b16 %v3087
      %v3480 = vunpack.c.l.b16 %v3088
      %v3481 = vunpack.c.l.b16 %v3089
      %v3482 = vunpack.c.l.b16 %v3090
      %v3483 = vunpack.c.l.b16 %v3091
      %v3484 = vunpack.c.l.b16 %v3092
      %v3485 = vunpack.c.l.b16 %v3093
      %v3486 = vunpack.c.l.b16 %v3094
      %v3487 = vunpack.c.l.b16 %v3095
      %v3488 = vrot.slane %v3293, 7
      %vm3489 = vcmask 1041409
      %v3490 = vsel %vm3489, %v3488, %v3292
      %v3491 = vrot.slane %v3294, 6
      %vm3492 = vcmask 1042434
      %v3493 = vsel %vm3492, %v3491, %v3490
      %v3494 = vrot.slane %v3295, 5
      %vm3495 = vcmask 1043459
      %v3496 = vsel %vm3495, %v3494, %v3493
      %v3497 = vrot.slane %v3296, 4
      %vm3498 = vcmask 1044484
      %v3499 = vsel %vm3498, %v3497, %v3496
      %v3500 = vrot.slane %v3297, 3
      %vm3501 = vcmask 1045509
      %v3502 = vsel %vm3501, %v3500, %v3499
      %v3503 = vrot.slane %v3298, 2
      %vm3504 = vcmask 1046534
      %v3505 = vsel %vm3504, %v3503, %v3502
      %v3506 = vrot.slane %v3299, 1
      %vm3507 = vcmask 1047559
      %v3508 = vsel %vm3507, %v3506, %v3505
      %v3509 = vrot.slane %v3301, 7
      %v3510 = vsel %vm3489, %v3509, %v3300
      %v3511 = vrot.slane %v3302, 6
      %v3512 = vsel %vm3492, %v3511, %v3510
      %v3513 = vrot.slane %v3303, 5
      %v3514 = vsel %vm3495, %v3513, %v3512
      %v3515 = vrot.slane %v3304, 4
      %v3516 = vsel %vm3498, %v3515, %v3514
      %v3517 = vrot.slane %v3305, 3
      %v3518 = vsel %vm3501, %v3517, %v3516
      %v3519 = vrot.slane %v3306, 2
      %v3520 = vsel %vm3504, %v3519, %v3518
      %v3521 = vrot.slane %v3307, 1
      %v3522 = vsel %vm3507, %v3521, %v3520
      %v3523 = vrot.slane %v3309, 7
      %v3524 = vsel %vm3489, %v3523, %v3308
      %v3525 = vrot.slane %v3310, 6
      %v3526 = vsel %vm3492, %v3525, %v3524
      %v3527 = vrot.slane %v3311, 5
      %v3528 = vsel %vm3495, %v3527, %v3526
      %v3529 = vrot.slane %v3312, 4
      %v3530 = vsel %vm3498, %v3529, %v3528
      %v3531 = vrot.slane %v3313, 3
      %v3532 = vsel %vm3501, %v3531, %v3530
      %v3533 = vrot.slane %v3314, 2
      %v3534 = vsel %vm3504, %v3533, %v3532
      %v3535 = vrot.slane %v3315, 1
      %v3536 = vsel %vm3507, %v3535, %v3534
      %v3537 = vrot.slane %v3317, 7
      %v3538 = vsel %vm3489, %v3537, %v3316
      %v3539 = vrot.slane %v3318, 6
      %v3540 = vsel %vm3492, %v3539, %v3538
      %v3541 = vrot.slane %v3319, 5
      %v3542 = vsel %vm3495, %v3541, %v3540
      %v3543 = vrot.slane %v3320, 4
      %v3544 = vsel %vm3498, %v3543, %v3542
      %v3545 = vrot.slane %v3321, 3
      %v3546 = vsel %vm3501, %v3545, %v3544
      %v3547 = vrot.slane %v3322, 2
      %v3548 = vsel %vm3504, %v3547, %v3546
      %v3549 = vrot.slane %v3323, 1
      %v3550 = vsel %vm3507, %v3549, %v3548
      %v3551 = vrot.slane %v3325, 7
      %v3552 = vsel %vm3489, %v3551, %v3324
      %v3553 = vrot.slane %v3326, 6
      %v3554 = vsel %vm3492, %v3553, %v3552
      %v3555 = vrot.slane %v3327, 5
      %v3556 = vsel %vm3495, %v3555, %v3554
      %v3557 = vrot.slane %v3328, 4
      %v3558 = vsel %vm3498, %v3557, %v3556
      %v3559 = vrot.slane %v3329, 3
      %v3560 = vsel %vm3501, %v3559, %v3558
      %v3561 = vrot.slane %v3330, 2
      %v3562 = vsel %vm3504, %v3561, %v3560
      %v3563 = vrot.slane %v3331, 1
      %v3564 = vsel %vm3507, %v3563, %v3562
      %v3565 = vrot.slane %v3333, 7
      %v3566 = vsel %vm3489, %v3565, %v3332
      %v3567 = vrot.slane %v3334, 6
      %v3568 = vsel %vm3492, %v3567, %v3566
      %v3569 = vrot.slane %v3335, 5
      %v3570 = vsel %vm3495, %v3569, %v3568
      %v3571 = vrot.slane %v3336, 4
      %v3572 = vsel %vm3498, %v3571, %v3570
      %v3573 = vrot.slane %v3337, 3
      %v3574 = vsel %vm3501, %v3573, %v3572
      %v3575 = vrot.slane %v3338, 2
      %v3576 = vsel %vm3504, %v3575, %v3574
      %v3577 = vrot.slane %v3339, 1
      %v3578 = vsel %vm3507, %v3577, %v3576
      %v3579 = vrot.slane %v3341, 7
      %v3580 = vsel %vm3489, %v3579, %v3340
      %v3581 = vrot.slane %v3342, 6
      %v3582 = vsel %vm3492, %v3581, %v3580
      %v3583 = vrot.slane %v3343, 5
      %v3584 = vsel %vm3495, %v3583, %v3582
      %v3585 = vrot.slane %v3344, 4
      %v3586 = vsel %vm3498, %v3585, %v3584
      %v3587 = vrot.slane %v3345, 3
      %v3588 = vsel %vm3501, %v3587, %v3586
      %v3589 = vrot.slane %v3346, 2
      %v3590 = vsel %vm3504, %v3589, %v3588
      %v3591 = vrot.slane %v3347, 1
      %v3592 = vsel %vm3507, %v3591, %v3590
      %v3593 = vrot.slane %v3349, 7
      %v3594 = vsel %vm3489, %v3593, %v3348
      %v3595 = vrot.slane %v3350, 6
      %v3596 = vsel %vm3492, %v3595, %v3594
      %v3597 = vrot.slane %v3351, 5
      %v3598 = vsel %vm3495, %v3597, %v3596
      %v3599 = vrot.slane %v3352, 4
      %v3600 = vsel %vm3498, %v3599, %v3598
      %v3601 = vrot.slane %v3353, 3
      %v3602 = vsel %vm3501, %v3601, %v3600
      %v3603 = vrot.slane %v3354, 2
      %v3604 = vsel %vm3504, %v3603, %v3602
      %v3605 = vrot.slane %v3355, 1
      %v3606 = vsel %vm3507, %v3605, %v3604
      %v3607 = vrot.slane %v3357, 7
      %v3608 = vsel %vm3489, %v3607, %v3356
      %v3609 = vrot.slane %v3358, 6
      %v3610 = vsel %vm3492, %v3609, %v3608
      %v3611 = vrot.slane %v3359, 5
      %v3612 = vsel %vm3495, %v3611, %v3610
      %v3613 = vrot.slane %v3360, 4
      %v3614 = vsel %vm3498, %v3613, %v3612
      %v3615 = vrot.slane %v3361, 3
      %v3616 = vsel %vm3501, %v3615, %v3614
      %v3617 = vrot.slane %v3362, 2
      %v3618 = vsel %vm3504, %v3617, %v3616
      %v3619 = vrot.slane %v3363, 1
      %v3620 = vsel %vm3507, %v3619, %v3618
      %v3621 = vrot.slane %v3365, 7
      %v3622 = vsel %vm3489, %v3621, %v3364
      %v3623 = vrot.slane %v3366, 6
      %v3624 = vsel %vm3492, %v3623, %v3622
      %v3625 = vrot.slane %v3367, 5
      %v3626 = vsel %vm3495, %v3625, %v3624
      %v3627 = vrot.slane %v3368, 4
      %v3628 = vsel %vm3498, %v3627, %v3626
      %v3629 = vrot.slane %v3369, 3
      %v3630 = vsel %vm3501, %v3629, %v3628
      %v3631 = vrot.slane %v3370, 2
      %v3632 = vsel %vm3504, %v3631, %v3630
      %v3633 = vrot.slane %v3371, 1
      %v3634 = vsel %vm3507, %v3633, %v3632
      %v3635 = vrot.slane %v3373, 7
      %v3636 = vsel %vm3489, %v3635, %v3372
      %v3637 = vrot.slane %v3374, 6
      %v3638 = vsel %vm3492, %v3637, %v3636
      %v3639 = vrot.slane %v3375, 5
      %v3640 = vsel %vm3495, %v3639, %v3638
      %v3641 = vrot.slane %v3376, 4
      %v3642 = vsel %vm3498, %v3641, %v3640
      %v3643 = vrot.slane %v3377, 3
      %v3644 = vsel %vm3501, %v3643, %v3642
      %v3645 = vrot.slane %v3378, 2
      %v3646 = vsel %vm3504, %v3645, %v3644
      %v3647 = vrot.slane %v3379, 1
      %v3648 = vsel %vm3507, %v3647, %v3646
      %v3649 = vrot.slane %v3381, 7
      %v3650 = vsel %vm3489, %v3649, %v3380
      %v3651 = vrot.slane %v3382, 6
      %v3652 = vsel %vm3492, %v3651, %v3650
      %v3653 = vrot.slane %v3383, 5
      %v3654 = vsel %vm3495, %v3653, %v3652
      %v3655 = vrot.slane %v3384, 4
      %v3656 = vsel %vm3498, %v3655, %v3654
      %v3657 = vrot.slane %v3385, 3
      %v3658 = vsel %vm3501, %v3657, %v3656
      %v3659 = vrot.slane %v3386, 2
      %v3660 = vsel %vm3504, %v3659, %v3658
      %v3661 = vrot.slane %v3387, 1
      %v3662 = vsel %vm3507, %v3661, %v3660
      %v3663 = vrot.slane %v3389, 7
      %v3664 = vsel %vm3489, %v3663, %v3388
      %v3665 = vrot.slane %v3390, 6
      %v3666 = vsel %vm3492, %v3665, %v3664
      %v3667 = vrot.slane %v3391, 5
      %v3668 = vsel %vm3495, %v3667, %v3666
      %v3669 = vrot.slane %v3392, 4
      %v3670 = vsel %vm3498, %v3669, %v3668
      %v3671 = vrot.slane %v3393, 3
      %v3672 = vsel %vm3501, %v3671, %v3670
      %v3673 = vrot.slane %v3394, 2
      %v3674 = vsel %vm3504, %v3673, %v3672
      %v3675 = vrot.slane %v3395, 1
      %v3676 = vsel %vm3507, %v3675, %v3674
      %v3677 = vrot.slane %v3397, 7
      %v3678 = vsel %vm3489, %v3677, %v3396
      %v3679 = vrot.slane %v3398, 6
      %v3680 = vsel %vm3492, %v3679, %v3678
      %v3681 = vrot.slane %v3399, 5
      %v3682 = vsel %vm3495, %v3681, %v3680
      %v3683 = vrot.slane %v3400, 4
      %v3684 = vsel %vm3498, %v3683, %v3682
      %v3685 = vrot.slane %v3401, 3
      %v3686 = vsel %vm3501, %v3685, %v3684
      %v3687 = vrot.slane %v3402, 2
      %v3688 = vsel %vm3504, %v3687, %v3686
      %v3689 = vrot.slane %v3403, 1
      %v3690 = vsel %vm3507, %v3689, %v3688
      %v3691 = vrot.slane %v3405, 7
      %v3692 = vsel %vm3489, %v3691, %v3404
      %v3693 = vrot.slane %v3406, 6
      %v3694 = vsel %vm3492, %v3693, %v3692
      %v3695 = vrot.slane %v3407, 5
      %v3696 = vsel %vm3495, %v3695, %v3694
      %v3697 = vrot.slane %v3408, 4
      %v3698 = vsel %vm3498, %v3697, %v3696
      %v3699 = vrot.slane %v3409, 3
      %v3700 = vsel %vm3501, %v3699, %v3698
      %v3701 = vrot.slane %v3410, 2
      %v3702 = vsel %vm3504, %v3701, %v3700
      %v3703 = vrot.slane %v3411, 1
      %v3704 = vsel %vm3507, %v3703, %v3702
      %v3705 = vrot.slane %v3413, 7
      %v3706 = vsel %vm3489, %v3705, %v3412
      %v3707 = vrot.slane %v3414, 6
      %v3708 = vsel %vm3492, %v3707, %v3706
      %v3709 = vrot.slane %v3415, 5
      %v3710 = vsel %vm3495, %v3709, %v3708
      %v3711 = vrot.slane %v3416, 4
      %v3712 = vsel %vm3498, %v3711, %v3710
      %v3713 = vrot.slane %v3417, 3
      %v3714 = vsel %vm3501, %v3713, %v3712
      %v3715 = vrot.slane %v3418, 2
      %v3716 = vsel %vm3504, %v3715, %v3714
      %v3717 = vrot.slane %v3419, 1
      %v3718 = vsel %vm3507, %v3717, %v3716
      %v3719 = vrot.slane %v3421, 7
      %v3720 = vsel %vm3489, %v3719, %v3420
      %v3721 = vrot.slane %v3422, 6
      %v3722 = vsel %vm3492, %v3721, %v3720
      %v3723 = vrot.slane %v3423, 5
      %v3724 = vsel %vm3495, %v3723, %v3722
      %v3725 = vrot.slane %v3424, 4
      %v3726 = vsel %vm3498, %v3725, %v3724
      %v3727 = vrot.slane %v3425, 3
      %v3728 = vsel %vm3501, %v3727, %v3726
      %v3729 = vrot.slane %v3426, 2
      %v3730 = vsel %vm3504, %v3729, %v3728
      %v3731 = vrot.slane %v3427, 1
      %v3732 = vsel %vm3507, %v3731, %v3730
      %v3733 = vrot.slane %v3429, 7
      %v3734 = vsel %vm3489, %v3733, %v3428
      %v3735 = vrot.slane %v3430, 6
      %v3736 = vsel %vm3492, %v3735, %v3734
      %v3737 = vrot.slane %v3431, 5
      %v3738 = vsel %vm3495, %v3737, %v3736
      %v3739 = vrot.slane %v3432, 4
      %v3740 = vsel %vm3498, %v3739, %v3738
      %v3741 = vrot.slane %v3433, 3
      %v3742 = vsel %vm3501, %v3741, %v3740
      %v3743 = vrot.slane %v3434, 2
      %v3744 = vsel %vm3504, %v3743, %v3742
      %v3745 = vrot.slane %v3435, 1
      %v3746 = vsel %vm3507, %v3745, %v3744
      %v3747 = vrot.slane %v3437, 7
      %v3748 = vsel %vm3489, %v3747, %v3436
      %v3749 = vrot.slane %v3438, 6
      %v3750 = vsel %vm3492, %v3749, %v3748
      %v3751 = vrot.slane %v3439, 5
      %v3752 = vsel %vm3495, %v3751, %v3750
      %v3753 = vrot.slane %v3440, 4
      %v3754 = vsel %vm3498, %v3753, %v3752
      %v3755 = vrot.slane %v3441, 3
      %v3756 = vsel %vm3501, %v3755, %v3754
      %v3757 = vrot.slane %v3442, 2
      %v3758 = vsel %vm3504, %v3757, %v3756
      %v3759 = vrot.slane %v3443, 1
      %v3760 = vsel %vm3507, %v3759, %v3758
      %v3761 = vrot.slane %v3445, 7
      %v3762 = vsel %vm3489, %v3761, %v3444
      %v3763 = vrot.slane %v3446, 6
      %v3764 = vsel %vm3492, %v3763, %v3762
      %v3765 = vrot.slane %v3447, 5
      %v3766 = vsel %vm3495, %v3765, %v3764
      %v3767 = vrot.slane %v3448, 4
      %v3768 = vsel %vm3498, %v3767, %v3766
      %v3769 = vrot.slane %v3449, 3
      %v3770 = vsel %vm3501, %v3769, %v3768
      %v3771 = vrot.slane %v3450, 2
      %v3772 = vsel %vm3504, %v3771, %v3770
      %v3773 = vrot.slane %v3451, 1
      %v3774 = vsel %vm3507, %v3773, %v3772
      %v3775 = vrot.slane %v3453, 7
      %v3776 = vsel %vm3489, %v3775, %v3452
      %v3777 = vrot.slane %v3454, 6
      %v3778 = vsel %vm3492, %v3777, %v3776
      %v3779 = vrot.slane %v3455, 5
      %v3780 = vsel %vm3495, %v3779, %v3778
      %v3781 = vrot.slane %v3456, 4
      %v3782 = vsel %vm3498, %v3781, %v3780
      %v3783 = vrot.slane %v3457, 3
      %v3784 = vsel %vm3501, %v3783, %v3782
      %v3785 = vrot.slane %v3458, 2
      %v3786 = vsel %vm3504, %v3785, %v3784
      %v3787 = vrot.slane %v3459, 1
      %v3788 = vsel %vm3507, %v3787, %v3786
      %v3789 = vrot.slane %v3461, 7
      %v3790 = vsel %vm3489, %v3789, %v3460
      %v3791 = vrot.slane %v3462, 6
      %v3792 = vsel %vm3492, %v3791, %v3790
      %v3793 = vrot.slane %v3463, 5
      %v3794 = vsel %vm3495, %v3793, %v3792
      %v3795 = vrot.slane %v3464, 4
      %v3796 = vsel %vm3498, %v3795, %v3794
      %v3797 = vrot.slane %v3465, 3
      %v3798 = vsel %vm3501, %v3797, %v3796
      %v3799 = vrot.slane %v3466, 2
      %v3800 = vsel %vm3504, %v3799, %v3798
      %v3801 = vrot.slane %v3467, 1
      %v3802 = vsel %vm3507, %v3801, %v3800
      %v3803 = vrot.slane %v3469, 7
      %v3804 = vsel %vm3489, %v3803, %v3468
      %v3805 = vrot.slane %v3470, 6
      %v3806 = vsel %vm3492, %v3805, %v3804
      %v3807 = vrot.slane %v3471, 5
      %v3808 = vsel %vm3495, %v3807, %v3806
      %v3809 = vrot.slane %v3472, 4
      %v3810 = vsel %vm3498, %v3809, %v3808
      %v3811 = vrot.slane %v3473, 3
      %v3812 = vsel %vm3501, %v3811, %v3810
      %v3813 = vrot.slane %v3474, 2
      %v3814 = vsel %vm3504, %v3813, %v3812
      %v3815 = vrot.slane %v3475, 1
      %v3816 = vsel %vm3507, %v3815, %v3814
      %v3817 = vrot.slane %v3477, 7
      %v3818 = vsel %vm3489, %v3817, %v3476
      %v3819 = vrot.slane %v3478, 6
      %v3820 = vsel %vm3492, %v3819, %v3818
      %v3821 = vrot.slane %v3479, 5
      %v3822 = vsel %vm3495, %v3821, %v3820
      %v3823 = vrot.slane %v3480, 4
      %v3824 = vsel %vm3498, %v3823, %v3822
      %v3825 = vrot.slane %v3481, 3
      %v3826 = vsel %vm3501, %v3825, %v3824
      %v3827 = vrot.slane %v3482, 2
      %v3828 = vsel %vm3504, %v3827, %v3826
      %v3829 = vrot.slane %v3483, 1
      %v3830 = vsel %vm3507, %v3829, %v3828
      %v3831 = vrot.slane %v3485, 7
      %v3832 = vsel %vm3489, %v3831, %v3484
      %v3833 = vrot.slane %v3486, 6
      %v3834 = vsel %vm3492, %v3833, %v3832
      %v3835 = vrot.slane %v3487, 5
      %v3836 = vsel %vm3495, %v3835, %v3834
      %v3837 = vpack.c.b16 %v3508, %v3508
      %v3838 = vpack.c.b16 %v3522, %v3522
      %v3839 = vpack.c.b16 %v3536, %v3536
      %v3840 = vpack.c.b16 %v3550, %v3550
      %v3841 = vpack.c.b16 %v3564, %v3564
      %v3842 = vpack.c.b16 %v3578, %v3578
      %v3843 = vpack.c.b16 %v3592, %v3592
      %v3844 = vpack.c.b16 %v3606, %v3606
      %v3845 = vpack.c.b16 %v3620, %v3620
      %v3846 = vpack.c.b16 %v3634, %v3634
      %v3847 = vpack.c.b16 %v3648, %v3648
      %v3848 = vpack.c.b16 %v3662, %v3662
      %v3849 = vpack.c.b16 %v3676, %v3676
      %v3850 = vpack.c.b16 %v3690, %v3690
      %v3851 = vpack.c.b16 %v3704, %v3704
      %v3852 = vpack.c.b16 %v3718, %v3718
      %v3853 = vpack.c.b16 %v3732, %v3732
      %v3854 = vpack.c.b16 %v3746, %v3746
      %v3855 = vpack.c.b16 %v3760, %v3760
      %v3856 = vpack.c.b16 %v3774, %v3774
      %v3857 = vpack.c.b16 %v3788, %v3788
      %v3858 = vpack.c.b16 %v3802, %v3802
      %v3859 = vpack.c.b16 %v3816, %v3816
      %v3860 = vpack.c.b16 %v3830, %v3830
      %v3861 = vpack.c.b16 %v3836, %v3836
      %3887 = vst.msk [vmem:[#allocation3] sm:$0xf] %vm187, %v3837
      %3888 = vst.msk [vmem:[#allocation3 + $0x4] sm:$0xf] %vm187, %v3838
      %3889 = vst.msk [vmem:[#allocation3 + $0x8] sm:$0xf] %vm187, %v3839
      %3890 = vst.msk [vmem:[#allocation3 + $0xc] sm:$0xf] %vm187, %v3840
      %3891 = vst.msk [vmem:[#allocation3 + $0x10] sm:$0xf] %vm187, %v3841
      %3892 = vst.msk [vmem:[#allocation3 + $0x14] sm:$0xf] %vm187, %v3842
      %3893 = vst.msk [vmem:[#allocation3 + $0x18] sm:$0xf] %vm187, %v3843
      %3894 = vst.msk [vmem:[#allocation3 + $0x1c] sm:$0xf] %vm187, %v3844
      %3895 = vst.msk [vmem:[#allocation3 + $0x20] sm:$0xf] %vm187, %v3845
      %3896 = vst.msk [vmem:[#allocation3 + $0x24] sm:$0xf] %vm187, %v3846
      %3897 = vst.msk [vmem:[#allocation3 + $0x28] sm:$0xf] %vm187, %v3847
      %3898 = vst.msk [vmem:[#allocation3 + $0x2c] sm:$0xf] %vm187, %v3848
      %3899 = vst.msk [vmem:[#allocation3 + $0x30] sm:$0xf] %vm187, %v3849
      %3900 = vst.msk [vmem:[#allocation3 + $0x34] sm:$0xf] %vm187, %v3850
      %3901 = vst.msk [vmem:[#allocation3 + $0x38] sm:$0xf] %vm187, %v3851
      %3902 = vst.msk [vmem:[#allocation3 + $0x3c] sm:$0xf] %vm187, %v3852
      %3903 = vst.msk [vmem:[#allocation3 + $0x40] sm:$0xf] %vm187, %v3853
      %3904 = vst.msk [vmem:[#allocation3 + $0x44] sm:$0xf] %vm187, %v3854
      %3905 = vst.msk [vmem:[#allocation3 + $0x48] sm:$0xf] %vm187, %v3855
      %3906 = vst.msk [vmem:[#allocation3 + $0x4c] sm:$0xf] %vm187, %v3856
      %3907 = vst.msk [vmem:[#allocation3 + $0x50] sm:$0xf] %vm187, %v3857
      %3908 = vst.msk [vmem:[#allocation3 + $0x54] sm:$0xf] %vm187, %v3858
      %3909 = vst.msk [vmem:[#allocation3 + $0x58] sm:$0xf] %vm187, %v3859
      %3910 = vst.msk [vmem:[#allocation3 + $0x5c] sm:$0xf] %vm187, %v3860
      %vm3911 = vcmask 58368
      %3912 = vst.msk [vmem:[#allocation3 + $0x60] sm:$0x3] %vm3911, %v3861
      %v3913 = vld [vmem:[#allocation2] sm:$0x1]
      %v3914 = vld [vmem:[#allocation2 + $0x4] sm:$0x1]
      %v3915 = vld [vmem:[#allocation2 + $0x8] sm:$0x1]
      %v3916 = vld [vmem:[#allocation2 + $0xc] sm:$0x1]
      %v3917 = vld [vmem:[#allocation2 + $0x10] sm:$0x1]
      %v3918 = vld [vmem:[#allocation2 + $0x14] sm:$0x1]
      %v3919 = vld [vmem:[#allocation2 + $0x18] sm:$0x1]
      %v3920 = vld [vmem:[#allocation2 + $0x1c] sm:$0x1]
      %v3921 = vld [vmem:[#allocation2 + $0x20] sm:$0x1]
      %v3922 = vld [vmem:[#allocation2 + $0x24] sm:$0x1]
      %v3923 = vld [vmem:[#allocation2 + $0x28] sm:$0x1]
      %v3924 = vld [vmem:[#allocation2 + $0x2c] sm:$0x1]
      %v3925 = vld [vmem:[#allocation2 + $0x30] sm:$0x1]
      %v3926 = vld [vmem:[#allocation2 + $0x34] sm:$0x1]
      %v3927 = vld [vmem:[#allocation2 + $0x38] sm:$0x1]
      %v3928 = vld [vmem:[#allocation2 + $0x3c] sm:$0x1]
      %v3929 = vld [vmem:[#allocation2 + $0x40] sm:$0x1]
      %v3930 = vld [vmem:[#allocation2 + $0x44] sm:$0x1]
      %v3931 = vld [vmem:[#allocation2 + $0x48] sm:$0x1]
      %v3932 = vld [vmem:[#allocation2 + $0x4c] sm:$0x1]
      %v3933 = vld [vmem:[#allocation2 + $0x50] sm:$0x1]
      %v3934 = vld [vmem:[#allocation2 + $0x54] sm:$0x1]
      %v3935 = vld [vmem:[#allocation2 + $0x58] sm:$0x1]
      %v3936 = vld [vmem:[#allocation2 + $0x5c] sm:$0x1]
      %v3937 = vld [vmem:[#allocation2 + $0x60] sm:$0x1]
      %v3938 = vld [vmem:[#allocation2 + $0x64] sm:$0x1]
      %v3939 = vld [vmem:[#allocation2 + $0x68] sm:$0x1]
      %v3940 = vld [vmem:[#allocation2 + $0x6c] sm:$0x1]
      %v3941 = vld [vmem:[#allocation2 + $0x70] sm:$0x1]
      %v3942 = vld [vmem:[#allocation2 + $0x74] sm:$0x1]
      %v3943 = vld [vmem:[#allocation2 + $0x78] sm:$0x1]
      %v3944 = vld [vmem:[#allocation2 + $0x7c] sm:$0x1]
      %v3945 = vld [vmem:[#allocation2 + $0x80] sm:$0x1]
      %v3946 = vld [vmem:[#allocation2 + $0x84] sm:$0x1]
      %v3947 = vld [vmem:[#allocation2 + $0x88] sm:$0x1]
      %v3948 = vld [vmem:[#allocation2 + $0x8c] sm:$0x1]
      %v3949 = vld [vmem:[#allocation2 + $0x90] sm:$0x1]
      %v3950 = vld [vmem:[#allocation2 + $0x94] sm:$0x1]
      %v3951 = vld [vmem:[#allocation2 + $0x98] sm:$0x1]
      %v3952 = vld [vmem:[#allocation2 + $0x9c] sm:$0x1]
      %v3953 = vld [vmem:[#allocation2 + $0xa0] sm:$0x1]
      %v3954 = vld [vmem:[#allocation2 + $0xa4] sm:$0x1]
      %v3955 = vld [vmem:[#allocation2 + $0xa8] sm:$0x1]
      %v3956 = vld [vmem:[#allocation2 + $0xac] sm:$0x1]
      %v3957 = vld [vmem:[#allocation2 + $0xb0] sm:$0x1]
      %v3958 = vld [vmem:[#allocation2 + $0xb4] sm:$0x1]
      %v3959 = vld [vmem:[#allocation2 + $0xb8] sm:$0x1]
      %v3960 = vld [vmem:[#allocation2 + $0xbc] sm:$0x1]
      %v3961 = vld [vmem:[#allocation2 + $0xc0] sm:$0x1]
      %v3962 = vld [vmem:[#allocation2 + $0xc4] sm:$0x1]
      %v3963 = vld [vmem:[#allocation2 + $0xc8] sm:$0x1]
      %v3964 = vld [vmem:[#allocation2 + $0xcc] sm:$0x1]
      %v3965 = vld [vmem:[#allocation2 + $0xd0] sm:$0x1]
      %v3966 = vld [vmem:[#allocation2 + $0xd4] sm:$0x1]
      %v3967 = vld [vmem:[#allocation2 + $0xd8] sm:$0x1]
      %v3968 = vld [vmem:[#allocation2 + $0xdc] sm:$0x1]
      %v3969 = vld [vmem:[#allocation2 + $0xe0] sm:$0x1]
      %v3970 = vld [vmem:[#allocation2 + $0xe4] sm:$0x1]
      %v3971 = vld [vmem:[#allocation2 + $0xe8] sm:$0x1]
      %v3972 = vld [vmem:[#allocation2 + $0xec] sm:$0x1]
      %v3973 = vld [vmem:[#allocation2 + $0xf0] sm:$0x1]
      %v3974 = vld [vmem:[#allocation2 + $0xf4] sm:$0x1]
      %v3975 = vld [vmem:[#allocation2 + $0xf8] sm:$0x1]
      %v3976 = vld [vmem:[#allocation2 + $0xfc] sm:$0x1]
      %v3977 = vld [vmem:[#allocation2 + $0x100] sm:$0x1]
      %v3978 = vld [vmem:[#allocation2 + $0x104] sm:$0x1]
      %v3979 = vld [vmem:[#allocation2 + $0x108] sm:$0x1]
      %v3980 = vld [vmem:[#allocation2 + $0x10c] sm:$0x1]
      %v3981 = vld [vmem:[#allocation2 + $0x110] sm:$0x1]
      %v3982 = vld [vmem:[#allocation2 + $0x114] sm:$0x1]
      %v3983 = vld [vmem:[#allocation2 + $0x118] sm:$0x1]
      %v3984 = vld [vmem:[#allocation2 + $0x11c] sm:$0x1]
      %v3985 = vld [vmem:[#allocation2 + $0x120] sm:$0x1]
      %v3986 = vld [vmem:[#allocation2 + $0x124] sm:$0x1]
      %v3987 = vld [vmem:[#allocation2 + $0x128] sm:$0x1]
      %v3988 = vld [vmem:[#allocation2 + $0x12c] sm:$0x1]
      %v3989 = vld [vmem:[#allocation2 + $0x130] sm:$0x1]
      %v3990 = vld [vmem:[#allocation2 + $0x134] sm:$0x1]
      %v3991 = vld [vmem:[#allocation2 + $0x138] sm:$0x1]
      %v3992 = vld [vmem:[#allocation2 + $0x13c] sm:$0x1]
      %v3993 = vld [vmem:[#allocation2 + $0x140] sm:$0x1]
      %v3994 = vld [vmem:[#allocation2 + $0x144] sm:$0x1]
      %v3995 = vld [vmem:[#allocation2 + $0x148] sm:$0x1]
      %v3996 = vld [vmem:[#allocation2 + $0x14c] sm:$0x1]
      %v3997 = vld [vmem:[#allocation2 + $0x150] sm:$0x1]
      %v3998 = vld [vmem:[#allocation2 + $0x154] sm:$0x1]
      %v3999 = vld [vmem:[#allocation2 + $0x158] sm:$0x1]
      %v4000 = vld [vmem:[#allocation2 + $0x15c] sm:$0x1]
      %v4001 = vld [vmem:[#allocation2 + $0x160] sm:$0x1]
      %v4002 = vld [vmem:[#allocation2 + $0x164] sm:$0x1]
      %v4003 = vld [vmem:[#allocation2 + $0x168] sm:$0x1]
      %v4004 = vld [vmem:[#allocation2 + $0x16c] sm:$0x1]
      %v4005 = vld [vmem:[#allocation2 + $0x170] sm:$0x1]
      %v4006 = vld [vmem:[#allocation2 + $0x174] sm:$0x1]
      %v4007 = vld [vmem:[#allocation2 + $0x178] sm:$0x1]
      %v4008 = vld [vmem:[#allocation2 + $0x17c] sm:$0x1]
      %v4009 = vld [vmem:[#allocation2 + $0x180] sm:$0x1]
      %v4010 = vld [vmem:[#allocation2 + $0x184] sm:$0x1]
      %v4011 = vld [vmem:[#allocation2 + $0x188] sm:$0x1]
      %v4012 = vld [vmem:[#allocation2 + $0x18c] sm:$0x1]
      %v4013 = vld [vmem:[#allocation2 + $0x190] sm:$0x1]
      %v4014 = vld [vmem:[#allocation2 + $0x194] sm:$0x1]
      %v4015 = vld [vmem:[#allocation2 + $0x198] sm:$0x1]
      %v4016 = vld [vmem:[#allocation2 + $0x19c] sm:$0x1]
      %v4017 = vld [vmem:[#allocation2 + $0x1a0] sm:$0x1]
      %v4018 = vld [vmem:[#allocation2 + $0x1a4] sm:$0x1]
      %v4019 = vld [vmem:[#allocation2 + $0x1a8] sm:$0x1]
      %v4020 = vld [vmem:[#allocation2 + $0x1ac] sm:$0x1]
      %v4021 = vld [vmem:[#allocation2 + $0x1b0] sm:$0x1]
      %v4022 = vld [vmem:[#allocation2 + $0x1b4] sm:$0x1]
      %v4023 = vld [vmem:[#allocation2 + $0x1b8] sm:$0x1]
      %v4024 = vld [vmem:[#allocation2 + $0x1bc] sm:$0x1]
      %v4025 = vld [vmem:[#allocation2 + $0x1c0] sm:$0x1]
      %v4026 = vld [vmem:[#allocation2 + $0x1c4] sm:$0x1]
      %v4027 = vld [vmem:[#allocation2 + $0x1c8] sm:$0x1]
      %v4028 = vld [vmem:[#allocation2 + $0x1cc] sm:$0x1]
      %v4029 = vld [vmem:[#allocation2 + $0x1d0] sm:$0x1]
      %v4030 = vld [vmem:[#allocation2 + $0x1d4] sm:$0x1]
      %v4031 = vld [vmem:[#allocation2 + $0x1d8] sm:$0x1]
      %v4032 = vld [vmem:[#allocation2 + $0x1dc] sm:$0x1]
      %v4033 = vld [vmem:[#allocation2 + $0x1e0] sm:$0x1]
      %v4034 = vld [vmem:[#allocation2 + $0x1e4] sm:$0x1]
      %v4035 = vld [vmem:[#allocation2 + $0x1e8] sm:$0x1]
      %v4036 = vld [vmem:[#allocation2 + $0x1ec] sm:$0x1]
      %v4037 = vld [vmem:[#allocation2 + $0x1f0] sm:$0x1]
      %v4038 = vld [vmem:[#allocation2 + $0x1f4] sm:$0x1]
      %v4039 = vld [vmem:[#allocation2 + $0x1f8] sm:$0x1]
      %v4040 = vld [vmem:[#allocation2 + $0x1fc] sm:$0x1]
      %v4041 = vld [vmem:[#allocation2 + $0x200] sm:$0x1]
      %v4042 = vld [vmem:[#allocation2 + $0x204] sm:$0x1]
      %v4043 = vld [vmem:[#allocation2 + $0x208] sm:$0x1]
      %v4044 = vld [vmem:[#allocation2 + $0x20c] sm:$0x1]
      %v4045 = vld [vmem:[#allocation2 + $0x210] sm:$0x1]
      %v4046 = vld [vmem:[#allocation2 + $0x214] sm:$0x1]
      %v4047 = vld [vmem:[#allocation2 + $0x218] sm:$0x1]
      %v4048 = vld [vmem:[#allocation2 + $0x21c] sm:$0x1]
      %v4049 = vld [vmem:[#allocation2 + $0x220] sm:$0x1]
      %v4050 = vld [vmem:[#allocation2 + $0x224] sm:$0x1]
      %v4051 = vld [vmem:[#allocation2 + $0x228] sm:$0x1]
      %v4052 = vld [vmem:[#allocation2 + $0x22c] sm:$0x1]
      %v4053 = vld [vmem:[#allocation2 + $0x230] sm:$0x1]
      %v4054 = vld [vmem:[#allocation2 + $0x234] sm:$0x1]
      %v4055 = vld [vmem:[#allocation2 + $0x238] sm:$0x1]
      %v4056 = vld [vmem:[#allocation2 + $0x23c] sm:$0x1]
      %v4057 = vld [vmem:[#allocation2 + $0x240] sm:$0x1]
      %v4058 = vld [vmem:[#allocation2 + $0x244] sm:$0x1]
      %v4059 = vld [vmem:[#allocation2 + $0x248] sm:$0x1]
      %v4060 = vld [vmem:[#allocation2 + $0x24c] sm:$0x1]
      %v4061 = vld [vmem:[#allocation2 + $0x250] sm:$0x1]
      %v4062 = vld [vmem:[#allocation2 + $0x254] sm:$0x1]
      %v4063 = vld [vmem:[#allocation2 + $0x258] sm:$0x1]
      %v4064 = vld [vmem:[#allocation2 + $0x25c] sm:$0x1]
      %v4065 = vld [vmem:[#allocation2 + $0x260] sm:$0x1]
      %v4066 = vld [vmem:[#allocation2 + $0x264] sm:$0x1]
      %v4067 = vld [vmem:[#allocation2 + $0x268] sm:$0x1]
      %v4068 = vld [vmem:[#allocation2 + $0x26c] sm:$0x1]
      %v4069 = vld [vmem:[#allocation2 + $0x270] sm:$0x1]
      %v4070 = vld [vmem:[#allocation2 + $0x274] sm:$0x1]
      %v4071 = vld [vmem:[#allocation2 + $0x278] sm:$0x1]
      %v4072 = vld [vmem:[#allocation2 + $0x27c] sm:$0x1]
      %v4073 = vld [vmem:[#allocation2 + $0x280] sm:$0x1]
      %v4074 = vld [vmem:[#allocation2 + $0x284] sm:$0x1]
      %v4075 = vld [vmem:[#allocation2 + $0x288] sm:$0x1]
      %v4076 = vld [vmem:[#allocation2 + $0x28c] sm:$0x1]
      %v4077 = vld [vmem:[#allocation2 + $0x290] sm:$0x1]
      %v4078 = vld [vmem:[#allocation2 + $0x294] sm:$0x1]
      %v4079 = vld [vmem:[#allocation2 + $0x298] sm:$0x1]
      %v4080 = vld [vmem:[#allocation2 + $0x29c] sm:$0x1]
      %v4081 = vld [vmem:[#allocation2 + $0x2a0] sm:$0x1]
      %v4082 = vld [vmem:[#allocation2 + $0x2a4] sm:$0x1]
      %v4083 = vld [vmem:[#allocation2 + $0x2a8] sm:$0x1]
      %v4084 = vld [vmem:[#allocation2 + $0x2ac] sm:$0x1]
      %v4085 = vld [vmem:[#allocation2 + $0x2b0] sm:$0x1]
      %v4086 = vld [vmem:[#allocation2 + $0x2b4] sm:$0x1]
      %v4087 = vld [vmem:[#allocation2 + $0x2b8] sm:$0x1]
      %v4088 = vld [vmem:[#allocation2 + $0x2bc] sm:$0x1]
      %v4089 = vld [vmem:[#allocation2 + $0x2c0] sm:$0x1]
      %v4090 = vld [vmem:[#allocation2 + $0x2c4] sm:$0x1]
      %v4091 = vld [vmem:[#allocation2 + $0x2c8] sm:$0x1]
      %v4092 = vld [vmem:[#allocation2 + $0x2cc] sm:$0x1]
      %v4093 = vld [vmem:[#allocation2 + $0x2d0] sm:$0x1]
      %v4094 = vld [vmem:[#allocation2 + $0x2d4] sm:$0x1]
      %v4095 = vld [vmem:[#allocation2 + $0x2d8] sm:$0x1]
      %v4096 = vld [vmem:[#allocation2 + $0x2dc] sm:$0x1]
      %v4097 = vld [vmem:[#allocation2 + $0x2e0] sm:$0x1]
      %v4098 = vld [vmem:[#allocation2 + $0x2e4] sm:$0x1]
      %v4099 = vld [vmem:[#allocation2 + $0x2e8] sm:$0x1]
      %v4100 = vld [vmem:[#allocation2 + $0x2ec] sm:$0x1]
      %v4101 = vld [vmem:[#allocation2 + $0x2f0] sm:$0x1]
      %v4102 = vld [vmem:[#allocation2 + $0x2f4] sm:$0x1]
      %v4103 = vld [vmem:[#allocation2 + $0x2f8] sm:$0x1]
      %v4104 = vld [vmem:[#allocation2 + $0x2fc] sm:$0x1]
      %v4105 = vld [vmem:[#allocation2 + $0x300] sm:$0x1]
      %v4106 = vld [vmem:[#allocation2 + $0x304] sm:$0x1]
      %v4107 = vld [vmem:[#allocation2 + $0x308] sm:$0x1]
      %v4108 = vld [vmem:[#allocation2 + $0x30c] sm:$0x1]
      %v4305 = vunpack.c.l.b16 %v3913
      %v4306 = vunpack.c.l.b16 %v3914
      %v4307 = vunpack.c.l.b16 %v3915
      %v4308 = vunpack.c.l.b16 %v3916
      %v4309 = vunpack.c.l.b16 %v3917
      %v4310 = vunpack.c.l.b16 %v3918
      %v4311 = vunpack.c.l.b16 %v3919
      %v4312 = vunpack.c.l.b16 %v3920
      %v4313 = vunpack.c.l.b16 %v3921
      %v4314 = vunpack.c.l.b16 %v3922
      %v4315 = vunpack.c.l.b16 %v3923
      %v4316 = vunpack.c.l.b16 %v3924
      %v4317 = vunpack.c.l.b16 %v3925
      %v4318 = vunpack.c.l.b16 %v3926
      %v4319 = vunpack.c.l.b16 %v3927
      %v4320 = vunpack.c.l.b16 %v3928
      %v4321 = vunpack.c.l.b16 %v3929
      %v4322 = vunpack.c.l.b16 %v3930
      %v4323 = vunpack.c.l.b16 %v3931
      %v4324 = vunpack.c.l.b16 %v3932
      %v4325 = vunpack.c.l.b16 %v3933
      %v4326 = vunpack.c.l.b16 %v3934
      %v4327 = vunpack.c.l.b16 %v3935
      %v4328 = vunpack.c.l.b16 %v3936
      %v4329 = vunpack.c.l.b16 %v3937
      %v4330 = vunpack.c.l.b16 %v3938
      %v4331 = vunpack.c.l.b16 %v3939
      %v4332 = vunpack.c.l.b16 %v3940
      %v4333 = vunpack.c.l.b16 %v3941
      %v4334 = vunpack.c.l.b16 %v3942
      %v4335 = vunpack.c.l.b16 %v3943
      %v4336 = vunpack.c.l.b16 %v3944
      %v4337 = vunpack.c.l.b16 %v3945
      %v4338 = vunpack.c.l.b16 %v3946
      %v4339 = vunpack.c.l.b16 %v3947
      %v4340 = vunpack.c.l.b16 %v3948
      %v4341 = vunpack.c.l.b16 %v3949
      %v4342 = vunpack.c.l.b16 %v3950
      %v4343 = vunpack.c.l.b16 %v3951
      %v4344 = vunpack.c.l.b16 %v3952
      %v4345 = vunpack.c.l.b16 %v3953
      %v4346 = vunpack.c.l.b16 %v3954
      %v4347 = vunpack.c.l.b16 %v3955
      %v4348 = vunpack.c.l.b16 %v3956
      %v4349 = vunpack.c.l.b16 %v3957
      %v4350 = vunpack.c.l.b16 %v3958
      %v4351 = vunpack.c.l.b16 %v3959
      %v4352 = vunpack.c.l.b16 %v3960
      %v4353 = vunpack.c.l.b16 %v3961
      %v4354 = vunpack.c.l.b16 %v3962
      %v4355 = vunpack.c.l.b16 %v3963
      %v4356 = vunpack.c.l.b16 %v3964
      %v4357 = vunpack.c.l.b16 %v3965
      %v4358 = vunpack.c.l.b16 %v3966
      %v4359 = vunpack.c.l.b16 %v3967
      %v4360 = vunpack.c.l.b16 %v3968
      %v4361 = vunpack.c.l.b16 %v3969
      %v4362 = vunpack.c.l.b16 %v3970
      %v4363 = vunpack.c.l.b16 %v3971
      %v4364 = vunpack.c.l.b16 %v3972
      %v4365 = vunpack.c.l.b16 %v3973
      %v4366 = vunpack.c.l.b16 %v3974
      %v4367 = vunpack.c.l.b16 %v3975
      %v4368 = vunpack.c.l.b16 %v3976
      %v4369 = vunpack.c.l.b16 %v3977
      %v4370 = vunpack.c.l.b16 %v3978
      %v4371 = vunpack.c.l.b16 %v3979
      %v4372 = vunpack.c.l.b16 %v3980
      %v4373 = vunpack.c.l.b16 %v3981
      %v4374 = vunpack.c.l.b16 %v3982
      %v4375 = vunpack.c.l.b16 %v3983
      %v4376 = vunpack.c.l.b16 %v3984
      %v4377 = vunpack.c.l.b16 %v3985
      %v4378 = vunpack.c.l.b16 %v3986
      %v4379 = vunpack.c.l.b16 %v3987
      %v4380 = vunpack.c.l.b16 %v3988
      %v4381 = vunpack.c.l.b16 %v3989
      %v4382 = vunpack.c.l.b16 %v3990
      %v4383 = vunpack.c.l.b16 %v3991
      %v4384 = vunpack.c.l.b16 %v3992
      %v4385 = vunpack.c.l.b16 %v3993
      %v4386 = vunpack.c.l.b16 %v3994
      %v4387 = vunpack.c.l.b16 %v3995
      %v4388 = vunpack.c.l.b16 %v3996
      %v4389 = vunpack.c.l.b16 %v3997
      %v4390 = vunpack.c.l.b16 %v3998
      %v4391 = vunpack.c.l.b16 %v3999
      %v4392 = vunpack.c.l.b16 %v4000
      %v4393 = vunpack.c.l.b16 %v4001
      %v4394 = vunpack.c.l.b16 %v4002
      %v4395 = vunpack.c.l.b16 %v4003
      %v4396 = vunpack.c.l.b16 %v4004
      %v4397 = vunpack.c.l.b16 %v4005
      %v4398 = vunpack.c.l.b16 %v4006
      %v4399 = vunpack.c.l.b16 %v4007
      %v4400 = vunpack.c.l.b16 %v4008
      %v4401 = vunpack.c.l.b16 %v4009
      %v4402 = vunpack.c.l.b16 %v4010
      %v4403 = vunpack.c.l.b16 %v4011
      %v4404 = vunpack.c.l.b16 %v4012
      %v4405 = vunpack.c.l.b16 %v4013
      %v4406 = vunpack.c.l.b16 %v4014
      %v4407 = vunpack.c.l.b16 %v4015
      %v4408 = vunpack.c.l.b16 %v4016
      %v4409 = vunpack.c.l.b16 %v4017
      %v4410 = vunpack.c.l.b16 %v4018
      %v4411 = vunpack.c.l.b16 %v4019
      %v4412 = vunpack.c.l.b16 %v4020
      %v4413 = vunpack.c.l.b16 %v4021
      %v4414 = vunpack.c.l.b16 %v4022
      %v4415 = vunpack.c.l.b16 %v4023
      %v4416 = vunpack.c.l.b16 %v4024
      %v4417 = vunpack.c.l.b16 %v4025
      %v4418 = vunpack.c.l.b16 %v4026
      %v4419 = vunpack.c.l.b16 %v4027
      %v4420 = vunpack.c.l.b16 %v4028
      %v4421 = vunpack.c.l.b16 %v4029
      %v4422 = vunpack.c.l.b16 %v4030
      %v4423 = vunpack.c.l.b16 %v4031
      %v4424 = vunpack.c.l.b16 %v4032
      %v4425 = vunpack.c.l.b16 %v4033
      %v4426 = vunpack.c.l.b16 %v4034
      %v4427 = vunpack.c.l.b16 %v4035
      %v4428 = vunpack.c.l.b16 %v4036
      %v4429 = vunpack.c.l.b16 %v4037
      %v4430 = vunpack.c.l.b16 %v4038
      %v4431 = vunpack.c.l.b16 %v4039
      %v4432 = vunpack.c.l.b16 %v4040
      %v4433 = vunpack.c.l.b16 %v4041
      %v4434 = vunpack.c.l.b16 %v4042
      %v4435 = vunpack.c.l.b16 %v4043
      %v4436 = vunpack.c.l.b16 %v4044
      %v4437 = vunpack.c.l.b16 %v4045
      %v4438 = vunpack.c.l.b16 %v4046
      %v4439 = vunpack.c.l.b16 %v4047
      %v4440 = vunpack.c.l.b16 %v4048
      %v4441 = vunpack.c.l.b16 %v4049
      %v4442 = vunpack.c.l.b16 %v4050
      %v4443 = vunpack.c.l.b16 %v4051
      %v4444 = vunpack.c.l.b16 %v4052
      %v4445 = vunpack.c.l.b16 %v4053
      %v4446 = vunpack.c.l.b16 %v4054
      %v4447 = vunpack.c.l.b16 %v4055
      %v4448 = vunpack.c.l.b16 %v4056
      %v4449 = vunpack.c.l.b16 %v4057
      %v4450 = vunpack.c.l.b16 %v4058
      %v4451 = vunpack.c.l.b16 %v4059
      %v4452 = vunpack.c.l.b16 %v4060
      %v4453 = vunpack.c.l.b16 %v4061
      %v4454 = vunpack.c.l.b16 %v4062
      %v4455 = vunpack.c.l.b16 %v4063
      %v4456 = vunpack.c.l.b16 %v4064
      %v4457 = vunpack.c.l.b16 %v4065
      %v4458 = vunpack.c.l.b16 %v4066
      %v4459 = vunpack.c.l.b16 %v4067
      %v4460 = vunpack.c.l.b16 %v4068
      %v4461 = vunpack.c.l.b16 %v4069
      %v4462 = vunpack.c.l.b16 %v4070
      %v4463 = vunpack.c.l.b16 %v4071
      %v4464 = vunpack.c.l.b16 %v4072
      %v4465 = vunpack.c.l.b16 %v4073
      %v4466 = vunpack.c.l.b16 %v4074
      %v4467 = vunpack.c.l.b16 %v4075
      %v4468 = vunpack.c.l.b16 %v4076
      %v4469 = vunpack.c.l.b16 %v4077
      %v4470 = vunpack.c.l.b16 %v4078
      %v4471 = vunpack.c.l.b16 %v4079
      %v4472 = vunpack.c.l.b16 %v4080
      %v4473 = vunpack.c.l.b16 %v4081
      %v4474 = vunpack.c.l.b16 %v4082
      %v4475 = vunpack.c.l.b16 %v4083
      %v4476 = vunpack.c.l.b16 %v4084
      %v4477 = vunpack.c.l.b16 %v4085
      %v4478 = vunpack.c.l.b16 %v4086
      %v4479 = vunpack.c.l.b16 %v4087
      %v4480 = vunpack.c.l.b16 %v4088
      %v4481 = vunpack.c.l.b16 %v4089
      %v4482 = vunpack.c.l.b16 %v4090
      %v4483 = vunpack.c.l.b16 %v4091
      %v4484 = vunpack.c.l.b16 %v4092
      %v4485 = vunpack.c.l.b16 %v4093
      %v4486 = vunpack.c.l.b16 %v4094
      %v4487 = vunpack.c.l.b16 %v4095
      %v4488 = vunpack.c.l.b16 %v4096
      %v4489 = vunpack.c.l.b16 %v4097
      %v4490 = vunpack.c.l.b16 %v4098
      %v4491 = vunpack.c.l.b16 %v4099
      %v4492 = vunpack.c.l.b16 %v4100
      %v4493 = vunpack.c.l.b16 %v4101
      %v4494 = vunpack.c.l.b16 %v4102
      %v4495 = vunpack.c.l.b16 %v4103
      %v4496 = vunpack.c.l.b16 %v4104
      %v4497 = vunpack.c.l.b16 %v4105
      %v4498 = vunpack.c.l.b16 %v4106
      %v4499 = vunpack.c.l.b16 %v4107
      %v4500 = vunpack.c.l.b16 %v4108
      %v4501 = vrot.slane %v4305, 1
      %v4502 = vsel %vm3489, %v4306, %v4501
      %v4503 = vrot.slane %v4307, 7
      %v4504 = vsel %vm3492, %v4503, %v4502
      %v4505 = vrot.slane %v4308, 6
      %v4506 = vsel %vm3495, %v4505, %v4504
      %v4507 = vrot.slane %v4309, 5
      %v4508 = vsel %vm3498, %v4507, %v4506
      %v4509 = vrot.slane %v4310, 4
      %v4510 = vsel %vm3501, %v4509, %v4508
      %v4511 = vrot.slane %v4311, 3
      %v4512 = vsel %vm3504, %v4511, %v4510
      %v4513 = vrot.slane %v4312, 2
      %v4514 = vsel %vm3507, %v4513, %v4512
      %v4515 = vrot.slane %v4313, 1
      %v4516 = vsel %vm3489, %v4314, %v4515
      %v4517 = vrot.slane %v4315, 7
      %v4518 = vsel %vm3492, %v4517, %v4516
      %v4519 = vrot.slane %v4316, 6
      %v4520 = vsel %vm3495, %v4519, %v4518
      %v4521 = vrot.slane %v4317, 5
      %v4522 = vsel %vm3498, %v4521, %v4520
      %v4523 = vrot.slane %v4318, 4
      %v4524 = vsel %vm3501, %v4523, %v4522
      %v4525 = vrot.slane %v4319, 3
      %v4526 = vsel %vm3504, %v4525, %v4524
      %v4527 = vrot.slane %v4320, 2
      %v4528 = vsel %vm3507, %v4527, %v4526
      %v4529 = vrot.slane %v4321, 1
      %v4530 = vsel %vm3489, %v4322, %v4529
      %v4531 = vrot.slane %v4323, 7
      %v4532 = vsel %vm3492, %v4531, %v4530
      %v4533 = vrot.slane %v4324, 6
      %v4534 = vsel %vm3495, %v4533, %v4532
      %v4535 = vrot.slane %v4325, 5
      %v4536 = vsel %vm3498, %v4535, %v4534
      %v4537 = vrot.slane %v4326, 4
      %v4538 = vsel %vm3501, %v4537, %v4536
      %v4539 = vrot.slane %v4327, 3
      %v4540 = vsel %vm3504, %v4539, %v4538
      %v4541 = vrot.slane %v4328, 2
      %v4542 = vsel %vm3507, %v4541, %v4540
      %v4543 = vrot.slane %v4329, 1
      %v4544 = vsel %vm3489, %v4330, %v4543
      %v4545 = vrot.slane %v4331, 7
      %v4546 = vsel %vm3492, %v4545, %v4544
      %v4547 = vrot.slane %v4332, 6
      %v4548 = vsel %vm3495, %v4547, %v4546
      %v4549 = vrot.slane %v4333, 5
      %v4550 = vsel %vm3498, %v4549, %v4548
      %v4551 = vrot.slane %v4334, 4
      %v4552 = vsel %vm3501, %v4551, %v4550
      %v4553 = vrot.slane %v4335, 3
      %v4554 = vsel %vm3504, %v4553, %v4552
      %v4555 = vrot.slane %v4336, 2
      %v4556 = vsel %vm3507, %v4555, %v4554
      %v4557 = vrot.slane %v4337, 1
      %v4558 = vsel %vm3489, %v4338, %v4557
      %v4559 = vrot.slane %v4339, 7
      %v4560 = vsel %vm3492, %v4559, %v4558
      %v4561 = vrot.slane %v4340, 6
      %v4562 = vsel %vm3495, %v4561, %v4560
      %v4563 = vrot.slane %v4341, 5
      %v4564 = vsel %vm3498, %v4563, %v4562
      %v4565 = vrot.slane %v4342, 4
      %v4566 = vsel %vm3501, %v4565, %v4564
      %v4567 = vrot.slane %v4343, 3
      %v4568 = vsel %vm3504, %v4567, %v4566
      %v4569 = vrot.slane %v4344, 2
      %v4570 = vsel %vm3507, %v4569, %v4568
      %v4571 = vrot.slane %v4345, 1
      %v4572 = vsel %vm3489, %v4346, %v4571
      %v4573 = vrot.slane %v4347, 7
      %v4574 = vsel %vm3492, %v4573, %v4572
      %v4575 = vrot.slane %v4348, 6
      %v4576 = vsel %vm3495, %v4575, %v4574
      %v4577 = vrot.slane %v4349, 5
      %v4578 = vsel %vm3498, %v4577, %v4576
      %v4579 = vrot.slane %v4350, 4
      %v4580 = vsel %vm3501, %v4579, %v4578
      %v4581 = vrot.slane %v4351, 3
      %v4582 = vsel %vm3504, %v4581, %v4580
      %v4583 = vrot.slane %v4352, 2
      %v4584 = vsel %vm3507, %v4583, %v4582
      %v4585 = vrot.slane %v4353, 1
      %v4586 = vsel %vm3489, %v4354, %v4585
      %v4587 = vrot.slane %v4355, 7
      %v4588 = vsel %vm3492, %v4587, %v4586
      %v4589 = vrot.slane %v4356, 6
      %v4590 = vsel %vm3495, %v4589, %v4588
      %v4591 = vrot.slane %v4357, 5
      %v4592 = vsel %vm3498, %v4591, %v4590
      %v4593 = vrot.slane %v4358, 4
      %v4594 = vsel %vm3501, %v4593, %v4592
      %v4595 = vrot.slane %v4359, 3
      %v4596 = vsel %vm3504, %v4595, %v4594
      %v4597 = vrot.slane %v4360, 2
      %v4598 = vsel %vm3507, %v4597, %v4596
      %v4599 = vrot.slane %v4361, 1
      %v4600 = vsel %vm3489, %v4362, %v4599
      %v4601 = vrot.slane %v4363, 7
      %v4602 = vsel %vm3492, %v4601, %v4600
      %v4603 = vrot.slane %v4364, 6
      %v4604 = vsel %vm3495, %v4603, %v4602
      %v4605 = vrot.slane %v4365, 5
      %v4606 = vsel %vm3498, %v4605, %v4604
      %v4607 = vrot.slane %v4366, 4
      %v4608 = vsel %vm3501, %v4607, %v4606
      %v4609 = vrot.slane %v4367, 3
      %v4610 = vsel %vm3504, %v4609, %v4608
      %v4611 = vrot.slane %v4368, 2
      %v4612 = vsel %vm3507, %v4611, %v4610
      %v4613 = vrot.slane %v4369, 1
      %v4614 = vsel %vm3489, %v4370, %v4613
      %v4615 = vrot.slane %v4371, 7
      %v4616 = vsel %vm3492, %v4615, %v4614
      %v4617 = vrot.slane %v4372, 6
      %v4618 = vsel %vm3495, %v4617, %v4616
      %v4619 = vrot.slane %v4373, 5
      %v4620 = vsel %vm3498, %v4619, %v4618
      %v4621 = vrot.slane %v4374, 4
      %v4622 = vsel %vm3501, %v4621, %v4620
      %v4623 = vrot.slane %v4375, 3
      %v4624 = vsel %vm3504, %v4623, %v4622
      %v4625 = vrot.slane %v4376, 2
      %v4626 = vsel %vm3507, %v4625, %v4624
      %v4627 = vrot.slane %v4377, 1
      %v4628 = vsel %vm3489, %v4378, %v4627
      %v4629 = vrot.slane %v4379, 7
      %v4630 = vsel %vm3492, %v4629, %v4628
      %v4631 = vrot.slane %v4380, 6
      %v4632 = vsel %vm3495, %v4631, %v4630
      %v4633 = vrot.slane %v4381, 5
      %v4634 = vsel %vm3498, %v4633, %v4632
      %v4635 = vrot.slane %v4382, 4
      %v4636 = vsel %vm3501, %v4635, %v4634
      %v4637 = vrot.slane %v4383, 3
      %v4638 = vsel %vm3504, %v4637, %v4636
      %v4639 = vrot.slane %v4384, 2
      %v4640 = vsel %vm3507, %v4639, %v4638
      %v4641 = vrot.slane %v4385, 1
      %v4642 = vsel %vm3489, %v4386, %v4641
      %v4643 = vrot.slane %v4387, 7
      %v4644 = vsel %vm3492, %v4643, %v4642
      %v4645 = vrot.slane %v4388, 6
      %v4646 = vsel %vm3495, %v4645, %v4644
      %v4647 = vrot.slane %v4389, 5
      %v4648 = vsel %vm3498, %v4647, %v4646
      %v4649 = vrot.slane %v4390, 4
      %v4650 = vsel %vm3501, %v4649, %v4648
      %v4651 = vrot.slane %v4391, 3
      %v4652 = vsel %vm3504, %v4651, %v4650
      %v4653 = vrot.slane %v4392, 2
      %v4654 = vsel %vm3507, %v4653, %v4652
      %v4655 = vrot.slane %v4393, 1
      %v4656 = vsel %vm3489, %v4394, %v4655
      %v4657 = vrot.slane %v4395, 7
      %v4658 = vsel %vm3492, %v4657, %v4656
      %v4659 = vrot.slane %v4396, 6
      %v4660 = vsel %vm3495, %v4659, %v4658
      %v4661 = vrot.slane %v4397, 5
      %v4662 = vsel %vm3498, %v4661, %v4660
      %v4663 = vrot.slane %v4398, 4
      %v4664 = vsel %vm3501, %v4663, %v4662
      %v4665 = vrot.slane %v4399, 3
      %v4666 = vsel %vm3504, %v4665, %v4664
      %v4667 = vrot.slane %v4400, 2
      %v4668 = vsel %vm3507, %v4667, %v4666
      %v4669 = vrot.slane %v4401, 1
      %v4670 = vsel %vm3489, %v4402, %v4669
      %v4671 = vrot.slane %v4403, 7
      %v4672 = vsel %vm3492, %v4671, %v4670
      %v4673 = vrot.slane %v4404, 6
      %v4674 = vsel %vm3495, %v4673, %v4672
      %v4675 = vrot.slane %v4405, 5
      %v4676 = vsel %vm3498, %v4675, %v4674
      %v4677 = vrot.slane %v4406, 4
      %v4678 = vsel %vm3501, %v4677, %v4676
      %v4679 = vrot.slane %v4407, 3
      %v4680 = vsel %vm3504, %v4679, %v4678
      %v4681 = vrot.slane %v4408, 2
      %v4682 = vsel %vm3507, %v4681, %v4680
      %v4683 = vrot.slane %v4409, 1
      %v4684 = vsel %vm3489, %v4410, %v4683
      %v4685 = vrot.slane %v4411, 7
      %v4686 = vsel %vm3492, %v4685, %v4684
      %v4687 = vrot.slane %v4412, 6
      %v4688 = vsel %vm3495, %v4687, %v4686
      %v4689 = vrot.slane %v4413, 5
      %v4690 = vsel %vm3498, %v4689, %v4688
      %v4691 = vrot.slane %v4414, 4
      %v4692 = vsel %vm3501, %v4691, %v4690
      %v4693 = vrot.slane %v4415, 3
      %v4694 = vsel %vm3504, %v4693, %v4692
      %v4695 = vrot.slane %v4416, 2
      %v4696 = vsel %vm3507, %v4695, %v4694
      %v4697 = vrot.slane %v4417, 1
      %v4698 = vsel %vm3489, %v4418, %v4697
      %v4699 = vrot.slane %v4419, 7
      %v4700 = vsel %vm3492, %v4699, %v4698
      %v4701 = vrot.slane %v4420, 6
      %v4702 = vsel %vm3495, %v4701, %v4700
      %v4703 = vrot.slane %v4421, 5
      %v4704 = vsel %vm3498, %v4703, %v4702
      %v4705 = vrot.slane %v4422, 4
      %v4706 = vsel %vm3501, %v4705, %v4704
      %v4707 = vrot.slane %v4423, 3
      %v4708 = vsel %vm3504, %v4707, %v4706
      %v4709 = vrot.slane %v4424, 2
      %v4710 = vsel %vm3507, %v4709, %v4708
      %v4711 = vrot.slane %v4425, 1
      %v4712 = vsel %vm3489, %v4426, %v4711
      %v4713 = vrot.slane %v4427, 7
      %v4714 = vsel %vm3492, %v4713, %v4712
      %v4715 = vrot.slane %v4428, 6
      %v4716 = vsel %vm3495, %v4715, %v4714
      %v4717 = vrot.slane %v4429, 5
      %v4718 = vsel %vm3498, %v4717, %v4716
      %v4719 = vrot.slane %v4430, 4
      %v4720 = vsel %vm3501, %v4719, %v4718
      %v4721 = vrot.slane %v4431, 3
      %v4722 = vsel %vm3504, %v4721, %v4720
      %v4723 = vrot.slane %v4432, 2
      %v4724 = vsel %vm3507, %v4723, %v4722
      %v4725 = vrot.slane %v4433, 1
      %v4726 = vsel %vm3489, %v4434, %v4725
      %v4727 = vrot.slane %v4435, 7
      %v4728 = vsel %vm3492, %v4727, %v4726
      %v4729 = vrot.slane %v4436, 6
      %v4730 = vsel %vm3495, %v4729, %v4728
      %v4731 = vrot.slane %v4437, 5
      %v4732 = vsel %vm3498, %v4731, %v4730
      %v4733 = vrot.slane %v4438, 4
      %v4734 = vsel %vm3501, %v4733, %v4732
      %v4735 = vrot.slane %v4439, 3
      %v4736 = vsel %vm3504, %v4735, %v4734
      %v4737 = vrot.slane %v4440, 2
      %v4738 = vsel %vm3507, %v4737, %v4736
      %v4739 = vrot.slane %v4441, 1
      %v4740 = vsel %vm3489, %v4442, %v4739
      %v4741 = vrot.slane %v4443, 7
      %v4742 = vsel %vm3492, %v4741, %v4740
      %v4743 = vrot.slane %v4444, 6
      %v4744 = vsel %vm3495, %v4743, %v4742
      %v4745 = vrot.slane %v4445, 5
      %v4746 = vsel %vm3498, %v4745, %v4744
      %v4747 = vrot.slane %v4446, 4
      %v4748 = vsel %vm3501, %v4747, %v4746
      %v4749 = vrot.slane %v4447, 3
      %v4750 = vsel %vm3504, %v4749, %v4748
      %v4751 = vrot.slane %v4448, 2
      %v4752 = vsel %vm3507, %v4751, %v4750
      %v4753 = vrot.slane %v4449, 1
      %v4754 = vsel %vm3489, %v4450, %v4753
      %v4755 = vrot.slane %v4451, 7
      %v4756 = vsel %vm3492, %v4755, %v4754
      %v4757 = vrot.slane %v4452, 6
      %v4758 = vsel %vm3495, %v4757, %v4756
      %v4759 = vrot.slane %v4453, 5
      %v4760 = vsel %vm3498, %v4759, %v4758
      %v4761 = vrot.slane %v4454, 4
      %v4762 = vsel %vm3501, %v4761, %v4760
      %v4763 = vrot.slane %v4455, 3
      %v4764 = vsel %vm3504, %v4763, %v4762
      %v4765 = vrot.slane %v4456, 2
      %v4766 = vsel %vm3507, %v4765, %v4764
      %v4767 = vrot.slane %v4457, 1
      %v4768 = vsel %vm3489, %v4458, %v4767
      %v4769 = vrot.slane %v4459, 7
      %v4770 = vsel %vm3492, %v4769, %v4768
      %v4771 = vrot.slane %v4460, 6
      %v4772 = vsel %vm3495, %v4771, %v4770
      %v4773 = vrot.slane %v4461, 5
      %v4774 = vsel %vm3498, %v4773, %v4772
      %v4775 = vrot.slane %v4462, 4
      %v4776 = vsel %vm3501, %v4775, %v4774
      %v4777 = vrot.slane %v4463, 3
      %v4778 = vsel %vm3504, %v4777, %v4776
      %v4779 = vrot.slane %v4464, 2
      %v4780 = vsel %vm3507, %v4779, %v4778
      %v4781 = vrot.slane %v4465, 1
      %v4782 = vsel %vm3489, %v4466, %v4781
      %v4783 = vrot.slane %v4467, 7
      %v4784 = vsel %vm3492, %v4783, %v4782
      %v4785 = vrot.slane %v4468, 6
      %v4786 = vsel %vm3495, %v4785, %v4784
      %v4787 = vrot.slane %v4469, 5
      %v4788 = vsel %vm3498, %v4787, %v4786
      %v4789 = vrot.slane %v4470, 4
      %v4790 = vsel %vm3501, %v4789, %v4788
      %v4791 = vrot.slane %v4471, 3
      %v4792 = vsel %vm3504, %v4791, %v4790
      %v4793 = vrot.slane %v4472, 2
      %v4794 = vsel %vm3507, %v4793, %v4792
      %v4795 = vrot.slane %v4473, 1
      %v4796 = vsel %vm3489, %v4474, %v4795
      %v4797 = vrot.slane %v4475, 7
      %v4798 = vsel %vm3492, %v4797, %v4796
      %v4799 = vrot.slane %v4476, 6
      %v4800 = vsel %vm3495, %v4799, %v4798
      %v4801 = vrot.slane %v4477, 5
      %v4802 = vsel %vm3498, %v4801, %v4800
      %v4803 = vrot.slane %v4478, 4
      %v4804 = vsel %vm3501, %v4803, %v4802
      %v4805 = vrot.slane %v4479, 3
      %v4806 = vsel %vm3504, %v4805, %v4804
      %v4807 = vrot.slane %v4480, 2
      %v4808 = vsel %vm3507, %v4807, %v4806
      %v4809 = vrot.slane %v4481, 1
      %v4810 = vsel %vm3489, %v4482, %v4809
      %v4811 = vrot.slane %v4483, 7
      %v4812 = vsel %vm3492, %v4811, %v4810
      %v4813 = vrot.slane %v4484, 6
      %v4814 = vsel %vm3495, %v4813, %v4812
      %v4815 = vrot.slane %v4485, 5
      %v4816 = vsel %vm3498, %v4815, %v4814
      %v4817 = vrot.slane %v4486, 4
      %v4818 = vsel %vm3501, %v4817, %v4816
      %v4819 = vrot.slane %v4487, 3
      %v4820 = vsel %vm3504, %v4819, %v4818
      %v4821 = vrot.slane %v4488, 2
      %v4822 = vsel %vm3507, %v4821, %v4820
      %v4823 = vrot.slane %v4489, 1
      %v4824 = vsel %vm3489, %v4490, %v4823
      %v4825 = vrot.slane %v4491, 7
      %v4826 = vsel %vm3492, %v4825, %v4824
      %v4827 = vrot.slane %v4492, 6
      %v4828 = vsel %vm3495, %v4827, %v4826
      %v4829 = vrot.slane %v4493, 5
      %v4830 = vsel %vm3498, %v4829, %v4828
      %v4831 = vrot.slane %v4494, 4
      %v4832 = vsel %vm3501, %v4831, %v4830
      %v4833 = vrot.slane %v4495, 3
      %v4834 = vsel %vm3504, %v4833, %v4832
      %v4835 = vrot.slane %v4496, 2
      %v4836 = vsel %vm3507, %v4835, %v4834
      %v4837 = vrot.slane %v4497, 1
      %v4838 = vsel %vm3489, %v4498, %v4837
      %v4839 = vrot.slane %v4499, 7
      %v4840 = vsel %vm3492, %v4839, %v4838
      %v4841 = vrot.slane %v4500, 6
      %v4842 = vsel %vm3495, %v4841, %v4840
      %v4843 = vpack.c.b16 %v4514, %v4514
      %v4844 = vpack.c.b16 %v4528, %v4528
      %v4845 = vpack.c.b16 %v4542, %v4542
      %v4846 = vpack.c.b16 %v4556, %v4556
      %v4847 = vpack.c.b16 %v4570, %v4570
      %v4848 = vpack.c.b16 %v4584, %v4584
      %v4849 = vpack.c.b16 %v4598, %v4598
      %v4850 = vpack.c.b16 %v4612, %v4612
      %v4851 = vpack.c.b16 %v4626, %v4626
      %v4852 = vpack.c.b16 %v4640, %v4640
      %v4853 = vpack.c.b16 %v4654, %v4654
      %v4854 = vpack.c.b16 %v4668, %v4668
      %v4855 = vpack.c.b16 %v4682, %v4682
      %v4856 = vpack.c.b16 %v4696, %v4696
      %v4857 = vpack.c.b16 %v4710, %v4710
      %v4858 = vpack.c.b16 %v4724, %v4724
      %v4859 = vpack.c.b16 %v4738, %v4738
      %v4860 = vpack.c.b16 %v4752, %v4752
      %v4861 = vpack.c.b16 %v4766, %v4766
      %v4862 = vpack.c.b16 %v4780, %v4780
      %v4863 = vpack.c.b16 %v4794, %v4794
      %v4864 = vpack.c.b16 %v4808, %v4808
      %v4865 = vpack.c.b16 %v4822, %v4822
      %v4866 = vpack.c.b16 %v4836, %v4836
      %v4867 = vpack.c.b16 %v4842, %v4842
      %4868 = vrot.lane.b32.xlu0 %v4843, 8
      %v4869 = vpop.permute.xlu0 %4868
      %4870 = vrot.lane.b32.xlu0 %v4844, 8
      %v4871 = vpop.permute.xlu0 %4870
      %4872 = vrot.lane.b32.xlu0 %v4845, 8
      %v4873 = vpop.permute.xlu0 %4872
      %4874 = vrot.lane.b32.xlu0 %v4846, 8
      %v4875 = vpop.permute.xlu0 %4874
      %4876 = vrot.lane.b32.xlu0 %v4847, 8
      %v4877 = vpop.permute.xlu0 %4876
      %4878 = vrot.lane.b32.xlu0 %v4848, 8
      %v4879 = vpop.permute.xlu0 %4878
      %4880 = vrot.lane.b32.xlu0 %v4849, 8
      %v4881 = vpop.permute.xlu0 %4880
      %4882 = vrot.lane.b32.xlu0 %v4850, 8
      %v4883 = vpop.permute.xlu0 %4882
      %4884 = vrot.lane.b32.xlu0 %v4851, 8
      %v4885 = vpop.permute.xlu0 %4884
      %4886 = vrot.lane.b32.xlu0 %v4852, 8
      %v4887 = vpop.permute.xlu0 %4886
      %4888 = vrot.lane.b32.xlu0 %v4853, 8
      %v4889 = vpop.permute.xlu0 %4888
      %4890 = vrot.lane.b32.xlu0 %v4854, 8
      %v4891 = vpop.permute.xlu0 %4890
      %4892 = vrot.lane.b32.xlu0 %v4855, 8
      %v4893 = vpop.permute.xlu0 %4892
      %4894 = vrot.lane.b32.xlu0 %v4856, 8
      %v4895 = vpop.permute.xlu0 %4894
      %4896 = vrot.lane.b32.xlu0 %v4857, 8
      %v4897 = vpop.permute.xlu0 %4896
      %4898 = vrot.lane.b32.xlu0 %v4858, 8
      %v4899 = vpop.permute.xlu0 %4898
      %4900 = vrot.lane.b32.xlu0 %v4859, 8
      %v4901 = vpop.permute.xlu0 %4900
      %4902 = vrot.lane.b32.xlu0 %v4860, 8
      %v4903 = vpop.permute.xlu0 %4902
      %4904 = vrot.lane.b32.xlu0 %v4861, 8
      %v4905 = vpop.permute.xlu0 %4904
      %4906 = vrot.lane.b32.xlu0 %v4862, 8
      %v4907 = vpop.permute.xlu0 %4906
      %4908 = vrot.lane.b32.xlu0 %v4863, 8
      %v4909 = vpop.permute.xlu0 %4908
      %4910 = vrot.lane.b32.xlu0 %v4864, 8
      %v4911 = vpop.permute.xlu0 %4910
      %4912 = vrot.lane.b32.xlu0 %v4865, 8
      %v4913 = vpop.permute.xlu0 %4912
      %4914 = vrot.lane.b32.xlu0 %v4866, 8
      %v4915 = vpop.permute.xlu0 %4914
      %4916 = vrot.lane.b32.xlu0 %v4867, 8
      %v4917 = vpop.permute.xlu0 %4916
      %vm4943 = vcmask 126016
      %4944 = vst.msk [vmem:[#allocation3] sm:$0xf] %vm4943, %v4869
      %4945 = vst.msk [vmem:[#allocation3 + $0x4] sm:$0xf] %vm4943, %v4871
      %4946 = vst.msk [vmem:[#allocation3 + $0x8] sm:$0xf] %vm4943, %v4873
      %4947 = vst.msk [vmem:[#allocation3 + $0xc] sm:$0xf] %vm4943, %v4875
      %4948 = vst.msk [vmem:[#allocation3 + $0x10] sm:$0xf] %vm4943, %v4877
      %4949 = vst.msk [vmem:[#allocation3 + $0x14] sm:$0xf] %vm4943, %v4879
      %4950 = vst.msk [vmem:[#allocation3 + $0x18] sm:$0xf] %vm4943, %v4881
      %4951 = vst.msk [vmem:[#allocation3 + $0x1c] sm:$0xf] %vm4943, %v4883
      %4952 = vst.msk [vmem:[#allocation3 + $0x20] sm:$0xf] %vm4943, %v4885
      %4953 = vst.msk [vmem:[#allocation3 + $0x24] sm:$0xf] %vm4943, %v4887
      %4954 = vst.msk [vmem:[#allocation3 + $0x28] sm:$0xf] %vm4943, %v4889
      %4955 = vst.msk [vmem:[#allocation3 + $0x2c] sm:$0xf] %vm4943, %v4891
      %4956 = vst.msk [vmem:[#allocation3 + $0x30] sm:$0xf] %vm4943, %v4893
      %4957 = vst.msk [vmem:[#allocation3 + $0x34] sm:$0xf] %vm4943, %v4895
      %4958 = vst.msk [vmem:[#allocation3 + $0x38] sm:$0xf] %vm4943, %v4897
      %4959 = vst.msk [vmem:[#allocation3 + $0x3c] sm:$0xf] %vm4943, %v4899
      %4960 = vst.msk [vmem:[#allocation3 + $0x40] sm:$0xf] %vm4943, %v4901
      %4961 = vst.msk [vmem:[#allocation3 + $0x44] sm:$0xf] %vm4943, %v4903
      %4962 = vst.msk [vmem:[#allocation3 + $0x48] sm:$0xf] %vm4943, %v4905
      %4963 = vst.msk [vmem:[#allocation3 + $0x4c] sm:$0xf] %vm4943, %v4907
      %4964 = vst.msk [vmem:[#allocation3 + $0x50] sm:$0xf] %vm4943, %v4909
      %4965 = vst.msk [vmem:[#allocation3 + $0x54] sm:$0xf] %vm4943, %v4911
      %4966 = vst.msk [vmem:[#allocation3 + $0x58] sm:$0xf] %vm4943, %v4913
      %4967 = vst.msk [vmem:[#allocation3 + $0x5c] sm:$0xf] %vm4943, %v4915
      %vm4968 = vcmask 123968
      %4969 = vst.msk [vmem:[#allocation3 + $0x60] sm:$0x3] %vm4968, %v4917
      %v4970 = vld [vmem:[#allocation2] sm:$0x2]
      %v4971 = vld [vmem:[#allocation2 + $0x4] sm:$0x2]
      %v4972 = vld [vmem:[#allocation2 + $0x8] sm:$0x2]
      %v4973 = vld [vmem:[#allocation2 + $0xc] sm:$0x2]
      %v4974 = vld [vmem:[#allocation2 + $0x10] sm:$0x2]
      %v4975 = vld [vmem:[#allocation2 + $0x14] sm:$0x2]
      %v4976 = vld [vmem:[#allocation2 + $0x18] sm:$0x2]
      %v4977 = vld [vmem:[#allocation2 + $0x1c] sm:$0x2]
      %v4978 = vld [vmem:[#allocation2 + $0x20] sm:$0x2]
      %v4979 = vld [vmem:[#allocation2 + $0x24] sm:$0x2]
      %v4980 = vld [vmem:[#allocation2 + $0x28] sm:$0x2]
      %v4981 = vld [vmem:[#allocation2 + $0x2c] sm:$0x2]
      %v4982 = vld [vmem:[#allocation2 + $0x30] sm:$0x2]
      %v4983 = vld [vmem:[#allocation2 + $0x34] sm:$0x2]
      %v4984 = vld [vmem:[#allocation2 + $0x38] sm:$0x2]
      %v4985 = vld [vmem:[#allocation2 + $0x3c] sm:$0x2]
      %v4986 = vld [vmem:[#allocation2 + $0x40] sm:$0x2]
      %v4987 = vld [vmem:[#allocation2 + $0x44] sm:$0x2]
      %v4988 = vld [vmem:[#allocation2 + $0x48] sm:$0x2]
      %v4989 = vld [vmem:[#allocation2 + $0x4c] sm:$0x2]
      %v4990 = vld [vmem:[#allocation2 + $0x50] sm:$0x2]
      %v4991 = vld [vmem:[#allocation2 + $0x54] sm:$0x2]
      %v4992 = vld [vmem:[#allocation2 + $0x58] sm:$0x2]
      %v4993 = vld [vmem:[#allocation2 + $0x5c] sm:$0x2]
      %v4994 = vld [vmem:[#allocation2 + $0x60] sm:$0x2]
      %v4995 = vld [vmem:[#allocation2 + $0x64] sm:$0x2]
      %v4996 = vld [vmem:[#allocation2 + $0x68] sm:$0x2]
      %v4997 = vld [vmem:[#allocation2 + $0x6c] sm:$0x2]
      %v4998 = vld [vmem:[#allocation2 + $0x70] sm:$0x2]
      %v4999 = vld [vmem:[#allocation2 + $0x74] sm:$0x2]
      %v5000 = vld [vmem:[#allocation2 + $0x78] sm:$0x2]
      %v5001 = vld [vmem:[#allocation2 + $0x7c] sm:$0x2]
      %v5002 = vld [vmem:[#allocation2 + $0x80] sm:$0x2]
      %v5003 = vld [vmem:[#allocation2 + $0x84] sm:$0x2]
      %v5004 = vld [vmem:[#allocation2 + $0x88] sm:$0x2]
      %v5005 = vld [vmem:[#allocation2 + $0x8c] sm:$0x2]
      %v5006 = vld [vmem:[#allocation2 + $0x90] sm:$0x2]
      %v5007 = vld [vmem:[#allocation2 + $0x94] sm:$0x2]
      %v5008 = vld [vmem:[#allocation2 + $0x98] sm:$0x2]
      %v5009 = vld [vmem:[#allocation2 + $0x9c] sm:$0x2]
      %v5010 = vld [vmem:[#allocation2 + $0xa0] sm:$0x2]
      %v5011 = vld [vmem:[#allocation2 + $0xa4] sm:$0x2]
      %v5012 = vld [vmem:[#allocation2 + $0xa8] sm:$0x2]
      %v5013 = vld [vmem:[#allocation2 + $0xac] sm:$0x2]
      %v5014 = vld [vmem:[#allocation2 + $0xb0] sm:$0x2]
      %v5015 = vld [vmem:[#allocation2 + $0xb4] sm:$0x2]
      %v5016 = vld [vmem:[#allocation2 + $0xb8] sm:$0x2]
      %v5017 = vld [vmem:[#allocation2 + $0xbc] sm:$0x2]
      %v5018 = vld [vmem:[#allocation2 + $0xc0] sm:$0x2]
      %v5019 = vld [vmem:[#allocation2 + $0xc4] sm:$0x2]
      %v5020 = vld [vmem:[#allocation2 + $0xc8] sm:$0x2]
      %v5021 = vld [vmem:[#allocation2 + $0xcc] sm:$0x2]
      %v5022 = vld [vmem:[#allocation2 + $0xd0] sm:$0x2]
      %v5023 = vld [vmem:[#allocation2 + $0xd4] sm:$0x2]
      %v5024 = vld [vmem:[#allocation2 + $0xd8] sm:$0x2]
      %v5025 = vld [vmem:[#allocation2 + $0xdc] sm:$0x2]
      %v5026 = vld [vmem:[#allocation2 + $0xe0] sm:$0x2]
      %v5027 = vld [vmem:[#allocation2 + $0xe4] sm:$0x2]
      %v5028 = vld [vmem:[#allocation2 + $0xe8] sm:$0x2]
      %v5029 = vld [vmem:[#allocation2 + $0xec] sm:$0x2]
      %v5030 = vld [vmem:[#allocation2 + $0xf0] sm:$0x2]
      %v5031 = vld [vmem:[#allocation2 + $0xf4] sm:$0x2]
      %v5032 = vld [vmem:[#allocation2 + $0xf8] sm:$0x2]
      %v5033 = vld [vmem:[#allocation2 + $0xfc] sm:$0x2]
      %v5034 = vld [vmem:[#allocation2 + $0x100] sm:$0x2]
      %v5035 = vld [vmem:[#allocation2 + $0x104] sm:$0x2]
      %v5036 = vld [vmem:[#allocation2 + $0x108] sm:$0x2]
      %v5037 = vld [vmem:[#allocation2 + $0x10c] sm:$0x2]
      %v5038 = vld [vmem:[#allocation2 + $0x110] sm:$0x2]
      %v5039 = vld [vmem:[#allocation2 + $0x114] sm:$0x2]
      %v5040 = vld [vmem:[#allocation2 + $0x118] sm:$0x2]
      %v5041 = vld [vmem:[#allocation2 + $0x11c] sm:$0x2]
      %v5042 = vld [vmem:[#allocation2 + $0x120] sm:$0x2]
      %v5043 = vld [vmem:[#allocation2 + $0x124] sm:$0x2]
      %v5044 = vld [vmem:[#allocation2 + $0x128] sm:$0x2]
      %v5045 = vld [vmem:[#allocation2 + $0x12c] sm:$0x2]
      %v5046 = vld [vmem:[#allocation2 + $0x130] sm:$0x2]
      %v5047 = vld [vmem:[#allocation2 + $0x134] sm:$0x2]
      %v5048 = vld [vmem:[#allocation2 + $0x138] sm:$0x2]
      %v5049 = vld [vmem:[#allocation2 + $0x13c] sm:$0x2]
      %v5050 = vld [vmem:[#allocation2 + $0x140] sm:$0x2]
      %v5051 = vld [vmem:[#allocation2 + $0x144] sm:$0x2]
      %v5052 = vld [vmem:[#allocation2 + $0x148] sm:$0x2]
      %v5053 = vld [vmem:[#allocation2 + $0x14c] sm:$0x2]
      %v5054 = vld [vmem:[#allocation2 + $0x150] sm:$0x2]
      %v5055 = vld [vmem:[#allocation2 + $0x154] sm:$0x2]
      %v5056 = vld [vmem:[#allocation2 + $0x158] sm:$0x2]
      %v5057 = vld [vmem:[#allocation2 + $0x15c] sm:$0x2]
      %v5058 = vld [vmem:[#allocation2 + $0x160] sm:$0x2]
      %v5059 = vld [vmem:[#allocation2 + $0x164] sm:$0x2]
      %v5060 = vld [vmem:[#allocation2 + $0x168] sm:$0x2]
      %v5061 = vld [vmem:[#allocation2 + $0x16c] sm:$0x2]
      %v5062 = vld [vmem:[#allocation2 + $0x170] sm:$0x2]
      %v5063 = vld [vmem:[#allocation2 + $0x174] sm:$0x2]
      %v5064 = vld [vmem:[#allocation2 + $0x178] sm:$0x2]
      %v5065 = vld [vmem:[#allocation2 + $0x17c] sm:$0x2]
      %v5066 = vld [vmem:[#allocation2 + $0x180] sm:$0x2]
      %v5067 = vld [vmem:[#allocation2 + $0x184] sm:$0x2]
      %v5068 = vld [vmem:[#allocation2 + $0x188] sm:$0x2]
      %v5069 = vld [vmem:[#allocation2 + $0x18c] sm:$0x2]
      %v5070 = vld [vmem:[#allocation2 + $0x190] sm:$0x2]
      %v5071 = vld [vmem:[#allocation2 + $0x194] sm:$0x2]
      %v5072 = vld [vmem:[#allocation2 + $0x198] sm:$0x2]
      %v5073 = vld [vmem:[#allocation2 + $0x19c] sm:$0x2]
      %v5074 = vld [vmem:[#allocation2 + $0x1a0] sm:$0x2]
      %v5075 = vld [vmem:[#allocation2 + $0x1a4] sm:$0x2]
      %v5076 = vld [vmem:[#allocation2 + $0x1a8] sm:$0x2]
      %v5077 = vld [vmem:[#allocation2 + $0x1ac] sm:$0x2]
      %v5078 = vld [vmem:[#allocation2 + $0x1b0] sm:$0x2]
      %v5079 = vld [vmem:[#allocation2 + $0x1b4] sm:$0x2]
      %v5080 = vld [vmem:[#allocation2 + $0x1b8] sm:$0x2]
      %v5081 = vld [vmem:[#allocation2 + $0x1bc] sm:$0x2]
      %v5082 = vld [vmem:[#allocation2 + $0x1c0] sm:$0x2]
      %v5083 = vld [vmem:[#allocation2 + $0x1c4] sm:$0x2]
      %v5084 = vld [vmem:[#allocation2 + $0x1c8] sm:$0x2]
      %v5085 = vld [vmem:[#allocation2 + $0x1cc] sm:$0x2]
      %v5086 = vld [vmem:[#allocation2 + $0x1d0] sm:$0x2]
      %v5087 = vld [vmem:[#allocation2 + $0x1d4] sm:$0x2]
      %v5088 = vld [vmem:[#allocation2 + $0x1d8] sm:$0x2]
      %v5089 = vld [vmem:[#allocation2 + $0x1dc] sm:$0x2]
      %v5090 = vld [vmem:[#allocation2 + $0x1e0] sm:$0x2]
      %v5091 = vld [vmem:[#allocation2 + $0x1e4] sm:$0x2]
      %v5092 = vld [vmem:[#allocation2 + $0x1e8] sm:$0x2]
      %v5093 = vld [vmem:[#allocation2 + $0x1ec] sm:$0x2]
      %v5094 = vld [vmem:[#allocation2 + $0x1f0] sm:$0x2]
      %v5095 = vld [vmem:[#allocation2 + $0x1f4] sm:$0x2]
      %v5096 = vld [vmem:[#allocation2 + $0x1f8] sm:$0x2]
      %v5097 = vld [vmem:[#allocation2 + $0x1fc] sm:$0x2]
      %v5098 = vld [vmem:[#allocation2 + $0x200] sm:$0x2]
      %v5099 = vld [vmem:[#allocation2 + $0x204] sm:$0x2]
      %v5100 = vld [vmem:[#allocation2 + $0x208] sm:$0x2]
      %v5101 = vld [vmem:[#allocation2 + $0x20c] sm:$0x2]
      %v5102 = vld [vmem:[#allocation2 + $0x210] sm:$0x2]
      %v5103 = vld [vmem:[#allocation2 + $0x214] sm:$0x2]
      %v5104 = vld [vmem:[#allocation2 + $0x218] sm:$0x2]
      %v5105 = vld [vmem:[#allocation2 + $0x21c] sm:$0x2]
      %v5106 = vld [vmem:[#allocation2 + $0x220] sm:$0x2]
      %v5107 = vld [vmem:[#allocation2 + $0x224] sm:$0x2]
      %v5108 = vld [vmem:[#allocation2 + $0x228] sm:$0x2]
      %v5109 = vld [vmem:[#allocation2 + $0x22c] sm:$0x2]
      %v5110 = vld [vmem:[#allocation2 + $0x230] sm:$0x2]
      %v5111 = vld [vmem:[#allocation2 + $0x234] sm:$0x2]
      %v5112 = vld [vmem:[#allocation2 + $0x238] sm:$0x2]
      %v5113 = vld [vmem:[#allocation2 + $0x23c] sm:$0x2]
      %v5114 = vld [vmem:[#allocation2 + $0x240] sm:$0x2]
      %v5115 = vld [vmem:[#allocation2 + $0x244] sm:$0x2]
      %v5116 = vld [vmem:[#allocation2 + $0x248] sm:$0x2]
      %v5117 = vld [vmem:[#allocation2 + $0x24c] sm:$0x2]
      %v5118 = vld [vmem:[#allocation2 + $0x250] sm:$0x2]
      %v5119 = vld [vmem:[#allocation2 + $0x254] sm:$0x2]
      %v5120 = vld [vmem:[#allocation2 + $0x258] sm:$0x2]
      %v5121 = vld [vmem:[#allocation2 + $0x25c] sm:$0x2]
      %v5122 = vld [vmem:[#allocation2 + $0x260] sm:$0x2]
      %v5123 = vld [vmem:[#allocation2 + $0x264] sm:$0x2]
      %v5124 = vld [vmem:[#allocation2 + $0x268] sm:$0x2]
      %v5125 = vld [vmem:[#allocation2 + $0x26c] sm:$0x2]
      %v5126 = vld [vmem:[#allocation2 + $0x270] sm:$0x2]
      %v5127 = vld [vmem:[#allocation2 + $0x274] sm:$0x2]
      %v5128 = vld [vmem:[#allocation2 + $0x278] sm:$0x2]
      %v5129 = vld [vmem:[#allocation2 + $0x27c] sm:$0x2]
      %v5130 = vld [vmem:[#allocation2 + $0x280] sm:$0x2]
      %v5131 = vld [vmem:[#allocation2 + $0x284] sm:$0x2]
      %v5132 = vld [vmem:[#allocation2 + $0x288] sm:$0x2]
      %v5133 = vld [vmem:[#allocation2 + $0x28c] sm:$0x2]
      %v5134 = vld [vmem:[#allocation2 + $0x290] sm:$0x2]
      %v5135 = vld [vmem:[#allocation2 + $0x294] sm:$0x2]
      %v5136 = vld [vmem:[#allocation2 + $0x298] sm:$0x2]
      %v5137 = vld [vmem:[#allocation2 + $0x29c] sm:$0x2]
      %v5138 = vld [vmem:[#allocation2 + $0x2a0] sm:$0x2]
      %v5139 = vld [vmem:[#allocation2 + $0x2a4] sm:$0x2]
      %v5140 = vld [vmem:[#allocation2 + $0x2a8] sm:$0x2]
      %v5141 = vld [vmem:[#allocation2 + $0x2ac] sm:$0x2]
      %v5142 = vld [vmem:[#allocation2 + $0x2b0] sm:$0x2]
      %v5143 = vld [vmem:[#allocation2 + $0x2b4] sm:$0x2]
      %v5144 = vld [vmem:[#allocation2 + $0x2b8] sm:$0x2]
      %v5145 = vld [vmem:[#allocation2 + $0x2bc] sm:$0x2]
      %v5146 = vld [vmem:[#allocation2 + $0x2c0] sm:$0x2]
      %v5147 = vld [vmem:[#allocation2 + $0x2c4] sm:$0x2]
      %v5148 = vld [vmem:[#allocation2 + $0x2c8] sm:$0x2]
      %v5149 = vld [vmem:[#allocation2 + $0x2cc] sm:$0x2]
      %v5150 = vld [vmem:[#allocation2 + $0x2d0] sm:$0x2]
      %v5151 = vld [vmem:[#allocation2 + $0x2d4] sm:$0x2]
      %v5152 = vld [vmem:[#allocation2 + $0x2d8] sm:$0x2]
      %v5153 = vld [vmem:[#allocation2 + $0x2dc] sm:$0x2]
      %v5154 = vld [vmem:[#allocation2 + $0x2e0] sm:$0x2]
      %v5155 = vld [vmem:[#allocation2 + $0x2e4] sm:$0x2]
      %v5156 = vld [vmem:[#allocation2 + $0x2e8] sm:$0x2]
      %v5157 = vld [vmem:[#allocation2 + $0x2ec] sm:$0x2]
      %v5158 = vld [vmem:[#allocation2 + $0x2f0] sm:$0x2]
      %v5159 = vld [vmem:[#allocation2 + $0x2f4] sm:$0x2]
      %v5160 = vld [vmem:[#allocation2 + $0x2f8] sm:$0x2]
      %v5161 = vld [vmem:[#allocation2 + $0x2fc] sm:$0x2]
      %v5162 = vld [vmem:[#allocation2 + $0x300] sm:$0x2]
      %v5163 = vld [vmem:[#allocation2 + $0x304] sm:$0x2]
      %v5164 = vld [vmem:[#allocation2 + $0x308] sm:$0x2]
      %v5165 = vld [vmem:[#allocation2 + $0x30c] sm:$0x2]
      %v5362 = vunpack.c.l.b16 %v4970
      %v5363 = vunpack.c.l.b16 %v4971
      %v5364 = vunpack.c.l.b16 %v4972
      %v5365 = vunpack.c.l.b16 %v4973
      %v5366 = vunpack.c.l.b16 %v4974
      %v5367 = vunpack.c.l.b16 %v4975
      %v5368 = vunpack.c.l.b16 %v4976
      %v5369 = vunpack.c.l.b16 %v4977
      %v5370 = vunpack.c.l.b16 %v4978
      %v5371 = vunpack.c.l.b16 %v4979
      %v5372 = vunpack.c.l.b16 %v4980
      %v5373 = vunpack.c.l.b16 %v4981
      %v5374 = vunpack.c.l.b16 %v4982
      %v5375 = vunpack.c.l.b16 %v4983
      %v5376 = vunpack.c.l.b16 %v4984
      %v5377 = vunpack.c.l.b16 %v4985
      %v5378 = vunpack.c.l.b16 %v4986
      %v5379 = vunpack.c.l.b16 %v4987
      %v5380 = vunpack.c.l.b16 %v4988
      %v5381 = vunpack.c.l.b16 %v4989
      %v5382 = vunpack.c.l.b16 %v4990
      %v5383 = vunpack.c.l.b16 %v4991
      %v5384 = vunpack.c.l.b16 %v4992
      %v5385 = vunpack.c.l.b16 %v4993
      %v5386 = vunpack.c.l.b16 %v4994
      %v5387 = vunpack.c.l.b16 %v4995
      %v5388 = vunpack.c.l.b16 %v4996
      %v5389 = vunpack.c.l.b16 %v4997
      %v5390 = vunpack.c.l.b16 %v4998
      %v5391 = vunpack.c.l.b16 %v4999
      %v5392 = vunpack.c.l.b16 %v5000
      %v5393 = vunpack.c.l.b16 %v5001
      %v5394 = vunpack.c.l.b16 %v5002
      %v5395 = vunpack.c.l.b16 %v5003
      %v5396 = vunpack.c.l.b16 %v5004
      %v5397 = vunpack.c.l.b16 %v5005
      %v5398 = vunpack.c.l.b16 %v5006
      %v5399 = vunpack.c.l.b16 %v5007
      %v5400 = vunpack.c.l.b16 %v5008
      %v5401 = vunpack.c.l.b16 %v5009
      %v5402 = vunpack.c.l.b16 %v5010
      %v5403 = vunpack.c.l.b16 %v5011
      %v5404 = vunpack.c.l.b16 %v5012
      %v5405 = vunpack.c.l.b16 %v5013
      %v5406 = vunpack.c.l.b16 %v5014
      %v5407 = vunpack.c.l.b16 %v5015
      %v5408 = vunpack.c.l.b16 %v5016
      %v5409 = vunpack.c.l.b16 %v5017
      %v5410 = vunpack.c.l.b16 %v5018
      %v5411 = vunpack.c.l.b16 %v5019
      %v5412 = vunpack.c.l.b16 %v5020
      %v5413 = vunpack.c.l.b16 %v5021
      %v5414 = vunpack.c.l.b16 %v5022
      %v5415 = vunpack.c.l.b16 %v5023
      %v5416 = vunpack.c.l.b16 %v5024
      %v5417 = vunpack.c.l.b16 %v5025
      %v5418 = vunpack.c.l.b16 %v5026
      %v5419 = vunpack.c.l.b16 %v5027
      %v5420 = vunpack.c.l.b16 %v5028
      %v5421 = vunpack.c.l.b16 %v5029
      %v5422 = vunpack.c.l.b16 %v5030
      %v5423 = vunpack.c.l.b16 %v5031
      %v5424 = vunpack.c.l.b16 %v5032
      %v5425 = vunpack.c.l.b16 %v5033
      %v5426 = vunpack.c.l.b16 %v5034
      %v5427 = vunpack.c.l.b16 %v5035
      %v5428 = vunpack.c.l.b16 %v5036
      %v5429 = vunpack.c.l.b16 %v5037
      %v5430 = vunpack.c.l.b16 %v5038
      %v5431 = vunpack.c.l.b16 %v5039
      %v5432 = vunpack.c.l.b16 %v5040
      %v5433 = vunpack.c.l.b16 %v5041
      %v5434 = vunpack.c.l.b16 %v5042
      %v5435 = vunpack.c.l.b16 %v5043
      %v5436 = vunpack.c.l.b16 %v5044
      %v5437 = vunpack.c.l.b16 %v5045
      %v5438 = vunpack.c.l.b16 %v5046
      %v5439 = vunpack.c.l.b16 %v5047
      %v5440 = vunpack.c.l.b16 %v5048
      %v5441 = vunpack.c.l.b16 %v5049
      %v5442 = vunpack.c.l.b16 %v5050
      %v5443 = vunpack.c.l.b16 %v5051
      %v5444 = vunpack.c.l.b16 %v5052
      %v5445 = vunpack.c.l.b16 %v5053
      %v5446 = vunpack.c.l.b16 %v5054
      %v5447 = vunpack.c.l.b16 %v5055
      %v5448 = vunpack.c.l.b16 %v5056
      %v5449 = vunpack.c.l.b16 %v5057
      %v5450 = vunpack.c.l.b16 %v5058
      %v5451 = vunpack.c.l.b16 %v5059
      %v5452 = vunpack.c.l.b16 %v5060
      %v5453 = vunpack.c.l.b16 %v5061
      %v5454 = vunpack.c.l.b16 %v5062
      %v5455 = vunpack.c.l.b16 %v5063
      %v5456 = vunpack.c.l.b16 %v5064
      %v5457 = vunpack.c.l.b16 %v5065
      %v5458 = vunpack.c.l.b16 %v5066
      %v5459 = vunpack.c.l.b16 %v5067
      %v5460 = vunpack.c.l.b16 %v5068
      %v5461 = vunpack.c.l.b16 %v5069
      %v5462 = vunpack.c.l.b16 %v5070
      %v5463 = vunpack.c.l.b16 %v5071
      %v5464 = vunpack.c.l.b16 %v5072
      %v5465 = vunpack.c.l.b16 %v5073
      %v5466 = vunpack.c.l.b16 %v5074
      %v5467 = vunpack.c.l.b16 %v5075
      %v5468 = vunpack.c.l.b16 %v5076
      %v5469 = vunpack.c.l.b16 %v5077
      %v5470 = vunpack.c.l.b16 %v5078
      %v5471 = vunpack.c.l.b16 %v5079
      %v5472 = vunpack.c.l.b16 %v5080
      %v5473 = vunpack.c.l.b16 %v5081
      %v5474 = vunpack.c.l.b16 %v5082
      %v5475 = vunpack.c.l.b16 %v5083
      %v5476 = vunpack.c.l.b16 %v5084
      %v5477 = vunpack.c.l.b16 %v5085
      %v5478 = vunpack.c.l.b16 %v5086
      %v5479 = vunpack.c.l.b16 %v5087
      %v5480 = vunpack.c.l.b16 %v5088
      %v5481 = vunpack.c.l.b16 %v5089
      %v5482 = vunpack.c.l.b16 %v5090
      %v5483 = vunpack.c.l.b16 %v5091
      %v5484 = vunpack.c.l.b16 %v5092
      %v5485 = vunpack.c.l.b16 %v5093
      %v5486 = vunpack.c.l.b16 %v5094
      %v5487 = vunpack.c.l.b16 %v5095
      %v5488 = vunpack.c.l.b16 %v5096
      %v5489 = vunpack.c.l.b16 %v5097
      %v5490 = vunpack.c.l.b16 %v5098
      %v5491 = vunpack.c.l.b16 %v5099
      %v5492 = vunpack.c.l.b16 %v5100
      %v5493 = vunpack.c.l.b16 %v5101
      %v5494 = vunpack.c.l.b16 %v5102
      %v5495 = vunpack.c.l.b16 %v5103
      %v5496 = vunpack.c.l.b16 %v5104
      %v5497 = vunpack.c.l.b16 %v5105
      %v5498 = vunpack.c.l.b16 %v5106
      %v5499 = vunpack.c.l.b16 %v5107
      %v5500 = vunpack.c.l.b16 %v5108
      %v5501 = vunpack.c.l.b16 %v5109
      %v5502 = vunpack.c.l.b16 %v5110
      %v5503 = vunpack.c.l.b16 %v5111
      %v5504 = vunpack.c.l.b16 %v5112
      %v5505 = vunpack.c.l.b16 %v5113
      %v5506 = vunpack.c.l.b16 %v5114
      %v5507 = vunpack.c.l.b16 %v5115
      %v5508 = vunpack.c.l.b16 %v5116
      %v5509 = vunpack.c.l.b16 %v5117
      %v5510 = vunpack.c.l.b16 %v5118
      %v5511 = vunpack.c.l.b16 %v5119
      %v5512 = vunpack.c.l.b16 %v5120
      %v5513 = vunpack.c.l.b16 %v5121
      %v5514 = vunpack.c.l.b16 %v5122
      %v5515 = vunpack.c.l.b16 %v5123
      %v5516 = vunpack.c.l.b16 %v5124
      %v5517 = vunpack.c.l.b16 %v5125
      %v5518 = vunpack.c.l.b16 %v5126
      %v5519 = vunpack.c.l.b16 %v5127
      %v5520 = vunpack.c.l.b16 %v5128
      %v5521 = vunpack.c.l.b16 %v5129
      %v5522 = vunpack.c.l.b16 %v5130
      %v5523 = vunpack.c.l.b16 %v5131
      %v5524 = vunpack.c.l.b16 %v5132
      %v5525 = vunpack.c.l.b16 %v5133
      %v5526 = vunpack.c.l.b16 %v5134
      %v5527 = vunpack.c.l.b16 %v5135
      %v5528 = vunpack.c.l.b16 %v5136
      %v5529 = vunpack.c.l.b16 %v5137
      %v5530 = vunpack.c.l.b16 %v5138
      %v5531 = vunpack.c.l.b16 %v5139
      %v5532 = vunpack.c.l.b16 %v5140
      %v5533 = vunpack.c.l.b16 %v5141
      %v5534 = vunpack.c.l.b16 %v5142
      %v5535 = vunpack.c.l.b16 %v5143
      %v5536 = vunpack.c.l.b16 %v5144
      %v5537 = vunpack.c.l.b16 %v5145
      %v5538 = vunpack.c.l.b16 %v5146
      %v5539 = vunpack.c.l.b16 %v5147
      %v5540 = vunpack.c.l.b16 %v5148
      %v5541 = vunpack.c.l.b16 %v5149
      %v5542 = vunpack.c.l.b16 %v5150
      %v5543 = vunpack.c.l.b16 %v5151
      %v5544 = vunpack.c.l.b16 %v5152
      %v5545 = vunpack.c.l.b16 %v5153
      %v5546 = vunpack.c.l.b16 %v5154
      %v5547 = vunpack.c.l.b16 %v5155
      %v5548 = vunpack.c.l.b16 %v5156
      %v5549 = vunpack.c.l.b16 %v5157
      %v5550 = vunpack.c.l.b16 %v5158
      %v5551 = vunpack.c.l.b16 %v5159
      %v5552 = vunpack.c.l.b16 %v5160
      %v5553 = vunpack.c.l.b16 %v5161
      %v5554 = vunpack.c.l.b16 %v5162
      %v5555 = vunpack.c.l.b16 %v5163
      %v5556 = vunpack.c.l.b16 %v5164
      %v5557 = vunpack.c.l.b16 %v5165
      %v5558 = vrot.slane %v5362, 2
      %v5559 = vrot.slane %v5363, 1
      %v5560 = vsel %vm3489, %v5559, %v5558
      %v5561 = vsel %vm3492, %v5364, %v5560
      %v5562 = vrot.slane %v5365, 7
      %v5563 = vsel %vm3495, %v5562, %v5561
      %v5564 = vrot.slane %v5366, 6
      %v5565 = vsel %vm3498, %v5564, %v5563
      %v5566 = vrot.slane %v5367, 5
      %v5567 = vsel %vm3501, %v5566, %v5565
      %v5568 = vrot.slane %v5368, 4
      %v5569 = vsel %vm3504, %v5568, %v5567
      %v5570 = vrot.slane %v5369, 3
      %v5571 = vsel %vm3507, %v5570, %v5569
      %v5572 = vrot.slane %v5370, 2
      %v5573 = vrot.slane %v5371, 1
      %v5574 = vsel %vm3489, %v5573, %v5572
      %v5575 = vsel %vm3492, %v5372, %v5574
      %v5576 = vrot.slane %v5373, 7
      %v5577 = vsel %vm3495, %v5576, %v5575
      %v5578 = vrot.slane %v5374, 6
      %v5579 = vsel %vm3498, %v5578, %v5577
      %v5580 = vrot.slane %v5375, 5
      %v5581 = vsel %vm3501, %v5580, %v5579
      %v5582 = vrot.slane %v5376, 4
      %v5583 = vsel %vm3504, %v5582, %v5581
      %v5584 = vrot.slane %v5377, 3
      %v5585 = vsel %vm3507, %v5584, %v5583
      %v5586 = vrot.slane %v5378, 2
      %v5587 = vrot.slane %v5379, 1
      %v5588 = vsel %vm3489, %v5587, %v5586
      %v5589 = vsel %vm3492, %v5380, %v5588
      %v5590 = vrot.slane %v5381, 7
      %v5591 = vsel %vm3495, %v5590, %v5589
      %v5592 = vrot.slane %v5382, 6
      %v5593 = vsel %vm3498, %v5592, %v5591
      %v5594 = vrot.slane %v5383, 5
      %v5595 = vsel %vm3501, %v5594, %v5593
      %v5596 = vrot.slane %v5384, 4
      %v5597 = vsel %vm3504, %v5596, %v5595
      %v5598 = vrot.slane %v5385, 3
      %v5599 = vsel %vm3507, %v5598, %v5597
      %v5600 = vrot.slane %v5386, 2
      %v5601 = vrot.slane %v5387, 1
      %v5602 = vsel %vm3489, %v5601, %v5600
      %v5603 = vsel %vm3492, %v5388, %v5602
      %v5604 = vrot.slane %v5389, 7
      %v5605 = vsel %vm3495, %v5604, %v5603
      %v5606 = vrot.slane %v5390, 6
      %v5607 = vsel %vm3498, %v5606, %v5605
      %v5608 = vrot.slane %v5391, 5
      %v5609 = vsel %vm3501, %v5608, %v5607
      %v5610 = vrot.slane %v5392, 4
      %v5611 = vsel %vm3504, %v5610, %v5609
      %v5612 = vrot.slane %v5393, 3
      %v5613 = vsel %vm3507, %v5612, %v5611
      %v5614 = vrot.slane %v5394, 2
      %v5615 = vrot.slane %v5395, 1
      %v5616 = vsel %vm3489, %v5615, %v5614
      %v5617 = vsel %vm3492, %v5396, %v5616
      %v5618 = vrot.slane %v5397, 7
      %v5619 = vsel %vm3495, %v5618, %v5617
      %v5620 = vrot.slane %v5398, 6
      %v5621 = vsel %vm3498, %v5620, %v5619
      %v5622 = vrot.slane %v5399, 5
      %v5623 = vsel %vm3501, %v5622, %v5621
      %v5624 = vrot.slane %v5400, 4
      %v5625 = vsel %vm3504, %v5624, %v5623
      %v5626 = vrot.slane %v5401, 3
      %v5627 = vsel %vm3507, %v5626, %v5625
      %v5628 = vrot.slane %v5402, 2
      %v5629 = vrot.slane %v5403, 1
      %v5630 = vsel %vm3489, %v5629, %v5628
      %v5631 = vsel %vm3492, %v5404, %v5630
      %v5632 = vrot.slane %v5405, 7
      %v5633 = vsel %vm3495, %v5632, %v5631
      %v5634 = vrot.slane %v5406, 6
      %v5635 = vsel %vm3498, %v5634, %v5633
      %v5636 = vrot.slane %v5407, 5
      %v5637 = vsel %vm3501, %v5636, %v5635
      %v5638 = vrot.slane %v5408, 4
      %v5639 = vsel %vm3504, %v5638, %v5637
      %v5640 = vrot.slane %v5409, 3
      %v5641 = vsel %vm3507, %v5640, %v5639
      %v5642 = vrot.slane %v5410, 2
      %v5643 = vrot.slane %v5411, 1
      %v5644 = vsel %vm3489, %v5643, %v5642
      %v5645 = vsel %vm3492, %v5412, %v5644
      %v5646 = vrot.slane %v5413, 7
      %v5647 = vsel %vm3495, %v5646, %v5645
      %v5648 = vrot.slane %v5414, 6
      %v5649 = vsel %vm3498, %v5648, %v5647
      %v5650 = vrot.slane %v5415, 5
      %v5651 = vsel %vm3501, %v5650, %v5649
      %v5652 = vrot.slane %v5416, 4
      %v5653 = vsel %vm3504, %v5652, %v5651
      %v5654 = vrot.slane %v5417, 3
      %v5655 = vsel %vm3507, %v5654, %v5653
      %v5656 = vrot.slane %v5418, 2
      %v5657 = vrot.slane %v5419, 1
      %v5658 = vsel %vm3489, %v5657, %v5656
      %v5659 = vsel %vm3492, %v5420, %v5658
      %v5660 = vrot.slane %v5421, 7
      %v5661 = vsel %vm3495, %v5660, %v5659
      %v5662 = vrot.slane %v5422, 6
      %v5663 = vsel %vm3498, %v5662, %v5661
      %v5664 = vrot.slane %v5423, 5
      %v5665 = vsel %vm3501, %v5664, %v5663
      %v5666 = vrot.slane %v5424, 4
      %v5667 = vsel %vm3504, %v5666, %v5665
      %v5668 = vrot.slane %v5425, 3
      %v5669 = vsel %vm3507, %v5668, %v5667
      %v5670 = vrot.slane %v5426, 2
      %v5671 = vrot.slane %v5427, 1
      %v5672 = vsel %vm3489, %v5671, %v5670
      %v5673 = vsel %vm3492, %v5428, %v5672
      %v5674 = vrot.slane %v5429, 7
      %v5675 = vsel %vm3495, %v5674, %v5673
      %v5676 = vrot.slane %v5430, 6
      %v5677 = vsel %vm3498, %v5676, %v5675
      %v5678 = vrot.slane %v5431, 5
      %v5679 = vsel %vm3501, %v5678, %v5677
      %v5680 = vrot.slane %v5432, 4
      %v5681 = vsel %vm3504, %v5680, %v5679
      %v5682 = vrot.slane %v5433, 3
      %v5683 = vsel %vm3507, %v5682, %v5681
      %v5684 = vrot.slane %v5434, 2
      %v5685 = vrot.slane %v5435, 1
      %v5686 = vsel %vm3489, %v5685, %v5684
      %v5687 = vsel %vm3492, %v5436, %v5686
      %v5688 = vrot.slane %v5437, 7
      %v5689 = vsel %vm3495, %v5688, %v5687
      %v5690 = vrot.slane %v5438, 6
      %v5691 = vsel %vm3498, %v5690, %v5689
      %v5692 = vrot.slane %v5439, 5
      %v5693 = vsel %vm3501, %v5692, %v5691
      %v5694 = vrot.slane %v5440, 4
      %v5695 = vsel %vm3504, %v5694, %v5693
      %v5696 = vrot.slane %v5441, 3
      %v5697 = vsel %vm3507, %v5696, %v5695
      %v5698 = vrot.slane %v5442, 2
      %v5699 = vrot.slane %v5443, 1
      %v5700 = vsel %vm3489, %v5699, %v5698
      %v5701 = vsel %vm3492, %v5444, %v5700
      %v5702 = vrot.slane %v5445, 7
      %v5703 = vsel %vm3495, %v5702, %v5701
      %v5704 = vrot.slane %v5446, 6
      %v5705 = vsel %vm3498, %v5704, %v5703
      %v5706 = vrot.slane %v5447, 5
      %v5707 = vsel %vm3501, %v5706, %v5705
      %v5708 = vrot.slane %v5448, 4
      %v5709 = vsel %vm3504, %v5708, %v5707
      %v5710 = vrot.slane %v5449, 3
      %v5711 = vsel %vm3507, %v5710, %v5709
      %v5712 = vrot.slane %v5450, 2
      %v5713 = vrot.slane %v5451, 1
      %v5714 = vsel %vm3489, %v5713, %v5712
      %v5715 = vsel %vm3492, %v5452, %v5714
      %v5716 = vrot.slane %v5453, 7
      %v5717 = vsel %vm3495, %v5716, %v5715
      %v5718 = vrot.slane %v5454, 6
      %v5719 = vsel %vm3498, %v5718, %v5717
      %v5720 = vrot.slane %v5455, 5
      %v5721 = vsel %vm3501, %v5720, %v5719
      %v5722 = vrot.slane %v5456, 4
      %v5723 = vsel %vm3504, %v5722, %v5721
      %v5724 = vrot.slane %v5457, 3
      %v5725 = vsel %vm3507, %v5724, %v5723
      %v5726 = vrot.slane %v5458, 2
      %v5727 = vrot.slane %v5459, 1
      %v5728 = vsel %vm3489, %v5727, %v5726
      %v5729 = vsel %vm3492, %v5460, %v5728
      %v5730 = vrot.slane %v5461, 7
      %v5731 = vsel %vm3495, %v5730, %v5729
      %v5732 = vrot.slane %v5462, 6
      %v5733 = vsel %vm3498, %v5732, %v5731
      %v5734 = vrot.slane %v5463, 5
      %v5735 = vsel %vm3501, %v5734, %v5733
      %v5736 = vrot.slane %v5464, 4
      %v5737 = vsel %vm3504, %v5736, %v5735
      %v5738 = vrot.slane %v5465, 3
      %v5739 = vsel %vm3507, %v5738, %v5737
      %v5740 = vrot.slane %v5466, 2
      %v5741 = vrot.slane %v5467, 1
      %v5742 = vsel %vm3489, %v5741, %v5740
      %v5743 = vsel %vm3492, %v5468, %v5742
      %v5744 = vrot.slane %v5469, 7
      %v5745 = vsel %vm3495, %v5744, %v5743
      %v5746 = vrot.slane %v5470, 6
      %v5747 = vsel %vm3498, %v5746, %v5745
      %v5748 = vrot.slane %v5471, 5
      %v5749 = vsel %vm3501, %v5748, %v5747
      %v5750 = vrot.slane %v5472, 4
      %v5751 = vsel %vm3504, %v5750, %v5749
      %v5752 = vrot.slane %v5473, 3
      %v5753 = vsel %vm3507, %v5752, %v5751
      %v5754 = vrot.slane %v5474, 2
      %v5755 = vrot.slane %v5475, 1
      %v5756 = vsel %vm3489, %v5755, %v5754
      %v5757 = vsel %vm3492, %v5476, %v5756
      %v5758 = vrot.slane %v5477, 7
      %v5759 = vsel %vm3495, %v5758, %v5757
      %v5760 = vrot.slane %v5478, 6
      %v5761 = vsel %vm3498, %v5760, %v5759
      %v5762 = vrot.slane %v5479, 5
      %v5763 = vsel %vm3501, %v5762, %v5761
      %v5764 = vrot.slane %v5480, 4
      %v5765 = vsel %vm3504, %v5764, %v5763
      %v5766 = vrot.slane %v5481, 3
      %v5767 = vsel %vm3507, %v5766, %v5765
      %v5768 = vrot.slane %v5482, 2
      %v5769 = vrot.slane %v5483, 1
      %v5770 = vsel %vm3489, %v5769, %v5768
      %v5771 = vsel %vm3492, %v5484, %v5770
      %v5772 = vrot.slane %v5485, 7
      %v5773 = vsel %vm3495, %v5772, %v5771
      %v5774 = vrot.slane %v5486, 6
      %v5775 = vsel %vm3498, %v5774, %v5773
      %v5776 = vrot.slane %v5487, 5
      %v5777 = vsel %vm3501, %v5776, %v5775
      %v5778 = vrot.slane %v5488, 4
      %v5779 = vsel %vm3504, %v5778, %v5777
      %v5780 = vrot.slane %v5489, 3
      %v5781 = vsel %vm3507, %v5780, %v5779
      %v5782 = vrot.slane %v5490, 2
      %v5783 = vrot.slane %v5491, 1
      %v5784 = vsel %vm3489, %v5783, %v5782
      %v5785 = vsel %vm3492, %v5492, %v5784
      %v5786 = vrot.slane %v5493, 7
      %v5787 = vsel %vm3495, %v5786, %v5785
      %v5788 = vrot.slane %v5494, 6
      %v5789 = vsel %vm3498, %v5788, %v5787
      %v5790 = vrot.slane %v5495, 5
      %v5791 = vsel %vm3501, %v5790, %v5789
      %v5792 = vrot.slane %v5496, 4
      %v5793 = vsel %vm3504, %v5792, %v5791
      %v5794 = vrot.slane %v5497, 3
      %v5795 = vsel %vm3507, %v5794, %v5793
      %v5796 = vrot.slane %v5498, 2
      %v5797 = vrot.slane %v5499, 1
      %v5798 = vsel %vm3489, %v5797, %v5796
      %v5799 = vsel %vm3492, %v5500, %v5798
      %v5800 = vrot.slane %v5501, 7
      %v5801 = vsel %vm3495, %v5800, %v5799
      %v5802 = vrot.slane %v5502, 6
      %v5803 = vsel %vm3498, %v5802, %v5801
      %v5804 = vrot.slane %v5503, 5
      %v5805 = vsel %vm3501, %v5804, %v5803
      %v5806 = vrot.slane %v5504, 4
      %v5807 = vsel %vm3504, %v5806, %v5805
      %v5808 = vrot.slane %v5505, 3
      %v5809 = vsel %vm3507, %v5808, %v5807
      %v5810 = vrot.slane %v5506, 2
      %v5811 = vrot.slane %v5507, 1
      %v5812 = vsel %vm3489, %v5811, %v5810
      %v5813 = vsel %vm3492, %v5508, %v5812
      %v5814 = vrot.slane %v5509, 7
      %v5815 = vsel %vm3495, %v5814, %v5813
      %v5816 = vrot.slane %v5510, 6
      %v5817 = vsel %vm3498, %v5816, %v5815
      %v5818 = vrot.slane %v5511, 5
      %v5819 = vsel %vm3501, %v5818, %v5817
      %v5820 = vrot.slane %v5512, 4
      %v5821 = vsel %vm3504, %v5820, %v5819
      %v5822 = vrot.slane %v5513, 3
      %v5823 = vsel %vm3507, %v5822, %v5821
      %v5824 = vrot.slane %v5514, 2
      %v5825 = vrot.slane %v5515, 1
      %v5826 = vsel %vm3489, %v5825, %v5824
      %v5827 = vsel %vm3492, %v5516, %v5826
      %v5828 = vrot.slane %v5517, 7
      %v5829 = vsel %vm3495, %v5828, %v5827
      %v5830 = vrot.slane %v5518, 6
      %v5831 = vsel %vm3498, %v5830, %v5829
      %v5832 = vrot.slane %v5519, 5
      %v5833 = vsel %vm3501, %v5832, %v5831
      %v5834 = vrot.slane %v5520, 4
      %v5835 = vsel %vm3504, %v5834, %v5833
      %v5836 = vrot.slane %v5521, 3
      %v5837 = vsel %vm3507, %v5836, %v5835
      %v5838 = vrot.slane %v5522, 2
      %v5839 = vrot.slane %v5523, 1
      %v5840 = vsel %vm3489, %v5839, %v5838
      %v5841 = vsel %vm3492, %v5524, %v5840
      %v5842 = vrot.slane %v5525, 7
      %v5843 = vsel %vm3495, %v5842, %v5841
      %v5844 = vrot.slane %v5526, 6
      %v5845 = vsel %vm3498, %v5844, %v5843
      %v5846 = vrot.slane %v5527, 5
      %v5847 = vsel %vm3501, %v5846, %v5845
      %v5848 = vrot.slane %v5528, 4
      %v5849 = vsel %vm3504, %v5848, %v5847
      %v5850 = vrot.slane %v5529, 3
      %v5851 = vsel %vm3507, %v5850, %v5849
      %v5852 = vrot.slane %v5530, 2
      %v5853 = vrot.slane %v5531, 1
      %v5854 = vsel %vm3489, %v5853, %v5852
      %v5855 = vsel %vm3492, %v5532, %v5854
      %v5856 = vrot.slane %v5533, 7
      %v5857 = vsel %vm3495, %v5856, %v5855
      %v5858 = vrot.slane %v5534, 6
      %v5859 = vsel %vm3498, %v5858, %v5857
      %v5860 = vrot.slane %v5535, 5
      %v5861 = vsel %vm3501, %v5860, %v5859
      %v5862 = vrot.slane %v5536, 4
      %v5863 = vsel %vm3504, %v5862, %v5861
      %v5864 = vrot.slane %v5537, 3
      %v5865 = vsel %vm3507, %v5864, %v5863
      %v5866 = vrot.slane %v5538, 2
      %v5867 = vrot.slane %v5539, 1
      %v5868 = vsel %vm3489, %v5867, %v5866
      %v5869 = vsel %vm3492, %v5540, %v5868
      %v5870 = vrot.slane %v5541, 7
      %v5871 = vsel %vm3495, %v5870, %v5869
      %v5872 = vrot.slane %v5542, 6
      %v5873 = vsel %vm3498, %v5872, %v5871
      %v5874 = vrot.slane %v5543, 5
      %v5875 = vsel %vm3501, %v5874, %v5873
      %v5876 = vrot.slane %v5544, 4
      %v5877 = vsel %vm3504, %v5876, %v5875
      %v5878 = vrot.slane %v5545, 3
      %v5879 = vsel %vm3507, %v5878, %v5877
      %v5880 = vrot.slane %v5546, 2
      %v5881 = vrot.slane %v5547, 1
      %v5882 = vsel %vm3489, %v5881, %v5880
      %v5883 = vsel %vm3492, %v5548, %v5882
      %v5884 = vrot.slane %v5549, 7
      %v5885 = vsel %vm3495, %v5884, %v5883
      %v5886 = vrot.slane %v5550, 6
      %v5887 = vsel %vm3498, %v5886, %v5885
      %v5888 = vrot.slane %v5551, 5
      %v5889 = vsel %vm3501, %v5888, %v5887
      %v5890 = vrot.slane %v5552, 4
      %v5891 = vsel %vm3504, %v5890, %v5889
      %v5892 = vrot.slane %v5553, 3
      %v5893 = vsel %vm3507, %v5892, %v5891
      %v5894 = vrot.slane %v5554, 2
      %v5895 = vrot.slane %v5555, 1
      %v5896 = vsel %vm3489, %v5895, %v5894
      %v5897 = vsel %vm3492, %v5556, %v5896
      %v5898 = vrot.slane %v5557, 7
      %v5899 = vsel %vm3495, %v5898, %v5897
      %v5900 = vpack.c.b16 %v5571, %v5571
      %v5901 = vpack.c.b16 %v5585, %v5585
      %v5902 = vpack.c.b16 %v5599, %v5599
      %v5903 = vpack.c.b16 %v5613, %v5613
      %v5904 = vpack.c.b16 %v5627, %v5627
      %v5905 = vpack.c.b16 %v5641, %v5641
      %v5906 = vpack.c.b16 %v5655, %v5655
      %v5907 = vpack.c.b16 %v5669, %v5669
      %v5908 = vpack.c.b16 %v5683, %v5683
      %v5909 = vpack.c.b16 %v5697, %v5697
      %v5910 = vpack.c.b16 %v5711, %v5711
      %v5911 = vpack.c.b16 %v5725, %v5725
      %v5912 = vpack.c.b16 %v5739, %v5739
      %v5913 = vpack.c.b16 %v5753, %v5753
      %v5914 = vpack.c.b16 %v5767, %v5767
      %v5915 = vpack.c.b16 %v5781, %v5781
      %v5916 = vpack.c.b16 %v5795, %v5795
      %v5917 = vpack.c.b16 %v5809, %v5809
      %v5918 = vpack.c.b16 %v5823, %v5823
      %v5919 = vpack.c.b16 %v5837, %v5837
      %v5920 = vpack.c.b16 %v5851, %v5851
      %v5921 = vpack.c.b16 %v5865, %v5865
      %v5922 = vpack.c.b16 %v5879, %v5879
      %v5923 = vpack.c.b16 %v5893, %v5893
      %v5924 = vpack.c.b16 %v5899, %v5899
      %5925 = vrot.lane.b32.xlu0 %v5900, 16
      %v5926 = vpop.permute.xlu0 %5925
      %5927 = vrot.lane.b32.xlu0 %v5901, 16
      %v5928 = vpop.permute.xlu0 %5927
      %5929 = vrot.lane.b32.xlu0 %v5902, 16
      %v5930 = vpop.permute.xlu0 %5929
      %5931 = vrot.lane.b32.xlu0 %v5903, 16
      %v5932 = vpop.permute.xlu0 %5931
      %5933 = vrot.lane.b32.xlu0 %v5904, 16
      %v5934 = vpop.permute.xlu0 %5933
      %5935 = vrot.lane.b32.xlu0 %v5905, 16
      %v5936 = vpop.permute.xlu0 %5935
      %5937 = vrot.lane.b32.xlu0 %v5906, 16
      %v5938 = vpop.permute.xlu0 %5937
      %5939 = vrot.lane.b32.xlu0 %v5907, 16
      %v5940 = vpop.permute.xlu0 %5939
      %5941 = vrot.lane.b32.xlu0 %v5908, 16
      %v5942 = vpop.permute.xlu0 %5941
      %5943 = vrot.lane.b32.xlu0 %v5909, 16
      %v5944 = vpop.permute.xlu0 %5943
      %5945 = vrot.lane.b32.xlu0 %v5910, 16
      %v5946 = vpop.permute.xlu0 %5945
      %5947 = vrot.lane.b32.xlu0 %v5911, 16
      %v5948 = vpop.permute.xlu0 %5947
      %5949 = vrot.lane.b32.xlu0 %v5912, 16
      %v5950 = vpop.permute.xlu0 %5949
      %5951 = vrot.lane.b32.xlu0 %v5913, 16
      %v5952 = vpop.permute.xlu0 %5951
      %5953 = vrot.lane.b32.xlu0 %v5914, 16
      %v5954 = vpop.permute.xlu0 %5953
      %5955 = vrot.lane.b32.xlu0 %v5915, 16
      %v5956 = vpop.permute.xlu0 %5955
      %5957 = vrot.lane.b32.xlu0 %v5916, 16
      %v5958 = vpop.permute.xlu0 %5957
      %5959 = vrot.lane.b32.xlu0 %v5917, 16
      %v5960 = vpop.permute.xlu0 %5959
      %5961 = vrot.lane.b32.xlu0 %v5918, 16
      %v5962 = vpop.permute.xlu0 %5961
      %5963 = vrot.lane.b32.xlu0 %v5919, 16
      %v5964 = vpop.permute.xlu0 %5963
      %5965 = vrot.lane.b32.xlu0 %v5920, 16
      %v5966 = vpop.permute.xlu0 %5965
      %5967 = vrot.lane.b32.xlu0 %v5921, 16
      %v5968 = vpop.permute.xlu0 %5967
      %5969 = vrot.lane.b32.xlu0 %v5922, 16
      %v5970 = vpop.permute.xlu0 %5969
      %5971 = vrot.lane.b32.xlu0 %v5923, 16
      %v5972 = vpop.permute.xlu0 %5971
      %5973 = vrot.lane.b32.xlu0 %v5924, 16
      %v5974 = vpop.permute.xlu0 %5973
      %vm6000 = vcmask 191616
      %6001 = vst.msk [vmem:[#allocation3] sm:$0xf] %vm6000, %v5926
      %6002 = vst.msk [vmem:[#allocation3 + $0x4] sm:$0xf] %vm6000, %v5928
      %6003 = vst.msk [vmem:[#allocation3 + $0x8] sm:$0xf] %vm6000, %v5930
      %6004 = vst.msk [vmem:[#allocation3 + $0xc] sm:$0xf] %vm6000, %v5932
      %6005 = vst.msk [vmem:[#allocation3 + $0x10] sm:$0xf] %vm6000, %v5934
      %6006 = vst.msk [vmem:[#allocation3 + $0x14] sm:$0xf] %vm6000, %v5936
      %6007 = vst.msk [vmem:[#allocation3 + $0x18] sm:$0xf] %vm6000, %v5938
      %6008 = vst.msk [vmem:[#allocation3 + $0x1c] sm:$0xf] %vm6000, %v5940
      %6009 = vst.msk [vmem:[#allocation3 + $0x20] sm:$0xf] %vm6000, %v5942
      %6010 = vst.msk [vmem:[#allocation3 + $0x24] sm:$0xf] %vm6000, %v5944
      %6011 = vst.msk [vmem:[#allocation3 + $0x28] sm:$0xf] %vm6000, %v5946
      %6012 = vst.msk [vmem:[#allocation3 + $0x2c] sm:$0xf] %vm6000, %v5948
      %6013 = vst.msk [vmem:[#allocation3 + $0x30] sm:$0xf] %vm6000, %v5950
      %6014 = vst.msk [vmem:[#allocation3 + $0x34] sm:$0xf] %vm6000, %v5952
      %6015 = vst.msk [vmem:[#allocation3 + $0x38] sm:$0xf] %vm6000, %v5954
      %6016 = vst.msk [vmem:[#allocation3 + $0x3c] sm:$0xf] %vm6000, %v5956
      %6017 = vst.msk [vmem:[#allocation3 + $0x40] sm:$0xf] %vm6000, %v5958
      %6018 = vst.msk [vmem:[#allocation3 + $0x44] sm:$0xf] %vm6000, %v5960
      %6019 = vst.msk [vmem:[#allocation3 + $0x48] sm:$0xf] %vm6000, %v5962
      %6020 = vst.msk [vmem:[#allocation3 + $0x4c] sm:$0xf] %vm6000, %v5964
      %6021 = vst.msk [vmem:[#allocation3 + $0x50] sm:$0xf] %vm6000, %v5966
      %6022 = vst.msk [vmem:[#allocation3 + $0x54] sm:$0xf] %vm6000, %v5968
      %6023 = vst.msk [vmem:[#allocation3 + $0x58] sm:$0xf] %vm6000, %v5970
      %6024 = vst.msk [vmem:[#allocation3 + $0x5c] sm:$0xf] %vm6000, %v5972
      %vm6025 = vcmask 189568
      %6026 = vst.msk [vmem:[#allocation3 + $0x60] sm:$0x3] %vm6025, %v5974
      %v6027 = vld [vmem:[#allocation2] sm:$0x2]
      %v6028 = vld [vmem:[#allocation2 + $0x4] sm:$0x2]
      %v6029 = vld [vmem:[#allocation2 + $0x8] sm:$0x2]
      %v6030 = vld [vmem:[#allocation2 + $0xc] sm:$0x2]
      %v6031 = vld [vmem:[#allocation2 + $0x10] sm:$0x2]
      %v6032 = vld [vmem:[#allocation2 + $0x14] sm:$0x2]
      %v6033 = vld [vmem:[#allocation2 + $0x18] sm:$0x2]
      %v6034 = vld [vmem:[#allocation2 + $0x1c] sm:$0x2]
      %v6035 = vld [vmem:[#allocation2 + $0x20] sm:$0x2]
      %v6036 = vld [vmem:[#allocation2 + $0x24] sm:$0x2]
      %v6037 = vld [vmem:[#allocation2 + $0x28] sm:$0x2]
      %v6038 = vld [vmem:[#allocation2 + $0x2c] sm:$0x2]
      %v6039 = vld [vmem:[#allocation2 + $0x30] sm:$0x2]
      %v6040 = vld [vmem:[#allocation2 + $0x34] sm:$0x2]
      %v6041 = vld [vmem:[#allocation2 + $0x38] sm:$0x2]
      %v6042 = vld [vmem:[#allocation2 + $0x3c] sm:$0x2]
      %v6043 = vld [vmem:[#allocation2 + $0x40] sm:$0x2]
      %v6044 = vld [vmem:[#allocation2 + $0x44] sm:$0x2]
      %v6045 = vld [vmem:[#allocation2 + $0x48] sm:$0x2]
      %v6046 = vld [vmem:[#allocation2 + $0x4c] sm:$0x2]
      %v6047 = vld [vmem:[#allocation2 + $0x50] sm:$0x2]
      %v6048 = vld [vmem:[#allocation2 + $0x54] sm:$0x2]
      %v6049 = vld [vmem:[#allocation2 + $0x58] sm:$0x2]
      %v6050 = vld [vmem:[#allocation2 + $0x5c] sm:$0x2]
      %v6051 = vld [vmem:[#allocation2 + $0x60] sm:$0x2]
      %v6052 = vld [vmem:[#allocation2 + $0x64] sm:$0x2]
      %v6053 = vld [vmem:[#allocation2 + $0x68] sm:$0x2]
      %v6054 = vld [vmem:[#allocation2 + $0x6c] sm:$0x2]
      %v6055 = vld [vmem:[#allocation2 + $0x70] sm:$0x2]
      %v6056 = vld [vmem:[#allocation2 + $0x74] sm:$0x2]
      %v6057 = vld [vmem:[#allocation2 + $0x78] sm:$0x2]
      %v6058 = vld [vmem:[#allocation2 + $0x7c] sm:$0x2]
      %v6059 = vld [vmem:[#allocation2 + $0x80] sm:$0x2]
      %v6060 = vld [vmem:[#allocation2 + $0x84] sm:$0x2]
      %v6061 = vld [vmem:[#allocation2 + $0x88] sm:$0x2]
      %v6062 = vld [vmem:[#allocation2 + $0x8c] sm:$0x2]
      %v6063 = vld [vmem:[#allocation2 + $0x90] sm:$0x2]
      %v6064 = vld [vmem:[#allocation2 + $0x94] sm:$0x2]
      %v6065 = vld [vmem:[#allocation2 + $0x98] sm:$0x2]
      %v6066 = vld [vmem:[#allocation2 + $0x9c] sm:$0x2]
      %v6067 = vld [vmem:[#allocation2 + $0xa0] sm:$0x2]
      %v6068 = vld [vmem:[#allocation2 + $0xa4] sm:$0x2]
      %v6069 = vld [vmem:[#allocation2 + $0xa8] sm:$0x2]
      %v6070 = vld [vmem:[#allocation2 + $0xac] sm:$0x2]
      %v6071 = vld [vmem:[#allocation2 + $0xb0] sm:$0x2]
      %v6072 = vld [vmem:[#allocation2 + $0xb4] sm:$0x2]
      %v6073 = vld [vmem:[#allocation2 + $0xb8] sm:$0x2]
      %v6074 = vld [vmem:[#allocation2 + $0xbc] sm:$0x2]
      %v6075 = vld [vmem:[#allocation2 + $0xc0] sm:$0x2]
      %v6076 = vld [vmem:[#allocation2 + $0xc4] sm:$0x2]
      %v6077 = vld [vmem:[#allocation2 + $0xc8] sm:$0x2]
      %v6078 = vld [vmem:[#allocation2 + $0xcc] sm:$0x2]
      %v6079 = vld [vmem:[#allocation2 + $0xd0] sm:$0x2]
      %v6080 = vld [vmem:[#allocation2 + $0xd4] sm:$0x2]
      %v6081 = vld [vmem:[#allocation2 + $0xd8] sm:$0x2]
      %v6082 = vld [vmem:[#allocation2 + $0xdc] sm:$0x2]
      %v6083 = vld [vmem:[#allocation2 + $0xe0] sm:$0x2]
      %v6084 = vld [vmem:[#allocation2 + $0xe4] sm:$0x2]
      %v6085 = vld [vmem:[#allocation2 + $0xe8] sm:$0x2]
      %v6086 = vld [vmem:[#allocation2 + $0xec] sm:$0x2]
      %v6087 = vld [vmem:[#allocation2 + $0xf0] sm:$0x2]
      %v6088 = vld [vmem:[#allocation2 + $0xf4] sm:$0x2]
      %v6089 = vld [vmem:[#allocation2 + $0xf8] sm:$0x2]
      %v6090 = vld [vmem:[#allocation2 + $0xfc] sm:$0x2]
      %v6091 = vld [vmem:[#allocation2 + $0x100] sm:$0x2]
      %v6092 = vld [vmem:[#allocation2 + $0x104] sm:$0x2]
      %v6093 = vld [vmem:[#allocation2 + $0x108] sm:$0x2]
      %v6094 = vld [vmem:[#allocation2 + $0x10c] sm:$0x2]
      %v6095 = vld [vmem:[#allocation2 + $0x110] sm:$0x2]
      %v6096 = vld [vmem:[#allocation2 + $0x114] sm:$0x2]
      %v6097 = vld [vmem:[#allocation2 + $0x118] sm:$0x2]
      %v6098 = vld [vmem:[#allocation2 + $0x11c] sm:$0x2]
      %v6099 = vld [vmem:[#allocation2 + $0x120] sm:$0x2]
      %v6100 = vld [vmem:[#allocation2 + $0x124] sm:$0x2]
      %v6101 = vld [vmem:[#allocation2 + $0x128] sm:$0x2]
      %v6102 = vld [vmem:[#allocation2 + $0x12c] sm:$0x2]
      %v6103 = vld [vmem:[#allocation2 + $0x130] sm:$0x2]
      %v6104 = vld [vmem:[#allocation2 + $0x134] sm:$0x2]
      %v6105 = vld [vmem:[#allocation2 + $0x138] sm:$0x2]
      %v6106 = vld [vmem:[#allocation2 + $0x13c] sm:$0x2]
      %v6107 = vld [vmem:[#allocation2 + $0x140] sm:$0x2]
      %v6108 = vld [vmem:[#allocation2 + $0x144] sm:$0x2]
      %v6109 = vld [vmem:[#allocation2 + $0x148] sm:$0x2]
      %v6110 = vld [vmem:[#allocation2 + $0x14c] sm:$0x2]
      %v6111 = vld [vmem:[#allocation2 + $0x150] sm:$0x2]
      %v6112 = vld [vmem:[#allocation2 + $0x154] sm:$0x2]
      %v6113 = vld [vmem:[#allocation2 + $0x158] sm:$0x2]
      %v6114 = vld [vmem:[#allocation2 + $0x15c] sm:$0x2]
      %v6115 = vld [vmem:[#allocation2 + $0x160] sm:$0x2]
      %v6116 = vld [vmem:[#allocation2 + $0x164] sm:$0x2]
      %v6117 = vld [vmem:[#allocation2 + $0x168] sm:$0x2]
      %v6118 = vld [vmem:[#allocation2 + $0x16c] sm:$0x2]
      %v6119 = vld [vmem:[#allocation2 + $0x170] sm:$0x2]
      %v6120 = vld [vmem:[#allocation2 + $0x174] sm:$0x2]
      %v6121 = vld [vmem:[#allocation2 + $0x178] sm:$0x2]
      %v6122 = vld [vmem:[#allocation2 + $0x17c] sm:$0x2]
      %v6123 = vld [vmem:[#allocation2 + $0x180] sm:$0x2]
      %v6124 = vld [vmem:[#allocation2 + $0x184] sm:$0x2]
      %v6125 = vld [vmem:[#allocation2 + $0x188] sm:$0x2]
      %v6126 = vld [vmem:[#allocation2 + $0x18c] sm:$0x2]
      %v6127 = vld [vmem:[#allocation2 + $0x190] sm:$0x2]
      %v6128 = vld [vmem:[#allocation2 + $0x194] sm:$0x2]
      %v6129 = vld [vmem:[#allocation2 + $0x198] sm:$0x2]
      %v6130 = vld [vmem:[#allocation2 + $0x19c] sm:$0x2]
      %v6131 = vld [vmem:[#allocation2 + $0x1a0] sm:$0x2]
      %v6132 = vld [vmem:[#allocation2 + $0x1a4] sm:$0x2]
      %v6133 = vld [vmem:[#allocation2 + $0x1a8] sm:$0x2]
      %v6134 = vld [vmem:[#allocation2 + $0x1ac] sm:$0x2]
      %v6135 = vld [vmem:[#allocation2 + $0x1b0] sm:$0x2]
      %v6136 = vld [vmem:[#allocation2 + $0x1b4] sm:$0x2]
      %v6137 = vld [vmem:[#allocation2 + $0x1b8] sm:$0x2]
      %v6138 = vld [vmem:[#allocation2 + $0x1bc] sm:$0x2]
      %v6139 = vld [vmem:[#allocation2 + $0x1c0] sm:$0x2]
      %v6140 = vld [vmem:[#allocation2 + $0x1c4] sm:$0x2]
      %v6141 = vld [vmem:[#allocation2 + $0x1c8] sm:$0x2]
      %v6142 = vld [vmem:[#allocation2 + $0x1cc] sm:$0x2]
      %v6143 = vld [vmem:[#allocation2 + $0x1d0] sm:$0x2]
      %v6144 = vld [vmem:[#allocation2 + $0x1d4] sm:$0x2]
      %v6145 = vld [vmem:[#allocation2 + $0x1d8] sm:$0x2]
      %v6146 = vld [vmem:[#allocation2 + $0x1dc] sm:$0x2]
      %v6147 = vld [vmem:[#allocation2 + $0x1e0] sm:$0x2]
      %v6148 = vld [vmem:[#allocation2 + $0x1e4] sm:$0x2]
      %v6149 = vld [vmem:[#allocation2 + $0x1e8] sm:$0x2]
      %v6150 = vld [vmem:[#allocation2 + $0x1ec] sm:$0x2]
      %v6151 = vld [vmem:[#allocation2 + $0x1f0] sm:$0x2]
      %v6152 = vld [vmem:[#allocation2 + $0x1f4] sm:$0x2]
      %v6153 = vld [vmem:[#allocation2 + $0x1f8] sm:$0x2]
      %v6154 = vld [vmem:[#allocation2 + $0x1fc] sm:$0x2]
      %v6155 = vld [vmem:[#allocation2 + $0x200] sm:$0x2]
      %v6156 = vld [vmem:[#allocation2 + $0x204] sm:$0x2]
      %v6157 = vld [vmem:[#allocation2 + $0x208] sm:$0x2]
      %v6158 = vld [vmem:[#allocation2 + $0x20c] sm:$0x2]
      %v6159 = vld [vmem:[#allocation2 + $0x210] sm:$0x2]
      %v6160 = vld [vmem:[#allocation2 + $0x214] sm:$0x2]
      %v6161 = vld [vmem:[#allocation2 + $0x218] sm:$0x2]
      %v6162 = vld [vmem:[#allocation2 + $0x21c] sm:$0x2]
      %v6163 = vld [vmem:[#allocation2 + $0x220] sm:$0x2]
      %v6164 = vld [vmem:[#allocation2 + $0x224] sm:$0x2]
      %v6165 = vld [vmem:[#allocation2 + $0x228] sm:$0x2]
      %v6166 = vld [vmem:[#allocation2 + $0x22c] sm:$0x2]
      %v6167 = vld [vmem:[#allocation2 + $0x230] sm:$0x2]
      %v6168 = vld [vmem:[#allocation2 + $0x234] sm:$0x2]
      %v6169 = vld [vmem:[#allocation2 + $0x238] sm:$0x2]
      %v6170 = vld [vmem:[#allocation2 + $0x23c] sm:$0x2]
      %v6171 = vld [vmem:[#allocation2 + $0x240] sm:$0x2]
      %v6172 = vld [vmem:[#allocation2 + $0x244] sm:$0x2]
      %v6173 = vld [vmem:[#allocation2 + $0x248] sm:$0x2]
      %v6174 = vld [vmem:[#allocation2 + $0x24c] sm:$0x2]
      %v6175 = vld [vmem:[#allocation2 + $0x250] sm:$0x2]
      %v6176 = vld [vmem:[#allocation2 + $0x254] sm:$0x2]
      %v6177 = vld [vmem:[#allocation2 + $0x258] sm:$0x2]
      %v6178 = vld [vmem:[#allocation2 + $0x25c] sm:$0x2]
      %v6179 = vld [vmem:[#allocation2 + $0x260] sm:$0x2]
      %v6180 = vld [vmem:[#allocation2 + $0x264] sm:$0x2]
      %v6181 = vld [vmem:[#allocation2 + $0x268] sm:$0x2]
      %v6182 = vld [vmem:[#allocation2 + $0x26c] sm:$0x2]
      %v6183 = vld [vmem:[#allocation2 + $0x270] sm:$0x2]
      %v6184 = vld [vmem:[#allocation2 + $0x274] sm:$0x2]
      %v6185 = vld [vmem:[#allocation2 + $0x278] sm:$0x2]
      %v6186 = vld [vmem:[#allocation2 + $0x27c] sm:$0x2]
      %v6187 = vld [vmem:[#allocation2 + $0x280] sm:$0x2]
      %v6188 = vld [vmem:[#allocation2 + $0x284] sm:$0x2]
      %v6189 = vld [vmem:[#allocation2 + $0x288] sm:$0x2]
      %v6190 = vld [vmem:[#allocation2 + $0x28c] sm:$0x2]
      %v6191 = vld [vmem:[#allocation2 + $0x290] sm:$0x2]
      %v6192 = vld [vmem:[#allocation2 + $0x294] sm:$0x2]
      %v6193 = vld [vmem:[#allocation2 + $0x298] sm:$0x2]
      %v6194 = vld [vmem:[#allocation2 + $0x29c] sm:$0x2]
      %v6195 = vld [vmem:[#allocation2 + $0x2a0] sm:$0x2]
      %v6196 = vld [vmem:[#allocation2 + $0x2a4] sm:$0x2]
      %v6197 = vld [vmem:[#allocation2 + $0x2a8] sm:$0x2]
      %v6198 = vld [vmem:[#allocation2 + $0x2ac] sm:$0x2]
      %v6199 = vld [vmem:[#allocation2 + $0x2b0] sm:$0x2]
      %v6200 = vld [vmem:[#allocation2 + $0x2b4] sm:$0x2]
      %v6201 = vld [vmem:[#allocation2 + $0x2b8] sm:$0x2]
      %v6202 = vld [vmem:[#allocation2 + $0x2bc] sm:$0x2]
      %v6203 = vld [vmem:[#allocation2 + $0x2c0] sm:$0x2]
      %v6204 = vld [vmem:[#allocation2 + $0x2c4] sm:$0x2]
      %v6205 = vld [vmem:[#allocation2 + $0x2c8] sm:$0x2]
      %v6206 = vld [vmem:[#allocation2 + $0x2cc] sm:$0x2]
      %v6207 = vld [vmem:[#allocation2 + $0x2d0] sm:$0x2]
      %v6208 = vld [vmem:[#allocation2 + $0x2d4] sm:$0x2]
      %v6209 = vld [vmem:[#allocation2 + $0x2d8] sm:$0x2]
      %v6210 = vld [vmem:[#allocation2 + $0x2dc] sm:$0x2]
      %v6211 = vld [vmem:[#allocation2 + $0x2e0] sm:$0x2]
      %v6212 = vld [vmem:[#allocation2 + $0x2e4] sm:$0x2]
      %v6213 = vld [vmem:[#allocation2 + $0x2e8] sm:$0x2]
      %v6214 = vld [vmem:[#allocation2 + $0x2ec] sm:$0x2]
      %v6215 = vld [vmem:[#allocation2 + $0x2f0] sm:$0x2]
      %v6216 = vld [vmem:[#allocation2 + $0x2f4] sm:$0x2]
      %v6217 = vld [vmem:[#allocation2 + $0x2f8] sm:$0x2]
      %v6218 = vld [vmem:[#allocation2 + $0x2fc] sm:$0x2]
      %v6219 = vld [vmem:[#allocation2 + $0x300] sm:$0x2]
      %v6220 = vld [vmem:[#allocation2 + $0x304] sm:$0x2]
      %v6221 = vld [vmem:[#allocation2 + $0x308] sm:$0x2]
      %v6222 = vld [vmem:[#allocation2 + $0x30c] sm:$0x2]
      %v6419 = vunpack.c.l.b16 %v6027
      %v6420 = vunpack.c.l.b16 %v6028
      %v6421 = vunpack.c.l.b16 %v6029
      %v6422 = vunpack.c.l.b16 %v6030
      %v6423 = vunpack.c.l.b16 %v6031
      %v6424 = vunpack.c.l.b16 %v6032
      %v6425 = vunpack.c.l.b16 %v6033
      %v6426 = vunpack.c.l.b16 %v6034
      %v6427 = vunpack.c.l.b16 %v6035
      %v6428 = vunpack.c.l.b16 %v6036
      %v6429 = vunpack.c.l.b16 %v6037
      %v6430 = vunpack.c.l.b16 %v6038
      %v6431 = vunpack.c.l.b16 %v6039
      %v6432 = vunpack.c.l.b16 %v6040
      %v6433 = vunpack.c.l.b16 %v6041
      %v6434 = vunpack.c.l.b16 %v6042
      %v6435 = vunpack.c.l.b16 %v6043
      %v6436 = vunpack.c.l.b16 %v6044
      %v6437 = vunpack.c.l.b16 %v6045
      %v6438 = vunpack.c.l.b16 %v6046
      %v6439 = vunpack.c.l.b16 %v6047
      %v6440 = vunpack.c.l.b16 %v6048
      %v6441 = vunpack.c.l.b16 %v6049
      %v6442 = vunpack.c.l.b16 %v6050
      %v6443 = vunpack.c.l.b16 %v6051
      %v6444 = vunpack.c.l.b16 %v6052
      %v6445 = vunpack.c.l.b16 %v6053
      %v6446 = vunpack.c.l.b16 %v6054
      %v6447 = vunpack.c.l.b16 %v6055
      %v6448 = vunpack.c.l.b16 %v6056
      %v6449 = vunpack.c.l.b16 %v6057
      %v6450 = vunpack.c.l.b16 %v6058
      %v6451 = vunpack.c.l.b16 %v6059
      %v6452 = vunpack.c.l.b16 %v6060
      %v6453 = vunpack.c.l.b16 %v6061
      %v6454 = vunpack.c.l.b16 %v6062
      %v6455 = vunpack.c.l.b16 %v6063
      %v6456 = vunpack.c.l.b16 %v6064
      %v6457 = vunpack.c.l.b16 %v6065
      %v6458 = vunpack.c.l.b16 %v6066
      %v6459 = vunpack.c.l.b16 %v6067
      %v6460 = vunpack.c.l.b16 %v6068
      %v6461 = vunpack.c.l.b16 %v6069
      %v6462 = vunpack.c.l.b16 %v6070
      %v6463 = vunpack.c.l.b16 %v6071
      %v6464 = vunpack.c.l.b16 %v6072
      %v6465 = vunpack.c.l.b16 %v6073
      %v6466 = vunpack.c.l.b16 %v6074
      %v6467 = vunpack.c.l.b16 %v6075
      %v6468 = vunpack.c.l.b16 %v6076
      %v6469 = vunpack.c.l.b16 %v6077
      %v6470 = vunpack.c.l.b16 %v6078
      %v6471 = vunpack.c.l.b16 %v6079
      %v6472 = vunpack.c.l.b16 %v6080
      %v6473 = vunpack.c.l.b16 %v6081
      %v6474 = vunpack.c.l.b16 %v6082
      %v6475 = vunpack.c.l.b16 %v6083
      %v6476 = vunpack.c.l.b16 %v6084
      %v6477 = vunpack.c.l.b16 %v6085
      %v6478 = vunpack.c.l.b16 %v6086
      %v6479 = vunpack.c.l.b16 %v6087
      %v6480 = vunpack.c.l.b16 %v6088
      %v6481 = vunpack.c.l.b16 %v6089
      %v6482 = vunpack.c.l.b16 %v6090
      %v6483 = vunpack.c.l.b16 %v6091
      %v6484 = vunpack.c.l.b16 %v6092
      %v6485 = vunpack.c.l.b16 %v6093
      %v6486 = vunpack.c.l.b16 %v6094
      %v6487 = vunpack.c.l.b16 %v6095
      %v6488 = vunpack.c.l.b16 %v6096
      %v6489 = vunpack.c.l.b16 %v6097
      %v6490 = vunpack.c.l.b16 %v6098
      %v6491 = vunpack.c.l.b16 %v6099
      %v6492 = vunpack.c.l.b16 %v6100
      %v6493 = vunpack.c.l.b16 %v6101
      %v6494 = vunpack.c.l.b16 %v6102
      %v6495 = vunpack.c.l.b16 %v6103
      %v6496 = vunpack.c.l.b16 %v6104
      %v6497 = vunpack.c.l.b16 %v6105
      %v6498 = vunpack.c.l.b16 %v6106
      %v6499 = vunpack.c.l.b16 %v6107
      %v6500 = vunpack.c.l.b16 %v6108
      %v6501 = vunpack.c.l.b16 %v6109
      %v6502 = vunpack.c.l.b16 %v6110
      %v6503 = vunpack.c.l.b16 %v6111
      %v6504 = vunpack.c.l.b16 %v6112
      %v6505 = vunpack.c.l.b16 %v6113
      %v6506 = vunpack.c.l.b16 %v6114
      %v6507 = vunpack.c.l.b16 %v6115
      %v6508 = vunpack.c.l.b16 %v6116
      %v6509 = vunpack.c.l.b16 %v6117
      %v6510 = vunpack.c.l.b16 %v6118
      %v6511 = vunpack.c.l.b16 %v6119
      %v6512 = vunpack.c.l.b16 %v6120
      %v6513 = vunpack.c.l.b16 %v6121
      %v6514 = vunpack.c.l.b16 %v6122
      %v6515 = vunpack.c.l.b16 %v6123
      %v6516 = vunpack.c.l.b16 %v6124
      %v6517 = vunpack.c.l.b16 %v6125
      %v6518 = vunpack.c.l.b16 %v6126
      %v6519 = vunpack.c.l.b16 %v6127
      %v6520 = vunpack.c.l.b16 %v6128
      %v6521 = vunpack.c.l.b16 %v6129
      %v6522 = vunpack.c.l.b16 %v6130
      %v6523 = vunpack.c.l.b16 %v6131
      %v6524 = vunpack.c.l.b16 %v6132
      %v6525 = vunpack.c.l.b16 %v6133
      %v6526 = vunpack.c.l.b16 %v6134
      %v6527 = vunpack.c.l.b16 %v6135
      %v6528 = vunpack.c.l.b16 %v6136
      %v6529 = vunpack.c.l.b16 %v6137
      %v6530 = vunpack.c.l.b16 %v6138
      %v6531 = vunpack.c.l.b16 %v6139
      %v6532 = vunpack.c.l.b16 %v6140
      %v6533 = vunpack.c.l.b16 %v6141
      %v6534 = vunpack.c.l.b16 %v6142
      %v6535 = vunpack.c.l.b16 %v6143
      %v6536 = vunpack.c.l.b16 %v6144
      %v6537 = vunpack.c.l.b16 %v6145
      %v6538 = vunpack.c.l.b16 %v6146
      %v6539 = vunpack.c.l.b16 %v6147
      %v6540 = vunpack.c.l.b16 %v6148
      %v6541 = vunpack.c.l.b16 %v6149
      %v6542 = vunpack.c.l.b16 %v6150
      %v6543 = vunpack.c.l.b16 %v6151
      %v6544 = vunpack.c.l.b16 %v6152
      %v6545 = vunpack.c.l.b16 %v6153
      %v6546 = vunpack.c.l.b16 %v6154
      %v6547 = vunpack.c.l.b16 %v6155
      %v6548 = vunpack.c.l.b16 %v6156
      %v6549 = vunpack.c.l.b16 %v6157
      %v6550 = vunpack.c.l.b16 %v6158
      %v6551 = vunpack.c.l.b16 %v6159
      %v6552 = vunpack.c.l.b16 %v6160
      %v6553 = vunpack.c.l.b16 %v6161
      %v6554 = vunpack.c.l.b16 %v6162
      %v6555 = vunpack.c.l.b16 %v6163
      %v6556 = vunpack.c.l.b16 %v6164
      %v6557 = vunpack.c.l.b16 %v6165
      %v6558 = vunpack.c.l.b16 %v6166
      %v6559 = vunpack.c.l.b16 %v6167
      %v6560 = vunpack.c.l.b16 %v6168
      %v6561 = vunpack.c.l.b16 %v6169
      %v6562 = vunpack.c.l.b16 %v6170
      %v6563 = vunpack.c.l.b16 %v6171
      %v6564 = vunpack.c.l.b16 %v6172
      %v6565 = vunpack.c.l.b16 %v6173
      %v6566 = vunpack.c.l.b16 %v6174
      %v6567 = vunpack.c.l.b16 %v6175
      %v6568 = vunpack.c.l.b16 %v6176
      %v6569 = vunpack.c.l.b16 %v6177
      %v6570 = vunpack.c.l.b16 %v6178
      %v6571 = vunpack.c.l.b16 %v6179
      %v6572 = vunpack.c.l.b16 %v6180
      %v6573 = vunpack.c.l.b16 %v6181
      %v6574 = vunpack.c.l.b16 %v6182
      %v6575 = vunpack.c.l.b16 %v6183
      %v6576 = vunpack.c.l.b16 %v6184
      %v6577 = vunpack.c.l.b16 %v6185
      %v6578 = vunpack.c.l.b16 %v6186
      %v6579 = vunpack.c.l.b16 %v6187
      %v6580 = vunpack.c.l.b16 %v6188
      %v6581 = vunpack.c.l.b16 %v6189
      %v6582 = vunpack.c.l.b16 %v6190
      %v6583 = vunpack.c.l.b16 %v6191
      %v6584 = vunpack.c.l.b16 %v6192
      %v6585 = vunpack.c.l.b16 %v6193
      %v6586 = vunpack.c.l.b16 %v6194
      %v6587 = vunpack.c.l.b16 %v6195
      %v6588 = vunpack.c.l.b16 %v6196
      %v6589 = vunpack.c.l.b16 %v6197
      %v6590 = vunpack.c.l.b16 %v6198
      %v6591 = vunpack.c.l.b16 %v6199
      %v6592 = vunpack.c.l.b16 %v6200
      %v6593 = vunpack.c.l.b16 %v6201
      %v6594 = vunpack.c.l.b16 %v6202
      %v6595 = vunpack.c.l.b16 %v6203
      %v6596 = vunpack.c.l.b16 %v6204
      %v6597 = vunpack.c.l.b16 %v6205
      %v6598 = vunpack.c.l.b16 %v6206
      %v6599 = vunpack.c.l.b16 %v6207
      %v6600 = vunpack.c.l.b16 %v6208
      %v6601 = vunpack.c.l.b16 %v6209
      %v6602 = vunpack.c.l.b16 %v6210
      %v6603 = vunpack.c.l.b16 %v6211
      %v6604 = vunpack.c.l.b16 %v6212
      %v6605 = vunpack.c.l.b16 %v6213
      %v6606 = vunpack.c.l.b16 %v6214
      %v6607 = vunpack.c.l.b16 %v6215
      %v6608 = vunpack.c.l.b16 %v6216
      %v6609 = vunpack.c.l.b16 %v6217
      %v6610 = vunpack.c.l.b16 %v6218
      %v6611 = vunpack.c.l.b16 %v6219
      %v6612 = vunpack.c.l.b16 %v6220
      %v6613 = vunpack.c.l.b16 %v6221
      %v6614 = vunpack.c.l.b16 %v6222
      %v6615 = vrot.slane %v6419, 3
      %v6616 = vrot.slane %v6420, 2
      %v6617 = vsel %vm3489, %v6616, %v6615
      %v6618 = vrot.slane %v6421, 1
      %v6619 = vsel %vm3492, %v6618, %v6617
      %v6620 = vsel %vm3495, %v6422, %v6619
      %v6621 = vrot.slane %v6423, 7
      %v6622 = vsel %vm3498, %v6621, %v6620
      %v6623 = vrot.slane %v6424, 6
      %v6624 = vsel %vm3501, %v6623, %v6622
      %v6625 = vrot.slane %v6425, 5
      %v6626 = vsel %vm3504, %v6625, %v6624
      %v6627 = vrot.slane %v6426, 4
      %v6628 = vsel %vm3507, %v6627, %v6626
      %v6629 = vrot.slane %v6427, 3
      %v6630 = vrot.slane %v6428, 2
      %v6631 = vsel %vm3489, %v6630, %v6629
      %v6632 = vrot.slane %v6429, 1
      %v6633 = vsel %vm3492, %v6632, %v6631
      %v6634 = vsel %vm3495, %v6430, %v6633
      %v6635 = vrot.slane %v6431, 7
      %v6636 = vsel %vm3498, %v6635, %v6634
      %v6637 = vrot.slane %v6432, 6
      %v6638 = vsel %vm3501, %v6637, %v6636
      %v6639 = vrot.slane %v6433, 5
      %v6640 = vsel %vm3504, %v6639, %v6638
      %v6641 = vrot.slane %v6434, 4
      %v6642 = vsel %vm3507, %v6641, %v6640
      %v6643 = vrot.slane %v6435, 3
      %v6644 = vrot.slane %v6436, 2
      %v6645 = vsel %vm3489, %v6644, %v6643
      %v6646 = vrot.slane %v6437, 1
      %v6647 = vsel %vm3492, %v6646, %v6645
      %v6648 = vsel %vm3495, %v6438, %v6647
      %v6649 = vrot.slane %v6439, 7
      %v6650 = vsel %vm3498, %v6649, %v6648
      %v6651 = vrot.slane %v6440, 6
      %v6652 = vsel %vm3501, %v6651, %v6650
      %v6653 = vrot.slane %v6441, 5
      %v6654 = vsel %vm3504, %v6653, %v6652
      %v6655 = vrot.slane %v6442, 4
      %v6656 = vsel %vm3507, %v6655, %v6654
      %v6657 = vrot.slane %v6443, 3
      %v6658 = vrot.slane %v6444, 2
      %v6659 = vsel %vm3489, %v6658, %v6657
      %v6660 = vrot.slane %v6445, 1
      %v6661 = vsel %vm3492, %v6660, %v6659
      %v6662 = vsel %vm3495, %v6446, %v6661
      %v6663 = vrot.slane %v6447, 7
      %v6664 = vsel %vm3498, %v6663, %v6662
      %v6665 = vrot.slane %v6448, 6
      %v6666 = vsel %vm3501, %v6665, %v6664
      %v6667 = vrot.slane %v6449, 5
      %v6668 = vsel %vm3504, %v6667, %v6666
      %v6669 = vrot.slane %v6450, 4
      %v6670 = vsel %vm3507, %v6669, %v6668
      %v6671 = vrot.slane %v6451, 3
      %v6672 = vrot.slane %v6452, 2
      %v6673 = vsel %vm3489, %v6672, %v6671
      %v6674 = vrot.slane %v6453, 1
      %v6675 = vsel %vm3492, %v6674, %v6673
      %v6676 = vsel %vm3495, %v6454, %v6675
      %v6677 = vrot.slane %v6455, 7
      %v6678 = vsel %vm3498, %v6677, %v6676
      %v6679 = vrot.slane %v6456, 6
      %v6680 = vsel %vm3501, %v6679, %v6678
      %v6681 = vrot.slane %v6457, 5
      %v6682 = vsel %vm3504, %v6681, %v6680
      %v6683 = vrot.slane %v6458, 4
      %v6684 = vsel %vm3507, %v6683, %v6682
      %v6685 = vrot.slane %v6459, 3
      %v6686 = vrot.slane %v6460, 2
      %v6687 = vsel %vm3489, %v6686, %v6685
      %v6688 = vrot.slane %v6461, 1
      %v6689 = vsel %vm3492, %v6688, %v6687
      %v6690 = vsel %vm3495, %v6462, %v6689
      %v6691 = vrot.slane %v6463, 7
      %v6692 = vsel %vm3498, %v6691, %v6690
      %v6693 = vrot.slane %v6464, 6
      %v6694 = vsel %vm3501, %v6693, %v6692
      %v6695 = vrot.slane %v6465, 5
      %v6696 = vsel %vm3504, %v6695, %v6694
      %v6697 = vrot.slane %v6466, 4
      %v6698 = vsel %vm3507, %v6697, %v6696
      %v6699 = vrot.slane %v6467, 3
      %v6700 = vrot.slane %v6468, 2
      %v6701 = vsel %vm3489, %v6700, %v6699
      %v6702 = vrot.slane %v6469, 1
      %v6703 = vsel %vm3492, %v6702, %v6701
      %v6704 = vsel %vm3495, %v6470, %v6703
      %v6705 = vrot.slane %v6471, 7
      %v6706 = vsel %vm3498, %v6705, %v6704
      %v6707 = vrot.slane %v6472, 6
      %v6708 = vsel %vm3501, %v6707, %v6706
      %v6709 = vrot.slane %v6473, 5
      %v6710 = vsel %vm3504, %v6709, %v6708
      %v6711 = vrot.slane %v6474, 4
      %v6712 = vsel %vm3507, %v6711, %v6710
      %v6713 = vrot.slane %v6475, 3
      %v6714 = vrot.slane %v6476, 2
      %v6715 = vsel %vm3489, %v6714, %v6713
      %v6716 = vrot.slane %v6477, 1
      %v6717 = vsel %vm3492, %v6716, %v6715
      %v6718 = vsel %vm3495, %v6478, %v6717
      %v6719 = vrot.slane %v6479, 7
      %v6720 = vsel %vm3498, %v6719, %v6718
      %v6721 = vrot.slane %v6480, 6
      %v6722 = vsel %vm3501, %v6721, %v6720
      %v6723 = vrot.slane %v6481, 5
      %v6724 = vsel %vm3504, %v6723, %v6722
      %v6725 = vrot.slane %v6482, 4
      %v6726 = vsel %vm3507, %v6725, %v6724
      %v6727 = vrot.slane %v6483, 3
      %v6728 = vrot.slane %v6484, 2
      %v6729 = vsel %vm3489, %v6728, %v6727
      %v6730 = vrot.slane %v6485, 1
      %v6731 = vsel %vm3492, %v6730, %v6729
      %v6732 = vsel %vm3495, %v6486, %v6731
      %v6733 = vrot.slane %v6487, 7
      %v6734 = vsel %vm3498, %v6733, %v6732
      %v6735 = vrot.slane %v6488, 6
      %v6736 = vsel %vm3501, %v6735, %v6734
      %v6737 = vrot.slane %v6489, 5
      %v6738 = vsel %vm3504, %v6737, %v6736
      %v6739 = vrot.slane %v6490, 4
      %v6740 = vsel %vm3507, %v6739, %v6738
      %v6741 = vrot.slane %v6491, 3
      %v6742 = vrot.slane %v6492, 2
      %v6743 = vsel %vm3489, %v6742, %v6741
      %v6744 = vrot.slane %v6493, 1
      %v6745 = vsel %vm3492, %v6744, %v6743
      %v6746 = vsel %vm3495, %v6494, %v6745
      %v6747 = vrot.slane %v6495, 7
      %v6748 = vsel %vm3498, %v6747, %v6746
      %v6749 = vrot.slane %v6496, 6
      %v6750 = vsel %vm3501, %v6749, %v6748
      %v6751 = vrot.slane %v6497, 5
      %v6752 = vsel %vm3504, %v6751, %v6750
      %v6753 = vrot.slane %v6498, 4
      %v6754 = vsel %vm3507, %v6753, %v6752
      %v6755 = vrot.slane %v6499, 3
      %v6756 = vrot.slane %v6500, 2
      %v6757 = vsel %vm3489, %v6756, %v6755
      %v6758 = vrot.slane %v6501, 1
      %v6759 = vsel %vm3492, %v6758, %v6757
      %v6760 = vsel %vm3495, %v6502, %v6759
      %v6761 = vrot.slane %v6503, 7
      %v6762 = vsel %vm3498, %v6761, %v6760
      %v6763 = vrot.slane %v6504, 6
      %v6764 = vsel %vm3501, %v6763, %v6762
      %v6765 = vrot.slane %v6505, 5
      %v6766 = vsel %vm3504, %v6765, %v6764
      %v6767 = vrot.slane %v6506, 4
      %v6768 = vsel %vm3507, %v6767, %v6766
      %v6769 = vrot.slane %v6507, 3
      %v6770 = vrot.slane %v6508, 2
      %v6771 = vsel %vm3489, %v6770, %v6769
      %v6772 = vrot.slane %v6509, 1
      %v6773 = vsel %vm3492, %v6772, %v6771
      %v6774 = vsel %vm3495, %v6510, %v6773
      %v6775 = vrot.slane %v6511, 7
      %v6776 = vsel %vm3498, %v6775, %v6774
      %v6777 = vrot.slane %v6512, 6
      %v6778 = vsel %vm3501, %v6777, %v6776
      %v6779 = vrot.slane %v6513, 5
      %v6780 = vsel %vm3504, %v6779, %v6778
      %v6781 = vrot.slane %v6514, 4
      %v6782 = vsel %vm3507, %v6781, %v6780
      %v6783 = vrot.slane %v6515, 3
      %v6784 = vrot.slane %v6516, 2
      %v6785 = vsel %vm3489, %v6784, %v6783
      %v6786 = vrot.slane %v6517, 1
      %v6787 = vsel %vm3492, %v6786, %v6785
      %v6788 = vsel %vm3495, %v6518, %v6787
      %v6789 = vrot.slane %v6519, 7
      %v6790 = vsel %vm3498, %v6789, %v6788
      %v6791 = vrot.slane %v6520, 6
      %v6792 = vsel %vm3501, %v6791, %v6790
      %v6793 = vrot.slane %v6521, 5
      %v6794 = vsel %vm3504, %v6793, %v6792
      %v6795 = vrot.slane %v6522, 4
      %v6796 = vsel %vm3507, %v6795, %v6794
      %v6797 = vrot.slane %v6523, 3
      %v6798 = vrot.slane %v6524, 2
      %v6799 = vsel %vm3489, %v6798, %v6797
      %v6800 = vrot.slane %v6525, 1
      %v6801 = vsel %vm3492, %v6800, %v6799
      %v6802 = vsel %vm3495, %v6526, %v6801
      %v6803 = vrot.slane %v6527, 7
      %v6804 = vsel %vm3498, %v6803, %v6802
      %v6805 = vrot.slane %v6528, 6
      %v6806 = vsel %vm3501, %v6805, %v6804
      %v6807 = vrot.slane %v6529, 5
      %v6808 = vsel %vm3504, %v6807, %v6806
      %v6809 = vrot.slane %v6530, 4
      %v6810 = vsel %vm3507, %v6809, %v6808
      %v6811 = vrot.slane %v6531, 3
      %v6812 = vrot.slane %v6532, 2
      %v6813 = vsel %vm3489, %v6812, %v6811
      %v6814 = vrot.slane %v6533, 1
      %v6815 = vsel %vm3492, %v6814, %v6813
      %v6816 = vsel %vm3495, %v6534, %v6815
      %v6817 = vrot.slane %v6535, 7
      %v6818 = vsel %vm3498, %v6817, %v6816
      %v6819 = vrot.slane %v6536, 6
      %v6820 = vsel %vm3501, %v6819, %v6818
      %v6821 = vrot.slane %v6537, 5
      %v6822 = vsel %vm3504, %v6821, %v6820
      %v6823 = vrot.slane %v6538, 4
      %v6824 = vsel %vm3507, %v6823, %v6822
      %v6825 = vrot.slane %v6539, 3
      %v6826 = vrot.slane %v6540, 2
      %v6827 = vsel %vm3489, %v6826, %v6825
      %v6828 = vrot.slane %v6541, 1
      %v6829 = vsel %vm3492, %v6828, %v6827
      %v6830 = vsel %vm3495, %v6542, %v6829
      %v6831 = vrot.slane %v6543, 7
      %v6832 = vsel %vm3498, %v6831, %v6830
      %v6833 = vrot.slane %v6544, 6
      %v6834 = vsel %vm3501, %v6833, %v6832
      %v6835 = vrot.slane %v6545, 5
      %v6836 = vsel %vm3504, %v6835, %v6834
      %v6837 = vrot.slane %v6546, 4
      %v6838 = vsel %vm3507, %v6837, %v6836
      %v6839 = vrot.slane %v6547, 3
      %v6840 = vrot.slane %v6548, 2
      %v6841 = vsel %vm3489, %v6840, %v6839
      %v6842 = vrot.slane %v6549, 1
      %v6843 = vsel %vm3492, %v6842, %v6841
      %v6844 = vsel %vm3495, %v6550, %v6843
      %v6845 = vrot.slane %v6551, 7
      %v6846 = vsel %vm3498, %v6845, %v6844
      %v6847 = vrot.slane %v6552, 6
      %v6848 = vsel %vm3501, %v6847, %v6846
      %v6849 = vrot.slane %v6553, 5
      %v6850 = vsel %vm3504, %v6849, %v6848
      %v6851 = vrot.slane %v6554, 4
      %v6852 = vsel %vm3507, %v6851, %v6850
      %v6853 = vrot.slane %v6555, 3
      %v6854 = vrot.slane %v6556, 2
      %v6855 = vsel %vm3489, %v6854, %v6853
      %v6856 = vrot.slane %v6557, 1
      %v6857 = vsel %vm3492, %v6856, %v6855
      %v6858 = vsel %vm3495, %v6558, %v6857
      %v6859 = vrot.slane %v6559, 7
      %v6860 = vsel %vm3498, %v6859, %v6858
      %v6861 = vrot.slane %v6560, 6
      %v6862 = vsel %vm3501, %v6861, %v6860
      %v6863 = vrot.slane %v6561, 5
      %v6864 = vsel %vm3504, %v6863, %v6862
      %v6865 = vrot.slane %v6562, 4
      %v6866 = vsel %vm3507, %v6865, %v6864
      %v6867 = vrot.slane %v6563, 3
      %v6868 = vrot.slane %v6564, 2
      %v6869 = vsel %vm3489, %v6868, %v6867
      %v6870 = vrot.slane %v6565, 1
      %v6871 = vsel %vm3492, %v6870, %v6869
      %v6872 = vsel %vm3495, %v6566, %v6871
      %v6873 = vrot.slane %v6567, 7
      %v6874 = vsel %vm3498, %v6873, %v6872
      %v6875 = vrot.slane %v6568, 6
      %v6876 = vsel %vm3501, %v6875, %v6874
      %v6877 = vrot.slane %v6569, 5
      %v6878 = vsel %vm3504, %v6877, %v6876
      %v6879 = vrot.slane %v6570, 4
      %v6880 = vsel %vm3507, %v6879, %v6878
      %v6881 = vrot.slane %v6571, 3
      %v6882 = vrot.slane %v6572, 2
      %v6883 = vsel %vm3489, %v6882, %v6881
      %v6884 = vrot.slane %v6573, 1
      %v6885 = vsel %vm3492, %v6884, %v6883
      %v6886 = vsel %vm3495, %v6574, %v6885
      %v6887 = vrot.slane %v6575, 7
      %v6888 = vsel %vm3498, %v6887, %v6886
      %v6889 = vrot.slane %v6576, 6
      %v6890 = vsel %vm3501, %v6889, %v6888
      %v6891 = vrot.slane %v6577, 5
      %v6892 = vsel %vm3504, %v6891, %v6890
      %v6893 = vrot.slane %v6578, 4
      %v6894 = vsel %vm3507, %v6893, %v6892
      %v6895 = vrot.slane %v6579, 3
      %v6896 = vrot.slane %v6580, 2
      %v6897 = vsel %vm3489, %v6896, %v6895
      %v6898 = vrot.slane %v6581, 1
      %v6899 = vsel %vm3492, %v6898, %v6897
      %v6900 = vsel %vm3495, %v6582, %v6899
      %v6901 = vrot.slane %v6583, 7
      %v6902 = vsel %vm3498, %v6901, %v6900
      %v6903 = vrot.slane %v6584, 6
      %v6904 = vsel %vm3501, %v6903, %v6902
      %v6905 = vrot.slane %v6585, 5
      %v6906 = vsel %vm3504, %v6905, %v6904
      %v6907 = vrot.slane %v6586, 4
      %v6908 = vsel %vm3507, %v6907, %v6906
      %v6909 = vrot.slane %v6587, 3
      %v6910 = vrot.slane %v6588, 2
      %v6911 = vsel %vm3489, %v6910, %v6909
      %v6912 = vrot.slane %v6589, 1
      %v6913 = vsel %vm3492, %v6912, %v6911
      %v6914 = vsel %vm3495, %v6590, %v6913
      %v6915 = vrot.slane %v6591, 7
      %v6916 = vsel %vm3498, %v6915, %v6914
      %v6917 = vrot.slane %v6592, 6
      %v6918 = vsel %vm3501, %v6917, %v6916
      %v6919 = vrot.slane %v6593, 5
      %v6920 = vsel %vm3504, %v6919, %v6918
      %v6921 = vrot.slane %v6594, 4
      %v6922 = vsel %vm3507, %v6921, %v6920
      %v6923 = vrot.slane %v6595, 3
      %v6924 = vrot.slane %v6596, 2
      %v6925 = vsel %vm3489, %v6924, %v6923
      %v6926 = vrot.slane %v6597, 1
      %v6927 = vsel %vm3492, %v6926, %v6925
      %v6928 = vsel %vm3495, %v6598, %v6927
      %v6929 = vrot.slane %v6599, 7
      %v6930 = vsel %vm3498, %v6929, %v6928
      %v6931 = vrot.slane %v6600, 6
      %v6932 = vsel %vm3501, %v6931, %v6930
      %v6933 = vrot.slane %v6601, 5
      %v6934 = vsel %vm3504, %v6933, %v6932
      %v6935 = vrot.slane %v6602, 4
      %v6936 = vsel %vm3507, %v6935, %v6934
      %v6937 = vrot.slane %v6603, 3
      %v6938 = vrot.slane %v6604, 2
      %v6939 = vsel %vm3489, %v6938, %v6937
      %v6940 = vrot.slane %v6605, 1
      %v6941 = vsel %vm3492, %v6940, %v6939
      %v6942 = vsel %vm3495, %v6606, %v6941
      %v6943 = vrot.slane %v6607, 7
      %v6944 = vsel %vm3498, %v6943, %v6942
      %v6945 = vrot.slane %v6608, 6
      %v6946 = vsel %vm3501, %v6945, %v6944
      %v6947 = vrot.slane %v6609, 5
      %v6948 = vsel %vm3504, %v6947, %v6946
      %v6949 = vrot.slane %v6610, 4
      %v6950 = vsel %vm3507, %v6949, %v6948
      %v6951 = vrot.slane %v6611, 3
      %v6952 = vrot.slane %v6612, 2
      %v6953 = vsel %vm3489, %v6952, %v6951
      %v6954 = vrot.slane %v6613, 1
      %v6955 = vsel %vm3492, %v6954, %v6953
      %v6956 = vsel %vm3495, %v6614, %v6955
      %v6957 = vpack.c.b16 %v6628, %v6628
      %v6958 = vpack.c.b16 %v6642, %v6642
      %v6959 = vpack.c.b16 %v6656, %v6656
      %v6960 = vpack.c.b16 %v6670, %v6670
      %v6961 = vpack.c.b16 %v6684, %v6684
      %v6962 = vpack.c.b16 %v6698, %v6698
      %v6963 = vpack.c.b16 %v6712, %v6712
      %v6964 = vpack.c.b16 %v6726, %v6726
      %v6965 = vpack.c.b16 %v6740, %v6740
      %v6966 = vpack.c.b16 %v6754, %v6754
      %v6967 = vpack.c.b16 %v6768, %v6768
      %v6968 = vpack.c.b16 %v6782, %v6782
      %v6969 = vpack.c.b16 %v6796, %v6796
      %v6970 = vpack.c.b16 %v6810, %v6810
      %v6971 = vpack.c.b16 %v6824, %v6824
      %v6972 = vpack.c.b16 %v6838, %v6838
      %v6973 = vpack.c.b16 %v6852, %v6852
      %v6974 = vpack.c.b16 %v6866, %v6866
      %v6975 = vpack.c.b16 %v6880, %v6880
      %v6976 = vpack.c.b16 %v6894, %v6894
      %v6977 = vpack.c.b16 %v6908, %v6908
      %v6978 = vpack.c.b16 %v6922, %v6922
      %v6979 = vpack.c.b16 %v6936, %v6936
      %v6980 = vpack.c.b16 %v6950, %v6950
      %v6981 = vpack.c.b16 %v6956, %v6956
      %6982 = vrot.lane.b32.xlu0 %v6957, 24
      %v6983 = vpop.permute.xlu0 %6982
      %6984 = vrot.lane.b32.xlu0 %v6958, 24
      %v6985 = vpop.permute.xlu0 %6984
      %6986 = vrot.lane.b32.xlu0 %v6959, 24
      %v6987 = vpop.permute.xlu0 %6986
      %6988 = vrot.lane.b32.xlu0 %v6960, 24
      %v6989 = vpop.permute.xlu0 %6988
      %6990 = vrot.lane.b32.xlu0 %v6961, 24
      %v6991 = vpop.permute.xlu0 %6990
      %6992 = vrot.lane.b32.xlu0 %v6962, 24
      %v6993 = vpop.permute.xlu0 %6992
      %6994 = vrot.lane.b32.xlu0 %v6963, 24
      %v6995 = vpop.permute.xlu0 %6994
      %6996 = vrot.lane.b32.xlu0 %v6964, 24
      %v6997 = vpop.permute.xlu0 %6996
      %6998 = vrot.lane.b32.xlu0 %v6965, 24
      %v6999 = vpop.permute.xlu0 %6998
      %7000 = vrot.lane.b32.xlu0 %v6966, 24
      %v7001 = vpop.permute.xlu0 %7000
      %7002 = vrot.lane.b32.xlu0 %v6967, 24
      %v7003 = vpop.permute.xlu0 %7002
      %7004 = vrot.lane.b32.xlu0 %v6968, 24
      %v7005 = vpop.permute.xlu0 %7004
      %7006 = vrot.lane.b32.xlu0 %v6969, 24
      %v7007 = vpop.permute.xlu0 %7006
      %7008 = vrot.lane.b32.xlu0 %v6970, 24
      %v7009 = vpop.permute.xlu0 %7008
      %7010 = vrot.lane.b32.xlu0 %v6971, 24
      %v7011 = vpop.permute.xlu0 %7010
      %7012 = vrot.lane.b32.xlu0 %v6972, 24
      %v7013 = vpop.permute.xlu0 %7012
      %7014 = vrot.lane.b32.xlu0 %v6973, 24
      %v7015 = vpop.permute.xlu0 %7014
      %7016 = vrot.lane.b32.xlu0 %v6974, 24
      %v7017 = vpop.permute.xlu0 %7016
      %7018 = vrot.lane.b32.xlu0 %v6975, 24
      %v7019 = vpop.permute.xlu0 %7018
      %7020 = vrot.lane.b32.xlu0 %v6976, 24
      %v7021 = vpop.permute.xlu0 %7020
      %7022 = vrot.lane.b32.xlu0 %v6977, 24
      %v7023 = vpop.permute.xlu0 %7022
      %7024 = vrot.lane.b32.xlu0 %v6978, 24
      %v7025 = vpop.permute.xlu0 %7024
      %7026 = vrot.lane.b32.xlu0 %v6979, 24
      %v7027 = vpop.permute.xlu0 %7026
      %7028 = vrot.lane.b32.xlu0 %v6980, 24
      %v7029 = vpop.permute.xlu0 %7028
      %7030 = vrot.lane.b32.xlu0 %v6981, 24
      %v7031 = vpop.permute.xlu0 %7030
      %vm7057 = vcmask 257216
      %7058 = vst.msk [vmem:[#allocation3] sm:$0xf] %vm7057, %v6983
      %7059 = vst.msk [vmem:[#allocation3 + $0x4] sm:$0xf] %vm7057, %v6985
      %7060 = vst.msk [vmem:[#allocation3 + $0x8] sm:$0xf] %vm7057, %v6987
      %7061 = vst.msk [vmem:[#allocation3 + $0xc] sm:$0xf] %vm7057, %v6989
      %7062 = vst.msk [vmem:[#allocation3 + $0x10] sm:$0xf] %vm7057, %v6991
      %7063 = vst.msk [vmem:[#allocation3 + $0x14] sm:$0xf] %vm7057, %v6993
      %7064 = vst.msk [vmem:[#allocation3 + $0x18] sm:$0xf] %vm7057, %v6995
      %7065 = vst.msk [vmem:[#allocation3 + $0x1c] sm:$0xf] %vm7057, %v6997
      %7066 = vst.msk [vmem:[#allocation3 + $0x20] sm:$0xf] %vm7057, %v6999
      %7067 = vst.msk [vmem:[#allocation3 + $0x24] sm:$0xf] %vm7057, %v7001
      %7068 = vst.msk [vmem:[#allocation3 + $0x28] sm:$0xf] %vm7057, %v7003
      %7069 = vst.msk [vmem:[#allocation3 + $0x2c] sm:$0xf] %vm7057, %v7005
      %7070 = vst.msk [vmem:[#allocation3 + $0x30] sm:$0xf] %vm7057, %v7007
      %7071 = vst.msk [vmem:[#allocation3 + $0x34] sm:$0xf] %vm7057, %v7009
      %7072 = vst.msk [vmem:[#allocation3 + $0x38] sm:$0xf] %vm7057, %v7011
      %7073 = vst.msk [vmem:[#allocation3 + $0x3c] sm:$0xf] %vm7057, %v7013
      %7074 = vst.msk [vmem:[#allocation3 + $0x40] sm:$0xf] %vm7057, %v7015
      %7075 = vst.msk [vmem:[#allocation3 + $0x44] sm:$0xf] %vm7057, %v7017
      %7076 = vst.msk [vmem:[#allocation3 + $0x48] sm:$0xf] %vm7057, %v7019
      %7077 = vst.msk [vmem:[#allocation3 + $0x4c] sm:$0xf] %vm7057, %v7021
      %7078 = vst.msk [vmem:[#allocation3 + $0x50] sm:$0xf] %vm7057, %v7023
      %7079 = vst.msk [vmem:[#allocation3 + $0x54] sm:$0xf] %vm7057, %v7025
      %7080 = vst.msk [vmem:[#allocation3 + $0x58] sm:$0xf] %vm7057, %v7027
      %7081 = vst.msk [vmem:[#allocation3 + $0x5c] sm:$0xf] %vm7057, %v7029
      %vm7082 = vcmask 255168
      %7083 = vst.msk [vmem:[#allocation3 + $0x60] sm:$0x3] %vm7082, %v7031
      %v7084 = vld [vmem:[#allocation2] sm:$0x4]
      %v7085 = vld [vmem:[#allocation2 + $0x4] sm:$0x4]
      %v7086 = vld [vmem:[#allocation2 + $0x8] sm:$0x4]
      %v7087 = vld [vmem:[#allocation2 + $0xc] sm:$0x4]
      %v7088 = vld [vmem:[#allocation2 + $0x10] sm:$0x4]
      %v7089 = vld [vmem:[#allocation2 + $0x14] sm:$0x4]
      %v7090 = vld [vmem:[#allocation2 + $0x18] sm:$0x4]
      %v7091 = vld [vmem:[#allocation2 + $0x1c] sm:$0x4]
      %v7092 = vld [vmem:[#allocation2 + $0x20] sm:$0x4]
      %v7093 = vld [vmem:[#allocation2 + $0x24] sm:$0x4]
      %v7094 = vld [vmem:[#allocation2 + $0x28] sm:$0x4]
      %v7095 = vld [vmem:[#allocation2 + $0x2c] sm:$0x4]
      %v7096 = vld [vmem:[#allocation2 + $0x30] sm:$0x4]
      %v7097 = vld [vmem:[#allocation2 + $0x34] sm:$0x4]
      %v7098 = vld [vmem:[#allocation2 + $0x38] sm:$0x4]
      %v7099 = vld [vmem:[#allocation2 + $0x3c] sm:$0x4]
      %v7100 = vld [vmem:[#allocation2 + $0x40] sm:$0x4]
      %v7101 = vld [vmem:[#allocation2 + $0x44] sm:$0x4]
      %v7102 = vld [vmem:[#allocation2 + $0x48] sm:$0x4]
      %v7103 = vld [vmem:[#allocation2 + $0x4c] sm:$0x4]
      %v7104 = vld [vmem:[#allocation2 + $0x50] sm:$0x4]
      %v7105 = vld [vmem:[#allocation2 + $0x54] sm:$0x4]
      %v7106 = vld [vmem:[#allocation2 + $0x58] sm:$0x4]
      %v7107 = vld [vmem:[#allocation2 + $0x5c] sm:$0x4]
      %v7108 = vld [vmem:[#allocation2 + $0x60] sm:$0x4]
      %v7109 = vld [vmem:[#allocation2 + $0x64] sm:$0x4]
      %v7110 = vld [vmem:[#allocation2 + $0x68] sm:$0x4]
      %v7111 = vld [vmem:[#allocation2 + $0x6c] sm:$0x4]
      %v7112 = vld [vmem:[#allocation2 + $0x70] sm:$0x4]
      %v7113 = vld [vmem:[#allocation2 + $0x74] sm:$0x4]
      %v7114 = vld [vmem:[#allocation2 + $0x78] sm:$0x4]
      %v7115 = vld [vmem:[#allocation2 + $0x7c] sm:$0x4]
      %v7116 = vld [vmem:[#allocation2 + $0x80] sm:$0x4]
      %v7117 = vld [vmem:[#allocation2 + $0x84] sm:$0x4]
      %v7118 = vld [vmem:[#allocation2 + $0x88] sm:$0x4]
      %v7119 = vld [vmem:[#allocation2 + $0x8c] sm:$0x4]
      %v7120 = vld [vmem:[#allocation2 + $0x90] sm:$0x4]
      %v7121 = vld [vmem:[#allocation2 + $0x94] sm:$0x4]
      %v7122 = vld [vmem:[#allocation2 + $0x98] sm:$0x4]
      %v7123 = vld [vmem:[#allocation2 + $0x9c] sm:$0x4]
      %v7124 = vld [vmem:[#allocation2 + $0xa0] sm:$0x4]
      %v7125 = vld [vmem:[#allocation2 + $0xa4] sm:$0x4]
      %v7126 = vld [vmem:[#allocation2 + $0xa8] sm:$0x4]
      %v7127 = vld [vmem:[#allocation2 + $0xac] sm:$0x4]
      %v7128 = vld [vmem:[#allocation2 + $0xb0] sm:$0x4]
      %v7129 = vld [vmem:[#allocation2 + $0xb4] sm:$0x4]
      %v7130 = vld [vmem:[#allocation2 + $0xb8] sm:$0x4]
      %v7131 = vld [vmem:[#allocation2 + $0xbc] sm:$0x4]
      %v7132 = vld [vmem:[#allocation2 + $0xc0] sm:$0x4]
      %v7133 = vld [vmem:[#allocation2 + $0xc4] sm:$0x4]
      %v7134 = vld [vmem:[#allocation2 + $0xc8] sm:$0x4]
      %v7135 = vld [vmem:[#allocation2 + $0xcc] sm:$0x4]
      %v7136 = vld [vmem:[#allocation2 + $0xd0] sm:$0x4]
      %v7137 = vld [vmem:[#allocation2 + $0xd4] sm:$0x4]
      %v7138 = vld [vmem:[#allocation2 + $0xd8] sm:$0x4]
      %v7139 = vld [vmem:[#allocation2 + $0xdc] sm:$0x4]
      %v7140 = vld [vmem:[#allocation2 + $0xe0] sm:$0x4]
      %v7141 = vld [vmem:[#allocation2 + $0xe4] sm:$0x4]
      %v7142 = vld [vmem:[#allocation2 + $0xe8] sm:$0x4]
      %v7143 = vld [vmem:[#allocation2 + $0xec] sm:$0x4]
      %v7144 = vld [vmem:[#allocation2 + $0xf0] sm:$0x4]
      %v7145 = vld [vmem:[#allocation2 + $0xf4] sm:$0x4]
      %v7146 = vld [vmem:[#allocation2 + $0xf8] sm:$0x4]
      %v7147 = vld [vmem:[#allocation2 + $0xfc] sm:$0x4]
      %v7148 = vld [vmem:[#allocation2 + $0x100] sm:$0x4]
      %v7149 = vld [vmem:[#allocation2 + $0x104] sm:$0x4]
      %v7150 = vld [vmem:[#allocation2 + $0x108] sm:$0x4]
      %v7151 = vld [vmem:[#allocation2 + $0x10c] sm:$0x4]
      %v7152 = vld [vmem:[#allocation2 + $0x110] sm:$0x4]
      %v7153 = vld [vmem:[#allocation2 + $0x114] sm:$0x4]
      %v7154 = vld [vmem:[#allocation2 + $0x118] sm:$0x4]
      %v7155 = vld [vmem:[#allocation2 + $0x11c] sm:$0x4]
      %v7156 = vld [vmem:[#allocation2 + $0x120] sm:$0x4]
      %v7157 = vld [vmem:[#allocation2 + $0x124] sm:$0x4]
      %v7158 = vld [vmem:[#allocation2 + $0x128] sm:$0x4]
      %v7159 = vld [vmem:[#allocation2 + $0x12c] sm:$0x4]
      %v7160 = vld [vmem:[#allocation2 + $0x130] sm:$0x4]
      %v7161 = vld [vmem:[#allocation2 + $0x134] sm:$0x4]
      %v7162 = vld [vmem:[#allocation2 + $0x138] sm:$0x4]
      %v7163 = vld [vmem:[#allocation2 + $0x13c] sm:$0x4]
      %v7164 = vld [vmem:[#allocation2 + $0x140] sm:$0x4]
      %v7165 = vld [vmem:[#allocation2 + $0x144] sm:$0x4]
      %v7166 = vld [vmem:[#allocation2 + $0x148] sm:$0x4]
      %v7167 = vld [vmem:[#allocation2 + $0x14c] sm:$0x4]
      %v7168 = vld [vmem:[#allocation2 + $0x150] sm:$0x4]
      %v7169 = vld [vmem:[#allocation2 + $0x154] sm:$0x4]
      %v7170 = vld [vmem:[#allocation2 + $0x158] sm:$0x4]
      %v7171 = vld [vmem:[#allocation2 + $0x15c] sm:$0x4]
      %v7172 = vld [vmem:[#allocation2 + $0x160] sm:$0x4]
      %v7173 = vld [vmem:[#allocation2 + $0x164] sm:$0x4]
      %v7174 = vld [vmem:[#allocation2 + $0x168] sm:$0x4]
      %v7175 = vld [vmem:[#allocation2 + $0x16c] sm:$0x4]
      %v7176 = vld [vmem:[#allocation2 + $0x170] sm:$0x4]
      %v7177 = vld [vmem:[#allocation2 + $0x174] sm:$0x4]
      %v7178 = vld [vmem:[#allocation2 + $0x178] sm:$0x4]
      %v7179 = vld [vmem:[#allocation2 + $0x17c] sm:$0x4]
      %v7180 = vld [vmem:[#allocation2 + $0x180] sm:$0x4]
      %v7181 = vld [vmem:[#allocation2 + $0x184] sm:$0x4]
      %v7182 = vld [vmem:[#allocation2 + $0x188] sm:$0x4]
      %v7183 = vld [vmem:[#allocation2 + $0x18c] sm:$0x4]
      %v7184 = vld [vmem:[#allocation2 + $0x190] sm:$0x4]
      %v7185 = vld [vmem:[#allocation2 + $0x194] sm:$0x4]
      %v7186 = vld [vmem:[#allocation2 + $0x198] sm:$0x4]
      %v7187 = vld [vmem:[#allocation2 + $0x19c] sm:$0x4]
      %v7188 = vld [vmem:[#allocation2 + $0x1a0] sm:$0x4]
      %v7189 = vld [vmem:[#allocation2 + $0x1a4] sm:$0x4]
      %v7190 = vld [vmem:[#allocation2 + $0x1a8] sm:$0x4]
      %v7191 = vld [vmem:[#allocation2 + $0x1ac] sm:$0x4]
      %v7192 = vld [vmem:[#allocation2 + $0x1b0] sm:$0x4]
      %v7193 = vld [vmem:[#allocation2 + $0x1b4] sm:$0x4]
      %v7194 = vld [vmem:[#allocation2 + $0x1b8] sm:$0x4]
      %v7195 = vld [vmem:[#allocation2 + $0x1bc] sm:$0x4]
      %v7196 = vld [vmem:[#allocation2 + $0x1c0] sm:$0x4]
      %v7197 = vld [vmem:[#allocation2 + $0x1c4] sm:$0x4]
      %v7198 = vld [vmem:[#allocation2 + $0x1c8] sm:$0x4]
      %v7199 = vld [vmem:[#allocation2 + $0x1cc] sm:$0x4]
      %v7200 = vld [vmem:[#allocation2 + $0x1d0] sm:$0x4]
      %v7201 = vld [vmem:[#allocation2 + $0x1d4] sm:$0x4]
      %v7202 = vld [vmem:[#allocation2 + $0x1d8] sm:$0x4]
      %v7203 = vld [vmem:[#allocation2 + $0x1dc] sm:$0x4]
      %v7204 = vld [vmem:[#allocation2 + $0x1e0] sm:$0x4]
      %v7205 = vld [vmem:[#allocation2 + $0x1e4] sm:$0x4]
      %v7206 = vld [vmem:[#allocation2 + $0x1e8] sm:$0x4]
      %v7207 = vld [vmem:[#allocation2 + $0x1ec] sm:$0x4]
      %v7208 = vld [vmem:[#allocation2 + $0x1f0] sm:$0x4]
      %v7209 = vld [vmem:[#allocation2 + $0x1f4] sm:$0x4]
      %v7210 = vld [vmem:[#allocation2 + $0x1f8] sm:$0x4]
      %v7211 = vld [vmem:[#allocation2 + $0x1fc] sm:$0x4]
      %v7212 = vld [vmem:[#allocation2 + $0x200] sm:$0x4]
      %v7213 = vld [vmem:[#allocation2 + $0x204] sm:$0x4]
      %v7214 = vld [vmem:[#allocation2 + $0x208] sm:$0x4]
      %v7215 = vld [vmem:[#allocation2 + $0x20c] sm:$0x4]
      %v7216 = vld [vmem:[#allocation2 + $0x210] sm:$0x4]
      %v7217 = vld [vmem:[#allocation2 + $0x214] sm:$0x4]
      %v7218 = vld [vmem:[#allocation2 + $0x218] sm:$0x4]
      %v7219 = vld [vmem:[#allocation2 + $0x21c] sm:$0x4]
      %v7220 = vld [vmem:[#allocation2 + $0x220] sm:$0x4]
      %v7221 = vld [vmem:[#allocation2 + $0x224] sm:$0x4]
      %v7222 = vld [vmem:[#allocation2 + $0x228] sm:$0x4]
      %v7223 = vld [vmem:[#allocation2 + $0x22c] sm:$0x4]
      %v7224 = vld [vmem:[#allocation2 + $0x230] sm:$0x4]
      %v7225 = vld [vmem:[#allocation2 + $0x234] sm:$0x4]
      %v7226 = vld [vmem:[#allocation2 + $0x238] sm:$0x4]
      %v7227 = vld [vmem:[#allocation2 + $0x23c] sm:$0x4]
      %v7228 = vld [vmem:[#allocation2 + $0x240] sm:$0x4]
      %v7229 = vld [vmem:[#allocation2 + $0x244] sm:$0x4]
      %v7230 = vld [vmem:[#allocation2 + $0x248] sm:$0x4]
      %v7231 = vld [vmem:[#allocation2 + $0x24c] sm:$0x4]
      %v7232 = vld [vmem:[#allocation2 + $0x250] sm:$0x4]
      %v7233 = vld [vmem:[#allocation2 + $0x254] sm:$0x4]
      %v7234 = vld [vmem:[#allocation2 + $0x258] sm:$0x4]
      %v7235 = vld [vmem:[#allocation2 + $0x25c] sm:$0x4]
      %v7236 = vld [vmem:[#allocation2 + $0x260] sm:$0x4]
      %v7237 = vld [vmem:[#allocation2 + $0x264] sm:$0x4]
      %v7238 = vld [vmem:[#allocation2 + $0x268] sm:$0x4]
      %v7239 = vld [vmem:[#allocation2 + $0x26c] sm:$0x4]
      %v7240 = vld [vmem:[#allocation2 + $0x270] sm:$0x4]
      %v7241 = vld [vmem:[#allocation2 + $0x274] sm:$0x4]
      %v7242 = vld [vmem:[#allocation2 + $0x278] sm:$0x4]
      %v7243 = vld [vmem:[#allocation2 + $0x27c] sm:$0x4]
      %v7244 = vld [vmem:[#allocation2 + $0x280] sm:$0x4]
      %v7245 = vld [vmem:[#allocation2 + $0x284] sm:$0x4]
      %v7246 = vld [vmem:[#allocation2 + $0x288] sm:$0x4]
      %v7247 = vld [vmem:[#allocation2 + $0x28c] sm:$0x4]
      %v7248 = vld [vmem:[#allocation2 + $0x290] sm:$0x4]
      %v7249 = vld [vmem:[#allocation2 + $0x294] sm:$0x4]
      %v7250 = vld [vmem:[#allocation2 + $0x298] sm:$0x4]
      %v7251 = vld [vmem:[#allocation2 + $0x29c] sm:$0x4]
      %v7252 = vld [vmem:[#allocation2 + $0x2a0] sm:$0x4]
      %v7253 = vld [vmem:[#allocation2 + $0x2a4] sm:$0x4]
      %v7254 = vld [vmem:[#allocation2 + $0x2a8] sm:$0x4]
      %v7255 = vld [vmem:[#allocation2 + $0x2ac] sm:$0x4]
      %v7256 = vld [vmem:[#allocation2 + $0x2b0] sm:$0x4]
      %v7257 = vld [vmem:[#allocation2 + $0x2b4] sm:$0x4]
      %v7258 = vld [vmem:[#allocation2 + $0x2b8] sm:$0x4]
      %v7259 = vld [vmem:[#allocation2 + $0x2bc] sm:$0x4]
      %v7260 = vld [vmem:[#allocation2 + $0x2c0] sm:$0x4]
      %v7261 = vld [vmem:[#allocation2 + $0x2c4] sm:$0x4]
      %v7262 = vld [vmem:[#allocation2 + $0x2c8] sm:$0x4]
      %v7263 = vld [vmem:[#allocation2 + $0x2cc] sm:$0x4]
      %v7264 = vld [vmem:[#allocation2 + $0x2d0] sm:$0x4]
      %v7265 = vld [vmem:[#allocation2 + $0x2d4] sm:$0x4]
      %v7266 = vld [vmem:[#allocation2 + $0x2d8] sm:$0x4]
      %v7267 = vld [vmem:[#allocation2 + $0x2dc] sm:$0x4]
      %v7268 = vld [vmem:[#allocation2 + $0x2e0] sm:$0x4]
      %v7269 = vld [vmem:[#allocation2 + $0x2e4] sm:$0x4]
      %v7270 = vld [vmem:[#allocation2 + $0x2e8] sm:$0x4]
      %v7271 = vld [vmem:[#allocation2 + $0x2ec] sm:$0x4]
      %v7272 = vld [vmem:[#allocation2 + $0x2f0] sm:$0x4]
      %v7273 = vld [vmem:[#allocation2 + $0x2f4] sm:$0x4]
      %v7274 = vld [vmem:[#allocation2 + $0x2f8] sm:$0x4]
      %v7275 = vld [vmem:[#allocation2 + $0x2fc] sm:$0x4]
      %v7276 = vld [vmem:[#allocation2 + $0x300] sm:$0x4]
      %v7277 = vld [vmem:[#allocation2 + $0x304] sm:$0x4]
      %v7278 = vld [vmem:[#allocation2 + $0x308] sm:$0x4]
      %v7279 = vld [vmem:[#allocation2 + $0x30c] sm:$0x4]
      %v7476 = vunpack.c.l.b16 %v7084
      %v7477 = vunpack.c.l.b16 %v7085
      %v7478 = vunpack.c.l.b16 %v7086
      %v7479 = vunpack.c.l.b16 %v7087
      %v7480 = vunpack.c.l.b16 %v7088
      %v7481 = vunpack.c.l.b16 %v7089
      %v7482 = vunpack.c.l.b16 %v7090
      %v7483 = vunpack.c.l.b16 %v7091
      %v7484 = vunpack.c.l.b16 %v7092
      %v7485 = vunpack.c.l.b16 %v7093
      %v7486 = vunpack.c.l.b16 %v7094
      %v7487 = vunpack.c.l.b16 %v7095
      %v7488 = vunpack.c.l.b16 %v7096
      %v7489 = vunpack.c.l.b16 %v7097
      %v7490 = vunpack.c.l.b16 %v7098
      %v7491 = vunpack.c.l.b16 %v7099
      %v7492 = vunpack.c.l.b16 %v7100
      %v7493 = vunpack.c.l.b16 %v7101
      %v7494 = vunpack.c.l.b16 %v7102
      %v7495 = vunpack.c.l.b16 %v7103
      %v7496 = vunpack.c.l.b16 %v7104
      %v7497 = vunpack.c.l.b16 %v7105
      %v7498 = vunpack.c.l.b16 %v7106
      %v7499 = vunpack.c.l.b16 %v7107
      %v7500 = vunpack.c.l.b16 %v7108
      %v7501 = vunpack.c.l.b16 %v7109
      %v7502 = vunpack.c.l.b16 %v7110
      %v7503 = vunpack.c.l.b16 %v7111
      %v7504 = vunpack.c.l.b16 %v7112
      %v7505 = vunpack.c.l.b16 %v7113
      %v7506 = vunpack.c.l.b16 %v7114
      %v7507 = vunpack.c.l.b16 %v7115
      %v7508 = vunpack.c.l.b16 %v7116
      %v7509 = vunpack.c.l.b16 %v7117
      %v7510 = vunpack.c.l.b16 %v7118
      %v7511 = vunpack.c.l.b16 %v7119
      %v7512 = vunpack.c.l.b16 %v7120
      %v7513 = vunpack.c.l.b16 %v7121
      %v7514 = vunpack.c.l.b16 %v7122
      %v7515 = vunpack.c.l.b16 %v7123
      %v7516 = vunpack.c.l.b16 %v7124
      %v7517 = vunpack.c.l.b16 %v7125
      %v7518 = vunpack.c.l.b16 %v7126
      %v7519 = vunpack.c.l.b16 %v7127
      %v7520 = vunpack.c.l.b16 %v7128
      %v7521 = vunpack.c.l.b16 %v7129
      %v7522 = vunpack.c.l.b16 %v7130
      %v7523 = vunpack.c.l.b16 %v7131
      %v7524 = vunpack.c.l.b16 %v7132
      %v7525 = vunpack.c.l.b16 %v7133
      %v7526 = vunpack.c.l.b16 %v7134
      %v7527 = vunpack.c.l.b16 %v7135
      %v7528 = vunpack.c.l.b16 %v7136
      %v7529 = vunpack.c.l.b16 %v7137
      %v7530 = vunpack.c.l.b16 %v7138
      %v7531 = vunpack.c.l.b16 %v7139
      %v7532 = vunpack.c.l.b16 %v7140
      %v7533 = vunpack.c.l.b16 %v7141
      %v7534 = vunpack.c.l.b16 %v7142
      %v7535 = vunpack.c.l.b16 %v7143
      %v7536 = vunpack.c.l.b16 %v7144
      %v7537 = vunpack.c.l.b16 %v7145
      %v7538 = vunpack.c.l.b16 %v7146
      %v7539 = vunpack.c.l.b16 %v7147
      %v7540 = vunpack.c.l.b16 %v7148
      %v7541 = vunpack.c.l.b16 %v7149
      %v7542 = vunpack.c.l.b16 %v7150
      %v7543 = vunpack.c.l.b16 %v7151
      %v7544 = vunpack.c.l.b16 %v7152
      %v7545 = vunpack.c.l.b16 %v7153
      %v7546 = vunpack.c.l.b16 %v7154
      %v7547 = vunpack.c.l.b16 %v7155
      %v7548 = vunpack.c.l.b16 %v7156
      %v7549 = vunpack.c.l.b16 %v7157
      %v7550 = vunpack.c.l.b16 %v7158
      %v7551 = vunpack.c.l.b16 %v7159
      %v7552 = vunpack.c.l.b16 %v7160
      %v7553 = vunpack.c.l.b16 %v7161
      %v7554 = vunpack.c.l.b16 %v7162
      %v7555 = vunpack.c.l.b16 %v7163
      %v7556 = vunpack.c.l.b16 %v7164
      %v7557 = vunpack.c.l.b16 %v7165
      %v7558 = vunpack.c.l.b16 %v7166
      %v7559 = vunpack.c.l.b16 %v7167
      %v7560 = vunpack.c.l.b16 %v7168
      %v7561 = vunpack.c.l.b16 %v7169
      %v7562 = vunpack.c.l.b16 %v7170
      %v7563 = vunpack.c.l.b16 %v7171
      %v7564 = vunpack.c.l.b16 %v7172
      %v7565 = vunpack.c.l.b16 %v7173
      %v7566 = vunpack.c.l.b16 %v7174
      %v7567 = vunpack.c.l.b16 %v7175
      %v7568 = vunpack.c.l.b16 %v7176
      %v7569 = vunpack.c.l.b16 %v7177
      %v7570 = vunpack.c.l.b16 %v7178
      %v7571 = vunpack.c.l.b16 %v7179
      %v7572 = vunpack.c.l.b16 %v7180
      %v7573 = vunpack.c.l.b16 %v7181
      %v7574 = vunpack.c.l.b16 %v7182
      %v7575 = vunpack.c.l.b16 %v7183
      %v7576 = vunpack.c.l.b16 %v7184
      %v7577 = vunpack.c.l.b16 %v7185
      %v7578 = vunpack.c.l.b16 %v7186
      %v7579 = vunpack.c.l.b16 %v7187
      %v7580 = vunpack.c.l.b16 %v7188
      %v7581 = vunpack.c.l.b16 %v7189
      %v7582 = vunpack.c.l.b16 %v7190
      %v7583 = vunpack.c.l.b16 %v7191
      %v7584 = vunpack.c.l.b16 %v7192
      %v7585 = vunpack.c.l.b16 %v7193
      %v7586 = vunpack.c.l.b16 %v7194
      %v7587 = vunpack.c.l.b16 %v7195
      %v7588 = vunpack.c.l.b16 %v7196
      %v7589 = vunpack.c.l.b16 %v7197
      %v7590 = vunpack.c.l.b16 %v7198
      %v7591 = vunpack.c.l.b16 %v7199
      %v7592 = vunpack.c.l.b16 %v7200
      %v7593 = vunpack.c.l.b16 %v7201
      %v7594 = vunpack.c.l.b16 %v7202
      %v7595 = vunpack.c.l.b16 %v7203
      %v7596 = vunpack.c.l.b16 %v7204
      %v7597 = vunpack.c.l.b16 %v7205
      %v7598 = vunpack.c.l.b16 %v7206
      %v7599 = vunpack.c.l.b16 %v7207
      %v7600 = vunpack.c.l.b16 %v7208
      %v7601 = vunpack.c.l.b16 %v7209
      %v7602 = vunpack.c.l.b16 %v7210
      %v7603 = vunpack.c.l.b16 %v7211
      %v7604 = vunpack.c.l.b16 %v7212
      %v7605 = vunpack.c.l.b16 %v7213
      %v7606 = vunpack.c.l.b16 %v7214
      %v7607 = vunpack.c.l.b16 %v7215
      %v7608 = vunpack.c.l.b16 %v7216
      %v7609 = vunpack.c.l.b16 %v7217
      %v7610 = vunpack.c.l.b16 %v7218
      %v7611 = vunpack.c.l.b16 %v7219
      %v7612 = vunpack.c.l.b16 %v7220
      %v7613 = vunpack.c.l.b16 %v7221
      %v7614 = vunpack.c.l.b16 %v7222
      %v7615 = vunpack.c.l.b16 %v7223
      %v7616 = vunpack.c.l.b16 %v7224
      %v7617 = vunpack.c.l.b16 %v7225
      %v7618 = vunpack.c.l.b16 %v7226
      %v7619 = vunpack.c.l.b16 %v7227
      %v7620 = vunpack.c.l.b16 %v7228
      %v7621 = vunpack.c.l.b16 %v7229
      %v7622 = vunpack.c.l.b16 %v7230
      %v7623 = vunpack.c.l.b16 %v7231
      %v7624 = vunpack.c.l.b16 %v7232
      %v7625 = vunpack.c.l.b16 %v7233
      %v7626 = vunpack.c.l.b16 %v7234
      %v7627 = vunpack.c.l.b16 %v7235
      %v7628 = vunpack.c.l.b16 %v7236
      %v7629 = vunpack.c.l.b16 %v7237
      %v7630 = vunpack.c.l.b16 %v7238
      %v7631 = vunpack.c.l.b16 %v7239
      %v7632 = vunpack.c.l.b16 %v7240
      %v7633 = vunpack.c.l.b16 %v7241
      %v7634 = vunpack.c.l.b16 %v7242
      %v7635 = vunpack.c.l.b16 %v7243
      %v7636 = vunpack.c.l.b16 %v7244
      %v7637 = vunpack.c.l.b16 %v7245
      %v7638 = vunpack.c.l.b16 %v7246
      %v7639 = vunpack.c.l.b16 %v7247
      %v7640 = vunpack.c.l.b16 %v7248
      %v7641 = vunpack.c.l.b16 %v7249
      %v7642 = vunpack.c.l.b16 %v7250
      %v7643 = vunpack.c.l.b16 %v7251
      %v7644 = vunpack.c.l.b16 %v7252
      %v7645 = vunpack.c.l.b16 %v7253
      %v7646 = vunpack.c.l.b16 %v7254
      %v7647 = vunpack.c.l.b16 %v7255
      %v7648 = vunpack.c.l.b16 %v7256
      %v7649 = vunpack.c.l.b16 %v7257
      %v7650 = vunpack.c.l.b16 %v7258
      %v7651 = vunpack.c.l.b16 %v7259
      %v7652 = vunpack.c.l.b16 %v7260
      %v7653 = vunpack.c.l.b16 %v7261
      %v7654 = vunpack.c.l.b16 %v7262
      %v7655 = vunpack.c.l.b16 %v7263
      %v7656 = vunpack.c.l.b16 %v7264
      %v7657 = vunpack.c.l.b16 %v7265
      %v7658 = vunpack.c.l.b16 %v7266
      %v7659 = vunpack.c.l.b16 %v7267
      %v7660 = vunpack.c.l.b16 %v7268
      %v7661 = vunpack.c.l.b16 %v7269
      %v7662 = vunpack.c.l.b16 %v7270
      %v7663 = vunpack.c.l.b16 %v7271
      %v7664 = vunpack.c.l.b16 %v7272
      %v7665 = vunpack.c.l.b16 %v7273
      %v7666 = vunpack.c.l.b16 %v7274
      %v7667 = vunpack.c.l.b16 %v7275
      %v7668 = vunpack.c.l.b16 %v7276
      %v7669 = vunpack.c.l.b16 %v7277
      %v7670 = vunpack.c.l.b16 %v7278
      %v7671 = vunpack.c.l.b16 %v7279
      %v7672 = vrot.slane %v7476, 4
      %v7673 = vrot.slane %v7477, 3
      %v7674 = vsel %vm3489, %v7673, %v7672
      %v7675 = vrot.slane %v7478, 2
      %v7676 = vsel %vm3492, %v7675, %v7674
      %v7677 = vrot.slane %v7479, 1
      %v7678 = vsel %vm3495, %v7677, %v7676
      %v7679 = vsel %vm3498, %v7480, %v7678
      %v7680 = vrot.slane %v7481, 7
      %v7681 = vsel %vm3501, %v7680, %v7679
      %v7682 = vrot.slane %v7482, 6
      %v7683 = vsel %vm3504, %v7682, %v7681
      %v7684 = vrot.slane %v7483, 5
      %v7685 = vsel %vm3507, %v7684, %v7683
      %v7686 = vrot.slane %v7484, 4
      %v7687 = vrot.slane %v7485, 3
      %v7688 = vsel %vm3489, %v7687, %v7686
      %v7689 = vrot.slane %v7486, 2
      %v7690 = vsel %vm3492, %v7689, %v7688
      %v7691 = vrot.slane %v7487, 1
      %v7692 = vsel %vm3495, %v7691, %v7690
      %v7693 = vsel %vm3498, %v7488, %v7692
      %v7694 = vrot.slane %v7489, 7
      %v7695 = vsel %vm3501, %v7694, %v7693
      %v7696 = vrot.slane %v7490, 6
      %v7697 = vsel %vm3504, %v7696, %v7695
      %v7698 = vrot.slane %v7491, 5
      %v7699 = vsel %vm3507, %v7698, %v7697
      %v7700 = vrot.slane %v7492, 4
      %v7701 = vrot.slane %v7493, 3
      %v7702 = vsel %vm3489, %v7701, %v7700
      %v7703 = vrot.slane %v7494, 2
      %v7704 = vsel %vm3492, %v7703, %v7702
      %v7705 = vrot.slane %v7495, 1
      %v7706 = vsel %vm3495, %v7705, %v7704
      %v7707 = vsel %vm3498, %v7496, %v7706
      %v7708 = vrot.slane %v7497, 7
      %v7709 = vsel %vm3501, %v7708, %v7707
      %v7710 = vrot.slane %v7498, 6
      %v7711 = vsel %vm3504, %v7710, %v7709
      %v7712 = vrot.slane %v7499, 5
      %v7713 = vsel %vm3507, %v7712, %v7711
      %v7714 = vrot.slane %v7500, 4
      %v7715 = vrot.slane %v7501, 3
      %v7716 = vsel %vm3489, %v7715, %v7714
      %v7717 = vrot.slane %v7502, 2
      %v7718 = vsel %vm3492, %v7717, %v7716
      %v7719 = vrot.slane %v7503, 1
      %v7720 = vsel %vm3495, %v7719, %v7718
      %v7721 = vsel %vm3498, %v7504, %v7720
      %v7722 = vrot.slane %v7505, 7
      %v7723 = vsel %vm3501, %v7722, %v7721
      %v7724 = vrot.slane %v7506, 6
      %v7725 = vsel %vm3504, %v7724, %v7723
      %v7726 = vrot.slane %v7507, 5
      %v7727 = vsel %vm3507, %v7726, %v7725
      %v7728 = vrot.slane %v7508, 4
      %v7729 = vrot.slane %v7509, 3
      %v7730 = vsel %vm3489, %v7729, %v7728
      %v7731 = vrot.slane %v7510, 2
      %v7732 = vsel %vm3492, %v7731, %v7730
      %v7733 = vrot.slane %v7511, 1
      %v7734 = vsel %vm3495, %v7733, %v7732
      %v7735 = vsel %vm3498, %v7512, %v7734
      %v7736 = vrot.slane %v7513, 7
      %v7737 = vsel %vm3501, %v7736, %v7735
      %v7738 = vrot.slane %v7514, 6
      %v7739 = vsel %vm3504, %v7738, %v7737
      %v7740 = vrot.slane %v7515, 5
      %v7741 = vsel %vm3507, %v7740, %v7739
      %v7742 = vrot.slane %v7516, 4
      %v7743 = vrot.slane %v7517, 3
      %v7744 = vsel %vm3489, %v7743, %v7742
      %v7745 = vrot.slane %v7518, 2
      %v7746 = vsel %vm3492, %v7745, %v7744
      %v7747 = vrot.slane %v7519, 1
      %v7748 = vsel %vm3495, %v7747, %v7746
      %v7749 = vsel %vm3498, %v7520, %v7748
      %v7750 = vrot.slane %v7521, 7
      %v7751 = vsel %vm3501, %v7750, %v7749
      %v7752 = vrot.slane %v7522, 6
      %v7753 = vsel %vm3504, %v7752, %v7751
      %v7754 = vrot.slane %v7523, 5
      %v7755 = vsel %vm3507, %v7754, %v7753
      %v7756 = vrot.slane %v7524, 4
      %v7757 = vrot.slane %v7525, 3
      %v7758 = vsel %vm3489, %v7757, %v7756
      %v7759 = vrot.slane %v7526, 2
      %v7760 = vsel %vm3492, %v7759, %v7758
      %v7761 = vrot.slane %v7527, 1
      %v7762 = vsel %vm3495, %v7761, %v7760
      %v7763 = vsel %vm3498, %v7528, %v7762
      %v7764 = vrot.slane %v7529, 7
      %v7765 = vsel %vm3501, %v7764, %v7763
      %v7766 = vrot.slane %v7530, 6
      %v7767 = vsel %vm3504, %v7766, %v7765
      %v7768 = vrot.slane %v7531, 5
      %v7769 = vsel %vm3507, %v7768, %v7767
      %v7770 = vrot.slane %v7532, 4
      %v7771 = vrot.slane %v7533, 3
      %v7772 = vsel %vm3489, %v7771, %v7770
      %v7773 = vrot.slane %v7534, 2
      %v7774 = vsel %vm3492, %v7773, %v7772
      %v7775 = vrot.slane %v7535, 1
      %v7776 = vsel %vm3495, %v7775, %v7774
      %v7777 = vsel %vm3498, %v7536, %v7776
      %v7778 = vrot.slane %v7537, 7
      %v7779 = vsel %vm3501, %v7778, %v7777
      %v7780 = vrot.slane %v7538, 6
      %v7781 = vsel %vm3504, %v7780, %v7779
      %v7782 = vrot.slane %v7539, 5
      %v7783 = vsel %vm3507, %v7782, %v7781
      %v7784 = vrot.slane %v7540, 4
      %v7785 = vrot.slane %v7541, 3
      %v7786 = vsel %vm3489, %v7785, %v7784
      %v7787 = vrot.slane %v7542, 2
      %v7788 = vsel %vm3492, %v7787, %v7786
      %v7789 = vrot.slane %v7543, 1
      %v7790 = vsel %vm3495, %v7789, %v7788
      %v7791 = vsel %vm3498, %v7544, %v7790
      %v7792 = vrot.slane %v7545, 7
      %v7793 = vsel %vm3501, %v7792, %v7791
      %v7794 = vrot.slane %v7546, 6
      %v7795 = vsel %vm3504, %v7794, %v7793
      %v7796 = vrot.slane %v7547, 5
      %v7797 = vsel %vm3507, %v7796, %v7795
      %v7798 = vrot.slane %v7548, 4
      %v7799 = vrot.slane %v7549, 3
      %v7800 = vsel %vm3489, %v7799, %v7798
      %v7801 = vrot.slane %v7550, 2
      %v7802 = vsel %vm3492, %v7801, %v7800
      %v7803 = vrot.slane %v7551, 1
      %v7804 = vsel %vm3495, %v7803, %v7802
      %v7805 = vsel %vm3498, %v7552, %v7804
      %v7806 = vrot.slane %v7553, 7
      %v7807 = vsel %vm3501, %v7806, %v7805
      %v7808 = vrot.slane %v7554, 6
      %v7809 = vsel %vm3504, %v7808, %v7807
      %v7810 = vrot.slane %v7555, 5
      %v7811 = vsel %vm3507, %v7810, %v7809
      %v7812 = vrot.slane %v7556, 4
      %v7813 = vrot.slane %v7557, 3
      %v7814 = vsel %vm3489, %v7813, %v7812
      %v7815 = vrot.slane %v7558, 2
      %v7816 = vsel %vm3492, %v7815, %v7814
      %v7817 = vrot.slane %v7559, 1
      %v7818 = vsel %vm3495, %v7817, %v7816
      %v7819 = vsel %vm3498, %v7560, %v7818
      %v7820 = vrot.slane %v7561, 7
      %v7821 = vsel %vm3501, %v7820, %v7819
      %v7822 = vrot.slane %v7562, 6
      %v7823 = vsel %vm3504, %v7822, %v7821
      %v7824 = vrot.slane %v7563, 5
      %v7825 = vsel %vm3507, %v7824, %v7823
      %v7826 = vrot.slane %v7564, 4
      %v7827 = vrot.slane %v7565, 3
      %v7828 = vsel %vm3489, %v7827, %v7826
      %v7829 = vrot.slane %v7566, 2
      %v7830 = vsel %vm3492, %v7829, %v7828
      %v7831 = vrot.slane %v7567, 1
      %v7832 = vsel %vm3495, %v7831, %v7830
      %v7833 = vsel %vm3498, %v7568, %v7832
      %v7834 = vrot.slane %v7569, 7
      %v7835 = vsel %vm3501, %v7834, %v7833
      %v7836 = vrot.slane %v7570, 6
      %v7837 = vsel %vm3504, %v7836, %v7835
      %v7838 = vrot.slane %v7571, 5
      %v7839 = vsel %vm3507, %v7838, %v7837
      %v7840 = vrot.slane %v7572, 4
      %v7841 = vrot.slane %v7573, 3
      %v7842 = vsel %vm3489, %v7841, %v7840
      %v7843 = vrot.slane %v7574, 2
      %v7844 = vsel %vm3492, %v7843, %v7842
      %v7845 = vrot.slane %v7575, 1
      %v7846 = vsel %vm3495, %v7845, %v7844
      %v7847 = vsel %vm3498, %v7576, %v7846
      %v7848 = vrot.slane %v7577, 7
      %v7849 = vsel %vm3501, %v7848, %v7847
      %v7850 = vrot.slane %v7578, 6
      %v7851 = vsel %vm3504, %v7850, %v7849
      %v7852 = vrot.slane %v7579, 5
      %v7853 = vsel %vm3507, %v7852, %v7851
      %v7854 = vrot.slane %v7580, 4
      %v7855 = vrot.slane %v7581, 3
      %v7856 = vsel %vm3489, %v7855, %v7854
      %v7857 = vrot.slane %v7582, 2
      %v7858 = vsel %vm3492, %v7857, %v7856
      %v7859 = vrot.slane %v7583, 1
      %v7860 = vsel %vm3495, %v7859, %v7858
      %v7861 = vsel %vm3498, %v7584, %v7860
      %v7862 = vrot.slane %v7585, 7
      %v7863 = vsel %vm3501, %v7862, %v7861
      %v7864 = vrot.slane %v7586, 6
      %v7865 = vsel %vm3504, %v7864, %v7863
      %v7866 = vrot.slane %v7587, 5
      %v7867 = vsel %vm3507, %v7866, %v7865
      %v7868 = vrot.slane %v7588, 4
      %v7869 = vrot.slane %v7589, 3
      %v7870 = vsel %vm3489, %v7869, %v7868
      %v7871 = vrot.slane %v7590, 2
      %v7872 = vsel %vm3492, %v7871, %v7870
      %v7873 = vrot.slane %v7591, 1
      %v7874 = vsel %vm3495, %v7873, %v7872
      %v7875 = vsel %vm3498, %v7592, %v7874
      %v7876 = vrot.slane %v7593, 7
      %v7877 = vsel %vm3501, %v7876, %v7875
      %v7878 = vrot.slane %v7594, 6
      %v7879 = vsel %vm3504, %v7878, %v7877
      %v7880 = vrot.slane %v7595, 5
      %v7881 = vsel %vm3507, %v7880, %v7879
      %v7882 = vrot.slane %v7596, 4
      %v7883 = vrot.slane %v7597, 3
      %v7884 = vsel %vm3489, %v7883, %v7882
      %v7885 = vrot.slane %v7598, 2
      %v7886 = vsel %vm3492, %v7885, %v7884
      %v7887 = vrot.slane %v7599, 1
      %v7888 = vsel %vm3495, %v7887, %v7886
      %v7889 = vsel %vm3498, %v7600, %v7888
      %v7890 = vrot.slane %v7601, 7
      %v7891 = vsel %vm3501, %v7890, %v7889
      %v7892 = vrot.slane %v7602, 6
      %v7893 = vsel %vm3504, %v7892, %v7891
      %v7894 = vrot.slane %v7603, 5
      %v7895 = vsel %vm3507, %v7894, %v7893
      %v7896 = vrot.slane %v7604, 4
      %v7897 = vrot.slane %v7605, 3
      %v7898 = vsel %vm3489, %v7897, %v7896
      %v7899 = vrot.slane %v7606, 2
      %v7900 = vsel %vm3492, %v7899, %v7898
      %v7901 = vrot.slane %v7607, 1
      %v7902 = vsel %vm3495, %v7901, %v7900
      %v7903 = vsel %vm3498, %v7608, %v7902
      %v7904 = vrot.slane %v7609, 7
      %v7905 = vsel %vm3501, %v7904, %v7903
      %v7906 = vrot.slane %v7610, 6
      %v7907 = vsel %vm3504, %v7906, %v7905
      %v7908 = vrot.slane %v7611, 5
      %v7909 = vsel %vm3507, %v7908, %v7907
      %v7910 = vrot.slane %v7612, 4
      %v7911 = vrot.slane %v7613, 3
      %v7912 = vsel %vm3489, %v7911, %v7910
      %v7913 = vrot.slane %v7614, 2
      %v7914 = vsel %vm3492, %v7913, %v7912
      %v7915 = vrot.slane %v7615, 1
      %v7916 = vsel %vm3495, %v7915, %v7914
      %v7917 = vsel %vm3498, %v7616, %v7916
      %v7918 = vrot.slane %v7617, 7
      %v7919 = vsel %vm3501, %v7918, %v7917
      %v7920 = vrot.slane %v7618, 6
      %v7921 = vsel %vm3504, %v7920, %v7919
      %v7922 = vrot.slane %v7619, 5
      %v7923 = vsel %vm3507, %v7922, %v7921
      %v7924 = vrot.slane %v7620, 4
      %v7925 = vrot.slane %v7621, 3
      %v7926 = vsel %vm3489, %v7925, %v7924
      %v7927 = vrot.slane %v7622, 2
      %v7928 = vsel %vm3492, %v7927, %v7926
      %v7929 = vrot.slane %v7623, 1
      %v7930 = vsel %vm3495, %v7929, %v7928
      %v7931 = vsel %vm3498, %v7624, %v7930
      %v7932 = vrot.slane %v7625, 7
      %v7933 = vsel %vm3501, %v7932, %v7931
      %v7934 = vrot.slane %v7626, 6
      %v7935 = vsel %vm3504, %v7934, %v7933
      %v7936 = vrot.slane %v7627, 5
      %v7937 = vsel %vm3507, %v7936, %v7935
      %v7938 = vrot.slane %v7628, 4
      %v7939 = vrot.slane %v7629, 3
      %v7940 = vsel %vm3489, %v7939, %v7938
      %v7941 = vrot.slane %v7630, 2
      %v7942 = vsel %vm3492, %v7941, %v7940
      %v7943 = vrot.slane %v7631, 1
      %v7944 = vsel %vm3495, %v7943, %v7942
      %v7945 = vsel %vm3498, %v7632, %v7944
      %v7946 = vrot.slane %v7633, 7
      %v7947 = vsel %vm3501, %v7946, %v7945
      %v7948 = vrot.slane %v7634, 6
      %v7949 = vsel %vm3504, %v7948, %v7947
      %v7950 = vrot.slane %v7635, 5
      %v7951 = vsel %vm3507, %v7950, %v7949
      %v7952 = vrot.slane %v7636, 4
      %v7953 = vrot.slane %v7637, 3
      %v7954 = vsel %vm3489, %v7953, %v7952
      %v7955 = vrot.slane %v7638, 2
      %v7956 = vsel %vm3492, %v7955, %v7954
      %v7957 = vrot.slane %v7639, 1
      %v7958 = vsel %vm3495, %v7957, %v7956
      %v7959 = vsel %vm3498, %v7640, %v7958
      %v7960 = vrot.slane %v7641, 7
      %v7961 = vsel %vm3501, %v7960, %v7959
      %v7962 = vrot.slane %v7642, 6
      %v7963 = vsel %vm3504, %v7962, %v7961
      %v7964 = vrot.slane %v7643, 5
      %v7965 = vsel %vm3507, %v7964, %v7963
      %v7966 = vrot.slane %v7644, 4
      %v7967 = vrot.slane %v7645, 3
      %v7968 = vsel %vm3489, %v7967, %v7966
      %v7969 = vrot.slane %v7646, 2
      %v7970 = vsel %vm3492, %v7969, %v7968
      %v7971 = vrot.slane %v7647, 1
      %v7972 = vsel %vm3495, %v7971, %v7970
      %v7973 = vsel %vm3498, %v7648, %v7972
      %v7974 = vrot.slane %v7649, 7
      %v7975 = vsel %vm3501, %v7974, %v7973
      %v7976 = vrot.slane %v7650, 6
      %v7977 = vsel %vm3504, %v7976, %v7975
      %v7978 = vrot.slane %v7651, 5
      %v7979 = vsel %vm3507, %v7978, %v7977
      %v7980 = vrot.slane %v7652, 4
      %v7981 = vrot.slane %v7653, 3
      %v7982 = vsel %vm3489, %v7981, %v7980
      %v7983 = vrot.slane %v7654, 2
      %v7984 = vsel %vm3492, %v7983, %v7982
      %v7985 = vrot.slane %v7655, 1
      %v7986 = vsel %vm3495, %v7985, %v7984
      %v7987 = vsel %vm3498, %v7656, %v7986
      %v7988 = vrot.slane %v7657, 7
      %v7989 = vsel %vm3501, %v7988, %v7987
      %v7990 = vrot.slane %v7658, 6
      %v7991 = vsel %vm3504, %v7990, %v7989
      %v7992 = vrot.slane %v7659, 5
      %v7993 = vsel %vm3507, %v7992, %v7991
      %v7994 = vrot.slane %v7660, 4
      %v7995 = vrot.slane %v7661, 3
      %v7996 = vsel %vm3489, %v7995, %v7994
      %v7997 = vrot.slane %v7662, 2
      %v7998 = vsel %vm3492, %v7997, %v7996
      %v7999 = vrot.slane %v7663, 1
      %v8000 = vsel %vm3495, %v7999, %v7998
      %v8001 = vsel %vm3498, %v7664, %v8000
      %v8002 = vrot.slane %v7665, 7
      %v8003 = vsel %vm3501, %v8002, %v8001
      %v8004 = vrot.slane %v7666, 6
      %v8005 = vsel %vm3504, %v8004, %v8003
      %v8006 = vrot.slane %v7667, 5
      %v8007 = vsel %vm3507, %v8006, %v8005
      %v8008 = vrot.slane %v7668, 4
      %v8009 = vrot.slane %v7669, 3
      %v8010 = vsel %vm3489, %v8009, %v8008
      %v8011 = vrot.slane %v7670, 2
      %v8012 = vsel %vm3492, %v8011, %v8010
      %v8013 = vrot.slane %v7671, 1
      %v8014 = vsel %vm3495, %v8013, %v8012
      %v8015 = vpack.c.b16 %v7685, %v7685
      %v8016 = vpack.c.b16 %v7699, %v7699
      %v8017 = vpack.c.b16 %v7713, %v7713
      %v8018 = vpack.c.b16 %v7727, %v7727
      %v8019 = vpack.c.b16 %v7741, %v7741
      %v8020 = vpack.c.b16 %v7755, %v7755
      %v8021 = vpack.c.b16 %v7769, %v7769
      %v8022 = vpack.c.b16 %v7783, %v7783
      %v8023 = vpack.c.b16 %v7797, %v7797
      %v8024 = vpack.c.b16 %v7811, %v7811
      %v8025 = vpack.c.b16 %v7825, %v7825
      %v8026 = vpack.c.b16 %v7839, %v7839
      %v8027 = vpack.c.b16 %v7853, %v7853
      %v8028 = vpack.c.b16 %v7867, %v7867
      %v8029 = vpack.c.b16 %v7881, %v7881
      %v8030 = vpack.c.b16 %v7895, %v7895
      %v8031 = vpack.c.b16 %v7909, %v7909
      %v8032 = vpack.c.b16 %v7923, %v7923
      %v8033 = vpack.c.b16 %v7937, %v7937
      %v8034 = vpack.c.b16 %v7951, %v7951
      %v8035 = vpack.c.b16 %v7965, %v7965
      %v8036 = vpack.c.b16 %v7979, %v7979
      %v8037 = vpack.c.b16 %v7993, %v7993
      %v8038 = vpack.c.b16 %v8007, %v8007
      %v8039 = vpack.c.b16 %v8014, %v8014
      %8040 = vrot.lane.b32.xlu0 %v8015, 32
      %v8041 = vpop.permute.xlu0 %8040
      %8042 = vrot.lane.b32.xlu0 %v8016, 32
      %v8043 = vpop.permute.xlu0 %8042
      %8044 = vrot.lane.b32.xlu0 %v8017, 32
      %v8045 = vpop.permute.xlu0 %8044
      %8046 = vrot.lane.b32.xlu0 %v8018, 32
      %v8047 = vpop.permute.xlu0 %8046
      %8048 = vrot.lane.b32.xlu0 %v8019, 32
      %v8049 = vpop.permute.xlu0 %8048
      %8050 = vrot.lane.b32.xlu0 %v8020, 32
      %v8051 = vpop.permute.xlu0 %8050
      %8052 = vrot.lane.b32.xlu0 %v8021, 32
      %v8053 = vpop.permute.xlu0 %8052
      %8054 = vrot.lane.b32.xlu0 %v8022, 32
      %v8055 = vpop.permute.xlu0 %8054
      %8056 = vrot.lane.b32.xlu0 %v8023, 32
      %v8057 = vpop.permute.xlu0 %8056
      %8058 = vrot.lane.b32.xlu0 %v8024, 32
      %v8059 = vpop.permute.xlu0 %8058
      %8060 = vrot.lane.b32.xlu0 %v8025, 32
      %v8061 = vpop.permute.xlu0 %8060
      %8062 = vrot.lane.b32.xlu0 %v8026, 32
      %v8063 = vpop.permute.xlu0 %8062
      %8064 = vrot.lane.b32.xlu0 %v8027, 32
      %v8065 = vpop.permute.xlu0 %8064
      %8066 = vrot.lane.b32.xlu0 %v8028, 32
      %v8067 = vpop.permute.xlu0 %8066
      %8068 = vrot.lane.b32.xlu0 %v8029, 32
      %v8069 = vpop.permute.xlu0 %8068
      %8070 = vrot.lane.b32.xlu0 %v8030, 32
      %v8071 = vpop.permute.xlu0 %8070
      %8072 = vrot.lane.b32.xlu0 %v8031, 32
      %v8073 = vpop.permute.xlu0 %8072
      %8074 = vrot.lane.b32.xlu0 %v8032, 32
      %v8075 = vpop.permute.xlu0 %8074
      %8076 = vrot.lane.b32.xlu0 %v8033, 32
      %v8077 = vpop.permute.xlu0 %8076
      %8078 = vrot.lane.b32.xlu0 %v8034, 32
      %v8079 = vpop.permute.xlu0 %8078
      %8080 = vrot.lane.b32.xlu0 %v8035, 32
      %v8081 = vpop.permute.xlu0 %8080
      %8082 = vrot.lane.b32.xlu0 %v8036, 32
      %v8083 = vpop.permute.xlu0 %8082
      %8084 = vrot.lane.b32.xlu0 %v8037, 32
      %v8085 = vpop.permute.xlu0 %8084
      %8086 = vrot.lane.b32.xlu0 %v8038, 32
      %v8087 = vpop.permute.xlu0 %8086
      %8088 = vrot.lane.b32.xlu0 %v8039, 32
      %v8089 = vpop.permute.xlu0 %8088
      %vm8115 = vcmask 322816
      %8116 = vst.msk [vmem:[#allocation3] sm:$0xf] %vm8115, %v8041
      %8117 = vst.msk [vmem:[#allocation3 + $0x4] sm:$0xf] %vm8115, %v8043
      %8118 = vst.msk [vmem:[#allocation3 + $0x8] sm:$0xf] %vm8115, %v8045
      %8119 = vst.msk [vmem:[#allocation3 + $0xc] sm:$0xf] %vm8115, %v8047
      %8120 = vst.msk [vmem:[#allocation3 + $0x10] sm:$0xf] %vm8115, %v8049
      %8121 = vst.msk [vmem:[#allocation3 + $0x14] sm:$0xf] %vm8115, %v8051
      %8122 = vst.msk [vmem:[#allocation3 + $0x18] sm:$0xf] %vm8115, %v8053
      %8123 = vst.msk [vmem:[#allocation3 + $0x1c] sm:$0xf] %vm8115, %v8055
      %8124 = vst.msk [vmem:[#allocation3 + $0x20] sm:$0xf] %vm8115, %v8057
      %8125 = vst.msk [vmem:[#allocation3 + $0x24] sm:$0xf] %vm8115, %v8059
      %8126 = vst.msk [vmem:[#allocation3 + $0x28] sm:$0xf] %vm8115, %v8061
      %8127 = vst.msk [vmem:[#allocation3 + $0x2c] sm:$0xf] %vm8115, %v8063
      %8128 = vst.msk [vmem:[#allocation3 + $0x30] sm:$0xf] %vm8115, %v8065
      %8129 = vst.msk [vmem:[#allocation3 + $0x34] sm:$0xf] %vm8115, %v8067
      %8130 = vst.msk [vmem:[#allocation3 + $0x38] sm:$0xf] %vm8115, %v8069
      %8131 = vst.msk [vmem:[#allocation3 + $0x3c] sm:$0xf] %vm8115, %v8071
      %8132 = vst.msk [vmem:[#allocation3 + $0x40] sm:$0xf] %vm8115, %v8073
      %8133 = vst.msk [vmem:[#allocation3 + $0x44] sm:$0xf] %vm8115, %v8075
      %8134 = vst.msk [vmem:[#allocation3 + $0x48] sm:$0xf] %vm8115, %v8077
      %8135 = vst.msk [vmem:[#allocation3 + $0x4c] sm:$0xf] %vm8115, %v8079
      %8136 = vst.msk [vmem:[#allocation3 + $0x50] sm:$0xf] %vm8115, %v8081
      %8137 = vst.msk [vmem:[#allocation3 + $0x54] sm:$0xf] %vm8115, %v8083
      %8138 = vst.msk [vmem:[#allocation3 + $0x58] sm:$0xf] %vm8115, %v8085
      %8139 = vst.msk [vmem:[#allocation3 + $0x5c] sm:$0xf] %vm8115, %v8087
      %vm8140 = vcmask 320768
      %8141 = vst.msk [vmem:[#allocation3 + $0x60] sm:$0x3] %vm8140, %v8089
      %v8142 = vld [vmem:[#allocation2] sm:$0x4]
      %v8143 = vld [vmem:[#allocation2 + $0x4] sm:$0x4]
      %v8144 = vld [vmem:[#allocation2 + $0x8] sm:$0x4]
      %v8145 = vld [vmem:[#allocation2 + $0xc] sm:$0x4]
      %v8146 = vld [vmem:[#allocation2 + $0x10] sm:$0x4]
      %v8147 = vld [vmem:[#allocation2 + $0x14] sm:$0x4]
      %v8148 = vld [vmem:[#allocation2 + $0x18] sm:$0x4]
      %v8149 = vld [vmem:[#allocation2 + $0x1c] sm:$0x4]
      %v8150 = vld [vmem:[#allocation2 + $0x20] sm:$0x4]
      %v8151 = vld [vmem:[#allocation2 + $0x24] sm:$0x4]
      %v8152 = vld [vmem:[#allocation2 + $0x28] sm:$0x4]
      %v8153 = vld [vmem:[#allocation2 + $0x2c] sm:$0x4]
      %v8154 = vld [vmem:[#allocation2 + $0x30] sm:$0x4]
      %v8155 = vld [vmem:[#allocation2 + $0x34] sm:$0x4]
      %v8156 = vld [vmem:[#allocation2 + $0x38] sm:$0x4]
      %v8157 = vld [vmem:[#allocation2 + $0x3c] sm:$0x4]
      %v8158 = vld [vmem:[#allocation2 + $0x40] sm:$0x4]
      %v8159 = vld [vmem:[#allocation2 + $0x44] sm:$0x4]
      %v8160 = vld [vmem:[#allocation2 + $0x48] sm:$0x4]
      %v8161 = vld [vmem:[#allocation2 + $0x4c] sm:$0x4]
      %v8162 = vld [vmem:[#allocation2 + $0x50] sm:$0x4]
      %v8163 = vld [vmem:[#allocation2 + $0x54] sm:$0x4]
      %v8164 = vld [vmem:[#allocation2 + $0x58] sm:$0x4]
      %v8165 = vld [vmem:[#allocation2 + $0x5c] sm:$0x4]
      %v8166 = vld [vmem:[#allocation2 + $0x60] sm:$0x4]
      %v8167 = vld [vmem:[#allocation2 + $0x64] sm:$0x4]
      %v8168 = vld [vmem:[#allocation2 + $0x68] sm:$0x4]
      %v8169 = vld [vmem:[#allocation2 + $0x6c] sm:$0x4]
      %v8170 = vld [vmem:[#allocation2 + $0x70] sm:$0x4]
      %v8171 = vld [vmem:[#allocation2 + $0x74] sm:$0x4]
      %v8172 = vld [vmem:[#allocation2 + $0x78] sm:$0x4]
      %v8173 = vld [vmem:[#allocation2 + $0x7c] sm:$0x4]
      %v8174 = vld [vmem:[#allocation2 + $0x80] sm:$0x4]
      %v8175 = vld [vmem:[#allocation2 + $0x84] sm:$0x4]
      %v8176 = vld [vmem:[#allocation2 + $0x88] sm:$0x4]
      %v8177 = vld [vmem:[#allocation2 + $0x8c] sm:$0x4]
      %v8178 = vld [vmem:[#allocation2 + $0x90] sm:$0x4]
      %v8179 = vld [vmem:[#allocation2 + $0x94] sm:$0x4]
      %v8180 = vld [vmem:[#allocation2 + $0x98] sm:$0x4]
      %v8181 = vld [vmem:[#allocation2 + $0x9c] sm:$0x4]
      %v8182 = vld [vmem:[#allocation2 + $0xa0] sm:$0x4]
      %v8183 = vld [vmem:[#allocation2 + $0xa4] sm:$0x4]
      %v8184 = vld [vmem:[#allocation2 + $0xa8] sm:$0x4]
      %v8185 = vld [vmem:[#allocation2 + $0xac] sm:$0x4]
      %v8186 = vld [vmem:[#allocation2 + $0xb0] sm:$0x4]
      %v8187 = vld [vmem:[#allocation2 + $0xb4] sm:$0x4]
      %v8188 = vld [vmem:[#allocation2 + $0xb8] sm:$0x4]
      %v8189 = vld [vmem:[#allocation2 + $0xbc] sm:$0x4]
      %v8190 = vld [vmem:[#allocation2 + $0xc0] sm:$0x4]
      %v8191 = vld [vmem:[#allocation2 + $0xc4] sm:$0x4]
      %v8192 = vld [vmem:[#allocation2 + $0xc8] sm:$0x4]
      %v8193 = vld [vmem:[#allocation2 + $0xcc] sm:$0x4]
      %v8194 = vld [vmem:[#allocation2 + $0xd0] sm:$0x4]
      %v8195 = vld [vmem:[#allocation2 + $0xd4] sm:$0x4]
      %v8196 = vld [vmem:[#allocation2 + $0xd8] sm:$0x4]
      %v8197 = vld [vmem:[#allocation2 + $0xdc] sm:$0x4]
      %v8198 = vld [vmem:[#allocation2 + $0xe0] sm:$0x4]
      %v8199 = vld [vmem:[#allocation2 + $0xe4] sm:$0x4]
      %v8200 = vld [vmem:[#allocation2 + $0xe8] sm:$0x4]
      %v8201 = vld [vmem:[#allocation2 + $0xec] sm:$0x4]
      %v8202 = vld [vmem:[#allocation2 + $0xf0] sm:$0x4]
      %v8203 = vld [vmem:[#allocation2 + $0xf4] sm:$0x4]
      %v8204 = vld [vmem:[#allocation2 + $0xf8] sm:$0x4]
      %v8205 = vld [vmem:[#allocation2 + $0xfc] sm:$0x4]
      %v8206 = vld [vmem:[#allocation2 + $0x100] sm:$0x4]
      %v8207 = vld [vmem:[#allocation2 + $0x104] sm:$0x4]
      %v8208 = vld [vmem:[#allocation2 + $0x108] sm:$0x4]
      %v8209 = vld [vmem:[#allocation2 + $0x10c] sm:$0x4]
      %v8210 = vld [vmem:[#allocation2 + $0x110] sm:$0x4]
      %v8211 = vld [vmem:[#allocation2 + $0x114] sm:$0x4]
      %v8212 = vld [vmem:[#allocation2 + $0x118] sm:$0x4]
      %v8213 = vld [vmem:[#allocation2 + $0x11c] sm:$0x4]
      %v8214 = vld [vmem:[#allocation2 + $0x120] sm:$0x4]
      %v8215 = vld [vmem:[#allocation2 + $0x124] sm:$0x4]
      %v8216 = vld [vmem:[#allocation2 + $0x128] sm:$0x4]
      %v8217 = vld [vmem:[#allocation2 + $0x12c] sm:$0x4]
      %v8218 = vld [vmem:[#allocation2 + $0x130] sm:$0x4]
      %v8219 = vld [vmem:[#allocation2 + $0x134] sm:$0x4]
      %v8220 = vld [vmem:[#allocation2 + $0x138] sm:$0x4]
      %v8221 = vld [vmem:[#allocation2 + $0x13c] sm:$0x4]
      %v8222 = vld [vmem:[#allocation2 + $0x140] sm:$0x4]
      %v8223 = vld [vmem:[#allocation2 + $0x144] sm:$0x4]
      %v8224 = vld [vmem:[#allocation2 + $0x148] sm:$0x4]
      %v8225 = vld [vmem:[#allocation2 + $0x14c] sm:$0x4]
      %v8226 = vld [vmem:[#allocation2 + $0x150] sm:$0x4]
      %v8227 = vld [vmem:[#allocation2 + $0x154] sm:$0x4]
      %v8228 = vld [vmem:[#allocation2 + $0x158] sm:$0x4]
      %v8229 = vld [vmem:[#allocation2 + $0x15c] sm:$0x4]
      %v8230 = vld [vmem:[#allocation2 + $0x160] sm:$0x4]
      %v8231 = vld [vmem:[#allocation2 + $0x164] sm:$0x4]
      %v8232 = vld [vmem:[#allocation2 + $0x168] sm:$0x4]
      %v8233 = vld [vmem:[#allocation2 + $0x16c] sm:$0x4]
      %v8234 = vld [vmem:[#allocation2 + $0x170] sm:$0x4]
      %v8235 = vld [vmem:[#allocation2 + $0x174] sm:$0x4]
      %v8236 = vld [vmem:[#allocation2 + $0x178] sm:$0x4]
      %v8237 = vld [vmem:[#allocation2 + $0x17c] sm:$0x4]
      %v8238 = vld [vmem:[#allocation2 + $0x180] sm:$0x4]
      %v8239 = vld [vmem:[#allocation2 + $0x184] sm:$0x4]
      %v8240 = vld [vmem:[#allocation2 + $0x188] sm:$0x4]
      %v8241 = vld [vmem:[#allocation2 + $0x18c] sm:$0x4]
      %v8242 = vld [vmem:[#allocation2 + $0x190] sm:$0x4]
      %v8243 = vld [vmem:[#allocation2 + $0x194] sm:$0x4]
      %v8244 = vld [vmem:[#allocation2 + $0x198] sm:$0x4]
      %v8245 = vld [vmem:[#allocation2 + $0x19c] sm:$0x4]
      %v8246 = vld [vmem:[#allocation2 + $0x1a0] sm:$0x4]
      %v8247 = vld [vmem:[#allocation2 + $0x1a4] sm:$0x4]
      %v8248 = vld [vmem:[#allocation2 + $0x1a8] sm:$0x4]
      %v8249 = vld [vmem:[#allocation2 + $0x1ac] sm:$0x4]
      %v8250 = vld [vmem:[#allocation2 + $0x1b0] sm:$0x4]
      %v8251 = vld [vmem:[#allocation2 + $0x1b4] sm:$0x4]
      %v8252 = vld [vmem:[#allocation2 + $0x1b8] sm:$0x4]
      %v8253 = vld [vmem:[#allocation2 + $0x1bc] sm:$0x4]
      %v8254 = vld [vmem:[#allocation2 + $0x1c0] sm:$0x4]
      %v8255 = vld [vmem:[#allocation2 + $0x1c4] sm:$0x4]
      %v8256 = vld [vmem:[#allocation2 + $0x1c8] sm:$0x4]
      %v8257 = vld [vmem:[#allocation2 + $0x1cc] sm:$0x4]
      %v8258 = vld [vmem:[#allocation2 + $0x1d0] sm:$0x4]
      %v8259 = vld [vmem:[#allocation2 + $0x1d4] sm:$0x4]
      %v8260 = vld [vmem:[#allocation2 + $0x1d8] sm:$0x4]
      %v8261 = vld [vmem:[#allocation2 + $0x1dc] sm:$0x4]
      %v8262 = vld [vmem:[#allocation2 + $0x1e0] sm:$0x4]
      %v8263 = vld [vmem:[#allocation2 + $0x1e4] sm:$0x4]
      %v8264 = vld [vmem:[#allocation2 + $0x1e8] sm:$0x4]
      %v8265 = vld [vmem:[#allocation2 + $0x1ec] sm:$0x4]
      %v8266 = vld [vmem:[#allocation2 + $0x1f0] sm:$0x4]
      %v8267 = vld [vmem:[#allocation2 + $0x1f4] sm:$0x4]
      %v8268 = vld [vmem:[#allocation2 + $0x1f8] sm:$0x4]
      %v8269 = vld [vmem:[#allocation2 + $0x1fc] sm:$0x4]
      %v8270 = vld [vmem:[#allocation2 + $0x200] sm:$0x4]
      %v8271 = vld [vmem:[#allocation2 + $0x204] sm:$0x4]
      %v8272 = vld [vmem:[#allocation2 + $0x208] sm:$0x4]
      %v8273 = vld [vmem:[#allocation2 + $0x20c] sm:$0x4]
      %v8274 = vld [vmem:[#allocation2 + $0x210] sm:$0x4]
      %v8275 = vld [vmem:[#allocation2 + $0x214] sm:$0x4]
      %v8276 = vld [vmem:[#allocation2 + $0x218] sm:$0x4]
      %v8277 = vld [vmem:[#allocation2 + $0x21c] sm:$0x4]
      %v8278 = vld [vmem:[#allocation2 + $0x220] sm:$0x4]
      %v8279 = vld [vmem:[#allocation2 + $0x224] sm:$0x4]
      %v8280 = vld [vmem:[#allocation2 + $0x228] sm:$0x4]
      %v8281 = vld [vmem:[#allocation2 + $0x22c] sm:$0x4]
      %v8282 = vld [vmem:[#allocation2 + $0x230] sm:$0x4]
      %v8283 = vld [vmem:[#allocation2 + $0x234] sm:$0x4]
      %v8284 = vld [vmem:[#allocation2 + $0x238] sm:$0x4]
      %v8285 = vld [vmem:[#allocation2 + $0x23c] sm:$0x4]
      %v8286 = vld [vmem:[#allocation2 + $0x240] sm:$0x4]
      %v8287 = vld [vmem:[#allocation2 + $0x244] sm:$0x4]
      %v8288 = vld [vmem:[#allocation2 + $0x248] sm:$0x4]
      %v8289 = vld [vmem:[#allocation2 + $0x24c] sm:$0x4]
      %v8290 = vld [vmem:[#allocation2 + $0x250] sm:$0x4]
      %v8291 = vld [vmem:[#allocation2 + $0x254] sm:$0x4]
      %v8292 = vld [vmem:[#allocation2 + $0x258] sm:$0x4]
      %v8293 = vld [vmem:[#allocation2 + $0x25c] sm:$0x4]
      %v8294 = vld [vmem:[#allocation2 + $0x260] sm:$0x4]
      %v8295 = vld [vmem:[#allocation2 + $0x264] sm:$0x4]
      %v8296 = vld [vmem:[#allocation2 + $0x268] sm:$0x4]
      %v8297 = vld [vmem:[#allocation2 + $0x26c] sm:$0x4]
      %v8298 = vld [vmem:[#allocation2 + $0x270] sm:$0x4]
      %v8299 = vld [vmem:[#allocation2 + $0x274] sm:$0x4]
      %v8300 = vld [vmem:[#allocation2 + $0x278] sm:$0x4]
      %v8301 = vld [vmem:[#allocation2 + $0x27c] sm:$0x4]
      %v8302 = vld [vmem:[#allocation2 + $0x280] sm:$0x4]
      %v8303 = vld [vmem:[#allocation2 + $0x284] sm:$0x4]
      %v8304 = vld [vmem:[#allocation2 + $0x288] sm:$0x4]
      %v8305 = vld [vmem:[#allocation2 + $0x28c] sm:$0x4]
      %v8306 = vld [vmem:[#allocation2 + $0x290] sm:$0x4]
      %v8307 = vld [vmem:[#allocation2 + $0x294] sm:$0x4]
      %v8308 = vld [vmem:[#allocation2 + $0x298] sm:$0x4]
      %v8309 = vld [vmem:[#allocation2 + $0x29c] sm:$0x4]
      %v8310 = vld [vmem:[#allocation2 + $0x2a0] sm:$0x4]
      %v8311 = vld [vmem:[#allocation2 + $0x2a4] sm:$0x4]
      %v8312 = vld [vmem:[#allocation2 + $0x2a8] sm:$0x4]
      %v8313 = vld [vmem:[#allocation2 + $0x2ac] sm:$0x4]
      %v8314 = vld [vmem:[#allocation2 + $0x2b0] sm:$0x4]
      %v8315 = vld [vmem:[#allocation2 + $0x2b4] sm:$0x4]
      %v8316 = vld [vmem:[#allocation2 + $0x2b8] sm:$0x4]
      %v8317 = vld [vmem:[#allocation2 + $0x2bc] sm:$0x4]
      %v8318 = vld [vmem:[#allocation2 + $0x2c0] sm:$0x4]
      %v8319 = vld [vmem:[#allocation2 + $0x2c4] sm:$0x4]
      %v8320 = vld [vmem:[#allocation2 + $0x2c8] sm:$0x4]
      %v8321 = vld [vmem:[#allocation2 + $0x2cc] sm:$0x4]
      %v8322 = vld [vmem:[#allocation2 + $0x2d0] sm:$0x4]
      %v8323 = vld [vmem:[#allocation2 + $0x2d4] sm:$0x4]
      %v8324 = vld [vmem:[#allocation2 + $0x2d8] sm:$0x4]
      %v8325 = vld [vmem:[#allocation2 + $0x2dc] sm:$0x4]
      %v8326 = vld [vmem:[#allocation2 + $0x2e0] sm:$0x4]
      %v8327 = vld [vmem:[#allocation2 + $0x2e4] sm:$0x4]
      %v8328 = vld [vmem:[#allocation2 + $0x2e8] sm:$0x4]
      %v8329 = vld [vmem:[#allocation2 + $0x2ec] sm:$0x4]
      %v8330 = vld [vmem:[#allocation2 + $0x2f0] sm:$0x4]
      %v8331 = vld [vmem:[#allocation2 + $0x2f4] sm:$0x4]
      %v8332 = vld [vmem:[#allocation2 + $0x2f8] sm:$0x4]
      %v8333 = vld [vmem:[#allocation2 + $0x2fc] sm:$0x4]
      %v8334 = vld [vmem:[#allocation2 + $0x300] sm:$0x4]
      %v8335 = vld [vmem:[#allocation2 + $0x304] sm:$0x4]
      %v8336 = vld [vmem:[#allocation2 + $0x308] sm:$0x4]
      %v8337 = vld [vmem:[#allocation2 + $0x30c] sm:$0x4]
      %v8534 = vunpack.c.l.b16 %v8142
      %v8535 = vunpack.c.l.b16 %v8143
      %v8536 = vunpack.c.l.b16 %v8144
      %v8537 = vunpack.c.l.b16 %v8145
      %v8538 = vunpack.c.l.b16 %v8146
      %v8539 = vunpack.c.l.b16 %v8147
      %v8540 = vunpack.c.l.b16 %v8148
      %v8541 = vunpack.c.l.b16 %v8149
      %v8542 = vunpack.c.l.b16 %v8150
      %v8543 = vunpack.c.l.b16 %v8151
      %v8544 = vunpack.c.l.b16 %v8152
      %v8545 = vunpack.c.l.b16 %v8153
      %v8546 = vunpack.c.l.b16 %v8154
      %v8547 = vunpack.c.l.b16 %v8155
      %v8548 = vunpack.c.l.b16 %v8156
      %v8549 = vunpack.c.l.b16 %v8157
      %v8550 = vunpack.c.l.b16 %v8158
      %v8551 = vunpack.c.l.b16 %v8159
      %v8552 = vunpack.c.l.b16 %v8160
      %v8553 = vunpack.c.l.b16 %v8161
      %v8554 = vunpack.c.l.b16 %v8162
      %v8555 = vunpack.c.l.b16 %v8163
      %v8556 = vunpack.c.l.b16 %v8164
      %v8557 = vunpack.c.l.b16 %v8165
      %v8558 = vunpack.c.l.b16 %v8166
      %v8559 = vunpack.c.l.b16 %v8167
      %v8560 = vunpack.c.l.b16 %v8168
      %v8561 = vunpack.c.l.b16 %v8169
      %v8562 = vunpack.c.l.b16 %v8170
      %v8563 = vunpack.c.l.b16 %v8171
      %v8564 = vunpack.c.l.b16 %v8172
      %v8565 = vunpack.c.l.b16 %v8173
      %v8566 = vunpack.c.l.b16 %v8174
      %v8567 = vunpack.c.l.b16 %v8175
      %v8568 = vunpack.c.l.b16 %v8176
      %v8569 = vunpack.c.l.b16 %v8177
      %v8570 = vunpack.c.l.b16 %v8178
      %v8571 = vunpack.c.l.b16 %v8179
      %v8572 = vunpack.c.l.b16 %v8180
      %v8573 = vunpack.c.l.b16 %v8181
      %v8574 = vunpack.c.l.b16 %v8182
      %v8575 = vunpack.c.l.b16 %v8183
      %v8576 = vunpack.c.l.b16 %v8184
      %v8577 = vunpack.c.l.b16 %v8185
      %v8578 = vunpack.c.l.b16 %v8186
      %v8579 = vunpack.c.l.b16 %v8187
      %v8580 = vunpack.c.l.b16 %v8188
      %v8581 = vunpack.c.l.b16 %v8189
      %v8582 = vunpack.c.l.b16 %v8190
      %v8583 = vunpack.c.l.b16 %v8191
      %v8584 = vunpack.c.l.b16 %v8192
      %v8585 = vunpack.c.l.b16 %v8193
      %v8586 = vunpack.c.l.b16 %v8194
      %v8587 = vunpack.c.l.b16 %v8195
      %v8588 = vunpack.c.l.b16 %v8196
      %v8589 = vunpack.c.l.b16 %v8197
      %v8590 = vunpack.c.l.b16 %v8198
      %v8591 = vunpack.c.l.b16 %v8199
      %v8592 = vunpack.c.l.b16 %v8200
      %v8593 = vunpack.c.l.b16 %v8201
      %v8594 = vunpack.c.l.b16 %v8202
      %v8595 = vunpack.c.l.b16 %v8203
      %v8596 = vunpack.c.l.b16 %v8204
      %v8597 = vunpack.c.l.b16 %v8205
      %v8598 = vunpack.c.l.b16 %v8206
      %v8599 = vunpack.c.l.b16 %v8207
      %v8600 = vunpack.c.l.b16 %v8208
      %v8601 = vunpack.c.l.b16 %v8209
      %v8602 = vunpack.c.l.b16 %v8210
      %v8603 = vunpack.c.l.b16 %v8211
      %v8604 = vunpack.c.l.b16 %v8212
      %v8605 = vunpack.c.l.b16 %v8213
      %v8606 = vunpack.c.l.b16 %v8214
      %v8607 = vunpack.c.l.b16 %v8215
      %v8608 = vunpack.c.l.b16 %v8216
      %v8609 = vunpack.c.l.b16 %v8217
      %v8610 = vunpack.c.l.b16 %v8218
      %v8611 = vunpack.c.l.b16 %v8219
      %v8612 = vunpack.c.l.b16 %v8220
      %v8613 = vunpack.c.l.b16 %v8221
      %v8614 = vunpack.c.l.b16 %v8222
      %v8615 = vunpack.c.l.b16 %v8223
      %v8616 = vunpack.c.l.b16 %v8224
      %v8617 = vunpack.c.l.b16 %v8225
      %v8618 = vunpack.c.l.b16 %v8226
      %v8619 = vunpack.c.l.b16 %v8227
      %v8620 = vunpack.c.l.b16 %v8228
      %v8621 = vunpack.c.l.b16 %v8229
      %v8622 = vunpack.c.l.b16 %v8230
      %v8623 = vunpack.c.l.b16 %v8231
      %v8624 = vunpack.c.l.b16 %v8232
      %v8625 = vunpack.c.l.b16 %v8233
      %v8626 = vunpack.c.l.b16 %v8234
      %v8627 = vunpack.c.l.b16 %v8235
      %v8628 = vunpack.c.l.b16 %v8236
      %v8629 = vunpack.c.l.b16 %v8237
      %v8630 = vunpack.c.l.b16 %v8238
      %v8631 = vunpack.c.l.b16 %v8239
      %v8632 = vunpack.c.l.b16 %v8240
      %v8633 = vunpack.c.l.b16 %v8241
      %v8634 = vunpack.c.l.b16 %v8242
      %v8635 = vunpack.c.l.b16 %v8243
      %v8636 = vunpack.c.l.b16 %v8244
      %v8637 = vunpack.c.l.b16 %v8245
      %v8638 = vunpack.c.l.b16 %v8246
      %v8639 = vunpack.c.l.b16 %v8247
      %v8640 = vunpack.c.l.b16 %v8248
      %v8641 = vunpack.c.l.b16 %v8249
      %v8642 = vunpack.c.l.b16 %v8250
      %v8643 = vunpack.c.l.b16 %v8251
      %v8644 = vunpack.c.l.b16 %v8252
      %v8645 = vunpack.c.l.b16 %v8253
      %v8646 = vunpack.c.l.b16 %v8254
      %v8647 = vunpack.c.l.b16 %v8255
      %v8648 = vunpack.c.l.b16 %v8256
      %v8649 = vunpack.c.l.b16 %v8257
      %v8650 = vunpack.c.l.b16 %v8258
      %v8651 = vunpack.c.l.b16 %v8259
      %v8652 = vunpack.c.l.b16 %v8260
      %v8653 = vunpack.c.l.b16 %v8261
      %v8654 = vunpack.c.l.b16 %v8262
      %v8655 = vunpack.c.l.b16 %v8263
      %v8656 = vunpack.c.l.b16 %v8264
      %v8657 = vunpack.c.l.b16 %v8265
      %v8658 = vunpack.c.l.b16 %v8266
      %v8659 = vunpack.c.l.b16 %v8267
      %v8660 = vunpack.c.l.b16 %v8268
      %v8661 = vunpack.c.l.b16 %v8269
      %v8662 = vunpack.c.l.b16 %v8270
      %v8663 = vunpack.c.l.b16 %v8271
      %v8664 = vunpack.c.l.b16 %v8272
      %v8665 = vunpack.c.l.b16 %v8273
      %v8666 = vunpack.c.l.b16 %v8274
      %v8667 = vunpack.c.l.b16 %v8275
      %v8668 = vunpack.c.l.b16 %v8276
      %v8669 = vunpack.c.l.b16 %v8277
      %v8670 = vunpack.c.l.b16 %v8278
      %v8671 = vunpack.c.l.b16 %v8279
      %v8672 = vunpack.c.l.b16 %v8280
      %v8673 = vunpack.c.l.b16 %v8281
      %v8674 = vunpack.c.l.b16 %v8282
      %v8675 = vunpack.c.l.b16 %v8283
      %v8676 = vunpack.c.l.b16 %v8284
      %v8677 = vunpack.c.l.b16 %v8285
      %v8678 = vunpack.c.l.b16 %v8286
      %v8679 = vunpack.c.l.b16 %v8287
      %v8680 = vunpack.c.l.b16 %v8288
      %v8681 = vunpack.c.l.b16 %v8289
      %v8682 = vunpack.c.l.b16 %v8290
      %v8683 = vunpack.c.l.b16 %v8291
      %v8684 = vunpack.c.l.b16 %v8292
      %v8685 = vunpack.c.l.b16 %v8293
      %v8686 = vunpack.c.l.b16 %v8294
      %v8687 = vunpack.c.l.b16 %v8295
      %v8688 = vunpack.c.l.b16 %v8296
      %v8689 = vunpack.c.l.b16 %v8297
      %v8690 = vunpack.c.l.b16 %v8298
      %v8691 = vunpack.c.l.b16 %v8299
      %v8692 = vunpack.c.l.b16 %v8300
      %v8693 = vunpack.c.l.b16 %v8301
      %v8694 = vunpack.c.l.b16 %v8302
      %v8695 = vunpack.c.l.b16 %v8303
      %v8696 = vunpack.c.l.b16 %v8304
      %v8697 = vunpack.c.l.b16 %v8305
      %v8698 = vunpack.c.l.b16 %v8306
      %v8699 = vunpack.c.l.b16 %v8307
      %v8700 = vunpack.c.l.b16 %v8308
      %v8701 = vunpack.c.l.b16 %v8309
      %v8702 = vunpack.c.l.b16 %v8310
      %v8703 = vunpack.c.l.b16 %v8311
      %v8704 = vunpack.c.l.b16 %v8312
      %v8705 = vunpack.c.l.b16 %v8313
      %v8706 = vunpack.c.l.b16 %v8314
      %v8707 = vunpack.c.l.b16 %v8315
      %v8708 = vunpack.c.l.b16 %v8316
      %v8709 = vunpack.c.l.b16 %v8317
      %v8710 = vunpack.c.l.b16 %v8318
      %v8711 = vunpack.c.l.b16 %v8319
      %v8712 = vunpack.c.l.b16 %v8320
      %v8713 = vunpack.c.l.b16 %v8321
      %v8714 = vunpack.c.l.b16 %v8322
      %v8715 = vunpack.c.l.b16 %v8323
      %v8716 = vunpack.c.l.b16 %v8324
      %v8717 = vunpack.c.l.b16 %v8325
      %v8718 = vunpack.c.l.b16 %v8326
      %v8719 = vunpack.c.l.b16 %v8327
      %v8720 = vunpack.c.l.b16 %v8328
      %v8721 = vunpack.c.l.b16 %v8329
      %v8722 = vunpack.c.l.b16 %v8330
      %v8723 = vunpack.c.l.b16 %v8331
      %v8724 = vunpack.c.l.b16 %v8332
      %v8725 = vunpack.c.l.b16 %v8333
      %v8726 = vunpack.c.l.b16 %v8334
      %v8727 = vunpack.c.l.b16 %v8335
      %v8728 = vunpack.c.l.b16 %v8336
      %v8729 = vunpack.c.l.b16 %v8337
      %v8730 = vrot.slane %v8534, 5
      %v8731 = vrot.slane %v8535, 4
      %v8732 = vsel %vm3489, %v8731, %v8730
      %v8733 = vrot.slane %v8536, 3
      %v8734 = vsel %vm3492, %v8733, %v8732
      %v8735 = vrot.slane %v8537, 2
      %v8736 = vsel %vm3495, %v8735, %v8734
      %v8737 = vrot.slane %v8538, 1
      %v8738 = vsel %vm3498, %v8737, %v8736
      %v8739 = vsel %vm3501, %v8539, %v8738
      %v8740 = vrot.slane %v8540, 7
      %v8741 = vsel %vm3504, %v8740, %v8739
      %v8742 = vrot.slane %v8541, 6
      %v8743 = vsel %vm3507, %v8742, %v8741
      %v8744 = vrot.slane %v8542, 5
      %v8745 = vrot.slane %v8543, 4
      %v8746 = vsel %vm3489, %v8745, %v8744
      %v8747 = vrot.slane %v8544, 3
      %v8748 = vsel %vm3492, %v8747, %v8746
      %v8749 = vrot.slane %v8545, 2
      %v8750 = vsel %vm3495, %v8749, %v8748
      %v8751 = vrot.slane %v8546, 1
      %v8752 = vsel %vm3498, %v8751, %v8750
      %v8753 = vsel %vm3501, %v8547, %v8752
      %v8754 = vrot.slane %v8548, 7
      %v8755 = vsel %vm3504, %v8754, %v8753
      %v8756 = vrot.slane %v8549, 6
      %v8757 = vsel %vm3507, %v8756, %v8755
      %v8758 = vrot.slane %v8550, 5
      %v8759 = vrot.slane %v8551, 4
      %v8760 = vsel %vm3489, %v8759, %v8758
      %v8761 = vrot.slane %v8552, 3
      %v8762 = vsel %vm3492, %v8761, %v8760
      %v8763 = vrot.slane %v8553, 2
      %v8764 = vsel %vm3495, %v8763, %v8762
      %v8765 = vrot.slane %v8554, 1
      %v8766 = vsel %vm3498, %v8765, %v8764
      %v8767 = vsel %vm3501, %v8555, %v8766
      %v8768 = vrot.slane %v8556, 7
      %v8769 = vsel %vm3504, %v8768, %v8767
      %v8770 = vrot.slane %v8557, 6
      %v8771 = vsel %vm3507, %v8770, %v8769
      %v8772 = vrot.slane %v8558, 5
      %v8773 = vrot.slane %v8559, 4
      %v8774 = vsel %vm3489, %v8773, %v8772
      %v8775 = vrot.slane %v8560, 3
      %v8776 = vsel %vm3492, %v8775, %v8774
      %v8777 = vrot.slane %v8561, 2
      %v8778 = vsel %vm3495, %v8777, %v8776
      %v8779 = vrot.slane %v8562, 1
      %v8780 = vsel %vm3498, %v8779, %v8778
      %v8781 = vsel %vm3501, %v8563, %v8780
      %v8782 = vrot.slane %v8564, 7
      %v8783 = vsel %vm3504, %v8782, %v8781
      %v8784 = vrot.slane %v8565, 6
      %v8785 = vsel %vm3507, %v8784, %v8783
      %v8786 = vrot.slane %v8566, 5
      %v8787 = vrot.slane %v8567, 4
      %v8788 = vsel %vm3489, %v8787, %v8786
      %v8789 = vrot.slane %v8568, 3
      %v8790 = vsel %vm3492, %v8789, %v8788
      %v8791 = vrot.slane %v8569, 2
      %v8792 = vsel %vm3495, %v8791, %v8790
      %v8793 = vrot.slane %v8570, 1
      %v8794 = vsel %vm3498, %v8793, %v8792
      %v8795 = vsel %vm3501, %v8571, %v8794
      %v8796 = vrot.slane %v8572, 7
      %v8797 = vsel %vm3504, %v8796, %v8795
      %v8798 = vrot.slane %v8573, 6
      %v8799 = vsel %vm3507, %v8798, %v8797
      %v8800 = vrot.slane %v8574, 5
      %v8801 = vrot.slane %v8575, 4
      %v8802 = vsel %vm3489, %v8801, %v8800
      %v8803 = vrot.slane %v8576, 3
      %v8804 = vsel %vm3492, %v8803, %v8802
      %v8805 = vrot.slane %v8577, 2
      %v8806 = vsel %vm3495, %v8805, %v8804
      %v8807 = vrot.slane %v8578, 1
      %v8808 = vsel %vm3498, %v8807, %v8806
      %v8809 = vsel %vm3501, %v8579, %v8808
      %v8810 = vrot.slane %v8580, 7
      %v8811 = vsel %vm3504, %v8810, %v8809
      %v8812 = vrot.slane %v8581, 6
      %v8813 = vsel %vm3507, %v8812, %v8811
      %v8814 = vrot.slane %v8582, 5
      %v8815 = vrot.slane %v8583, 4
      %v8816 = vsel %vm3489, %v8815, %v8814
      %v8817 = vrot.slane %v8584, 3
      %v8818 = vsel %vm3492, %v8817, %v8816
      %v8819 = vrot.slane %v8585, 2
      %v8820 = vsel %vm3495, %v8819, %v8818
      %v8821 = vrot.slane %v8586, 1
      %v8822 = vsel %vm3498, %v8821, %v8820
      %v8823 = vsel %vm3501, %v8587, %v8822
      %v8824 = vrot.slane %v8588, 7
      %v8825 = vsel %vm3504, %v8824, %v8823
      %v8826 = vrot.slane %v8589, 6
      %v8827 = vsel %vm3507, %v8826, %v8825
      %v8828 = vrot.slane %v8590, 5
      %v8829 = vrot.slane %v8591, 4
      %v8830 = vsel %vm3489, %v8829, %v8828
      %v8831 = vrot.slane %v8592, 3
      %v8832 = vsel %vm3492, %v8831, %v8830
      %v8833 = vrot.slane %v8593, 2
      %v8834 = vsel %vm3495, %v8833, %v8832
      %v8835 = vrot.slane %v8594, 1
      %v8836 = vsel %vm3498, %v8835, %v8834
      %v8837 = vsel %vm3501, %v8595, %v8836
      %v8838 = vrot.slane %v8596, 7
      %v8839 = vsel %vm3504, %v8838, %v8837
      %v8840 = vrot.slane %v8597, 6
      %v8841 = vsel %vm3507, %v8840, %v8839
      %v8842 = vrot.slane %v8598, 5
      %v8843 = vrot.slane %v8599, 4
      %v8844 = vsel %vm3489, %v8843, %v8842
      %v8845 = vrot.slane %v8600, 3
      %v8846 = vsel %vm3492, %v8845, %v8844
      %v8847 = vrot.slane %v8601, 2
      %v8848 = vsel %vm3495, %v8847, %v8846
      %v8849 = vrot.slane %v8602, 1
      %v8850 = vsel %vm3498, %v8849, %v8848
      %v8851 = vsel %vm3501, %v8603, %v8850
      %v8852 = vrot.slane %v8604, 7
      %v8853 = vsel %vm3504, %v8852, %v8851
      %v8854 = vrot.slane %v8605, 6
      %v8855 = vsel %vm3507, %v8854, %v8853
      %v8856 = vrot.slane %v8606, 5
      %v8857 = vrot.slane %v8607, 4
      %v8858 = vsel %vm3489, %v8857, %v8856
      %v8859 = vrot.slane %v8608, 3
      %v8860 = vsel %vm3492, %v8859, %v8858
      %v8861 = vrot.slane %v8609, 2
      %v8862 = vsel %vm3495, %v8861, %v8860
      %v8863 = vrot.slane %v8610, 1
      %v8864 = vsel %vm3498, %v8863, %v8862
      %v8865 = vsel %vm3501, %v8611, %v8864
      %v8866 = vrot.slane %v8612, 7
      %v8867 = vsel %vm3504, %v8866, %v8865
      %v8868 = vrot.slane %v8613, 6
      %v8869 = vsel %vm3507, %v8868, %v8867
      %v8870 = vrot.slane %v8614, 5
      %v8871 = vrot.slane %v8615, 4
      %v8872 = vsel %vm3489, %v8871, %v8870
      %v8873 = vrot.slane %v8616, 3
      %v8874 = vsel %vm3492, %v8873, %v8872
      %v8875 = vrot.slane %v8617, 2
      %v8876 = vsel %vm3495, %v8875, %v8874
      %v8877 = vrot.slane %v8618, 1
      %v8878 = vsel %vm3498, %v8877, %v8876
      %v8879 = vsel %vm3501, %v8619, %v8878
      %v8880 = vrot.slane %v8620, 7
      %v8881 = vsel %vm3504, %v8880, %v8879
      %v8882 = vrot.slane %v8621, 6
      %v8883 = vsel %vm3507, %v8882, %v8881
      %v8884 = vrot.slane %v8622, 5
      %v8885 = vrot.slane %v8623, 4
      %v8886 = vsel %vm3489, %v8885, %v8884
      %v8887 = vrot.slane %v8624, 3
      %v8888 = vsel %vm3492, %v8887, %v8886
      %v8889 = vrot.slane %v8625, 2
      %v8890 = vsel %vm3495, %v8889, %v8888
      %v8891 = vrot.slane %v8626, 1
      %v8892 = vsel %vm3498, %v8891, %v8890
      %v8893 = vsel %vm3501, %v8627, %v8892
      %v8894 = vrot.slane %v8628, 7
      %v8895 = vsel %vm3504, %v8894, %v8893
      %v8896 = vrot.slane %v8629, 6
      %v8897 = vsel %vm3507, %v8896, %v8895
      %v8898 = vrot.slane %v8630, 5
      %v8899 = vrot.slane %v8631, 4
      %v8900 = vsel %vm3489, %v8899, %v8898
      %v8901 = vrot.slane %v8632, 3
      %v8902 = vsel %vm3492, %v8901, %v8900
      %v8903 = vrot.slane %v8633, 2
      %v8904 = vsel %vm3495, %v8903, %v8902
      %v8905 = vrot.slane %v8634, 1
      %v8906 = vsel %vm3498, %v8905, %v8904
      %v8907 = vsel %vm3501, %v8635, %v8906
      %v8908 = vrot.slane %v8636, 7
      %v8909 = vsel %vm3504, %v8908, %v8907
      %v8910 = vrot.slane %v8637, 6
      %v8911 = vsel %vm3507, %v8910, %v8909
      %v8912 = vrot.slane %v8638, 5
      %v8913 = vrot.slane %v8639, 4
      %v8914 = vsel %vm3489, %v8913, %v8912
      %v8915 = vrot.slane %v8640, 3
      %v8916 = vsel %vm3492, %v8915, %v8914
      %v8917 = vrot.slane %v8641, 2
      %v8918 = vsel %vm3495, %v8917, %v8916
      %v8919 = vrot.slane %v8642, 1
      %v8920 = vsel %vm3498, %v8919, %v8918
      %v8921 = vsel %vm3501, %v8643, %v8920
      %v8922 = vrot.slane %v8644, 7
      %v8923 = vsel %vm3504, %v8922, %v8921
      %v8924 = vrot.slane %v8645, 6
      %v8925 = vsel %vm3507, %v8924, %v8923
      %v8926 = vrot.slane %v8646, 5
      %v8927 = vrot.slane %v8647, 4
      %v8928 = vsel %vm3489, %v8927, %v8926
      %v8929 = vrot.slane %v8648, 3
      %v8930 = vsel %vm3492, %v8929, %v8928
      %v8931 = vrot.slane %v8649, 2
      %v8932 = vsel %vm3495, %v8931, %v8930
      %v8933 = vrot.slane %v8650, 1
      %v8934 = vsel %vm3498, %v8933, %v8932
      %v8935 = vsel %vm3501, %v8651, %v8934
      %v8936 = vrot.slane %v8652, 7
      %v8937 = vsel %vm3504, %v8936, %v8935
      %v8938 = vrot.slane %v8653, 6
      %v8939 = vsel %vm3507, %v8938, %v8937
      %v8940 = vrot.slane %v8654, 5
      %v8941 = vrot.slane %v8655, 4
      %v8942 = vsel %vm3489, %v8941, %v8940
      %v8943 = vrot.slane %v8656, 3
      %v8944 = vsel %vm3492, %v8943, %v8942
      %v8945 = vrot.slane %v8657, 2
      %v8946 = vsel %vm3495, %v8945, %v8944
      %v8947 = vrot.slane %v8658, 1
      %v8948 = vsel %vm3498, %v8947, %v8946
      %v8949 = vsel %vm3501, %v8659, %v8948
      %v8950 = vrot.slane %v8660, 7
      %v8951 = vsel %vm3504, %v8950, %v8949
      %v8952 = vrot.slane %v8661, 6
      %v8953 = vsel %vm3507, %v8952, %v8951
      %v8954 = vrot.slane %v8662, 5
      %v8955 = vrot.slane %v8663, 4
      %v8956 = vsel %vm3489, %v8955, %v8954
      %v8957 = vrot.slane %v8664, 3
      %v8958 = vsel %vm3492, %v8957, %v8956
      %v8959 = vrot.slane %v8665, 2
      %v8960 = vsel %vm3495, %v8959, %v8958
      %v8961 = vrot.slane %v8666, 1
      %v8962 = vsel %vm3498, %v8961, %v8960
      %v8963 = vsel %vm3501, %v8667, %v8962
      %v8964 = vrot.slane %v8668, 7
      %v8965 = vsel %vm3504, %v8964, %v8963
      %v8966 = vrot.slane %v8669, 6
      %v8967 = vsel %vm3507, %v8966, %v8965
      %v8968 = vrot.slane %v8670, 5
      %v8969 = vrot.slane %v8671, 4
      %v8970 = vsel %vm3489, %v8969, %v8968
      %v8971 = vrot.slane %v8672, 3
      %v8972 = vsel %vm3492, %v8971, %v8970
      %v8973 = vrot.slane %v8673, 2
      %v8974 = vsel %vm3495, %v8973, %v8972
      %v8975 = vrot.slane %v8674, 1
      %v8976 = vsel %vm3498, %v8975, %v8974
      %v8977 = vsel %vm3501, %v8675, %v8976
      %v8978 = vrot.slane %v8676, 7
      %v8979 = vsel %vm3504, %v8978, %v8977
      %v8980 = vrot.slane %v8677, 6
      %v8981 = vsel %vm3507, %v8980, %v8979
      %v8982 = vrot.slane %v8678, 5
      %v8983 = vrot.slane %v8679, 4
      %v8984 = vsel %vm3489, %v8983, %v8982
      %v8985 = vrot.slane %v8680, 3
      %v8986 = vsel %vm3492, %v8985, %v8984
      %v8987 = vrot.slane %v8681, 2
      %v8988 = vsel %vm3495, %v8987, %v8986
      %v8989 = vrot.slane %v8682, 1
      %v8990 = vsel %vm3498, %v8989, %v8988
      %v8991 = vsel %vm3501, %v8683, %v8990
      %v8992 = vrot.slane %v8684, 7
      %v8993 = vsel %vm3504, %v8992, %v8991
      %v8994 = vrot.slane %v8685, 6
      %v8995 = vsel %vm3507, %v8994, %v8993
      %v8996 = vrot.slane %v8686, 5
      %v8997 = vrot.slane %v8687, 4
      %v8998 = vsel %vm3489, %v8997, %v8996
      %v8999 = vrot.slane %v8688, 3
      %v9000 = vsel %vm3492, %v8999, %v8998
      %v9001 = vrot.slane %v8689, 2
      %v9002 = vsel %vm3495, %v9001, %v9000
      %v9003 = vrot.slane %v8690, 1
      %v9004 = vsel %vm3498, %v9003, %v9002
      %v9005 = vsel %vm3501, %v8691, %v9004
      %v9006 = vrot.slane %v8692, 7
      %v9007 = vsel %vm3504, %v9006, %v9005
      %v9008 = vrot.slane %v8693, 6
      %v9009 = vsel %vm3507, %v9008, %v9007
      %v9010 = vrot.slane %v8694, 5
      %v9011 = vrot.slane %v8695, 4
      %v9012 = vsel %vm3489, %v9011, %v9010
      %v9013 = vrot.slane %v8696, 3
      %v9014 = vsel %vm3492, %v9013, %v9012
      %v9015 = vrot.slane %v8697, 2
      %v9016 = vsel %vm3495, %v9015, %v9014
      %v9017 = vrot.slane %v8698, 1
      %v9018 = vsel %vm3498, %v9017, %v9016
      %v9019 = vsel %vm3501, %v8699, %v9018
      %v9020 = vrot.slane %v8700, 7
      %v9021 = vsel %vm3504, %v9020, %v9019
      %v9022 = vrot.slane %v8701, 6
      %v9023 = vsel %vm3507, %v9022, %v9021
      %v9024 = vrot.slane %v8702, 5
      %v9025 = vrot.slane %v8703, 4
      %v9026 = vsel %vm3489, %v9025, %v9024
      %v9027 = vrot.slane %v8704, 3
      %v9028 = vsel %vm3492, %v9027, %v9026
      %v9029 = vrot.slane %v8705, 2
      %v9030 = vsel %vm3495, %v9029, %v9028
      %v9031 = vrot.slane %v8706, 1
      %v9032 = vsel %vm3498, %v9031, %v9030
      %v9033 = vsel %vm3501, %v8707, %v9032
      %v9034 = vrot.slane %v8708, 7
      %v9035 = vsel %vm3504, %v9034, %v9033
      %v9036 = vrot.slane %v8709, 6
      %v9037 = vsel %vm3507, %v9036, %v9035
      %v9038 = vrot.slane %v8710, 5
      %v9039 = vrot.slane %v8711, 4
      %v9040 = vsel %vm3489, %v9039, %v9038
      %v9041 = vrot.slane %v8712, 3
      %v9042 = vsel %vm3492, %v9041, %v9040
      %v9043 = vrot.slane %v8713, 2
      %v9044 = vsel %vm3495, %v9043, %v9042
      %v9045 = vrot.slane %v8714, 1
      %v9046 = vsel %vm3498, %v9045, %v9044
      %v9047 = vsel %vm3501, %v8715, %v9046
      %v9048 = vrot.slane %v8716, 7
      %v9049 = vsel %vm3504, %v9048, %v9047
      %v9050 = vrot.slane %v8717, 6
      %v9051 = vsel %vm3507, %v9050, %v9049
      %v9052 = vrot.slane %v8718, 5
      %v9053 = vrot.slane %v8719, 4
      %v9054 = vsel %vm3489, %v9053, %v9052
      %v9055 = vrot.slane %v8720, 3
      %v9056 = vsel %vm3492, %v9055, %v9054
      %v9057 = vrot.slane %v8721, 2
      %v9058 = vsel %vm3495, %v9057, %v9056
      %v9059 = vrot.slane %v8722, 1
      %v9060 = vsel %vm3498, %v9059, %v9058
      %v9061 = vsel %vm3501, %v8723, %v9060
      %v9062 = vrot.slane %v8724, 7
      %v9063 = vsel %vm3504, %v9062, %v9061
      %v9064 = vrot.slane %v8725, 6
      %v9065 = vsel %vm3507, %v9064, %v9063
      %v9066 = vrot.slane %v8726, 5
      %v9067 = vrot.slane %v8727, 4
      %v9068 = vsel %vm3489, %v9067, %v9066
      %v9069 = vrot.slane %v8728, 3
      %v9070 = vsel %vm3492, %v9069, %v9068
      %v9071 = vrot.slane %v8729, 2
      %v9072 = vsel %vm3495, %v9071, %v9070
      %v9073 = vpack.c.b16 %v8743, %v8743
      %v9074 = vpack.c.b16 %v8757, %v8757
      %v9075 = vpack.c.b16 %v8771, %v8771
      %v9076 = vpack.c.b16 %v8785, %v8785
      %v9077 = vpack.c.b16 %v8799, %v8799
      %v9078 = vpack.c.b16 %v8813, %v8813
      %v9079 = vpack.c.b16 %v8827, %v8827
      %v9080 = vpack.c.b16 %v8841, %v8841
      %v9081 = vpack.c.b16 %v8855, %v8855
      %v9082 = vpack.c.b16 %v8869, %v8869
      %v9083 = vpack.c.b16 %v8883, %v8883
      %v9084 = vpack.c.b16 %v8897, %v8897
      %v9085 = vpack.c.b16 %v8911, %v8911
      %v9086 = vpack.c.b16 %v8925, %v8925
      %v9087 = vpack.c.b16 %v8939, %v8939
      %v9088 = vpack.c.b16 %v8953, %v8953
      %v9089 = vpack.c.b16 %v8967, %v8967
      %v9090 = vpack.c.b16 %v8981, %v8981
      %v9091 = vpack.c.b16 %v8995, %v8995
      %v9092 = vpack.c.b16 %v9009, %v9009
      %v9093 = vpack.c.b16 %v9023, %v9023
      %v9094 = vpack.c.b16 %v9037, %v9037
      %v9095 = vpack.c.b16 %v9051, %v9051
      %v9096 = vpack.c.b16 %v9065, %v9065
      %v9097 = vpack.c.b16 %v9072, %v9072
      %9098 = vrot.lane.b32.xlu0 %v9073, 40
      %v9099 = vpop.permute.xlu0 %9098
      %9100 = vrot.lane.b32.xlu0 %v9074, 40
      %v9101 = vpop.permute.xlu0 %9100
      %9102 = vrot.lane.b32.xlu0 %v9075, 40
      %v9103 = vpop.permute.xlu0 %9102
      %9104 = vrot.lane.b32.xlu0 %v9076, 40
      %v9105 = vpop.permute.xlu0 %9104
      %9106 = vrot.lane.b32.xlu0 %v9077, 40
      %v9107 = vpop.permute.xlu0 %9106
      %9108 = vrot.lane.b32.xlu0 %v9078, 40
      %v9109 = vpop.permute.xlu0 %9108
      %9110 = vrot.lane.b32.xlu0 %v9079, 40
      %v9111 = vpop.permute.xlu0 %9110
      %9112 = vrot.lane.b32.xlu0 %v9080, 40
      %v9113 = vpop.permute.xlu0 %9112
      %9114 = vrot.lane.b32.xlu0 %v9081, 40
      %v9115 = vpop.permute.xlu0 %9114
      %9116 = vrot.lane.b32.xlu0 %v9082, 40
      %v9117 = vpop.permute.xlu0 %9116
      %9118 = vrot.lane.b32.xlu0 %v9083, 40
      %v9119 = vpop.permute.xlu0 %9118
      %9120 = vrot.lane.b32.xlu0 %v9084, 40
      %v9121 = vpop.permute.xlu0 %9120
      %9122 = vrot.lane.b32.xlu0 %v9085, 40
      %v9123 = vpop.permute.xlu0 %9122
      %9124 = vrot.lane.b32.xlu0 %v9086, 40
      %v9125 = vpop.permute.xlu0 %9124
      %9126 = vrot.lane.b32.xlu0 %v9087, 40
      %v9127 = vpop.permute.xlu0 %9126
      %9128 = vrot.lane.b32.xlu0 %v9088, 40
      %v9129 = vpop.permute.xlu0 %9128
      %9130 = vrot.lane.b32.xlu0 %v9089, 40
      %v9131 = vpop.permute.xlu0 %9130
      %9132 = vrot.lane.b32.xlu0 %v9090, 40
      %v9133 = vpop.permute.xlu0 %9132
      %9134 = vrot.lane.b32.xlu0 %v9091, 40
      %v9135 = vpop.permute.xlu0 %9134
      %9136 = vrot.lane.b32.xlu0 %v9092, 40
      %v9137 = vpop.permute.xlu0 %9136
      %9138 = vrot.lane.b32.xlu0 %v9093, 40
      %v9139 = vpop.permute.xlu0 %9138
      %9140 = vrot.lane.b32.xlu0 %v9094, 40
      %v9141 = vpop.permute.xlu0 %9140
      %9142 = vrot.lane.b32.xlu0 %v9095, 40
      %v9143 = vpop.permute.xlu0 %9142
      %9144 = vrot.lane.b32.xlu0 %v9096, 40
      %v9145 = vpop.permute.xlu0 %9144
      %9146 = vrot.lane.b32.xlu0 %v9097, 40
      %v9147 = vpop.permute.xlu0 %9146
      %vm9173 = vcmask 388416
      %9174 = vst.msk [vmem:[#allocation3] sm:$0xf] %vm9173, %v9099
      %9175 = vst.msk [vmem:[#allocation3 + $0x4] sm:$0xf] %vm9173, %v9101
      %9176 = vst.msk [vmem:[#allocation3 + $0x8] sm:$0xf] %vm9173, %v9103
      %9177 = vst.msk [vmem:[#allocation3 + $0xc] sm:$0xf] %vm9173, %v9105
      %9178 = vst.msk [vmem:[#allocation3 + $0x10] sm:$0xf] %vm9173, %v9107
      %9179 = vst.msk [vmem:[#allocation3 + $0x14] sm:$0xf] %vm9173, %v9109
      %9180 = vst.msk [vmem:[#allocation3 + $0x18] sm:$0xf] %vm9173, %v9111
      %9181 = vst.msk [vmem:[#allocation3 + $0x1c] sm:$0xf] %vm9173, %v9113
      %9182 = vst.msk [vmem:[#allocation3 + $0x20] sm:$0xf] %vm9173, %v9115
      %9183 = vst.msk [vmem:[#allocation3 + $0x24] sm:$0xf] %vm9173, %v9117
      %9184 = vst.msk [vmem:[#allocation3 + $0x28] sm:$0xf] %vm9173, %v9119
      %9185 = vst.msk [vmem:[#allocation3 + $0x2c] sm:$0xf] %vm9173, %v9121
      %9186 = vst.msk [vmem:[#allocation3 + $0x30] sm:$0xf] %vm9173, %v9123
      %9187 = vst.msk [vmem:[#allocation3 + $0x34] sm:$0xf] %vm9173, %v9125
      %9188 = vst.msk [vmem:[#allocation3 + $0x38] sm:$0xf] %vm9173, %v9127
      %9189 = vst.msk [vmem:[#allocation3 + $0x3c] sm:$0xf] %vm9173, %v9129
      %9190 = vst.msk [vmem:[#allocation3 + $0x40] sm:$0xf] %vm9173, %v9131
      %9191 = vst.msk [vmem:[#allocation3 + $0x44] sm:$0xf] %vm9173, %v9133
      %9192 = vst.msk [vmem:[#allocation3 + $0x48] sm:$0xf] %vm9173, %v9135
      %9193 = vst.msk [vmem:[#allocation3 + $0x4c] sm:$0xf] %vm9173, %v9137
      %9194 = vst.msk [vmem:[#allocation3 + $0x50] sm:$0xf] %vm9173, %v9139
      %9195 = vst.msk [vmem:[#allocation3 + $0x54] sm:$0xf] %vm9173, %v9141
      %9196 = vst.msk [vmem:[#allocation3 + $0x58] sm:$0xf] %vm9173, %v9143
      %9197 = vst.msk [vmem:[#allocation3 + $0x5c] sm:$0xf] %vm9173, %v9145
      %vm9198 = vcmask 386368
      %9199 = vst.msk [vmem:[#allocation3 + $0x60] sm:$0x3] %vm9198, %v9147
      %v9200 = vld [vmem:[#allocation2] sm:$0x8]
      %v9201 = vld [vmem:[#allocation2 + $0x4] sm:$0x8]
      %v9202 = vld [vmem:[#allocation2 + $0x8] sm:$0x8]
      %v9203 = vld [vmem:[#allocation2 + $0xc] sm:$0x8]
      %v9204 = vld [vmem:[#allocation2 + $0x10] sm:$0x8]
      %v9205 = vld [vmem:[#allocation2 + $0x14] sm:$0x8]
      %v9206 = vld [vmem:[#allocation2 + $0x18] sm:$0x8]
      %v9207 = vld [vmem:[#allocation2 + $0x1c] sm:$0x8]
      %v9208 = vld [vmem:[#allocation2 + $0x20] sm:$0x8]
      %v9209 = vld [vmem:[#allocation2 + $0x24] sm:$0x8]
      %v9210 = vld [vmem:[#allocation2 + $0x28] sm:$0x8]
      %v9211 = vld [vmem:[#allocation2 + $0x2c] sm:$0x8]
      %v9212 = vld [vmem:[#allocation2 + $0x30] sm:$0x8]
      %v9213 = vld [vmem:[#allocation2 + $0x34] sm:$0x8]
      %v9214 = vld [vmem:[#allocation2 + $0x38] sm:$0x8]
      %v9215 = vld [vmem:[#allocation2 + $0x3c] sm:$0x8]
      %v9216 = vld [vmem:[#allocation2 + $0x40] sm:$0x8]
      %v9217 = vld [vmem:[#allocation2 + $0x44] sm:$0x8]
      %v9218 = vld [vmem:[#allocation2 + $0x48] sm:$0x8]
      %v9219 = vld [vmem:[#allocation2 + $0x4c] sm:$0x8]
      %v9220 = vld [vmem:[#allocation2 + $0x50] sm:$0x8]
      %v9221 = vld [vmem:[#allocation2 + $0x54] sm:$0x8]
      %v9222 = vld [vmem:[#allocation2 + $0x58] sm:$0x8]
      %v9223 = vld [vmem:[#allocation2 + $0x5c] sm:$0x8]
      %v9224 = vld [vmem:[#allocation2 + $0x60] sm:$0x8]
      %v9225 = vld [vmem:[#allocation2 + $0x64] sm:$0x8]
      %v9226 = vld [vmem:[#allocation2 + $0x68] sm:$0x8]
      %v9227 = vld [vmem:[#allocation2 + $0x6c] sm:$0x8]
      %v9228 = vld [vmem:[#allocation2 + $0x70] sm:$0x8]
      %v9229 = vld [vmem:[#allocation2 + $0x74] sm:$0x8]
      %v9230 = vld [vmem:[#allocation2 + $0x78] sm:$0x8]
      %v9231 = vld [vmem:[#allocation2 + $0x7c] sm:$0x8]
      %v9232 = vld [vmem:[#allocation2 + $0x80] sm:$0x8]
      %v9233 = vld [vmem:[#allocation2 + $0x84] sm:$0x8]
      %v9234 = vld [vmem:[#allocation2 + $0x88] sm:$0x8]
      %v9235 = vld [vmem:[#allocation2 + $0x8c] sm:$0x8]
      %v9236 = vld [vmem:[#allocation2 + $0x90] sm:$0x8]
      %v9237 = vld [vmem:[#allocation2 + $0x94] sm:$0x8]
      %v9238 = vld [vmem:[#allocation2 + $0x98] sm:$0x8]
      %v9239 = vld [vmem:[#allocation2 + $0x9c] sm:$0x8]
      %v9240 = vld [vmem:[#allocation2 + $0xa0] sm:$0x8]
      %v9241 = vld [vmem:[#allocation2 + $0xa4] sm:$0x8]
      %v9242 = vld [vmem:[#allocation2 + $0xa8] sm:$0x8]
      %v9243 = vld [vmem:[#allocation2 + $0xac] sm:$0x8]
      %v9244 = vld [vmem:[#allocation2 + $0xb0] sm:$0x8]
      %v9245 = vld [vmem:[#allocation2 + $0xb4] sm:$0x8]
      %v9246 = vld [vmem:[#allocation2 + $0xb8] sm:$0x8]
      %v9247 = vld [vmem:[#allocation2 + $0xbc] sm:$0x8]
      %v9248 = vld [vmem:[#allocation2 + $0xc0] sm:$0x8]
      %v9249 = vld [vmem:[#allocation2 + $0xc4] sm:$0x8]
      %v9250 = vld [vmem:[#allocation2 + $0xc8] sm:$0x8]
      %v9251 = vld [vmem:[#allocation2 + $0xcc] sm:$0x8]
      %v9252 = vld [vmem:[#allocation2 + $0xd0] sm:$0x8]
      %v9253 = vld [vmem:[#allocation2 + $0xd4] sm:$0x8]
      %v9254 = vld [vmem:[#allocation2 + $0xd8] sm:$0x8]
      %v9255 = vld [vmem:[#allocation2 + $0xdc] sm:$0x8]
      %v9256 = vld [vmem:[#allocation2 + $0xe0] sm:$0x8]
      %v9257 = vld [vmem:[#allocation2 + $0xe4] sm:$0x8]
      %v9258 = vld [vmem:[#allocation2 + $0xe8] sm:$0x8]
      %v9259 = vld [vmem:[#allocation2 + $0xec] sm:$0x8]
      %v9260 = vld [vmem:[#allocation2 + $0xf0] sm:$0x8]
      %v9261 = vld [vmem:[#allocation2 + $0xf4] sm:$0x8]
      %v9262 = vld [vmem:[#allocation2 + $0xf8] sm:$0x8]
      %v9263 = vld [vmem:[#allocation2 + $0xfc] sm:$0x8]
      %v9264 = vld [vmem:[#allocation2 + $0x100] sm:$0x8]
      %v9265 = vld [vmem:[#allocation2 + $0x104] sm:$0x8]
      %v9266 = vld [vmem:[#allocation2 + $0x108] sm:$0x8]
      %v9267 = vld [vmem:[#allocation2 + $0x10c] sm:$0x8]
      %v9268 = vld [vmem:[#allocation2 + $0x110] sm:$0x8]
      %v9269 = vld [vmem:[#allocation2 + $0x114] sm:$0x8]
      %v9270 = vld [vmem:[#allocation2 + $0x118] sm:$0x8]
      %v9271 = vld [vmem:[#allocation2 + $0x11c] sm:$0x8]
      %v9272 = vld [vmem:[#allocation2 + $0x120] sm:$0x8]
      %v9273 = vld [vmem:[#allocation2 + $0x124] sm:$0x8]
      %v9274 = vld [vmem:[#allocation2 + $0x128] sm:$0x8]
      %v9275 = vld [vmem:[#allocation2 + $0x12c] sm:$0x8]
      %v9276 = vld [vmem:[#allocation2 + $0x130] sm:$0x8]
      %v9277 = vld [vmem:[#allocation2 + $0x134] sm:$0x8]
      %v9278 = vld [vmem:[#allocation2 + $0x138] sm:$0x8]
      %v9279 = vld [vmem:[#allocation2 + $0x13c] sm:$0x8]
      %v9280 = vld [vmem:[#allocation2 + $0x140] sm:$0x8]
      %v9281 = vld [vmem:[#allocation2 + $0x144] sm:$0x8]
      %v9282 = vld [vmem:[#allocation2 + $0x148] sm:$0x8]
      %v9283 = vld [vmem:[#allocation2 + $0x14c] sm:$0x8]
      %v9284 = vld [vmem:[#allocation2 + $0x150] sm:$0x8]
      %v9285 = vld [vmem:[#allocation2 + $0x154] sm:$0x8]
      %v9286 = vld [vmem:[#allocation2 + $0x158] sm:$0x8]
      %v9287 = vld [vmem:[#allocation2 + $0x15c] sm:$0x8]
      %v9288 = vld [vmem:[#allocation2 + $0x160] sm:$0x8]
      %v9289 = vld [vmem:[#allocation2 + $0x164] sm:$0x8]
      %v9290 = vld [vmem:[#allocation2 + $0x168] sm:$0x8]
      %v9291 = vld [vmem:[#allocation2 + $0x16c] sm:$0x8]
      %v9292 = vld [vmem:[#allocation2 + $0x170] sm:$0x8]
      %v9293 = vld [vmem:[#allocation2 + $0x174] sm:$0x8]
      %v9294 = vld [vmem:[#allocation2 + $0x178] sm:$0x8]
      %v9295 = vld [vmem:[#allocation2 + $0x17c] sm:$0x8]
      %v9296 = vld [vmem:[#allocation2 + $0x180] sm:$0x8]
      %v9297 = vld [vmem:[#allocation2 + $0x184] sm:$0x8]
      %v9298 = vld [vmem:[#allocation2 + $0x188] sm:$0x8]
      %v9299 = vld [vmem:[#allocation2 + $0x18c] sm:$0x8]
      %v9300 = vld [vmem:[#allocation2 + $0x190] sm:$0x8]
      %v9301 = vld [vmem:[#allocation2 + $0x194] sm:$0x8]
      %v9302 = vld [vmem:[#allocation2 + $0x198] sm:$0x8]
      %v9303 = vld [vmem:[#allocation2 + $0x19c] sm:$0x8]
      %v9304 = vld [vmem:[#allocation2 + $0x1a0] sm:$0x8]
      %v9305 = vld [vmem:[#allocation2 + $0x1a4] sm:$0x8]
      %v9306 = vld [vmem:[#allocation2 + $0x1a8] sm:$0x8]
      %v9307 = vld [vmem:[#allocation2 + $0x1ac] sm:$0x8]
      %v9308 = vld [vmem:[#allocation2 + $0x1b0] sm:$0x8]
      %v9309 = vld [vmem:[#allocation2 + $0x1b4] sm:$0x8]
      %v9310 = vld [vmem:[#allocation2 + $0x1b8] sm:$0x8]
      %v9311 = vld [vmem:[#allocation2 + $0x1bc] sm:$0x8]
      %v9312 = vld [vmem:[#allocation2 + $0x1c0] sm:$0x8]
      %v9313 = vld [vmem:[#allocation2 + $0x1c4] sm:$0x8]
      %v9314 = vld [vmem:[#allocation2 + $0x1c8] sm:$0x8]
      %v9315 = vld [vmem:[#allocation2 + $0x1cc] sm:$0x8]
      %v9316 = vld [vmem:[#allocation2 + $0x1d0] sm:$0x8]
      %v9317 = vld [vmem:[#allocation2 + $0x1d4] sm:$0x8]
      %v9318 = vld [vmem:[#allocation2 + $0x1d8] sm:$0x8]
      %v9319 = vld [vmem:[#allocation2 + $0x1dc] sm:$0x8]
      %v9320 = vld [vmem:[#allocation2 + $0x1e0] sm:$0x8]
      %v9321 = vld [vmem:[#allocation2 + $0x1e4] sm:$0x8]
      %v9322 = vld [vmem:[#allocation2 + $0x1e8] sm:$0x8]
      %v9323 = vld [vmem:[#allocation2 + $0x1ec] sm:$0x8]
      %v9324 = vld [vmem:[#allocation2 + $0x1f0] sm:$0x8]
      %v9325 = vld [vmem:[#allocation2 + $0x1f4] sm:$0x8]
      %v9326 = vld [vmem:[#allocation2 + $0x1f8] sm:$0x8]
      %v9327 = vld [vmem:[#allocation2 + $0x1fc] sm:$0x8]
      %v9328 = vld [vmem:[#allocation2 + $0x200] sm:$0x8]
      %v9329 = vld [vmem:[#allocation2 + $0x204] sm:$0x8]
      %v9330 = vld [vmem:[#allocation2 + $0x208] sm:$0x8]
      %v9331 = vld [vmem:[#allocation2 + $0x20c] sm:$0x8]
      %v9332 = vld [vmem:[#allocation2 + $0x210] sm:$0x8]
      %v9333 = vld [vmem:[#allocation2 + $0x214] sm:$0x8]
      %v9334 = vld [vmem:[#allocation2 + $0x218] sm:$0x8]
      %v9335 = vld [vmem:[#allocation2 + $0x21c] sm:$0x8]
      %v9336 = vld [vmem:[#allocation2 + $0x220] sm:$0x8]
      %v9337 = vld [vmem:[#allocation2 + $0x224] sm:$0x8]
      %v9338 = vld [vmem:[#allocation2 + $0x228] sm:$0x8]
      %v9339 = vld [vmem:[#allocation2 + $0x22c] sm:$0x8]
      %v9340 = vld [vmem:[#allocation2 + $0x230] sm:$0x8]
      %v9341 = vld [vmem:[#allocation2 + $0x234] sm:$0x8]
      %v9342 = vld [vmem:[#allocation2 + $0x238] sm:$0x8]
      %v9343 = vld [vmem:[#allocation2 + $0x23c] sm:$0x8]
      %v9344 = vld [vmem:[#allocation2 + $0x240] sm:$0x8]
      %v9345 = vld [vmem:[#allocation2 + $0x244] sm:$0x8]
      %v9346 = vld [vmem:[#allocation2 + $0x248] sm:$0x8]
      %v9347 = vld [vmem:[#allocation2 + $0x24c] sm:$0x8]
      %v9348 = vld [vmem:[#allocation2 + $0x250] sm:$0x8]
      %v9349 = vld [vmem:[#allocation2 + $0x254] sm:$0x8]
      %v9350 = vld [vmem:[#allocation2 + $0x258] sm:$0x8]
      %v9351 = vld [vmem:[#allocation2 + $0x25c] sm:$0x8]
      %v9352 = vld [vmem:[#allocation2 + $0x260] sm:$0x8]
      %v9353 = vld [vmem:[#allocation2 + $0x264] sm:$0x8]
      %v9354 = vld [vmem:[#allocation2 + $0x268] sm:$0x8]
      %v9355 = vld [vmem:[#allocation2 + $0x26c] sm:$0x8]
      %v9356 = vld [vmem:[#allocation2 + $0x270] sm:$0x8]
      %v9357 = vld [vmem:[#allocation2 + $0x274] sm:$0x8]
      %v9358 = vld [vmem:[#allocation2 + $0x278] sm:$0x8]
      %v9359 = vld [vmem:[#allocation2 + $0x27c] sm:$0x8]
      %v9360 = vld [vmem:[#allocation2 + $0x280] sm:$0x8]
      %v9361 = vld [vmem:[#allocation2 + $0x284] sm:$0x8]
      %v9362 = vld [vmem:[#allocation2 + $0x288] sm:$0x8]
      %v9363 = vld [vmem:[#allocation2 + $0x28c] sm:$0x8]
      %v9364 = vld [vmem:[#allocation2 + $0x290] sm:$0x8]
      %v9365 = vld [vmem:[#allocation2 + $0x294] sm:$0x8]
      %v9366 = vld [vmem:[#allocation2 + $0x298] sm:$0x8]
      %v9367 = vld [vmem:[#allocation2 + $0x29c] sm:$0x8]
      %v9368 = vld [vmem:[#allocation2 + $0x2a0] sm:$0x8]
      %v9369 = vld [vmem:[#allocation2 + $0x2a4] sm:$0x8]
      %v9370 = vld [vmem:[#allocation2 + $0x2a8] sm:$0x8]
      %v9371 = vld [vmem:[#allocation2 + $0x2ac] sm:$0x8]
      %v9372 = vld [vmem:[#allocation2 + $0x2b0] sm:$0x8]
      %v9373 = vld [vmem:[#allocation2 + $0x2b4] sm:$0x8]
      %v9374 = vld [vmem:[#allocation2 + $0x2b8] sm:$0x8]
      %v9375 = vld [vmem:[#allocation2 + $0x2bc] sm:$0x8]
      %v9376 = vld [vmem:[#allocation2 + $0x2c0] sm:$0x8]
      %v9377 = vld [vmem:[#allocation2 + $0x2c4] sm:$0x8]
      %v9378 = vld [vmem:[#allocation2 + $0x2c8] sm:$0x8]
      %v9379 = vld [vmem:[#allocation2 + $0x2cc] sm:$0x8]
      %v9380 = vld [vmem:[#allocation2 + $0x2d0] sm:$0x8]
      %v9381 = vld [vmem:[#allocation2 + $0x2d4] sm:$0x8]
      %v9382 = vld [vmem:[#allocation2 + $0x2d8] sm:$0x8]
      %v9383 = vld [vmem:[#allocation2 + $0x2dc] sm:$0x8]
      %v9384 = vld [vmem:[#allocation2 + $0x2e0] sm:$0x8]
      %v9385 = vld [vmem:[#allocation2 + $0x2e4] sm:$0x8]
      %v9386 = vld [vmem:[#allocation2 + $0x2e8] sm:$0x8]
      %v9387 = vld [vmem:[#allocation2 + $0x2ec] sm:$0x8]
      %v9388 = vld [vmem:[#allocation2 + $0x2f0] sm:$0x8]
      %v9389 = vld [vmem:[#allocation2 + $0x2f4] sm:$0x8]
      %v9390 = vld [vmem:[#allocation2 + $0x2f8] sm:$0x8]
      %v9391 = vld [vmem:[#allocation2 + $0x2fc] sm:$0x8]
      %v9392 = vld [vmem:[#allocation2 + $0x300] sm:$0x8]
      %v9393 = vld [vmem:[#allocation2 + $0x304] sm:$0x8]
      %v9394 = vld [vmem:[#allocation2 + $0x308] sm:$0x8]
      %v9395 = vld [vmem:[#allocation2 + $0x30c] sm:$0x8]
      %v9592 = vunpack.c.l.b16 %v9200
      %v9593 = vunpack.c.l.b16 %v9201
      %v9594 = vunpack.c.l.b16 %v9202
      %v9595 = vunpack.c.l.b16 %v9203
      %v9596 = vunpack.c.l.b16 %v9204
      %v9597 = vunpack.c.l.b16 %v9205
      %v9598 = vunpack.c.l.b16 %v9206
      %v9599 = vunpack.c.l.b16 %v9207
      %v9600 = vunpack.c.l.b16 %v9208
      %v9601 = vunpack.c.l.b16 %v9209
      %v9602 = vunpack.c.l.b16 %v9210
      %v9603 = vunpack.c.l.b16 %v9211
      %v9604 = vunpack.c.l.b16 %v9212
      %v9605 = vunpack.c.l.b16 %v9213
      %v9606 = vunpack.c.l.b16 %v9214
      %v9607 = vunpack.c.l.b16 %v9215
      %v9608 = vunpack.c.l.b16 %v9216
      %v9609 = vunpack.c.l.b16 %v9217
      %v9610 = vunpack.c.l.b16 %v9218
      %v9611 = vunpack.c.l.b16 %v9219
      %v9612 = vunpack.c.l.b16 %v9220
      %v9613 = vunpack.c.l.b16 %v9221
      %v9614 = vunpack.c.l.b16 %v9222
      %v9615 = vunpack.c.l.b16 %v9223
      %v9616 = vunpack.c.l.b16 %v9224
      %v9617 = vunpack.c.l.b16 %v9225
      %v9618 = vunpack.c.l.b16 %v9226
      %v9619 = vunpack.c.l.b16 %v9227
      %v9620 = vunpack.c.l.b16 %v9228
      %v9621 = vunpack.c.l.b16 %v9229
      %v9622 = vunpack.c.l.b16 %v9230
      %v9623 = vunpack.c.l.b16 %v9231
      %v9624 = vunpack.c.l.b16 %v9232
      %v9625 = vunpack.c.l.b16 %v9233
      %v9626 = vunpack.c.l.b16 %v9234
      %v9627 = vunpack.c.l.b16 %v9235
      %v9628 = vunpack.c.l.b16 %v9236
      %v9629 = vunpack.c.l.b16 %v9237
      %v9630 = vunpack.c.l.b16 %v9238
      %v9631 = vunpack.c.l.b16 %v9239
      %v9632 = vunpack.c.l.b16 %v9240
      %v9633 = vunpack.c.l.b16 %v9241
      %v9634 = vunpack.c.l.b16 %v9242
      %v9635 = vunpack.c.l.b16 %v9243
      %v9636 = vunpack.c.l.b16 %v9244
      %v9637 = vunpack.c.l.b16 %v9245
      %v9638 = vunpack.c.l.b16 %v9246
      %v9639 = vunpack.c.l.b16 %v9247
      %v9640 = vunpack.c.l.b16 %v9248
      %v9641 = vunpack.c.l.b16 %v9249
      %v9642 = vunpack.c.l.b16 %v9250
      %v9643 = vunpack.c.l.b16 %v9251
      %v9644 = vunpack.c.l.b16 %v9252
      %v9645 = vunpack.c.l.b16 %v9253
      %v9646 = vunpack.c.l.b16 %v9254
      %v9647 = vunpack.c.l.b16 %v9255
      %v9648 = vunpack.c.l.b16 %v9256
      %v9649 = vunpack.c.l.b16 %v9257
      %v9650 = vunpack.c.l.b16 %v9258
      %v9651 = vunpack.c.l.b16 %v9259
      %v9652 = vunpack.c.l.b16 %v9260
      %v9653 = vunpack.c.l.b16 %v9261
      %v9654 = vunpack.c.l.b16 %v9262
      %v9655 = vunpack.c.l.b16 %v9263
      %v9656 = vunpack.c.l.b16 %v9264
      %v9657 = vunpack.c.l.b16 %v9265
      %v9658 = vunpack.c.l.b16 %v9266
      %v9659 = vunpack.c.l.b16 %v9267
      %v9660 = vunpack.c.l.b16 %v9268
      %v9661 = vunpack.c.l.b16 %v9269
      %v9662 = vunpack.c.l.b16 %v9270
      %v9663 = vunpack.c.l.b16 %v9271
      %v9664 = vunpack.c.l.b16 %v9272
      %v9665 = vunpack.c.l.b16 %v9273
      %v9666 = vunpack.c.l.b16 %v9274
      %v9667 = vunpack.c.l.b16 %v9275
      %v9668 = vunpack.c.l.b16 %v9276
      %v9669 = vunpack.c.l.b16 %v9277
      %v9670 = vunpack.c.l.b16 %v9278
      %v9671 = vunpack.c.l.b16 %v9279
      %v9672 = vunpack.c.l.b16 %v9280
      %v9673 = vunpack.c.l.b16 %v9281
      %v9674 = vunpack.c.l.b16 %v9282
      %v9675 = vunpack.c.l.b16 %v9283
      %v9676 = vunpack.c.l.b16 %v9284
      %v9677 = vunpack.c.l.b16 %v9285
      %v9678 = vunpack.c.l.b16 %v9286
      %v9679 = vunpack.c.l.b16 %v9287
      %v9680 = vunpack.c.l.b16 %v9288
      %v9681 = vunpack.c.l.b16 %v9289
      %v9682 = vunpack.c.l.b16 %v9290
      %v9683 = vunpack.c.l.b16 %v9291
      %v9684 = vunpack.c.l.b16 %v9292
      %v9685 = vunpack.c.l.b16 %v9293
      %v9686 = vunpack.c.l.b16 %v9294
      %v9687 = vunpack.c.l.b16 %v9295
      %v9688 = vunpack.c.l.b16 %v9296
      %v9689 = vunpack.c.l.b16 %v9297
      %v9690 = vunpack.c.l.b16 %v9298
      %v9691 = vunpack.c.l.b16 %v9299
      %v9692 = vunpack.c.l.b16 %v9300
      %v9693 = vunpack.c.l.b16 %v9301
      %v9694 = vunpack.c.l.b16 %v9302
      %v9695 = vunpack.c.l.b16 %v9303
      %v9696 = vunpack.c.l.b16 %v9304
      %v9697 = vunpack.c.l.b16 %v9305
      %v9698 = vunpack.c.l.b16 %v9306
      %v9699 = vunpack.c.l.b16 %v9307
      %v9700 = vunpack.c.l.b16 %v9308
      %v9701 = vunpack.c.l.b16 %v9309
      %v9702 = vunpack.c.l.b16 %v9310
      %v9703 = vunpack.c.l.b16 %v9311
      %v9704 = vunpack.c.l.b16 %v9312
      %v9705 = vunpack.c.l.b16 %v9313
      %v9706 = vunpack.c.l.b16 %v9314
      %v9707 = vunpack.c.l.b16 %v9315
      %v9708 = vunpack.c.l.b16 %v9316
      %v9709 = vunpack.c.l.b16 %v9317
      %v9710 = vunpack.c.l.b16 %v9318
      %v9711 = vunpack.c.l.b16 %v9319
      %v9712 = vunpack.c.l.b16 %v9320
      %v9713 = vunpack.c.l.b16 %v9321
      %v9714 = vunpack.c.l.b16 %v9322
      %v9715 = vunpack.c.l.b16 %v9323
      %v9716 = vunpack.c.l.b16 %v9324
      %v9717 = vunpack.c.l.b16 %v9325
      %v9718 = vunpack.c.l.b16 %v9326
      %v9719 = vunpack.c.l.b16 %v9327
      %v9720 = vunpack.c.l.b16 %v9328
      %v9721 = vunpack.c.l.b16 %v9329
      %v9722 = vunpack.c.l.b16 %v9330
      %v9723 = vunpack.c.l.b16 %v9331
      %v9724 = vunpack.c.l.b16 %v9332
      %v9725 = vunpack.c.l.b16 %v9333
      %v9726 = vunpack.c.l.b16 %v9334
      %v9727 = vunpack.c.l.b16 %v9335
      %v9728 = vunpack.c.l.b16 %v9336
      %v9729 = vunpack.c.l.b16 %v9337
      %v9730 = vunpack.c.l.b16 %v9338
      %v9731 = vunpack.c.l.b16 %v9339
      %v9732 = vunpack.c.l.b16 %v9340
      %v9733 = vunpack.c.l.b16 %v9341
      %v9734 = vunpack.c.l.b16 %v9342
      %v9735 = vunpack.c.l.b16 %v9343
      %v9736 = vunpack.c.l.b16 %v9344
      %v9737 = vunpack.c.l.b16 %v9345
      %v9738 = vunpack.c.l.b16 %v9346
      %v9739 = vunpack.c.l.b16 %v9347
      %v9740 = vunpack.c.l.b16 %v9348
      %v9741 = vunpack.c.l.b16 %v9349
      %v9742 = vunpack.c.l.b16 %v9350
      %v9743 = vunpack.c.l.b16 %v9351
      %v9744 = vunpack.c.l.b16 %v9352
      %v9745 = vunpack.c.l.b16 %v9353
      %v9746 = vunpack.c.l.b16 %v9354
      %v9747 = vunpack.c.l.b16 %v9355
      %v9748 = vunpack.c.l.b16 %v9356
      %v9749 = vunpack.c.l.b16 %v9357
      %v9750 = vunpack.c.l.b16 %v9358
      %v9751 = vunpack.c.l.b16 %v9359
      %v9752 = vunpack.c.l.b16 %v9360
      %v9753 = vunpack.c.l.b16 %v9361
      %v9754 = vunpack.c.l.b16 %v9362
      %v9755 = vunpack.c.l.b16 %v9363
      %v9756 = vunpack.c.l.b16 %v9364
      %v9757 = vunpack.c.l.b16 %v9365
      %v9758 = vunpack.c.l.b16 %v9366
      %v9759 = vunpack.c.l.b16 %v9367
      %v9760 = vunpack.c.l.b16 %v9368
      %v9761 = vunpack.c.l.b16 %v9369
      %v9762 = vunpack.c.l.b16 %v9370
      %v9763 = vunpack.c.l.b16 %v9371
      %v9764 = vunpack.c.l.b16 %v9372
      %v9765 = vunpack.c.l.b16 %v9373
      %v9766 = vunpack.c.l.b16 %v9374
      %v9767 = vunpack.c.l.b16 %v9375
      %v9768 = vunpack.c.l.b16 %v9376
      %v9769 = vunpack.c.l.b16 %v9377
      %v9770 = vunpack.c.l.b16 %v9378
      %v9771 = vunpack.c.l.b16 %v9379
      %v9772 = vunpack.c.l.b16 %v9380
      %v9773 = vunpack.c.l.b16 %v9381
      %v9774 = vunpack.c.l.b16 %v9382
      %v9775 = vunpack.c.l.b16 %v9383
      %v9776 = vunpack.c.l.b16 %v9384
      %v9777 = vunpack.c.l.b16 %v9385
      %v9778 = vunpack.c.l.b16 %v9386
      %v9779 = vunpack.c.l.b16 %v9387
      %v9780 = vunpack.c.l.b16 %v9388
      %v9781 = vunpack.c.l.b16 %v9389
      %v9782 = vunpack.c.l.b16 %v9390
      %v9783 = vunpack.c.l.b16 %v9391
      %v9784 = vunpack.c.l.b16 %v9392
      %v9785 = vunpack.c.l.b16 %v9393
      %v9786 = vunpack.c.l.b16 %v9394
      %v9787 = vunpack.c.l.b16 %v9395
      %v9788 = vrot.slane %v9592, 6
      %v9789 = vrot.slane %v9593, 5
      %v9790 = vsel %vm3489, %v9789, %v9788
      %v9791 = vrot.slane %v9594, 4
      %v9792 = vsel %vm3492, %v9791, %v9790
      %v9793 = vrot.slane %v9595, 3
      %v9794 = vsel %vm3495, %v9793, %v9792
      %v9795 = vrot.slane %v9596, 2
      %v9796 = vsel %vm3498, %v9795, %v9794
      %v9797 = vrot.slane %v9597, 1
      %v9798 = vsel %vm3501, %v9797, %v9796
      %v9799 = vsel %vm3504, %v9598, %v9798
      %v9800 = vrot.slane %v9599, 7
      %v9801 = vsel %vm3507, %v9800, %v9799
      %v9802 = vrot.slane %v9600, 6
      %v9803 = vrot.slane %v9601, 5
      %v9804 = vsel %vm3489, %v9803, %v9802
      %v9805 = vrot.slane %v9602, 4
      %v9806 = vsel %vm3492, %v9805, %v9804
      %v9807 = vrot.slane %v9603, 3
      %v9808 = vsel %vm3495, %v9807, %v9806
      %v9809 = vrot.slane %v9604, 2
      %v9810 = vsel %vm3498, %v9809, %v9808
      %v9811 = vrot.slane %v9605, 1
      %v9812 = vsel %vm3501, %v9811, %v9810
      %v9813 = vsel %vm3504, %v9606, %v9812
      %v9814 = vrot.slane %v9607, 7
      %v9815 = vsel %vm3507, %v9814, %v9813
      %v9816 = vrot.slane %v9608, 6
      %v9817 = vrot.slane %v9609, 5
      %v9818 = vsel %vm3489, %v9817, %v9816
      %v9819 = vrot.slane %v9610, 4
      %v9820 = vsel %vm3492, %v9819, %v9818
      %v9821 = vrot.slane %v9611, 3
      %v9822 = vsel %vm3495, %v9821, %v9820
      %v9823 = vrot.slane %v9612, 2
      %v9824 = vsel %vm3498, %v9823, %v9822
      %v9825 = vrot.slane %v9613, 1
      %v9826 = vsel %vm3501, %v9825, %v9824
      %v9827 = vsel %vm3504, %v9614, %v9826
      %v9828 = vrot.slane %v9615, 7
      %v9829 = vsel %vm3507, %v9828, %v9827
      %v9830 = vrot.slane %v9616, 6
      %v9831 = vrot.slane %v9617, 5
      %v9832 = vsel %vm3489, %v9831, %v9830
      %v9833 = vrot.slane %v9618, 4
      %v9834 = vsel %vm3492, %v9833, %v9832
      %v9835 = vrot.slane %v9619, 3
      %v9836 = vsel %vm3495, %v9835, %v9834
      %v9837 = vrot.slane %v9620, 2
      %v9838 = vsel %vm3498, %v9837, %v9836
      %v9839 = vrot.slane %v9621, 1
      %v9840 = vsel %vm3501, %v9839, %v9838
      %v9841 = vsel %vm3504, %v9622, %v9840
      %v9842 = vrot.slane %v9623, 7
      %v9843 = vsel %vm3507, %v9842, %v9841
      %v9844 = vrot.slane %v9624, 6
      %v9845 = vrot.slane %v9625, 5
      %v9846 = vsel %vm3489, %v9845, %v9844
      %v9847 = vrot.slane %v9626, 4
      %v9848 = vsel %vm3492, %v9847, %v9846
      %v9849 = vrot.slane %v9627, 3
      %v9850 = vsel %vm3495, %v9849, %v9848
      %v9851 = vrot.slane %v9628, 2
      %v9852 = vsel %vm3498, %v9851, %v9850
      %v9853 = vrot.slane %v9629, 1
      %v9854 = vsel %vm3501, %v9853, %v9852
      %v9855 = vsel %vm3504, %v9630, %v9854
      %v9856 = vrot.slane %v9631, 7
      %v9857 = vsel %vm3507, %v9856, %v9855
      %v9858 = vrot.slane %v9632, 6
      %v9859 = vrot.slane %v9633, 5
      %v9860 = vsel %vm3489, %v9859, %v9858
      %v9861 = vrot.slane %v9634, 4
      %v9862 = vsel %vm3492, %v9861, %v9860
      %v9863 = vrot.slane %v9635, 3
      %v9864 = vsel %vm3495, %v9863, %v9862
      %v9865 = vrot.slane %v9636, 2
      %v9866 = vsel %vm3498, %v9865, %v9864
      %v9867 = vrot.slane %v9637, 1
      %v9868 = vsel %vm3501, %v9867, %v9866
      %v9869 = vsel %vm3504, %v9638, %v9868
      %v9870 = vrot.slane %v9639, 7
      %v9871 = vsel %vm3507, %v9870, %v9869
      %v9872 = vrot.slane %v9640, 6
      %v9873 = vrot.slane %v9641, 5
      %v9874 = vsel %vm3489, %v9873, %v9872
      %v9875 = vrot.slane %v9642, 4
      %v9876 = vsel %vm3492, %v9875, %v9874
      %v9877 = vrot.slane %v9643, 3
      %v9878 = vsel %vm3495, %v9877, %v9876
      %v9879 = vrot.slane %v9644, 2
      %v9880 = vsel %vm3498, %v9879, %v9878
      %v9881 = vrot.slane %v9645, 1
      %v9882 = vsel %vm3501, %v9881, %v9880
      %v9883 = vsel %vm3504, %v9646, %v9882
      %v9884 = vrot.slane %v9647, 7
      %v9885 = vsel %vm3507, %v9884, %v9883
      %v9886 = vrot.slane %v9648, 6
      %v9887 = vrot.slane %v9649, 5
      %v9888 = vsel %vm3489, %v9887, %v9886
      %v9889 = vrot.slane %v9650, 4
      %v9890 = vsel %vm3492, %v9889, %v9888
      %v9891 = vrot.slane %v9651, 3
      %v9892 = vsel %vm3495, %v9891, %v9890
      %v9893 = vrot.slane %v9652, 2
      %v9894 = vsel %vm3498, %v9893, %v9892
      %v9895 = vrot.slane %v9653, 1
      %v9896 = vsel %vm3501, %v9895, %v9894
      %v9897 = vsel %vm3504, %v9654, %v9896
      %v9898 = vrot.slane %v9655, 7
      %v9899 = vsel %vm3507, %v9898, %v9897
      %v9900 = vrot.slane %v9656, 6
      %v9901 = vrot.slane %v9657, 5
      %v9902 = vsel %vm3489, %v9901, %v9900
      %v9903 = vrot.slane %v9658, 4
      %v9904 = vsel %vm3492, %v9903, %v9902
      %v9905 = vrot.slane %v9659, 3
      %v9906 = vsel %vm3495, %v9905, %v9904
      %v9907 = vrot.slane %v9660, 2
      %v9908 = vsel %vm3498, %v9907, %v9906
      %v9909 = vrot.slane %v9661, 1
      %v9910 = vsel %vm3501, %v9909, %v9908
      %v9911 = vsel %vm3504, %v9662, %v9910
      %v9912 = vrot.slane %v9663, 7
      %v9913 = vsel %vm3507, %v9912, %v9911
      %v9914 = vrot.slane %v9664, 6
      %v9915 = vrot.slane %v9665, 5
      %v9916 = vsel %vm3489, %v9915, %v9914
      %v9917 = vrot.slane %v9666, 4
      %v9918 = vsel %vm3492, %v9917, %v9916
      %v9919 = vrot.slane %v9667, 3
      %v9920 = vsel %vm3495, %v9919, %v9918
      %v9921 = vrot.slane %v9668, 2
      %v9922 = vsel %vm3498, %v9921, %v9920
      %v9923 = vrot.slane %v9669, 1
      %v9924 = vsel %vm3501, %v9923, %v9922
      %v9925 = vsel %vm3504, %v9670, %v9924
      %v9926 = vrot.slane %v9671, 7
      %v9927 = vsel %vm3507, %v9926, %v9925
      %v9928 = vrot.slane %v9672, 6
      %v9929 = vrot.slane %v9673, 5
      %v9930 = vsel %vm3489, %v9929, %v9928
      %v9931 = vrot.slane %v9674, 4
      %v9932 = vsel %vm3492, %v9931, %v9930
      %v9933 = vrot.slane %v9675, 3
      %v9934 = vsel %vm3495, %v9933, %v9932
      %v9935 = vrot.slane %v9676, 2
      %v9936 = vsel %vm3498, %v9935, %v9934
      %v9937 = vrot.slane %v9677, 1
      %v9938 = vsel %vm3501, %v9937, %v9936
      %v9939 = vsel %vm3504, %v9678, %v9938
      %v9940 = vrot.slane %v9679, 7
      %v9941 = vsel %vm3507, %v9940, %v9939
      %v9942 = vrot.slane %v9680, 6
      %v9943 = vrot.slane %v9681, 5
      %v9944 = vsel %vm3489, %v9943, %v9942
      %v9945 = vrot.slane %v9682, 4
      %v9946 = vsel %vm3492, %v9945, %v9944
      %v9947 = vrot.slane %v9683, 3
      %v9948 = vsel %vm3495, %v9947, %v9946
      %v9949 = vrot.slane %v9684, 2
      %v9950 = vsel %vm3498, %v9949, %v9948
      %v9951 = vrot.slane %v9685, 1
      %v9952 = vsel %vm3501, %v9951, %v9950
      %v9953 = vsel %vm3504, %v9686, %v9952
      %v9954 = vrot.slane %v9687, 7
      %v9955 = vsel %vm3507, %v9954, %v9953
      %v9956 = vrot.slane %v9688, 6
      %v9957 = vrot.slane %v9689, 5
      %v9958 = vsel %vm3489, %v9957, %v9956
      %v9959 = vrot.slane %v9690, 4
      %v9960 = vsel %vm3492, %v9959, %v9958
      %v9961 = vrot.slane %v9691, 3
      %v9962 = vsel %vm3495, %v9961, %v9960
      %v9963 = vrot.slane %v9692, 2
      %v9964 = vsel %vm3498, %v9963, %v9962
      %v9965 = vrot.slane %v9693, 1
      %v9966 = vsel %vm3501, %v9965, %v9964
      %v9967 = vsel %vm3504, %v9694, %v9966
      %v9968 = vrot.slane %v9695, 7
      %v9969 = vsel %vm3507, %v9968, %v9967
      %v9970 = vrot.slane %v9696, 6
      %v9971 = vrot.slane %v9697, 5
      %v9972 = vsel %vm3489, %v9971, %v9970
      %v9973 = vrot.slane %v9698, 4
      %v9974 = vsel %vm3492, %v9973, %v9972
      %v9975 = vrot.slane %v9699, 3
      %v9976 = vsel %vm3495, %v9975, %v9974
      %v9977 = vrot.slane %v9700, 2
      %v9978 = vsel %vm3498, %v9977, %v9976
      %v9979 = vrot.slane %v9701, 1
      %v9980 = vsel %vm3501, %v9979, %v9978
      %v9981 = vsel %vm3504, %v9702, %v9980
      %v9982 = vrot.slane %v9703, 7
      %v9983 = vsel %vm3507, %v9982, %v9981
      %v9984 = vrot.slane %v9704, 6
      %v9985 = vrot.slane %v9705, 5
      %v9986 = vsel %vm3489, %v9985, %v9984
      %v9987 = vrot.slane %v9706, 4
      %v9988 = vsel %vm3492, %v9987, %v9986
      %v9989 = vrot.slane %v9707, 3
      %v9990 = vsel %vm3495, %v9989, %v9988
      %v9991 = vrot.slane %v9708, 2
      %v9992 = vsel %vm3498, %v9991, %v9990
      %v9993 = vrot.slane %v9709, 1
      %v9994 = vsel %vm3501, %v9993, %v9992
      %v9995 = vsel %vm3504, %v9710, %v9994
      %v9996 = vrot.slane %v9711, 7
      %v9997 = vsel %vm3507, %v9996, %v9995
      %v9998 = vrot.slane %v9712, 6
      %v9999 = vrot.slane %v9713, 5
      %v10000 = vsel %vm3489, %v9999, %v9998
      %v10001 = vrot.slane %v9714, 4
      %v10002 = vsel %vm3492, %v10001, %v10000
      %v10003 = vrot.slane %v9715, 3
      %v10004 = vsel %vm3495, %v10003, %v10002
      %v10005 = vrot.slane %v9716, 2
      %v10006 = vsel %vm3498, %v10005, %v10004
      %v10007 = vrot.slane %v9717, 1
      %v10008 = vsel %vm3501, %v10007, %v10006
      %v10009 = vsel %vm3504, %v9718, %v10008
      %v10010 = vrot.slane %v9719, 7
      %v10011 = vsel %vm3507, %v10010, %v10009
      %v10012 = vrot.slane %v9720, 6
      %v10013 = vrot.slane %v9721, 5
      %v10014 = vsel %vm3489, %v10013, %v10012
      %v10015 = vrot.slane %v9722, 4
      %v10016 = vsel %vm3492, %v10015, %v10014
      %v10017 = vrot.slane %v9723, 3
      %v10018 = vsel %vm3495, %v10017, %v10016
      %v10019 = vrot.slane %v9724, 2
      %v10020 = vsel %vm3498, %v10019, %v10018
      %v10021 = vrot.slane %v9725, 1
      %v10022 = vsel %vm3501, %v10021, %v10020
      %v10023 = vsel %vm3504, %v9726, %v10022
      %v10024 = vrot.slane %v9727, 7
      %v10025 = vsel %vm3507, %v10024, %v10023
      %v10026 = vrot.slane %v9728, 6
      %v10027 = vrot.slane %v9729, 5
      %v10028 = vsel %vm3489, %v10027, %v10026
      %v10029 = vrot.slane %v9730, 4
      %v10030 = vsel %vm3492, %v10029, %v10028
      %v10031 = vrot.slane %v9731, 3
      %v10032 = vsel %vm3495, %v10031, %v10030
      %v10033 = vrot.slane %v9732, 2
      %v10034 = vsel %vm3498, %v10033, %v10032
      %v10035 = vrot.slane %v9733, 1
      %v10036 = vsel %vm3501, %v10035, %v10034
      %v10037 = vsel %vm3504, %v9734, %v10036
      %v10038 = vrot.slane %v9735, 7
      %v10039 = vsel %vm3507, %v10038, %v10037
      %v10040 = vrot.slane %v9736, 6
      %v10041 = vrot.slane %v9737, 5
      %v10042 = vsel %vm3489, %v10041, %v10040
      %v10043 = vrot.slane %v9738, 4
      %v10044 = vsel %vm3492, %v10043, %v10042
      %v10045 = vrot.slane %v9739, 3
      %v10046 = vsel %vm3495, %v10045, %v10044
      %v10047 = vrot.slane %v9740, 2
      %v10048 = vsel %vm3498, %v10047, %v10046
      %v10049 = vrot.slane %v9741, 1
      %v10050 = vsel %vm3501, %v10049, %v10048
      %v10051 = vsel %vm3504, %v9742, %v10050
      %v10052 = vrot.slane %v9743, 7
      %v10053 = vsel %vm3507, %v10052, %v10051
      %v10054 = vrot.slane %v9744, 6
      %v10055 = vrot.slane %v9745, 5
      %v10056 = vsel %vm3489, %v10055, %v10054
      %v10057 = vrot.slane %v9746, 4
      %v10058 = vsel %vm3492, %v10057, %v10056
      %v10059 = vrot.slane %v9747, 3
      %v10060 = vsel %vm3495, %v10059, %v10058
      %v10061 = vrot.slane %v9748, 2
      %v10062 = vsel %vm3498, %v10061, %v10060
      %v10063 = vrot.slane %v9749, 1
      %v10064 = vsel %vm3501, %v10063, %v10062
      %v10065 = vsel %vm3504, %v9750, %v10064
      %v10066 = vrot.slane %v9751, 7
      %v10067 = vsel %vm3507, %v10066, %v10065
      %v10068 = vrot.slane %v9752, 6
      %v10069 = vrot.slane %v9753, 5
      %v10070 = vsel %vm3489, %v10069, %v10068
      %v10071 = vrot.slane %v9754, 4
      %v10072 = vsel %vm3492, %v10071, %v10070
      %v10073 = vrot.slane %v9755, 3
      %v10074 = vsel %vm3495, %v10073, %v10072
      %v10075 = vrot.slane %v9756, 2
      %v10076 = vsel %vm3498, %v10075, %v10074
      %v10077 = vrot.slane %v9757, 1
      %v10078 = vsel %vm3501, %v10077, %v10076
      %v10079 = vsel %vm3504, %v9758, %v10078
      %v10080 = vrot.slane %v9759, 7
      %v10081 = vsel %vm3507, %v10080, %v10079
      %v10082 = vrot.slane %v9760, 6
      %v10083 = vrot.slane %v9761, 5
      %v10084 = vsel %vm3489, %v10083, %v10082
      %v10085 = vrot.slane %v9762, 4
      %v10086 = vsel %vm3492, %v10085, %v10084
      %v10087 = vrot.slane %v9763, 3
      %v10088 = vsel %vm3495, %v10087, %v10086
      %v10089 = vrot.slane %v9764, 2
      %v10090 = vsel %vm3498, %v10089, %v10088
      %v10091 = vrot.slane %v9765, 1
      %v10092 = vsel %vm3501, %v10091, %v10090
      %v10093 = vsel %vm3504, %v9766, %v10092
      %v10094 = vrot.slane %v9767, 7
      %v10095 = vsel %vm3507, %v10094, %v10093
      %v10096 = vrot.slane %v9768, 6
      %v10097 = vrot.slane %v9769, 5
      %v10098 = vsel %vm3489, %v10097, %v10096
      %v10099 = vrot.slane %v9770, 4
      %v10100 = vsel %vm3492, %v10099, %v10098
      %v10101 = vrot.slane %v9771, 3
      %v10102 = vsel %vm3495, %v10101, %v10100
      %v10103 = vrot.slane %v9772, 2
      %v10104 = vsel %vm3498, %v10103, %v10102
      %v10105 = vrot.slane %v9773, 1
      %v10106 = vsel %vm3501, %v10105, %v10104
      %v10107 = vsel %vm3504, %v9774, %v10106
      %v10108 = vrot.slane %v9775, 7
      %v10109 = vsel %vm3507, %v10108, %v10107
      %v10110 = vrot.slane %v9776, 6
      %v10111 = vrot.slane %v9777, 5
      %v10112 = vsel %vm3489, %v10111, %v10110
      %v10113 = vrot.slane %v9778, 4
      %v10114 = vsel %vm3492, %v10113, %v10112
      %v10115 = vrot.slane %v9779, 3
      %v10116 = vsel %vm3495, %v10115, %v10114
      %v10117 = vrot.slane %v9780, 2
      %v10118 = vsel %vm3498, %v10117, %v10116
      %v10119 = vrot.slane %v9781, 1
      %v10120 = vsel %vm3501, %v10119, %v10118
      %v10121 = vsel %vm3504, %v9782, %v10120
      %v10122 = vrot.slane %v9783, 7
      %v10123 = vsel %vm3507, %v10122, %v10121
      %v10124 = vrot.slane %v9784, 6
      %v10125 = vrot.slane %v9785, 5
      %v10126 = vsel %vm3489, %v10125, %v10124
      %v10127 = vrot.slane %v9786, 4
      %v10128 = vsel %vm3492, %v10127, %v10126
      %v10129 = vrot.slane %v9787, 3
      %v10130 = vsel %vm3495, %v10129, %v10128
      %v10131 = vpack.c.b16 %v9801, %v9801
      %v10132 = vpack.c.b16 %v9815, %v9815
      %v10133 = vpack.c.b16 %v9829, %v9829
      %v10134 = vpack.c.b16 %v9843, %v9843
      %v10135 = vpack.c.b16 %v9857, %v9857
      %v10136 = vpack.c.b16 %v9871, %v9871
      %v10137 = vpack.c.b16 %v9885, %v9885
      %v10138 = vpack.c.b16 %v9899, %v9899
      %v10139 = vpack.c.b16 %v9913, %v9913
      %v10140 = vpack.c.b16 %v9927, %v9927
      %v10141 = vpack.c.b16 %v9941, %v9941
      %v10142 = vpack.c.b16 %v9955, %v9955
      %v10143 = vpack.c.b16 %v9969, %v9969
      %v10144 = vpack.c.b16 %v9983, %v9983
      %v10145 = vpack.c.b16 %v9997, %v9997
      %v10146 = vpack.c.b16 %v10011, %v10011
      %v10147 = vpack.c.b16 %v10025, %v10025
      %v10148 = vpack.c.b16 %v10039, %v10039
      %v10149 = vpack.c.b16 %v10053, %v10053
      %v10150 = vpack.c.b16 %v10067, %v10067
      %v10151 = vpack.c.b16 %v10081, %v10081
      %v10152 = vpack.c.b16 %v10095, %v10095
      %v10153 = vpack.c.b16 %v10109, %v10109
      %v10154 = vpack.c.b16 %v10123, %v10123
      %v10155 = vpack.c.b16 %v10130, %v10130
      %10156 = vrot.lane.b32.xlu0 %v10131, 48
      %v10157 = vpop.permute.xlu0 %10156
      %10158 = vrot.lane.b32.xlu0 %v10132, 48
      %v10159 = vpop.permute.xlu0 %10158
      %10160 = vrot.lane.b32.xlu0 %v10133, 48
      %v10161 = vpop.permute.xlu0 %10160
      %10162 = vrot.lane.b32.xlu0 %v10134, 48
      %v10163 = vpop.permute.xlu0 %10162
      %10164 = vrot.lane.b32.xlu0 %v10135, 48
      %v10165 = vpop.permute.xlu0 %10164
      %10166 = vrot.lane.b32.xlu0 %v10136, 48
      %v10167 = vpop.permute.xlu0 %10166
      %10168 = vrot.lane.b32.xlu0 %v10137, 48
      %v10169 = vpop.permute.xlu0 %10168
      %10170 = vrot.lane.b32.xlu0 %v10138, 48
      %v10171 = vpop.permute.xlu0 %10170
      %10172 = vrot.lane.b32.xlu0 %v10139, 48
      %v10173 = vpop.permute.xlu0 %10172
      %10174 = vrot.lane.b32.xlu0 %v10140, 48
      %v10175 = vpop.permute.xlu0 %10174
      %10176 = vrot.lane.b32.xlu0 %v10141, 48
      %v10177 = vpop.permute.xlu0 %10176
      %10178 = vrot.lane.b32.xlu0 %v10142, 48
      %v10179 = vpop.permute.xlu0 %10178
      %10180 = vrot.lane.b32.xlu0 %v10143, 48
      %v10181 = vpop.permute.xlu0 %10180
      %10182 = vrot.lane.b32.xlu0 %v10144, 48
      %v10183 = vpop.permute.xlu0 %10182
      %10184 = vrot.lane.b32.xlu0 %v10145, 48
      %v10185 = vpop.permute.xlu0 %10184
      %10186 = vrot.lane.b32.xlu0 %v10146, 48
      %v10187 = vpop.permute.xlu0 %10186
      %10188 = vrot.lane.b32.xlu0 %v10147, 48
      %v10189 = vpop.permute.xlu0 %10188
      %10190 = vrot.lane.b32.xlu0 %v10148, 48
      %v10191 = vpop.permute.xlu0 %10190
      %10192 = vrot.lane.b32.xlu0 %v10149, 48
      %v10193 = vpop.permute.xlu0 %10192
      %10194 = vrot.lane.b32.xlu0 %v10150, 48
      %v10195 = vpop.permute.xlu0 %10194
      %10196 = vrot.lane.b32.xlu0 %v10151, 48
      %v10197 = vpop.permute.xlu0 %10196
      %10198 = vrot.lane.b32.xlu0 %v10152, 48
      %v10199 = vpop.permute.xlu0 %10198
      %10200 = vrot.lane.b32.xlu0 %v10153, 48
      %v10201 = vpop.permute.xlu0 %10200
      %10202 = vrot.lane.b32.xlu0 %v10154, 48
      %v10203 = vpop.permute.xlu0 %10202
      %10204 = vrot.lane.b32.xlu0 %v10155, 48
      %v10205 = vpop.permute.xlu0 %10204
      %vm10231 = vcmask 454016
      %10232 = vst.msk [vmem:[#allocation3] sm:$0xf] %vm10231, %v10157
      %10233 = vst.msk [vmem:[#allocation3 + $0x4] sm:$0xf] %vm10231, %v10159
      %10234 = vst.msk [vmem:[#allocation3 + $0x8] sm:$0xf] %vm10231, %v10161
      %10235 = vst.msk [vmem:[#allocation3 + $0xc] sm:$0xf] %vm10231, %v10163
      %10236 = vst.msk [vmem:[#allocation3 + $0x10] sm:$0xf] %vm10231, %v10165
      %10237 = vst.msk [vmem:[#allocation3 + $0x14] sm:$0xf] %vm10231, %v10167
      %10238 = vst.msk [vmem:[#allocation3 + $0x18] sm:$0xf] %vm10231, %v10169
      %10239 = vst.msk [vmem:[#allocation3 + $0x1c] sm:$0xf] %vm10231, %v10171
      %10240 = vst.msk [vmem:[#allocation3 + $0x20] sm:$0xf] %vm10231, %v10173
      %10241 = vst.msk [vmem:[#allocation3 + $0x24] sm:$0xf] %vm10231, %v10175
      %10242 = vst.msk [vmem:[#allocation3 + $0x28] sm:$0xf] %vm10231, %v10177
      %10243 = vst.msk [vmem:[#allocation3 + $0x2c] sm:$0xf] %vm10231, %v10179
      %10244 = vst.msk [vmem:[#allocation3 + $0x30] sm:$0xf] %vm10231, %v10181
      %10245 = vst.msk [vmem:[#allocation3 + $0x34] sm:$0xf] %vm10231, %v10183
      %10246 = vst.msk [vmem:[#allocation3 + $0x38] sm:$0xf] %vm10231, %v10185
      %10247 = vst.msk [vmem:[#allocation3 + $0x3c] sm:$0xf] %vm10231, %v10187
      %10248 = vst.msk [vmem:[#allocation3 + $0x40] sm:$0xf] %vm10231, %v10189
      %10249 = vst.msk [vmem:[#allocation3 + $0x44] sm:$0xf] %vm10231, %v10191
      %10250 = vst.msk [vmem:[#allocation3 + $0x48] sm:$0xf] %vm10231, %v10193
      %10251 = vst.msk [vmem:[#allocation3 + $0x4c] sm:$0xf] %vm10231, %v10195
      %10252 = vst.msk [vmem:[#allocation3 + $0x50] sm:$0xf] %vm10231, %v10197
      %10253 = vst.msk [vmem:[#allocation3 + $0x54] sm:$0xf] %vm10231, %v10199
      %10254 = vst.msk [vmem:[#allocation3 + $0x58] sm:$0xf] %vm10231, %v10201
      %10255 = vst.msk [vmem:[#allocation3 + $0x5c] sm:$0xf] %vm10231, %v10203
      %vm10256 = vcmask 451968
      %10257 = vst.msk [vmem:[#allocation3 + $0x60] sm:$0x3] %vm10256, %v10205
      %v10258 = vld [vmem:[#allocation2] sm:$0x8]
      %v10259 = vld [vmem:[#allocation2 + $0x4] sm:$0x8]
      %v10260 = vld [vmem:[#allocation2 + $0x8] sm:$0x8]
      %v10261 = vld [vmem:[#allocation2 + $0xc] sm:$0x8]
      %v10262 = vld [vmem:[#allocation2 + $0x10] sm:$0x8]
      %v10263 = vld [vmem:[#allocation2 + $0x14] sm:$0x8]
      %v10264 = vld [vmem:[#allocation2 + $0x18] sm:$0x8]
      %v10265 = vld [vmem:[#allocation2 + $0x1c] sm:$0x8]
      %v10266 = vld [vmem:[#allocation2 + $0x20] sm:$0x8]
      %v10267 = vld [vmem:[#allocation2 + $0x24] sm:$0x8]
      %v10268 = vld [vmem:[#allocation2 + $0x28] sm:$0x8]
      %v10269 = vld [vmem:[#allocation2 + $0x2c] sm:$0x8]
      %v10270 = vld [vmem:[#allocation2 + $0x30] sm:$0x8]
      %v10271 = vld [vmem:[#allocation2 + $0x34] sm:$0x8]
      %v10272 = vld [vmem:[#allocation2 + $0x38] sm:$0x8]
      %v10273 = vld [vmem:[#allocation2 + $0x3c] sm:$0x8]
      %v10274 = vld [vmem:[#allocation2 + $0x40] sm:$0x8]
      %v10275 = vld [vmem:[#allocation2 + $0x44] sm:$0x8]
      %v10276 = vld [vmem:[#allocation2 + $0x48] sm:$0x8]
      %v10277 = vld [vmem:[#allocation2 + $0x4c] sm:$0x8]
      %v10278 = vld [vmem:[#allocation2 + $0x50] sm:$0x8]
      %v10279 = vld [vmem:[#allocation2 + $0x54] sm:$0x8]
      %v10280 = vld [vmem:[#allocation2 + $0x58] sm:$0x8]
      %v10281 = vld [vmem:[#allocation2 + $0x5c] sm:$0x8]
      %v10282 = vld [vmem:[#allocation2 + $0x60] sm:$0x8]
      %v10283 = vld [vmem:[#allocation2 + $0x64] sm:$0x8]
      %v10284 = vld [vmem:[#allocation2 + $0x68] sm:$0x8]
      %v10285 = vld [vmem:[#allocation2 + $0x6c] sm:$0x8]
      %v10286 = vld [vmem:[#allocation2 + $0x70] sm:$0x8]
      %v10287 = vld [vmem:[#allocation2 + $0x74] sm:$0x8]
      %v10288 = vld [vmem:[#allocation2 + $0x78] sm:$0x8]
      %v10289 = vld [vmem:[#allocation2 + $0x7c] sm:$0x8]
      %v10290 = vld [vmem:[#allocation2 + $0x80] sm:$0x8]
      %v10291 = vld [vmem:[#allocation2 + $0x84] sm:$0x8]
      %v10292 = vld [vmem:[#allocation2 + $0x88] sm:$0x8]
      %v10293 = vld [vmem:[#allocation2 + $0x8c] sm:$0x8]
      %v10294 = vld [vmem:[#allocation2 + $0x90] sm:$0x8]
      %v10295 = vld [vmem:[#allocation2 + $0x94] sm:$0x8]
      %v10296 = vld [vmem:[#allocation2 + $0x98] sm:$0x8]
      %v10297 = vld [vmem:[#allocation2 + $0x9c] sm:$0x8]
      %v10298 = vld [vmem:[#allocation2 + $0xa0] sm:$0x8]
      %v10299 = vld [vmem:[#allocation2 + $0xa4] sm:$0x8]
      %v10300 = vld [vmem:[#allocation2 + $0xa8] sm:$0x8]
      %v10301 = vld [vmem:[#allocation2 + $0xac] sm:$0x8]
      %v10302 = vld [vmem:[#allocation2 + $0xb0] sm:$0x8]
      %v10303 = vld [vmem:[#allocation2 + $0xb4] sm:$0x8]
      %v10304 = vld [vmem:[#allocation2 + $0xb8] sm:$0x8]
      %v10305 = vld [vmem:[#allocation2 + $0xbc] sm:$0x8]
      %v10306 = vld [vmem:[#allocation2 + $0xc0] sm:$0x8]
      %v10307 = vld [vmem:[#allocation2 + $0xc4] sm:$0x8]
      %v10308 = vld [vmem:[#allocation2 + $0xc8] sm:$0x8]
      %v10309 = vld [vmem:[#allocation2 + $0xcc] sm:$0x8]
      %v10310 = vld [vmem:[#allocation2 + $0xd0] sm:$0x8]
      %v10311 = vld [vmem:[#allocation2 + $0xd4] sm:$0x8]
      %v10312 = vld [vmem:[#allocation2 + $0xd8] sm:$0x8]
      %v10313 = vld [vmem:[#allocation2 + $0xdc] sm:$0x8]
      %v10314 = vld [vmem:[#allocation2 + $0xe0] sm:$0x8]
      %v10315 = vld [vmem:[#allocation2 + $0xe4] sm:$0x8]
      %v10316 = vld [vmem:[#allocation2 + $0xe8] sm:$0x8]
      %v10317 = vld [vmem:[#allocation2 + $0xec] sm:$0x8]
      %v10318 = vld [vmem:[#allocation2 + $0xf0] sm:$0x8]
      %v10319 = vld [vmem:[#allocation2 + $0xf4] sm:$0x8]
      %v10320 = vld [vmem:[#allocation2 + $0xf8] sm:$0x8]
      %v10321 = vld [vmem:[#allocation2 + $0xfc] sm:$0x8]
      %v10322 = vld [vmem:[#allocation2 + $0x100] sm:$0x8]
      %v10323 = vld [vmem:[#allocation2 + $0x104] sm:$0x8]
      %v10324 = vld [vmem:[#allocation2 + $0x108] sm:$0x8]
      %v10325 = vld [vmem:[#allocation2 + $0x10c] sm:$0x8]
      %v10326 = vld [vmem:[#allocation2 + $0x110] sm:$0x8]
      %v10327 = vld [vmem:[#allocation2 + $0x114] sm:$0x8]
      %v10328 = vld [vmem:[#allocation2 + $0x118] sm:$0x8]
      %v10329 = vld [vmem:[#allocation2 + $0x11c] sm:$0x8]
      %v10330 = vld [vmem:[#allocation2 + $0x120] sm:$0x8]
      %v10331 = vld [vmem:[#allocation2 + $0x124] sm:$0x8]
      %v10332 = vld [vmem:[#allocation2 + $0x128] sm:$0x8]
      %v10333 = vld [vmem:[#allocation2 + $0x12c] sm:$0x8]
      %v10334 = vld [vmem:[#allocation2 + $0x130] sm:$0x8]
      %v10335 = vld [vmem:[#allocation2 + $0x134] sm:$0x8]
      %v10336 = vld [vmem:[#allocation2 + $0x138] sm:$0x8]
      %v10337 = vld [vmem:[#allocation2 + $0x13c] sm:$0x8]
      %v10338 = vld [vmem:[#allocation2 + $0x140] sm:$0x8]
      %v10339 = vld [vmem:[#allocation2 + $0x144] sm:$0x8]
      %v10340 = vld [vmem:[#allocation2 + $0x148] sm:$0x8]
      %v10341 = vld [vmem:[#allocation2 + $0x14c] sm:$0x8]
      %v10342 = vld [vmem:[#allocation2 + $0x150] sm:$0x8]
      %v10343 = vld [vmem:[#allocation2 + $0x154] sm:$0x8]
      %v10344 = vld [vmem:[#allocation2 + $0x158] sm:$0x8]
      %v10345 = vld [vmem:[#allocation2 + $0x15c] sm:$0x8]
      %v10346 = vld [vmem:[#allocation2 + $0x160] sm:$0x8]
      %v10347 = vld [vmem:[#allocation2 + $0x164] sm:$0x8]
      %v10348 = vld [vmem:[#allocation2 + $0x168] sm:$0x8]
      %v10349 = vld [vmem:[#allocation2 + $0x16c] sm:$0x8]
      %v10350 = vld [vmem:[#allocation2 + $0x170] sm:$0x8]
      %v10351 = vld [vmem:[#allocation2 + $0x174] sm:$0x8]
      %v10352 = vld [vmem:[#allocation2 + $0x178] sm:$0x8]
      %v10353 = vld [vmem:[#allocation2 + $0x17c] sm:$0x8]
      %v10354 = vld [vmem:[#allocation2 + $0x180] sm:$0x8]
      %v10355 = vld [vmem:[#allocation2 + $0x184] sm:$0x8]
      %v10356 = vld [vmem:[#allocation2 + $0x188] sm:$0x8]
      %v10357 = vld [vmem:[#allocation2 + $0x18c] sm:$0x8]
      %v10358 = vld [vmem:[#allocation2 + $0x190] sm:$0x8]
      %v10359 = vld [vmem:[#allocation2 + $0x194] sm:$0x8]
      %v10360 = vld [vmem:[#allocation2 + $0x198] sm:$0x8]
      %v10361 = vld [vmem:[#allocation2 + $0x19c] sm:$0x8]
      %v10362 = vld [vmem:[#allocation2 + $0x1a0] sm:$0x8]
      %v10363 = vld [vmem:[#allocation2 + $0x1a4] sm:$0x8]
      %v10364 = vld [vmem:[#allocation2 + $0x1a8] sm:$0x8]
      %v10365 = vld [vmem:[#allocation2 + $0x1ac] sm:$0x8]
      %v10366 = vld [vmem:[#allocation2 + $0x1b0] sm:$0x8]
      %v10367 = vld [vmem:[#allocation2 + $0x1b4] sm:$0x8]
      %v10368 = vld [vmem:[#allocation2 + $0x1b8] sm:$0x8]
      %v10369 = vld [vmem:[#allocation2 + $0x1bc] sm:$0x8]
      %v10370 = vld [vmem:[#allocation2 + $0x1c0] sm:$0x8]
      %v10371 = vld [vmem:[#allocation2 + $0x1c4] sm:$0x8]
      %v10372 = vld [vmem:[#allocation2 + $0x1c8] sm:$0x8]
      %v10373 = vld [vmem:[#allocation2 + $0x1cc] sm:$0x8]
      %v10374 = vld [vmem:[#allocation2 + $0x1d0] sm:$0x8]
      %v10375 = vld [vmem:[#allocation2 + $0x1d4] sm:$0x8]
      %v10376 = vld [vmem:[#allocation2 + $0x1d8] sm:$0x8]
      %v10377 = vld [vmem:[#allocation2 + $0x1dc] sm:$0x8]
      %v10378 = vld [vmem:[#allocation2 + $0x1e0] sm:$0x8]
      %v10379 = vld [vmem:[#allocation2 + $0x1e4] sm:$0x8]
      %v10380 = vld [vmem:[#allocation2 + $0x1e8] sm:$0x8]
      %v10381 = vld [vmem:[#allocation2 + $0x1ec] sm:$0x8]
      %v10382 = vld [vmem:[#allocation2 + $0x1f0] sm:$0x8]
      %v10383 = vld [vmem:[#allocation2 + $0x1f4] sm:$0x8]
      %v10384 = vld [vmem:[#allocation2 + $0x1f8] sm:$0x8]
      %v10385 = vld [vmem:[#allocation2 + $0x1fc] sm:$0x8]
      %v10386 = vld [vmem:[#allocation2 + $0x200] sm:$0x8]
      %v10387 = vld [vmem:[#allocation2 + $0x204] sm:$0x8]
      %v10388 = vld [vmem:[#allocation2 + $0x208] sm:$0x8]
      %v10389 = vld [vmem:[#allocation2 + $0x20c] sm:$0x8]
      %v10390 = vld [vmem:[#allocation2 + $0x210] sm:$0x8]
      %v10391 = vld [vmem:[#allocation2 + $0x214] sm:$0x8]
      %v10392 = vld [vmem:[#allocation2 + $0x218] sm:$0x8]
      %v10393 = vld [vmem:[#allocation2 + $0x21c] sm:$0x8]
      %v10394 = vld [vmem:[#allocation2 + $0x220] sm:$0x8]
      %v10395 = vld [vmem:[#allocation2 + $0x224] sm:$0x8]
      %v10396 = vld [vmem:[#allocation2 + $0x228] sm:$0x8]
      %v10397 = vld [vmem:[#allocation2 + $0x22c] sm:$0x8]
      %v10398 = vld [vmem:[#allocation2 + $0x230] sm:$0x8]
      %v10399 = vld [vmem:[#allocation2 + $0x234] sm:$0x8]
      %v10400 = vld [vmem:[#allocation2 + $0x238] sm:$0x8]
      %v10401 = vld [vmem:[#allocation2 + $0x23c] sm:$0x8]
      %v10402 = vld [vmem:[#allocation2 + $0x240] sm:$0x8]
      %v10403 = vld [vmem:[#allocation2 + $0x244] sm:$0x8]
      %v10404 = vld [vmem:[#allocation2 + $0x248] sm:$0x8]
      %v10405 = vld [vmem:[#allocation2 + $0x24c] sm:$0x8]
      %v10406 = vld [vmem:[#allocation2 + $0x250] sm:$0x8]
      %v10407 = vld [vmem:[#allocation2 + $0x254] sm:$0x8]
      %v10408 = vld [vmem:[#allocation2 + $0x258] sm:$0x8]
      %v10409 = vld [vmem:[#allocation2 + $0x25c] sm:$0x8]
      %v10410 = vld [vmem:[#allocation2 + $0x260] sm:$0x8]
      %v10411 = vld [vmem:[#allocation2 + $0x264] sm:$0x8]
      %v10412 = vld [vmem:[#allocation2 + $0x268] sm:$0x8]
      %v10413 = vld [vmem:[#allocation2 + $0x26c] sm:$0x8]
      %v10414 = vld [vmem:[#allocation2 + $0x270] sm:$0x8]
      %v10415 = vld [vmem:[#allocation2 + $0x274] sm:$0x8]
      %v10416 = vld [vmem:[#allocation2 + $0x278] sm:$0x8]
      %v10417 = vld [vmem:[#allocation2 + $0x27c] sm:$0x8]
      %v10418 = vld [vmem:[#allocation2 + $0x280] sm:$0x8]
      %v10419 = vld [vmem:[#allocation2 + $0x284] sm:$0x8]
      %v10420 = vld [vmem:[#allocation2 + $0x288] sm:$0x8]
      %v10421 = vld [vmem:[#allocation2 + $0x28c] sm:$0x8]
      %v10422 = vld [vmem:[#allocation2 + $0x290] sm:$0x8]
      %v10423 = vld [vmem:[#allocation2 + $0x294] sm:$0x8]
      %v10424 = vld [vmem:[#allocation2 + $0x298] sm:$0x8]
      %v10425 = vld [vmem:[#allocation2 + $0x29c] sm:$0x8]
      %v10426 = vld [vmem:[#allocation2 + $0x2a0] sm:$0x8]
      %v10427 = vld [vmem:[#allocation2 + $0x2a4] sm:$0x8]
      %v10428 = vld [vmem:[#allocation2 + $0x2a8] sm:$0x8]
      %v10429 = vld [vmem:[#allocation2 + $0x2ac] sm:$0x8]
      %v10430 = vld [vmem:[#allocation2 + $0x2b0] sm:$0x8]
      %v10431 = vld [vmem:[#allocation2 + $0x2b4] sm:$0x8]
      %v10432 = vld [vmem:[#allocation2 + $0x2b8] sm:$0x8]
      %v10433 = vld [vmem:[#allocation2 + $0x2bc] sm:$0x8]
      %v10434 = vld [vmem:[#allocation2 + $0x2c0] sm:$0x8]
      %v10435 = vld [vmem:[#allocation2 + $0x2c4] sm:$0x8]
      %v10436 = vld [vmem:[#allocation2 + $0x2c8] sm:$0x8]
      %v10437 = vld [vmem:[#allocation2 + $0x2cc] sm:$0x8]
      %v10438 = vld [vmem:[#allocation2 + $0x2d0] sm:$0x8]
      %v10439 = vld [vmem:[#allocation2 + $0x2d4] sm:$0x8]
      %v10440 = vld [vmem:[#allocation2 + $0x2d8] sm:$0x8]
      %v10441 = vld [vmem:[#allocation2 + $0x2dc] sm:$0x8]
      %v10442 = vld [vmem:[#allocation2 + $0x2e0] sm:$0x8]
      %v10443 = vld [vmem:[#allocation2 + $0x2e4] sm:$0x8]
      %v10444 = vld [vmem:[#allocation2 + $0x2e8] sm:$0x8]
      %v10445 = vld [vmem:[#allocation2 + $0x2ec] sm:$0x8]
      %v10446 = vld [vmem:[#allocation2 + $0x2f0] sm:$0x8]
      %v10447 = vld [vmem:[#allocation2 + $0x2f4] sm:$0x8]
      %v10448 = vld [vmem:[#allocation2 + $0x2f8] sm:$0x8]
      %v10449 = vld [vmem:[#allocation2 + $0x2fc] sm:$0x8]
      %v10450 = vld [vmem:[#allocation2 + $0x300] sm:$0x8]
      %v10451 = vld [vmem:[#allocation2 + $0x304] sm:$0x8]
      %v10452 = vld [vmem:[#allocation2 + $0x308] sm:$0x8]
      %v10453 = vld [vmem:[#allocation2 + $0x30c] sm:$0x8]
      %v10650 = vunpack.c.l.b16 %v10258
      %v10651 = vunpack.c.l.b16 %v10259
      %v10652 = vunpack.c.l.b16 %v10260
      %v10653 = vunpack.c.l.b16 %v10261
      %v10654 = vunpack.c.l.b16 %v10262
      %v10655 = vunpack.c.l.b16 %v10263
      %v10656 = vunpack.c.l.b16 %v10264
      %v10657 = vunpack.c.l.b16 %v10265
      %v10658 = vunpack.c.l.b16 %v10266
      %v10659 = vunpack.c.l.b16 %v10267
      %v10660 = vunpack.c.l.b16 %v10268
      %v10661 = vunpack.c.l.b16 %v10269
      %v10662 = vunpack.c.l.b16 %v10270
      %v10663 = vunpack.c.l.b16 %v10271
      %v10664 = vunpack.c.l.b16 %v10272
      %v10665 = vunpack.c.l.b16 %v10273
      %v10666 = vunpack.c.l.b16 %v10274
      %v10667 = vunpack.c.l.b16 %v10275
      %v10668 = vunpack.c.l.b16 %v10276
      %v10669 = vunpack.c.l.b16 %v10277
      %v10670 = vunpack.c.l.b16 %v10278
      %v10671 = vunpack.c.l.b16 %v10279
      %v10672 = vunpack.c.l.b16 %v10280
      %v10673 = vunpack.c.l.b16 %v10281
      %v10674 = vunpack.c.l.b16 %v10282
      %v10675 = vunpack.c.l.b16 %v10283
      %v10676 = vunpack.c.l.b16 %v10284
      %v10677 = vunpack.c.l.b16 %v10285
      %v10678 = vunpack.c.l.b16 %v10286
      %v10679 = vunpack.c.l.b16 %v10287
      %v10680 = vunpack.c.l.b16 %v10288
      %v10681 = vunpack.c.l.b16 %v10289
      %v10682 = vunpack.c.l.b16 %v10290
      %v10683 = vunpack.c.l.b16 %v10291
      %v10684 = vunpack.c.l.b16 %v10292
      %v10685 = vunpack.c.l.b16 %v10293
      %v10686 = vunpack.c.l.b16 %v10294
      %v10687 = vunpack.c.l.b16 %v10295
      %v10688 = vunpack.c.l.b16 %v10296
      %v10689 = vunpack.c.l.b16 %v10297
      %v10690 = vunpack.c.l.b16 %v10298
      %v10691 = vunpack.c.l.b16 %v10299
      %v10692 = vunpack.c.l.b16 %v10300
      %v10693 = vunpack.c.l.b16 %v10301
      %v10694 = vunpack.c.l.b16 %v10302
      %v10695 = vunpack.c.l.b16 %v10303
      %v10696 = vunpack.c.l.b16 %v10304
      %v10697 = vunpack.c.l.b16 %v10305
      %v10698 = vunpack.c.l.b16 %v10306
      %v10699 = vunpack.c.l.b16 %v10307
      %v10700 = vunpack.c.l.b16 %v10308
      %v10701 = vunpack.c.l.b16 %v10309
      %v10702 = vunpack.c.l.b16 %v10310
      %v10703 = vunpack.c.l.b16 %v10311
      %v10704 = vunpack.c.l.b16 %v10312
      %v10705 = vunpack.c.l.b16 %v10313
      %v10706 = vunpack.c.l.b16 %v10314
      %v10707 = vunpack.c.l.b16 %v10315
      %v10708 = vunpack.c.l.b16 %v10316
      %v10709 = vunpack.c.l.b16 %v10317
      %v10710 = vunpack.c.l.b16 %v10318
      %v10711 = vunpack.c.l.b16 %v10319
      %v10712 = vunpack.c.l.b16 %v10320
      %v10713 = vunpack.c.l.b16 %v10321
      %v10714 = vunpack.c.l.b16 %v10322
      %v10715 = vunpack.c.l.b16 %v10323
      %v10716 = vunpack.c.l.b16 %v10324
      %v10717 = vunpack.c.l.b16 %v10325
      %v10718 = vunpack.c.l.b16 %v10326
      %v10719 = vunpack.c.l.b16 %v10327
      %v10720 = vunpack.c.l.b16 %v10328
      %v10721 = vunpack.c.l.b16 %v10329
      %v10722 = vunpack.c.l.b16 %v10330
      %v10723 = vunpack.c.l.b16 %v10331
      %v10724 = vunpack.c.l.b16 %v10332
      %v10725 = vunpack.c.l.b16 %v10333
      %v10726 = vunpack.c.l.b16 %v10334
      %v10727 = vunpack.c.l.b16 %v10335
      %v10728 = vunpack.c.l.b16 %v10336
      %v10729 = vunpack.c.l.b16 %v10337
      %v10730 = vunpack.c.l.b16 %v10338
      %v10731 = vunpack.c.l.b16 %v10339
      %v10732 = vunpack.c.l.b16 %v10340
      %v10733 = vunpack.c.l.b16 %v10341
      %v10734 = vunpack.c.l.b16 %v10342
      %v10735 = vunpack.c.l.b16 %v10343
      %v10736 = vunpack.c.l.b16 %v10344
      %v10737 = vunpack.c.l.b16 %v10345
      %v10738 = vunpack.c.l.b16 %v10346
      %v10739 = vunpack.c.l.b16 %v10347
      %v10740 = vunpack.c.l.b16 %v10348
      %v10741 = vunpack.c.l.b16 %v10349
      %v10742 = vunpack.c.l.b16 %v10350
      %v10743 = vunpack.c.l.b16 %v10351
      %v10744 = vunpack.c.l.b16 %v10352
      %v10745 = vunpack.c.l.b16 %v10353
      %v10746 = vunpack.c.l.b16 %v10354
      %v10747 = vunpack.c.l.b16 %v10355
      %v10748 = vunpack.c.l.b16 %v10356
      %v10749 = vunpack.c.l.b16 %v10357
      %v10750 = vunpack.c.l.b16 %v10358
      %v10751 = vunpack.c.l.b16 %v10359
      %v10752 = vunpack.c.l.b16 %v10360
      %v10753 = vunpack.c.l.b16 %v10361
      %v10754 = vunpack.c.l.b16 %v10362
      %v10755 = vunpack.c.l.b16 %v10363
      %v10756 = vunpack.c.l.b16 %v10364
      %v10757 = vunpack.c.l.b16 %v10365
      %v10758 = vunpack.c.l.b16 %v10366
      %v10759 = vunpack.c.l.b16 %v10367
      %v10760 = vunpack.c.l.b16 %v10368
      %v10761 = vunpack.c.l.b16 %v10369
      %v10762 = vunpack.c.l.b16 %v10370
      %v10763 = vunpack.c.l.b16 %v10371
      %v10764 = vunpack.c.l.b16 %v10372
      %v10765 = vunpack.c.l.b16 %v10373
      %v10766 = vunpack.c.l.b16 %v10374
      %v10767 = vunpack.c.l.b16 %v10375
      %v10768 = vunpack.c.l.b16 %v10376
      %v10769 = vunpack.c.l.b16 %v10377
      %v10770 = vunpack.c.l.b16 %v10378
      %v10771 = vunpack.c.l.b16 %v10379
      %v10772 = vunpack.c.l.b16 %v10380
      %v10773 = vunpack.c.l.b16 %v10381
      %v10774 = vunpack.c.l.b16 %v10382
      %v10775 = vunpack.c.l.b16 %v10383
      %v10776 = vunpack.c.l.b16 %v10384
      %v10777 = vunpack.c.l.b16 %v10385
      %v10778 = vunpack.c.l.b16 %v10386
      %v10779 = vunpack.c.l.b16 %v10387
      %v10780 = vunpack.c.l.b16 %v10388
      %v10781 = vunpack.c.l.b16 %v10389
      %v10782 = vunpack.c.l.b16 %v10390
      %v10783 = vunpack.c.l.b16 %v10391
      %v10784 = vunpack.c.l.b16 %v10392
      %v10785 = vunpack.c.l.b16 %v10393
      %v10786 = vunpack.c.l.b16 %v10394
      %v10787 = vunpack.c.l.b16 %v10395
      %v10788 = vunpack.c.l.b16 %v10396
      %v10789 = vunpack.c.l.b16 %v10397
      %v10790 = vunpack.c.l.b16 %v10398
      %v10791 = vunpack.c.l.b16 %v10399
      %v10792 = vunpack.c.l.b16 %v10400
      %v10793 = vunpack.c.l.b16 %v10401
      %v10794 = vunpack.c.l.b16 %v10402
      %v10795 = vunpack.c.l.b16 %v10403
      %v10796 = vunpack.c.l.b16 %v10404
      %v10797 = vunpack.c.l.b16 %v10405
      %v10798 = vunpack.c.l.b16 %v10406
      %v10799 = vunpack.c.l.b16 %v10407
      %v10800 = vunpack.c.l.b16 %v10408
      %v10801 = vunpack.c.l.b16 %v10409
      %v10802 = vunpack.c.l.b16 %v10410
      %v10803 = vunpack.c.l.b16 %v10411
      %v10804 = vunpack.c.l.b16 %v10412
      %v10805 = vunpack.c.l.b16 %v10413
      %v10806 = vunpack.c.l.b16 %v10414
      %v10807 = vunpack.c.l.b16 %v10415
      %v10808 = vunpack.c.l.b16 %v10416
      %v10809 = vunpack.c.l.b16 %v10417
      %v10810 = vunpack.c.l.b16 %v10418
      %v10811 = vunpack.c.l.b16 %v10419
      %v10812 = vunpack.c.l.b16 %v10420
      %v10813 = vunpack.c.l.b16 %v10421
      %v10814 = vunpack.c.l.b16 %v10422
      %v10815 = vunpack.c.l.b16 %v10423
      %v10816 = vunpack.c.l.b16 %v10424
      %v10817 = vunpack.c.l.b16 %v10425
      %v10818 = vunpack.c.l.b16 %v10426
      %v10819 = vunpack.c.l.b16 %v10427
      %v10820 = vunpack.c.l.b16 %v10428
      %v10821 = vunpack.c.l.b16 %v10429
      %v10822 = vunpack.c.l.b16 %v10430
      %v10823 = vunpack.c.l.b16 %v10431
      %v10824 = vunpack.c.l.b16 %v10432
      %v10825 = vunpack.c.l.b16 %v10433
      %v10826 = vunpack.c.l.b16 %v10434
      %v10827 = vunpack.c.l.b16 %v10435
      %v10828 = vunpack.c.l.b16 %v10436
      %v10829 = vunpack.c.l.b16 %v10437
      %v10830 = vunpack.c.l.b16 %v10438
      %v10831 = vunpack.c.l.b16 %v10439
      %v10832 = vunpack.c.l.b16 %v10440
      %v10833 = vunpack.c.l.b16 %v10441
      %v10834 = vunpack.c.l.b16 %v10442
      %v10835 = vunpack.c.l.b16 %v10443
      %v10836 = vunpack.c.l.b16 %v10444
      %v10837 = vunpack.c.l.b16 %v10445
      %v10838 = vunpack.c.l.b16 %v10446
      %v10839 = vunpack.c.l.b16 %v10447
      %v10840 = vunpack.c.l.b16 %v10448
      %v10841 = vunpack.c.l.b16 %v10449
      %v10842 = vunpack.c.l.b16 %v10450
      %v10843 = vunpack.c.l.b16 %v10451
      %v10844 = vunpack.c.l.b16 %v10452
      %v10845 = vunpack.c.l.b16 %v10453
      %v10846 = vrot.slane %v10650, 7
      %v10847 = vrot.slane %v10651, 6
      %v10848 = vsel %vm3489, %v10847, %v10846
      %v10849 = vrot.slane %v10652, 5
      %v10850 = vsel %vm3492, %v10849, %v10848
      %v10851 = vrot.slane %v10653, 4
      %v10852 = vsel %vm3495, %v10851, %v10850
      %v10853 = vrot.slane %v10654, 3
      %v10854 = vsel %vm3498, %v10853, %v10852
      %v10855 = vrot.slane %v10655, 2
      %v10856 = vsel %vm3501, %v10855, %v10854
      %v10857 = vrot.slane %v10656, 1
      %v10858 = vsel %vm3504, %v10857, %v10856
      %v10859 = vsel %vm3507, %v10657, %v10858
      %v10860 = vrot.slane %v10658, 7
      %v10861 = vrot.slane %v10659, 6
      %v10862 = vsel %vm3489, %v10861, %v10860
      %v10863 = vrot.slane %v10660, 5
      %v10864 = vsel %vm3492, %v10863, %v10862
      %v10865 = vrot.slane %v10661, 4
      %v10866 = vsel %vm3495, %v10865, %v10864
      %v10867 = vrot.slane %v10662, 3
      %v10868 = vsel %vm3498, %v10867, %v10866
      %v10869 = vrot.slane %v10663, 2
      %v10870 = vsel %vm3501, %v10869, %v10868
      %v10871 = vrot.slane %v10664, 1
      %v10872 = vsel %vm3504, %v10871, %v10870
      %v10873 = vsel %vm3507, %v10665, %v10872
      %v10874 = vrot.slane %v10666, 7
      %v10875 = vrot.slane %v10667, 6
      %v10876 = vsel %vm3489, %v10875, %v10874
      %v10877 = vrot.slane %v10668, 5
      %v10878 = vsel %vm3492, %v10877, %v10876
      %v10879 = vrot.slane %v10669, 4
      %v10880 = vsel %vm3495, %v10879, %v10878
      %v10881 = vrot.slane %v10670, 3
      %v10882 = vsel %vm3498, %v10881, %v10880
      %v10883 = vrot.slane %v10671, 2
      %v10884 = vsel %vm3501, %v10883, %v10882
      %v10885 = vrot.slane %v10672, 1
      %v10886 = vsel %vm3504, %v10885, %v10884
      %v10887 = vsel %vm3507, %v10673, %v10886
      %v10888 = vrot.slane %v10674, 7
      %v10889 = vrot.slane %v10675, 6
      %v10890 = vsel %vm3489, %v10889, %v10888
      %v10891 = vrot.slane %v10676, 5
      %v10892 = vsel %vm3492, %v10891, %v10890
      %v10893 = vrot.slane %v10677, 4
      %v10894 = vsel %vm3495, %v10893, %v10892
      %v10895 = vrot.slane %v10678, 3
      %v10896 = vsel %vm3498, %v10895, %v10894
      %v10897 = vrot.slane %v10679, 2
      %v10898 = vsel %vm3501, %v10897, %v10896
      %v10899 = vrot.slane %v10680, 1
      %v10900 = vsel %vm3504, %v10899, %v10898
      %v10901 = vsel %vm3507, %v10681, %v10900
      %v10902 = vrot.slane %v10682, 7
      %v10903 = vrot.slane %v10683, 6
      %v10904 = vsel %vm3489, %v10903, %v10902
      %v10905 = vrot.slane %v10684, 5
      %v10906 = vsel %vm3492, %v10905, %v10904
      %v10907 = vrot.slane %v10685, 4
      %v10908 = vsel %vm3495, %v10907, %v10906
      %v10909 = vrot.slane %v10686, 3
      %v10910 = vsel %vm3498, %v10909, %v10908
      %v10911 = vrot.slane %v10687, 2
      %v10912 = vsel %vm3501, %v10911, %v10910
      %v10913 = vrot.slane %v10688, 1
      %v10914 = vsel %vm3504, %v10913, %v10912
      %v10915 = vsel %vm3507, %v10689, %v10914
      %v10916 = vrot.slane %v10690, 7
      %v10917 = vrot.slane %v10691, 6
      %v10918 = vsel %vm3489, %v10917, %v10916
      %v10919 = vrot.slane %v10692, 5
      %v10920 = vsel %vm3492, %v10919, %v10918
      %v10921 = vrot.slane %v10693, 4
      %v10922 = vsel %vm3495, %v10921, %v10920
      %v10923 = vrot.slane %v10694, 3
      %v10924 = vsel %vm3498, %v10923, %v10922
      %v10925 = vrot.slane %v10695, 2
      %v10926 = vsel %vm3501, %v10925, %v10924
      %v10927 = vrot.slane %v10696, 1
      %v10928 = vsel %vm3504, %v10927, %v10926
      %v10929 = vsel %vm3507, %v10697, %v10928
      %v10930 = vrot.slane %v10698, 7
      %v10931 = vrot.slane %v10699, 6
      %v10932 = vsel %vm3489, %v10931, %v10930
      %v10933 = vrot.slane %v10700, 5
      %v10934 = vsel %vm3492, %v10933, %v10932
      %v10935 = vrot.slane %v10701, 4
      %v10936 = vsel %vm3495, %v10935, %v10934
      %v10937 = vrot.slane %v10702, 3
      %v10938 = vsel %vm3498, %v10937, %v10936
      %v10939 = vrot.slane %v10703, 2
      %v10940 = vsel %vm3501, %v10939, %v10938
      %v10941 = vrot.slane %v10704, 1
      %v10942 = vsel %vm3504, %v10941, %v10940
      %v10943 = vsel %vm3507, %v10705, %v10942
      %v10944 = vrot.slane %v10706, 7
      %v10945 = vrot.slane %v10707, 6
      %v10946 = vsel %vm3489, %v10945, %v10944
      %v10947 = vrot.slane %v10708, 5
      %v10948 = vsel %vm3492, %v10947, %v10946
      %v10949 = vrot.slane %v10709, 4
      %v10950 = vsel %vm3495, %v10949, %v10948
      %v10951 = vrot.slane %v10710, 3
      %v10952 = vsel %vm3498, %v10951, %v10950
      %v10953 = vrot.slane %v10711, 2
      %v10954 = vsel %vm3501, %v10953, %v10952
      %v10955 = vrot.slane %v10712, 1
      %v10956 = vsel %vm3504, %v10955, %v10954
      %v10957 = vsel %vm3507, %v10713, %v10956
      %v10958 = vrot.slane %v10714, 7
      %v10959 = vrot.slane %v10715, 6
      %v10960 = vsel %vm3489, %v10959, %v10958
      %v10961 = vrot.slane %v10716, 5
      %v10962 = vsel %vm3492, %v10961, %v10960
      %v10963 = vrot.slane %v10717, 4
      %v10964 = vsel %vm3495, %v10963, %v10962
      %v10965 = vrot.slane %v10718, 3
      %v10966 = vsel %vm3498, %v10965, %v10964
      %v10967 = vrot.slane %v10719, 2
      %v10968 = vsel %vm3501, %v10967, %v10966
      %v10969 = vrot.slane %v10720, 1
      %v10970 = vsel %vm3504, %v10969, %v10968
      %v10971 = vsel %vm3507, %v10721, %v10970
      %v10972 = vrot.slane %v10722, 7
      %v10973 = vrot.slane %v10723, 6
      %v10974 = vsel %vm3489, %v10973, %v10972
      %v10975 = vrot.slane %v10724, 5
      %v10976 = vsel %vm3492, %v10975, %v10974
      %v10977 = vrot.slane %v10725, 4
      %v10978 = vsel %vm3495, %v10977, %v10976
      %v10979 = vrot.slane %v10726, 3
      %v10980 = vsel %vm3498, %v10979, %v10978
      %v10981 = vrot.slane %v10727, 2
      %v10982 = vsel %vm3501, %v10981, %v10980
      %v10983 = vrot.slane %v10728, 1
      %v10984 = vsel %vm3504, %v10983, %v10982
      %v10985 = vsel %vm3507, %v10729, %v10984
      %v10986 = vrot.slane %v10730, 7
      %v10987 = vrot.slane %v10731, 6
      %v10988 = vsel %vm3489, %v10987, %v10986
      %v10989 = vrot.slane %v10732, 5
      %v10990 = vsel %vm3492, %v10989, %v10988
      %v10991 = vrot.slane %v10733, 4
      %v10992 = vsel %vm3495, %v10991, %v10990
      %v10993 = vrot.slane %v10734, 3
      %v10994 = vsel %vm3498, %v10993, %v10992
      %v10995 = vrot.slane %v10735, 2
      %v10996 = vsel %vm3501, %v10995, %v10994
      %v10997 = vrot.slane %v10736, 1
      %v10998 = vsel %vm3504, %v10997, %v10996
      %v10999 = vsel %vm3507, %v10737, %v10998
      %v11000 = vrot.slane %v10738, 7
      %v11001 = vrot.slane %v10739, 6
      %v11002 = vsel %vm3489, %v11001, %v11000
      %v11003 = vrot.slane %v10740, 5
      %v11004 = vsel %vm3492, %v11003, %v11002
      %v11005 = vrot.slane %v10741, 4
      %v11006 = vsel %vm3495, %v11005, %v11004
      %v11007 = vrot.slane %v10742, 3
      %v11008 = vsel %vm3498, %v11007, %v11006
      %v11009 = vrot.slane %v10743, 2
      %v11010 = vsel %vm3501, %v11009, %v11008
      %v11011 = vrot.slane %v10744, 1
      %v11012 = vsel %vm3504, %v11011, %v11010
      %v11013 = vsel %vm3507, %v10745, %v11012
      %v11014 = vrot.slane %v10746, 7
      %v11015 = vrot.slane %v10747, 6
      %v11016 = vsel %vm3489, %v11015, %v11014
      %v11017 = vrot.slane %v10748, 5
      %v11018 = vsel %vm3492, %v11017, %v11016
      %v11019 = vrot.slane %v10749, 4
      %v11020 = vsel %vm3495, %v11019, %v11018
      %v11021 = vrot.slane %v10750, 3
      %v11022 = vsel %vm3498, %v11021, %v11020
      %v11023 = vrot.slane %v10751, 2
      %v11024 = vsel %vm3501, %v11023, %v11022
      %v11025 = vrot.slane %v10752, 1
      %v11026 = vsel %vm3504, %v11025, %v11024
      %v11027 = vsel %vm3507, %v10753, %v11026
      %v11028 = vrot.slane %v10754, 7
      %v11029 = vrot.slane %v10755, 6
      %v11030 = vsel %vm3489, %v11029, %v11028
      %v11031 = vrot.slane %v10756, 5
      %v11032 = vsel %vm3492, %v11031, %v11030
      %v11033 = vrot.slane %v10757, 4
      %v11034 = vsel %vm3495, %v11033, %v11032
      %v11035 = vrot.slane %v10758, 3
      %v11036 = vsel %vm3498, %v11035, %v11034
      %v11037 = vrot.slane %v10759, 2
      %v11038 = vsel %vm3501, %v11037, %v11036
      %v11039 = vrot.slane %v10760, 1
      %v11040 = vsel %vm3504, %v11039, %v11038
      %v11041 = vsel %vm3507, %v10761, %v11040
      %v11042 = vrot.slane %v10762, 7
      %v11043 = vrot.slane %v10763, 6
      %v11044 = vsel %vm3489, %v11043, %v11042
      %v11045 = vrot.slane %v10764, 5
      %v11046 = vsel %vm3492, %v11045, %v11044
      %v11047 = vrot.slane %v10765, 4
      %v11048 = vsel %vm3495, %v11047, %v11046
      %v11049 = vrot.slane %v10766, 3
      %v11050 = vsel %vm3498, %v11049, %v11048
      %v11051 = vrot.slane %v10767, 2
      %v11052 = vsel %vm3501, %v11051, %v11050
      %v11053 = vrot.slane %v10768, 1
      %v11054 = vsel %vm3504, %v11053, %v11052
      %v11055 = vsel %vm3507, %v10769, %v11054
      %v11056 = vrot.slane %v10770, 7
      %v11057 = vrot.slane %v10771, 6
      %v11058 = vsel %vm3489, %v11057, %v11056
      %v11059 = vrot.slane %v10772, 5
      %v11060 = vsel %vm3492, %v11059, %v11058
      %v11061 = vrot.slane %v10773, 4
      %v11062 = vsel %vm3495, %v11061, %v11060
      %v11063 = vrot.slane %v10774, 3
      %v11064 = vsel %vm3498, %v11063, %v11062
      %v11065 = vrot.slane %v10775, 2
      %v11066 = vsel %vm3501, %v11065, %v11064
      %v11067 = vrot.slane %v10776, 1
      %v11068 = vsel %vm3504, %v11067, %v11066
      %v11069 = vsel %vm3507, %v10777, %v11068
      %v11070 = vrot.slane %v10778, 7
      %v11071 = vrot.slane %v10779, 6
      %v11072 = vsel %vm3489, %v11071, %v11070
      %v11073 = vrot.slane %v10780, 5
      %v11074 = vsel %vm3492, %v11073, %v11072
      %v11075 = vrot.slane %v10781, 4
      %v11076 = vsel %vm3495, %v11075, %v11074
      %v11077 = vrot.slane %v10782, 3
      %v11078 = vsel %vm3498, %v11077, %v11076
      %v11079 = vrot.slane %v10783, 2
      %v11080 = vsel %vm3501, %v11079, %v11078
      %v11081 = vrot.slane %v10784, 1
      %v11082 = vsel %vm3504, %v11081, %v11080
      %v11083 = vsel %vm3507, %v10785, %v11082
      %v11084 = vrot.slane %v10786, 7
      %v11085 = vrot.slane %v10787, 6
      %v11086 = vsel %vm3489, %v11085, %v11084
      %v11087 = vrot.slane %v10788, 5
      %v11088 = vsel %vm3492, %v11087, %v11086
      %v11089 = vrot.slane %v10789, 4
      %v11090 = vsel %vm3495, %v11089, %v11088
      %v11091 = vrot.slane %v10790, 3
      %v11092 = vsel %vm3498, %v11091, %v11090
      %v11093 = vrot.slane %v10791, 2
      %v11094 = vsel %vm3501, %v11093, %v11092
      %v11095 = vrot.slane %v10792, 1
      %v11096 = vsel %vm3504, %v11095, %v11094
      %v11097 = vsel %vm3507, %v10793, %v11096
      %v11098 = vrot.slane %v10794, 7
      %v11099 = vrot.slane %v10795, 6
      %v11100 = vsel %vm3489, %v11099, %v11098
      %v11101 = vrot.slane %v10796, 5
      %v11102 = vsel %vm3492, %v11101, %v11100
      %v11103 = vrot.slane %v10797, 4
      %v11104 = vsel %vm3495, %v11103, %v11102
      %v11105 = vrot.slane %v10798, 3
      %v11106 = vsel %vm3498, %v11105, %v11104
      %v11107 = vrot.slane %v10799, 2
      %v11108 = vsel %vm3501, %v11107, %v11106
      %v11109 = vrot.slane %v10800, 1
      %v11110 = vsel %vm3504, %v11109, %v11108
      %v11111 = vsel %vm3507, %v10801, %v11110
      %v11112 = vrot.slane %v10802, 7
      %v11113 = vrot.slane %v10803, 6
      %v11114 = vsel %vm3489, %v11113, %v11112
      %v11115 = vrot.slane %v10804, 5
      %v11116 = vsel %vm3492, %v11115, %v11114
      %v11117 = vrot.slane %v10805, 4
      %v11118 = vsel %vm3495, %v11117, %v11116
      %v11119 = vrot.slane %v10806, 3
      %v11120 = vsel %vm3498, %v11119, %v11118
      %v11121 = vrot.slane %v10807, 2
      %v11122 = vsel %vm3501, %v11121, %v11120
      %v11123 = vrot.slane %v10808, 1
      %v11124 = vsel %vm3504, %v11123, %v11122
      %v11125 = vsel %vm3507, %v10809, %v11124
      %v11126 = vrot.slane %v10810, 7
      %v11127 = vrot.slane %v10811, 6
      %v11128 = vsel %vm3489, %v11127, %v11126
      %v11129 = vrot.slane %v10812, 5
      %v11130 = vsel %vm3492, %v11129, %v11128
      %v11131 = vrot.slane %v10813, 4
      %v11132 = vsel %vm3495, %v11131, %v11130
      %v11133 = vrot.slane %v10814, 3
      %v11134 = vsel %vm3498, %v11133, %v11132
      %v11135 = vrot.slane %v10815, 2
      %v11136 = vsel %vm3501, %v11135, %v11134
      %v11137 = vrot.slane %v10816, 1
      %v11138 = vsel %vm3504, %v11137, %v11136
      %v11139 = vsel %vm3507, %v10817, %v11138
      %v11140 = vrot.slane %v10818, 7
      %v11141 = vrot.slane %v10819, 6
      %v11142 = vsel %vm3489, %v11141, %v11140
      %v11143 = vrot.slane %v10820, 5
      %v11144 = vsel %vm3492, %v11143, %v11142
      %v11145 = vrot.slane %v10821, 4
      %v11146 = vsel %vm3495, %v11145, %v11144
      %v11147 = vrot.slane %v10822, 3
      %v11148 = vsel %vm3498, %v11147, %v11146
      %v11149 = vrot.slane %v10823, 2
      %v11150 = vsel %vm3501, %v11149, %v11148
      %v11151 = vrot.slane %v10824, 1
      %v11152 = vsel %vm3504, %v11151, %v11150
      %v11153 = vsel %vm3507, %v10825, %v11152
      %v11154 = vrot.slane %v10826, 7
      %v11155 = vrot.slane %v10827, 6
      %v11156 = vsel %vm3489, %v11155, %v11154
      %v11157 = vrot.slane %v10828, 5
      %v11158 = vsel %vm3492, %v11157, %v11156
      %v11159 = vrot.slane %v10829, 4
      %v11160 = vsel %vm3495, %v11159, %v11158
      %v11161 = vrot.slane %v10830, 3
      %v11162 = vsel %vm3498, %v11161, %v11160
      %v11163 = vrot.slane %v10831, 2
      %v11164 = vsel %vm3501, %v11163, %v11162
      %v11165 = vrot.slane %v10832, 1
      %v11166 = vsel %vm3504, %v11165, %v11164
      %v11167 = vsel %vm3507, %v10833, %v11166
      %v11168 = vrot.slane %v10834, 7
      %v11169 = vrot.slane %v10835, 6
      %v11170 = vsel %vm3489, %v11169, %v11168
      %v11171 = vrot.slane %v10836, 5
      %v11172 = vsel %vm3492, %v11171, %v11170
      %v11173 = vrot.slane %v10837, 4
      %v11174 = vsel %vm3495, %v11173, %v11172
      %v11175 = vrot.slane %v10838, 3
      %v11176 = vsel %vm3498, %v11175, %v11174
      %v11177 = vrot.slane %v10839, 2
      %v11178 = vsel %vm3501, %v11177, %v11176
      %v11179 = vrot.slane %v10840, 1
      %v11180 = vsel %vm3504, %v11179, %v11178
      %v11181 = vsel %vm3507, %v10841, %v11180
      %v11182 = vrot.slane %v10842, 7
      %v11183 = vrot.slane %v10843, 6
      %v11184 = vsel %vm3489, %v11183, %v11182
      %v11185 = vrot.slane %v10844, 5
      %v11186 = vsel %vm3492, %v11185, %v11184
      %v11187 = vrot.slane %v10845, 4
      %v11188 = vsel %vm3495, %v11187, %v11186
      %v11189 = vpack.c.b16 %v10859, %v10859
      %v11190 = vpack.c.b16 %v10873, %v10873
      %v11191 = vpack.c.b16 %v10887, %v10887
      %v11192 = vpack.c.b16 %v10901, %v10901
      %v11193 = vpack.c.b16 %v10915, %v10915
      %v11194 = vpack.c.b16 %v10929, %v10929
      %v11195 = vpack.c.b16 %v10943, %v10943
      %v11196 = vpack.c.b16 %v10957, %v10957
      %v11197 = vpack.c.b16 %v10971, %v10971
      %v11198 = vpack.c.b16 %v10985, %v10985
      %v11199 = vpack.c.b16 %v10999, %v10999
      %v11200 = vpack.c.b16 %v11013, %v11013
      %v11201 = vpack.c.b16 %v11027, %v11027
      %v11202 = vpack.c.b16 %v11041, %v11041
      %v11203 = vpack.c.b16 %v11055, %v11055
      %v11204 = vpack.c.b16 %v11069, %v11069
      %v11205 = vpack.c.b16 %v11083, %v11083
      %v11206 = vpack.c.b16 %v11097, %v11097
      %v11207 = vpack.c.b16 %v11111, %v11111
      %v11208 = vpack.c.b16 %v11125, %v11125
      %v11209 = vpack.c.b16 %v11139, %v11139
      %v11210 = vpack.c.b16 %v11153, %v11153
      %v11211 = vpack.c.b16 %v11167, %v11167
      %v11212 = vpack.c.b16 %v11181, %v11181
      %v11213 = vpack.c.b16 %v11188, %v11188
      %11214 = vrot.lane.b32.xlu0 %v11189, 56
      %v11215 = vpop.permute.xlu0 %11214
      %11216 = vrot.lane.b32.xlu0 %v11190, 56
      %v11217 = vpop.permute.xlu0 %11216
      %11218 = vrot.lane.b32.xlu0 %v11191, 56
      %v11219 = vpop.permute.xlu0 %11218
      %11220 = vrot.lane.b32.xlu0 %v11192, 56
      %v11221 = vpop.permute.xlu0 %11220
      %11222 = vrot.lane.b32.xlu0 %v11193, 56
      %v11223 = vpop.permute.xlu0 %11222
      %11224 = vrot.lane.b32.xlu0 %v11194, 56
      %v11225 = vpop.permute.xlu0 %11224
      %11226 = vrot.lane.b32.xlu0 %v11195, 56
      %v11227 = vpop.permute.xlu0 %11226
      %11228 = vrot.lane.b32.xlu0 %v11196, 56
      %v11229 = vpop.permute.xlu0 %11228
      %11230 = vrot.lane.b32.xlu0 %v11197, 56
      %v11231 = vpop.permute.xlu0 %11230
      %11232 = vrot.lane.b32.xlu0 %v11198, 56
      %v11233 = vpop.permute.xlu0 %11232
      %11234 = vrot.lane.b32.xlu0 %v11199, 56
      %v11235 = vpop.permute.xlu0 %11234
      %11236 = vrot.lane.b32.xlu0 %v11200, 56
      %v11237 = vpop.permute.xlu0 %11236
      %11238 = vrot.lane.b32.xlu0 %v11201, 56
      %v11239 = vpop.permute.xlu0 %11238
      %11240 = vrot.lane.b32.xlu0 %v11202, 56
      %v11241 = vpop.permute.xlu0 %11240
      %11242 = vrot.lane.b32.xlu0 %v11203, 56
      %v11243 = vpop.permute.xlu0 %11242
      %11244 = vrot.lane.b32.xlu0 %v11204, 56
      %v11245 = vpop.permute.xlu0 %11244
      %11246 = vrot.lane.b32.xlu0 %v11205, 56
      %v11247 = vpop.permute.xlu0 %11246
      %11248 = vrot.lane.b32.xlu0 %v11206, 56
      %v11249 = vpop.permute.xlu0 %11248
      %11250 = vrot.lane.b32.xlu0 %v11207, 56
      %v11251 = vpop.permute.xlu0 %11250
      %11252 = vrot.lane.b32.xlu0 %v11208, 56
      %v11253 = vpop.permute.xlu0 %11252
      %11254 = vrot.lane.b32.xlu0 %v11209, 56
      %v11255 = vpop.permute.xlu0 %11254
      %11256 = vrot.lane.b32.xlu0 %v11210, 56
      %v11257 = vpop.permute.xlu0 %11256
      %11258 = vrot.lane.b32.xlu0 %v11211, 56
      %v11259 = vpop.permute.xlu0 %11258
      %11260 = vrot.lane.b32.xlu0 %v11212, 56
      %v11261 = vpop.permute.xlu0 %11260
      %11262 = vrot.lane.b32.xlu0 %v11213, 56
      %v11263 = vpop.permute.xlu0 %11262
      %vm11289 = vcmask 519616
      %11290 = vst.msk [vmem:[#allocation3] sm:$0xf] %vm11289, %v11215
      %11291 = vst.msk [vmem:[#allocation3 + $0x4] sm:$0xf] %vm11289, %v11217
      %11292 = vst.msk [vmem:[#allocation3 + $0x8] sm:$0xf] %vm11289, %v11219
      %11293 = vst.msk [vmem:[#allocation3 + $0xc] sm:$0xf] %vm11289, %v11221
      %11294 = vst.msk [vmem:[#allocation3 + $0x10] sm:$0xf] %vm11289, %v11223
      %11295 = vst.msk [vmem:[#allocation3 + $0x14] sm:$0xf] %vm11289, %v11225
      %11296 = vst.msk [vmem:[#allocation3 + $0x18] sm:$0xf] %vm11289, %v11227
      %11297 = vst.msk [vmem:[#allocation3 + $0x1c] sm:$0xf] %vm11289, %v11229
      %11298 = vst.msk [vmem:[#allocation3 + $0x20] sm:$0xf] %vm11289, %v11231
      %11299 = vst.msk [vmem:[#allocation3 + $0x24] sm:$0xf] %vm11289, %v11233
      %11300 = vst.msk [vmem:[#allocation3 + $0x28] sm:$0xf] %vm11289, %v11235
      %11301 = vst.msk [vmem:[#allocation3 + $0x2c] sm:$0xf] %vm11289, %v11237
      %11302 = vst.msk [vmem:[#allocation3 + $0x30] sm:$0xf] %vm11289, %v11239
      %11303 = vst.msk [vmem:[#allocation3 + $0x34] sm:$0xf] %vm11289, %v11241
      %11304 = vst.msk [vmem:[#allocation3 + $0x38] sm:$0xf] %vm11289, %v11243
      %11305 = vst.msk [vmem:[#allocation3 + $0x3c] sm:$0xf] %vm11289, %v11245
      %11306 = vst.msk [vmem:[#allocation3 + $0x40] sm:$0xf] %vm11289, %v11247
      %11307 = vst.msk [vmem:[#allocation3 + $0x44] sm:$0xf] %vm11289, %v11249
      %11308 = vst.msk [vmem:[#allocation3 + $0x48] sm:$0xf] %vm11289, %v11251
      %11309 = vst.msk [vmem:[#allocation3 + $0x4c] sm:$0xf] %vm11289, %v11253
      %11310 = vst.msk [vmem:[#allocation3 + $0x50] sm:$0xf] %vm11289, %v11255
      %11311 = vst.msk [vmem:[#allocation3 + $0x54] sm:$0xf] %vm11289, %v11257
      %11312 = vst.msk [vmem:[#allocation3 + $0x58] sm:$0xf] %vm11289, %v11259
      %11313 = vst.msk [vmem:[#allocation3 + $0x5c] sm:$0xf] %vm11289, %v11261
      %vm11314 = vcmask 517568
      %11315 = vst.msk [vmem:[#allocation3 + $0x60] sm:$0x3] %vm11314, %v11263
      %v11316 = vld [vmem:[%s1] sm:$0x77]
      %v11317 = vld [vmem:[#allocation3] sm:$0xf]
      %v11318 = vld [vmem:[#allocation3 + $0x4] sm:$0xf]
      %v11319 = vld [vmem:[#allocation3 + $0x8] sm:$0xf]
      %v11320 = vld [vmem:[#allocation3 + $0xc] sm:$0xf]
      %v11321 = vld [vmem:[#allocation3 + $0x10] sm:$0xf]
      %v11322 = vld [vmem:[#allocation3 + $0x14] sm:$0xf]
      %v11323 = vld [vmem:[#allocation3 + $0x18] sm:$0xf]
      %v11324 = vld [vmem:[#allocation3 + $0x1c] sm:$0xf]
      %v11325 = vld [vmem:[#allocation3 + $0x20] sm:$0xf]
      %v11326 = vld [vmem:[#allocation3 + $0x24] sm:$0xf]
      %v11327 = vld [vmem:[#allocation3 + $0x28] sm:$0xf]
      %v11328 = vld [vmem:[#allocation3 + $0x2c] sm:$0xf]
      %v11329 = vld [vmem:[#allocation3 + $0x30] sm:$0xf]
      %v11330 = vld [vmem:[#allocation3 + $0x34] sm:$0xf]
      %v11331 = vld [vmem:[#allocation3 + $0x38] sm:$0xf]
      %v11332 = vld [vmem:[#allocation3 + $0x3c] sm:$0xf]
      %v11333 = vld [vmem:[#allocation3 + $0x40] sm:$0xf]
      %v11334 = vld [vmem:[#allocation3 + $0x44] sm:$0xf]
      %v11335 = vld [vmem:[#allocation3 + $0x48] sm:$0xf]
      %v11336 = vld [vmem:[#allocation3 + $0x4c] sm:$0xf]
      %v11337 = vld [vmem:[#allocation3 + $0x50] sm:$0xf]
      %v11338 = vld [vmem:[#allocation3 + $0x54] sm:$0xf]
      %v11339 = vld [vmem:[#allocation3 + $0x58] sm:$0xf]
      %v11340 = vld [vmem:[#allocation3 + $0x5c] sm:$0xf]
      %v11341 = vld [vmem:[#allocation3 + $0x60] sm:$0x3]
      %v11343 = vunpack.c.l.b16 %v11316
      %v11344 = vunpack.c.h.b16 %v11316
      %v11345 = vpack.c.b16 %v11343, %v11343
      %v11346 = vpack.c.b16 %v11344, %v11344
      %v11373 = vunpack.c.l.b16 %v11317
      %v11374 = vunpack.c.l.b16 %v11318
      %v11375 = vunpack.c.l.b16 %v11319
      %v11376 = vunpack.c.l.b16 %v11320
      %v11377 = vunpack.c.l.b16 %v11321
      %v11378 = vunpack.c.l.b16 %v11322
      %v11379 = vunpack.c.l.b16 %v11323
      %v11380 = vunpack.c.l.b16 %v11324
      %v11381 = vunpack.c.l.b16 %v11325
      %v11382 = vunpack.c.l.b16 %v11326
      %v11383 = vunpack.c.l.b16 %v11327
      %v11384 = vunpack.c.l.b16 %v11328
      %v11385 = vunpack.c.l.b16 %v11329
      %v11386 = vunpack.c.l.b16 %v11330
      %v11387 = vunpack.c.l.b16 %v11331
      %v11388 = vunpack.c.l.b16 %v11332
      %v11389 = vunpack.c.l.b16 %v11333
      %v11390 = vunpack.c.l.b16 %v11334
      %v11391 = vunpack.c.l.b16 %v11335
      %v11392 = vunpack.c.l.b16 %v11336
      %v11393 = vunpack.c.l.b16 %v11337
      %v11394 = vunpack.c.l.b16 %v11338
      %v11395 = vunpack.c.l.b16 %v11339
      %v11396 = vunpack.c.l.b16 %v11340
      %v11397 = vunpack.c.l.b16 %v11341
      %v11398 = vpack.c.b16 %v11374, %v11373
      %v11399 = vpack.c.b16 %v11376, %v11375
      %v11400 = vpack.c.b16 %v11378, %v11377
      %v11401 = vpack.c.b16 %v11380, %v11379
      %v11402 = vpack.c.b16 %v11382, %v11381
      %v11403 = vpack.c.b16 %v11384, %v11383
      %v11404 = vpack.c.b16 %v11386, %v11385
      %v11405 = vpack.c.b16 %v11388, %v11387
      %v11406 = vpack.c.b16 %v11390, %v11389
      %v11407 = vpack.c.b16 %v11392, %v11391
      %v11408 = vpack.c.b16 %v11394, %v11393
      %v11409 = vpack.c.b16 %v11396, %v11395
      %v11410 = vpack.c.b16 %v11397, %v11397
      %vm11423 = vcmask 556032
      %v11425 = vsel %vm11423, %v11346, 0
      %vm11427 = vcmask 1041408
      %v11429 = vsel %vm11427, %v11410, 0
      %11431 = vmatprep.subr.bf16.mxu0 0
      %11432 = vmatpush1.bf16.msra.mxu0 %v11405
      %11433 = vmatprep.subr.bf16.mxu0 0
      %11434 = vmatpush1.bf16.msra.mxu0 %v11404
      %11435 = vmatprep.subr.bf16.mxu0 0
      %11436 = vmatpush1.bf16.msra.mxu0 %v11403
      %11437 = vmatprep.subr.bf16.mxu0 0
      %11438 = vmatpush1.bf16.msra.mxu0 %v11402
      %11439 = vmatprep.subr.bf16.mxu0 0
      %11440 = vmatpush1.bf16.msra.mxu0 %v11401
      %11441 = vmatprep.subr.bf16.mxu0 0
      %11442 = vmatpush1.bf16.msra.mxu0 %v11400
      %11443 = vmatprep.subr.bf16.mxu0 0
      %11444 = vmatpush1.bf16.msra.mxu0 %v11399
      %11445 = vmatprep.subr.bf16.mxu0 0
      %11446 = vmatpush1.bf16.msra.mxu0 %v11398
      %11447 = vmatprep.subr.bf16.mxu0 0
      %11448 = vmatpush2.bf16.msra.mxu0 0
      %11449 = vmatprep.subr.bf16.mxu0 0
      %11450 = vmatpush2.bf16.msra.mxu0 0
      %11451 = vmatprep.subr.bf16.mxu0 0
      %11452 = vmatpush2.bf16.msra.mxu0 0
      %11453 = vmatprep.subr.bf16.mxu0 0
      %11454 = vmatpush2.bf16.msra.mxu0 %v11429
      %11455 = vmatprep.subr.bf16.mxu0 0
      %11456 = vmatpush2.bf16.msra.mxu0 %v11409
      %11457 = vmatprep.subr.bf16.mxu0 0
      %11458 = vmatpush2.bf16.msra.mxu0 %v11408
      %11459 = vmatprep.subr.bf16.mxu0 0
      %11460 = vmatpush2.bf16.msra.mxu0 %v11407
      %11461 = vmatprep.subr.bf16.mxu0 0
      %11462 = vmatpush2.bf16.msra.mxu0 %v11406
      %11463 = vmatprep.mubr.bf16.mxu0 %v11425
      %11464 = vmatmul.mubr.bf16.gmra.mxu0 %v11345
      %v11465 = vpop.f32.mrf.mxu0
      %v11466 = vadd.f32 0.0, %v11465
      %v11467 = vpop.f32.mrf.mxu0
      %v11468 = vpop.f32.mrf.mxu0
      %v11469 = vpop.f32.mrf.mxu0
      %11470 = vdwg.mxu0
      %vm11471 = vcmask 521216
      %v11472 = vsel %vm11471, %v11466, 0.0
      %11473 = vadd.xlane.f32.xlu0 %v11472
      %v11474 = vpop.xlane.xlu0 %11473
      %v11475 = vmul.f32 %v11466, %v11466
      %v11476 = vsel %vm11471, %v11475, 0.0
      %11477 = vadd.xlane.f32.xlu0 %v11476
      %v11478 = vpop.xlane.xlu0 %11477
      %vm11479 = vcmask 7168
      %v11480 = vsel %vm11479, %v11474, %v11478
      %vm11481 = vcmask 13312
      %11482 = vst.msk [vmem:[%s181] sm:$0x3f] %vm11481, %v11480
      %v11484 = vcombine.high %v11466, %v11466
      %v11486 = vunpack.c.l.s4 1966171168
      %v11487 = vunpack.c.0.s8 %v11486
      %v11488 = vlaneseq
      %v11489 = vshrl.u32 %v11488, 7
      %v11490 = vsub.s32 %v11487, %v11489
      %v11491 = vrot.slane %v11466, %v11490
      %v11493 = vunpack.c.l.s4 1966171168
      %v11494 = vunpack.c.0.s8 %v11493
      %v11495 = vlaneseq
      %v11496 = vshrl.u32 %v11495, 7
      %v11497 = vsub.s32 %v11494, %v11496
      %v11498 = vrot.slane %v11484, %v11497
      %v11499 = vcombine.high %v11491, %v11491
      %v11500 = vcombine.high %v11498, %v11498
      %v11502 = vunpack.c.l.s4 1966171168
      %v11503 = vunpack.c.0.s8 %v11502
      %v11504 = vlaneseq
      %v11505 = vshrl.u32 %v11504, 7
      %v11506 = vsub.s32 %v11503, %v11505
      %v11507 = vrot.slane %v11491, %v11506
      %v11509 = vunpack.c.l.s4 1966171168
      %v11510 = vunpack.c.0.s8 %v11509
      %v11511 = vlaneseq
      %v11512 = vshrl.u32 %v11511, 7
      %v11513 = vsub.s32 %v11510, %v11512
      %v11514 = vrot.slane %v11498, %v11513
      %v11516 = vunpack.c.l.s4 1966171168
      %v11517 = vunpack.c.0.s8 %v11516
      %v11518 = vlaneseq
      %v11519 = vshrl.u32 %v11518, 7
      %v11520 = vsub.s32 %v11517, %v11519
      %v11521 = vrot.slane %v11499, %v11520
      %v11523 = vunpack.c.l.s4 1966171168
      %v11524 = vunpack.c.0.s8 %v11523
      %v11525 = vlaneseq
      %v11526 = vshrl.u32 %v11525, 7
      %v11527 = vsub.s32 %v11524, %v11526
      %v11528 = vrot.slane %v11500, %v11527
      %v11529 = vcombine.high %v11507, %v11507
      %v11530 = vcombine.high %v11521, %v11521
      %vm11537 = vcmask 57344
      %11538 = vst.msk [vmem:[#allocation4] sm:$0x1] %vm11537, %v11507
      %11539 = vst.msk [vmem:[#allocation4 + $0x8] sm:$0x1] %vm11537, %v11521
      %11540 = vst.msk [vmem:[#allocation4 + $0x10] sm:$0x1] %vm11537, %v11529
      %11541 = vst.msk [vmem:[#allocation4 + $0x18] sm:$0x1] %vm11537, %v11530
      %11542 = vst.msk [vmem:[#allocation4 + $0x20] sm:$0x1] %vm11537, %v11514
      %11543 = vst.msk [vmem:[#allocation4 + $0x28] sm:$0x1] %vm11537, %v11528
      %v11544 = vlaneseq
      %v11545 = vshrl.u32 %v11544, 7
      %v11546 = vsub.s32 0, %v11545
      %v11547 = vrot.slane %v11507, %v11546
      %v11548 = vlaneseq
      %v11549 = vshrl.u32 %v11548, 7
      %v11550 = vsub.s32 0, %v11549
      %v11551 = vrot.slane %v11521, %v11550
      %v11552 = vlaneseq
      %v11553 = vshrl.u32 %v11552, 7
      %v11554 = vsub.s32 0, %v11553
      %v11555 = vrot.slane %v11529, %v11554
      %v11556 = vlaneseq
      %v11557 = vshrl.u32 %v11556, 7
      %v11558 = vsub.s32 0, %v11557
      %v11559 = vrot.slane %v11530, %v11558
      %v11560 = vlaneseq
      %v11561 = vshrl.u32 %v11560, 7
      %v11562 = vsub.s32 0, %v11561
      %v11563 = vrot.slane %v11514, %v11562
      %v11564 = vlaneseq
      %v11565 = vshrl.u32 %v11564, 7
      %v11566 = vsub.s32 0, %v11565
      %v11567 = vrot.slane %v11528, %v11566
      %11568 = vrot.lane.b32.xlu0 %v11547, 120
      %v11569 = vpop.permute.xlu0 %11568
      %11570 = vrot.lane.b32.xlu0 %v11551, 120
      %v11571 = vpop.permute.xlu0 %11570
      %11572 = vrot.lane.b32.xlu0 %v11555, 120
      %v11573 = vpop.permute.xlu0 %11572
      %11574 = vrot.lane.b32.xlu0 %v11559, 120
      %v11575 = vpop.permute.xlu0 %11574
      %11576 = vrot.lane.b32.xlu0 %v11563, 120
      %v11577 = vpop.permute.xlu0 %11576
      %11578 = vrot.lane.b32.xlu0 %v11567, 120
      %v11579 = vpop.permute.xlu0 %11578
      %11586 = vst.msk [vmem:[#allocation4 + $0x1] sm:$0x1] %vm11537, %v11569
      %11587 = vst.msk [vmem:[#allocation4 + $0x9] sm:$0x1] %vm11537, %v11571
      %11588 = vst.msk [vmem:[#allocation4 + $0x11] sm:$0x1] %vm11537, %v11573
      %11589 = vst.msk [vmem:[#allocation4 + $0x19] sm:$0x1] %vm11537, %v11575
      %11590 = vst.msk [vmem:[#allocation4 + $0x21] sm:$0x1] %vm11537, %v11577
      %11591 = vst.msk [vmem:[#allocation4 + $0x29] sm:$0x1] %vm11537, %v11579
      %11592 = vrot.lane.b32.xlu0 %v11547, 112
      %v11593 = vpop.permute.xlu0 %11592
      %11594 = vrot.lane.b32.xlu0 %v11551, 112
      %v11595 = vpop.permute.xlu0 %11594
      %11596 = vrot.lane.b32.xlu0 %v11555, 112
      %v11597 = vpop.permute.xlu0 %11596
      %11598 = vrot.lane.b32.xlu0 %v11559, 112
      %v11599 = vpop.permute.xlu0 %11598
      %11600 = vrot.lane.b32.xlu0 %v11563, 112
      %v11601 = vpop.permute.xlu0 %11600
      %11602 = vrot.lane.b32.xlu0 %v11567, 112
      %v11603 = vpop.permute.xlu0 %11602
      %11610 = vst.msk [vmem:[#allocation4 + $0x2] sm:$0x1] %vm11537, %v11593
      %11611 = vst.msk [vmem:[#allocation4 + $0xa] sm:$0x1] %vm11537, %v11595
      %11612 = vst.msk [vmem:[#allocation4 + $0x12] sm:$0x1] %vm11537, %v11597
      %11613 = vst.msk [vmem:[#allocation4 + $0x1a] sm:$0x1] %vm11537, %v11599
      %11614 = vst.msk [vmem:[#allocation4 + $0x22] sm:$0x1] %vm11537, %v11601
      %11615 = vst.msk [vmem:[#allocation4 + $0x2a] sm:$0x1] %vm11537, %v11603
      %11616 = vrot.lane.b32.xlu0 %v11547, 104
      %v11617 = vpop.permute.xlu0 %11616
      %11618 = vrot.lane.b32.xlu0 %v11551, 104
      %v11619 = vpop.permute.xlu0 %11618
      %11620 = vrot.lane.b32.xlu0 %v11555, 104
      %v11621 = vpop.permute.xlu0 %11620
      %11622 = vrot.lane.b32.xlu0 %v11559, 104
      %v11623 = vpop.permute.xlu0 %11622
      %11624 = vrot.lane.b32.xlu0 %v11563, 104
      %v11625 = vpop.permute.xlu0 %11624
      %11626 = vrot.lane.b32.xlu0 %v11567, 104
      %v11627 = vpop.permute.xlu0 %11626
      %11634 = vst.msk [vmem:[#allocation4 + $0x3] sm:$0x1] %vm11537, %v11617
      %11635 = vst.msk [vmem:[#allocation4 + $0xb] sm:$0x1] %vm11537, %v11619
      %11636 = vst.msk [vmem:[#allocation4 + $0x13] sm:$0x1] %vm11537, %v11621
      %11637 = vst.msk [vmem:[#allocation4 + $0x1b] sm:$0x1] %vm11537, %v11623
      %11638 = vst.msk [vmem:[#allocation4 + $0x23] sm:$0x1] %vm11537, %v11625
      %11639 = vst.msk [vmem:[#allocation4 + $0x2b] sm:$0x1] %vm11537, %v11627
      %11640 = vrot.lane.b32.xlu0 %v11547, 96
      %v11641 = vpop.permute.xlu0 %11640
      %11642 = vrot.lane.b32.xlu0 %v11551, 96
      %v11643 = vpop.permute.xlu0 %11642
      %11644 = vrot.lane.b32.xlu0 %v11555, 96
      %v11645 = vpop.permute.xlu0 %11644
      %11646 = vrot.lane.b32.xlu0 %v11559, 96
      %v11647 = vpop.permute.xlu0 %11646
      %11648 = vrot.lane.b32.xlu0 %v11563, 96
      %v11649 = vpop.permute.xlu0 %11648
      %11650 = vrot.lane.b32.xlu0 %v11567, 96
      %v11651 = vpop.permute.xlu0 %11650
      %11658 = vst.msk [vmem:[#allocation4 + $0x4] sm:$0x1] %vm11537, %v11641
      %11659 = vst.msk [vmem:[#allocation4 + $0xc] sm:$0x1] %vm11537, %v11643
      %11660 = vst.msk [vmem:[#allocation4 + $0x14] sm:$0x1] %vm11537, %v11645
      %11661 = vst.msk [vmem:[#allocation4 + $0x1c] sm:$0x1] %vm11537, %v11647
      %11662 = vst.msk [vmem:[#allocation4 + $0x24] sm:$0x1] %vm11537, %v11649
      %11663 = vst.msk [vmem:[#allocation4 + $0x2c] sm:$0x1] %vm11537, %v11651
      %11664 = vrot.lane.b32.xlu0 %v11547, 88
      %v11665 = vpop.permute.xlu0 %11664
      %11666 = vrot.lane.b32.xlu0 %v11551, 88
      %v11667 = vpop.permute.xlu0 %11666
      %11668 = vrot.lane.b32.xlu0 %v11555, 88
      %v11669 = vpop.permute.xlu0 %11668
      %11670 = vrot.lane.b32.xlu0 %v11559, 88
      %v11671 = vpop.permute.xlu0 %11670
      %11672 = vrot.lane.b32.xlu0 %v11563, 88
      %v11673 = vpop.permute.xlu0 %11672
      %11674 = vrot.lane.b32.xlu0 %v11567, 88
      %v11675 = vpop.permute.xlu0 %11674
      %11682 = vst.msk [vmem:[#allocation4 + $0x5] sm:$0x1] %vm11537, %v11665
      %11683 = vst.msk [vmem:[#allocation4 + $0xd] sm:$0x1] %vm11537, %v11667
      %11684 = vst.msk [vmem:[#allocation4 + $0x15] sm:$0x1] %vm11537, %v11669
      %11685 = vst.msk [vmem:[#allocation4 + $0x1d] sm:$0x1] %vm11537, %v11671
      %11686 = vst.msk [vmem:[#allocation4 + $0x25] sm:$0x1] %vm11537, %v11673
      %11687 = vst.msk [vmem:[#allocation4 + $0x2d] sm:$0x1] %vm11537, %v11675
      %11688 = vrot.lane.b32.xlu0 %v11547, 80
      %v11689 = vpop.permute.xlu0 %11688
      %11690 = vrot.lane.b32.xlu0 %v11551, 80
      %v11691 = vpop.permute.xlu0 %11690
      %11692 = vrot.lane.b32.xlu0 %v11555, 80
      %v11693 = vpop.permute.xlu0 %11692
      %11694 = vrot.lane.b32.xlu0 %v11559, 80
      %v11695 = vpop.permute.xlu0 %11694
      %11696 = vrot.lane.b32.xlu0 %v11563, 80
      %v11697 = vpop.permute.xlu0 %11696
      %11698 = vrot.lane.b32.xlu0 %v11567, 80
      %v11699 = vpop.permute.xlu0 %11698
      %11706 = vst.msk [vmem:[#allocation4 + $0x6] sm:$0x1] %vm11537, %v11689
      %11707 = vst.msk [vmem:[#allocation4 + $0xe] sm:$0x1] %vm11537, %v11691
      %11708 = vst.msk [vmem:[#allocation4 + $0x16] sm:$0x1] %vm11537, %v11693
      %11709 = vst.msk [vmem:[#allocation4 + $0x1e] sm:$0x1] %vm11537, %v11695
      %11710 = vst.msk [vmem:[#allocation4 + $0x26] sm:$0x1] %vm11537, %v11697
      %11711 = vst.msk [vmem:[#allocation4 + $0x2e] sm:$0x1] %vm11537, %v11699
      %11712 = vrot.lane.b32.xlu0 %v11547, 72
      %v11713 = vpop.permute.xlu0 %11712
      %11714 = vrot.lane.b32.xlu0 %v11551, 72
      %v11715 = vpop.permute.xlu0 %11714
      %11716 = vrot.lane.b32.xlu0 %v11555, 72
      %v11717 = vpop.permute.xlu0 %11716
      %11718 = vrot.lane.b32.xlu0 %v11559, 72
      %v11719 = vpop.permute.xlu0 %11718
      %11720 = vrot.lane.b32.xlu0 %v11563, 72
      %v11721 = vpop.permute.xlu0 %11720
      %11722 = vrot.lane.b32.xlu0 %v11567, 72
      %v11723 = vpop.permute.xlu0 %11722
      %11730 = vst.msk [vmem:[#allocation4 + $0x7] sm:$0x1] %vm11537, %v11713
      %11731 = vst.msk [vmem:[#allocation4 + $0xf] sm:$0x1] %vm11537, %v11715
      %11732 = vst.msk [vmem:[#allocation4 + $0x17] sm:$0x1] %vm11537, %v11717
      %11733 = vst.msk [vmem:[#allocation4 + $0x1f] sm:$0x1] %vm11537, %v11719
      %11734 = vst.msk [vmem:[#allocation4 + $0x27] sm:$0x1] %vm11537, %v11721
      %11735 = vst.msk [vmem:[#allocation4 + $0x2f] sm:$0x1] %vm11537, %v11723
      %v11736 = vld [vmem:[#allocation4] sm:$0xff]
      %v11737 = vld [vmem:[#allocation4 + $0x8] sm:$0xff]
      %v11738 = vld [vmem:[#allocation4 + $0x10] sm:$0xff]
      %v11739 = vld [vmem:[#allocation4 + $0x18] sm:$0xff]
      %v11740 = vld [vmem:[#allocation4 + $0x20] sm:$0xff]
      %v11741 = vld [vmem:[#allocation4 + $0x28] sm:$0xff]
      %vm11742 = vcmask 15360
      %v11743 = vsel %vm11742, %v11736, -inf
      %11744 = vmax.xlane.f32.xlu0 %v11743
      %v11745 = vpop.xlane.xlu0 %11744
      %v11746 = vsel %vm11742, %v11737, -inf
      %11747 = vmax.xlane.f32.xlu0 %v11746
      %v11748 = vpop.xlane.xlu0 %11747
      %v11749 = vsel %vm11742, %v11738, -inf
      %11750 = vmax.xlane.f32.xlu0 %v11749
      %v11751 = vpop.xlane.xlu0 %11750
      %v11752 = vsel %vm11742, %v11739, -inf
      %11753 = vmax.xlane.f32.xlu0 %v11752
      %v11754 = vpop.xlane.xlu0 %11753
      %v11755 = vsel %vm11742, %v11740, -inf
      %11756 = vmax.xlane.f32.xlu0 %v11755
      %v11757 = vpop.xlane.xlu0 %11756
      %v11758 = vsel %vm11742, %v11741, -inf
      %11759 = vmax.xlane.f32.xlu0 %v11758
      %v11760 = vpop.xlane.xlu0 %11759
      %vm11761 = vcmask 31752
      %v11762 = vsel %vm11761, %v11736, -inf
      %11763 = vmax.xlane.f32.xlu0 %v11762
      %v11764 = vpop.xlane.xlu0 %11763
      %v11765 = vsel %vm11761, %v11737, -inf
      %11766 = vmax.xlane.f32.xlu0 %v11765
      %v11767 = vpop.xlane.xlu0 %11766
      %v11768 = vsel %vm11761, %v11738, -inf
      %11769 = vmax.xlane.f32.xlu0 %v11768
      %v11770 = vpop.xlane.xlu0 %11769
      %v11771 = vsel %vm11761, %v11739, -inf
      %11772 = vmax.xlane.f32.xlu0 %v11771
      %v11773 = vpop.xlane.xlu0 %11772
      %v11774 = vsel %vm11761, %v11740, -inf
      %11775 = vmax.xlane.f32.xlu0 %v11774
      %v11776 = vpop.xlane.xlu0 %11775
      %v11777 = vsel %vm11761, %v11741, -inf
      %11778 = vmax.xlane.f32.xlu0 %v11777
      %v11779 = vpop.xlane.xlu0 %11778
      %vm11780 = vcmask 48152
      %v11781 = vsel %vm11780, %v11736, -inf
      %11782 = vmax.xlane.f32.xlu0 %v11781
      %v11783 = vpop.xlane.xlu0 %11782
      %v11784 = vsel %vm11780, %v11737, -inf
      %11785 = vmax.xlane.f32.xlu0 %v11784
      %v11786 = vpop.xlane.xlu0 %11785
      %v11787 = vsel %vm11780, %v11738, -inf
      %11788 = vmax.xlane.f32.xlu0 %v11787
      %v11789 = vpop.xlane.xlu0 %11788
      %v11790 = vsel %vm11780, %v11739, -inf
      %11791 = vmax.xlane.f32.xlu0 %v11790
      %v11792 = vpop.xlane.xlu0 %11791
      %v11793 = vsel %vm11780, %v11740, -inf
      %11794 = vmax.xlane.f32.xlu0 %v11793
      %v11795 = vpop.xlane.xlu0 %11794
      %v11796 = vsel %vm11780, %v11741, -inf
      %11797 = vmax.xlane.f32.xlu0 %v11796
      %v11798 = vpop.xlane.xlu0 %11797
      %vm11799 = vcmask 64552
      %v11800 = vsel %vm11799, %v11736, -inf
      %11801 = vmax.xlane.f32.xlu0 %v11800
      %v11802 = vpop.xlane.xlu0 %11801
      %v11803 = vsel %vm11799, %v11737, -inf
      %11804 = vmax.xlane.f32.xlu0 %v11803
      %v11805 = vpop.xlane.xlu0 %11804
      %v11806 = vsel %vm11799, %v11738, -inf
      %11807 = vmax.xlane.f32.xlu0 %v11806
      %v11808 = vpop.xlane.xlu0 %11807
      %v11809 = vsel %vm11799, %v11739, -inf
      %11810 = vmax.xlane.f32.xlu0 %v11809
      %v11811 = vpop.xlane.xlu0 %11810
      %v11812 = vsel %vm11799, %v11740, -inf
      %11813 = vmax.xlane.f32.xlu0 %v11812
      %v11814 = vpop.xlane.xlu0 %11813
      %v11815 = vsel %vm11799, %v11741, -inf
      %11816 = vmax.xlane.f32.xlu0 %v11815
      %v11817 = vpop.xlane.xlu0 %11816
      %v11818 = vsel %vm11479, %v11745, %v11764
      %v11819 = vsel %vm11479, %v11748, %v11767
      %v11820 = vsel %vm11479, %v11751, %v11770
      %v11821 = vsel %vm11479, %v11754, %v11773
      %v11822 = vsel %vm11479, %v11757, %v11776
      %v11823 = vsel %vm11479, %v11760, %v11779
      %v11824 = vsel %vm11742, %v11818, %v11783
      %v11825 = vsel %vm11742, %v11819, %v11786
      %v11826 = vsel %vm11742, %v11820, %v11789
      %v11827 = vsel %vm11742, %v11821, %v11792
      %v11828 = vsel %vm11742, %v11822, %v11795
      %v11829 = vsel %vm11742, %v11823, %v11798
      %vm11830 = vcmask 23552
      %v11831 = vsel %vm11830, %v11824, %v11802
      %v11832 = vsel %vm11830, %v11825, %v11805
      %v11833 = vsel %vm11830, %v11826, %v11808
      %v11834 = vsel %vm11830, %v11827, %v11811
      %v11835 = vsel %vm11830, %v11828, %v11814
      %v11836 = vsel %vm11830, %v11829, %v11817
      %vm11837 = vcmask 25600
      %v11838 = vsel %vm11837, %v11831, -inf
      %v11839 = vrot.slane %v11838, 4
      %v11840 = vmax.f32 %v11838, %v11839
      %v11841 = vrot.slane %v11840, 2
      %v11842 = vmax.f32 %v11840, %v11841
      %v11843 = vrot.slane %v11842, 1
      %v11844 = vmax.f32 %v11842, %v11843
      %v11845 = vsel %vm11837, %v11832, -inf
      %v11846 = vrot.slane %v11845, 4
      %v11847 = vmax.f32 %v11845, %v11846
      %v11848 = vrot.slane %v11847, 2
      %v11849 = vmax.f32 %v11847, %v11848
      %v11850 = vrot.slane %v11849, 1
      %v11851 = vmax.f32 %v11849, %v11850
      %v11852 = vsel %vm11837, %v11833, -inf
      %v11853 = vrot.slane %v11852, 4
      %v11854 = vmax.f32 %v11852, %v11853
      %v11855 = vrot.slane %v11854, 2
      %v11856 = vmax.f32 %v11854, %v11855
      %v11857 = vrot.slane %v11856, 1
      %v11858 = vmax.f32 %v11856, %v11857
      %v11859 = vsel %vm11837, %v11834, -inf
      %v11860 = vrot.slane %v11859, 4
      %v11861 = vmax.f32 %v11859, %v11860
      %v11862 = vrot.slane %v11861, 2
      %v11863 = vmax.f32 %v11861, %v11862
      %v11864 = vrot.slane %v11863, 1
      %v11865 = vmax.f32 %v11863, %v11864
      %v11866 = vsel %vm11837, %v11835, -inf
      %v11867 = vrot.slane %v11866, 4
      %v11868 = vmax.f32 %v11866, %v11867
      %v11869 = vrot.slane %v11868, 2
      %v11870 = vmax.f32 %v11868, %v11869
      %v11871 = vrot.slane %v11870, 1
      %v11872 = vmax.f32 %v11870, %v11871
      %v11873 = vsel %vm11837, %v11836, -inf
      %v11874 = vrot.slane %v11873, 4
      %v11875 = vmax.f32 %v11873, %v11874
      %v11876 = vrot.slane %v11875, 2
      %v11877 = vmax.f32 %v11875, %v11876
      %v11878 = vrot.slane %v11877, 1
      %v11879 = vmax.f32 %v11877, %v11878
      %vm11880 = vcmask 27649
      %v11881 = vsel %vm11880, %v11831, -inf
      %v11882 = vrot.slane %v11881, 4
      %v11883 = vmax.f32 %v11881, %v11882
      %v11884 = vrot.slane %v11883, 2
      %v11885 = vmax.f32 %v11883, %v11884
      %v11886 = vrot.slane %v11885, 1
      %v11887 = vmax.f32 %v11885, %v11886
      %v11888 = vsel %vm11880, %v11832, -inf
      %v11889 = vrot.slane %v11888, 4
      %v11890 = vmax.f32 %v11888, %v11889
      %v11891 = vrot.slane %v11890, 2
      %v11892 = vmax.f32 %v11890, %v11891
      %v11893 = vrot.slane %v11892, 1
      %v11894 = vmax.f32 %v11892, %v11893
      %v11895 = vsel %vm11880, %v11833, -inf
      %v11896 = vrot.slane %v11895, 4
      %v11897 = vmax.f32 %v11895, %v11896
      %v11898 = vrot.slane %v11897, 2
      %v11899 = vmax.f32 %v11897, %v11898
      %v11900 = vrot.slane %v11899, 1
      %v11901 = vmax.f32 %v11899, %v11900
      %v11902 = vsel %vm11880, %v11834, -inf
      %v11903 = vrot.slane %v11902, 4
      %v11904 = vmax.f32 %v11902, %v11903
      %v11905 = vrot.slane %v11904, 2
      %v11906 = vmax.f32 %v11904, %v11905
      %v11907 = vrot.slane %v11906, 1
      %v11908 = vmax.f32 %v11906, %v11907
      %v11909 = vsel %vm11880, %v11835, -inf
      %v11910 = vrot.slane %v11909, 4
      %v11911 = vmax.f32 %v11909, %v11910
      %v11912 = vrot.slane %v11911, 2
      %v11913 = vmax.f32 %v11911, %v11912
      %v11914 = vrot.slane %v11913, 1
      %v11915 = vmax.f32 %v11913, %v11914
      %v11916 = vsel %vm11880, %v11836, -inf
      %v11917 = vrot.slane %v11916, 4
      %v11918 = vmax.f32 %v11916, %v11917
      %v11919 = vrot.slane %v11918, 2
      %v11920 = vmax.f32 %v11918, %v11919
      %v11921 = vrot.slane %v11920, 1
      %v11922 = vmax.f32 %v11920, %v11921
      %vm11923 = vcmask 29699
      %v11924 = vsel %vm11923, %v11831, -inf
      %v11925 = vrot.slane %v11924, 4
      %v11926 = vmax.f32 %v11924, %v11925
      %v11927 = vrot.slane %v11926, 2
      %v11928 = vmax.f32 %v11926, %v11927
      %v11929 = vrot.slane %v11928, 1
      %v11930 = vmax.f32 %v11928, %v11929
      %v11931 = vsel %vm11923, %v11832, -inf
      %v11932 = vrot.slane %v11931, 4
      %v11933 = vmax.f32 %v11931, %v11932
      %v11934 = vrot.slane %v11933, 2
      %v11935 = vmax.f32 %v11933, %v11934
      %v11936 = vrot.slane %v11935, 1
      %v11937 = vmax.f32 %v11935, %v11936
      %v11938 = vsel %vm11923, %v11833, -inf
      %v11939 = vrot.slane %v11938, 4
      %v11940 = vmax.f32 %v11938, %v11939
      %v11941 = vrot.slane %v11940, 2
      %v11942 = vmax.f32 %v11940, %v11941
      %v11943 = vrot.slane %v11942, 1
      %v11944 = vmax.f32 %v11942, %v11943
      %v11945 = vsel %vm11923, %v11834, -inf
      %v11946 = vrot.slane %v11945, 4
      %v11947 = vmax.f32 %v11945, %v11946
      %v11948 = vrot.slane %v11947, 2
      %v11949 = vmax.f32 %v11947, %v11948
      %v11950 = vrot.slane %v11949, 1
      %v11951 = vmax.f32 %v11949, %v11950
      %v11952 = vsel %vm11923, %v11835, -inf
      %v11953 = vrot.slane %v11952, 4
      %v11954 = vmax.f32 %v11952, %v11953
      %v11955 = vrot.slane %v11954, 2
      %v11956 = vmax.f32 %v11954, %v11955
      %v11957 = vrot.slane %v11956, 1
      %v11958 = vmax.f32 %v11956, %v11957
      %v11959 = vsel %vm11923, %v11836, -inf
      %v11960 = vrot.slane %v11959, 4
      %v11961 = vmax.f32 %v11959, %v11960
      %v11962 = vrot.slane %v11961, 2
      %v11963 = vmax.f32 %v11961, %v11962
      %v11964 = vrot.slane %v11963, 1
      %v11965 = vmax.f32 %v11963, %v11964
      %vm11966 = vcmask 31749
      %v11967 = vsel %vm11966, %v11831, -inf
      %v11968 = vrot.slane %v11967, 4
      %v11969 = vmax.f32 %v11967, %v11968
      %v11970 = vrot.slane %v11969, 2
      %v11971 = vmax.f32 %v11969, %v11970
      %v11972 = vrot.slane %v11971, 1
      %v11973 = vmax.f32 %v11971, %v11972
      %v11974 = vsel %vm11966, %v11832, -inf
      %v11975 = vrot.slane %v11974, 4
      %v11976 = vmax.f32 %v11974, %v11975
      %v11977 = vrot.slane %v11976, 2
      %v11978 = vmax.f32 %v11976, %v11977
      %v11979 = vrot.slane %v11978, 1
      %v11980 = vmax.f32 %v11978, %v11979
      %v11981 = vsel %vm11966, %v11833, -inf
      %v11982 = vrot.slane %v11981, 4
      %v11983 = vmax.f32 %v11981, %v11982
      %v11984 = vrot.slane %v11983, 2
      %v11985 = vmax.f32 %v11983, %v11984
      %v11986 = vrot.slane %v11985, 1
      %v11987 = vmax.f32 %v11985, %v11986
      %v11988 = vsel %vm11966, %v11834, -inf
      %v11989 = vrot.slane %v11988, 4
      %v11990 = vmax.f32 %v11988, %v11989
      %v11991 = vrot.slane %v11990, 2
      %v11992 = vmax.f32 %v11990, %v11991
      %v11993 = vrot.slane %v11992, 1
      %v11994 = vmax.f32 %v11992, %v11993
      %v11995 = vsel %vm11966, %v11835, -inf
      %v11996 = vrot.slane %v11995, 4
      %v11997 = vmax.f32 %v11995, %v11996
      %v11998 = vrot.slane %v11997, 2
      %v11999 = vmax.f32 %v11997, %v11998
      %v12000 = vrot.slane %v11999, 1
      %v12001 = vmax.f32 %v11999, %v12000
      %v12002 = vsel %vm11966, %v11836, -inf
      %v12003 = vrot.slane %v12002, 4
      %v12004 = vmax.f32 %v12002, %v12003
      %v12005 = vrot.slane %v12004, 2
      %v12006 = vmax.f32 %v12004, %v12005
      %v12007 = vrot.slane %v12006, 1
      %v12008 = vmax.f32 %v12006, %v12007
      %vm12009 = vcmask 1040384
      %v12010 = vsel %vm12009, %v11844, %v11887
      %v12011 = vsel %vm12009, %v11851, %v11894
      %v12012 = vsel %vm12009, %v11858, %v11901
      %v12013 = vsel %vm12009, %v11865, %v11908
      %v12014 = vsel %vm12009, %v11872, %v11915
      %v12015 = vsel %vm12009, %v11879, %v11922
      %v12016 = vsel %vm11427, %v12010, %v11930
      %v12017 = vsel %vm11427, %v12011, %v11937
      %v12018 = vsel %vm11427, %v12012, %v11944
      %v12019 = vsel %vm11427, %v12013, %v11951
      %v12020 = vsel %vm11427, %v12014, %v11958
      %v12021 = vsel %vm11427, %v12015, %v11965
      %vm12022 = vcmask 1042432
      %v12023 = vsel %vm12022, %v12016, %v11973
      %v12024 = vsel %vm12022, %v12017, %v11980
      %v12025 = vsel %vm12022, %v12018, %v11987
      %v12026 = vsel %vm12022, %v12019, %v11994
      %v12027 = vsel %vm12022, %v12020, %v12001
      %v12028 = vsel %vm12022, %v12021, %v12008
      %vm12029 = vcmask 27648
      %12030 = vst.msk [vmem:[%s177] sm:$0xf] %vm12029, %v12023
      %12031 = vst.msk [vmem:[%s177 + $0x4] sm:$0xf] %vm12029, %v12024
      %12032 = vst.msk [vmem:[%s177 + $0x8] sm:$0xf] %vm12029, %v12025
      %12033 = vst.msk [vmem:[%s177 + $0xc] sm:$0xf] %vm12029, %v12026
      %12034 = vst.msk [vmem:[%s177 + $0x10] sm:$0xf] %vm12029, %v12027
      %12035 = vst.msk [vmem:[%s177 + $0x14] sm:$0xf] %vm12029, %v12028
      %p12036 = scmp.lt.s32.totalorder %s15, 1
      %s12037 = scalar_select %p12036, %s15, 1
      %s12038 = smul.addr %s12037, 6
      %s12039 = smul.addr %s12038, 4
      %s12040 = scalar_lea.vmem %s2, %s12039
      %p12041 = scmp.lt.s32.totalorder %s15, 1
      %s12042 = scalar_select %p12041, %s15, 1
      %s12043 = smul.addr %s12042, 8
      %s12044 = scalar_lea.vmem %s3, %s12043
      // Predicated region
      $region29: #{tpu_custom_call.1} parent=27 // pred_check
        %p12045 = pneg %p80
      $region30: #{tpu_custom_call.1} parent=27 // pred_check_branch
        %12047 = sbr.rel (%p12045) target = $region32
      $region31: #{tpu_custom_call.1} parent=27 // pred_region
        _
      $region32: #{tpu_custom_call.1} parent=27 // pred_fallthru
        _
      // Predicated region
      $region33: #{tpu_custom_call.1} parent=27 // pred_check
        %p12048 = pneg %p106
      $region34: #{tpu_custom_call.1} parent=27 // pred_check_branch
        %12050 = sbr.rel (%p12048) target = $region36
      $region35: #{tpu_custom_call.1} parent=27 // pred_region
        _
      $region36: #{tpu_custom_call.1} parent=27 // pred_fallthru
        _
    $region28: #{tpu_custom_call.1} parent=5 // pred_fallthru
      _
    %p12051 = scmp.le.s32.totalorder 2, %s10
    // Predicated region
    $region37: #{tpu_custom_call.1} parent=5 // pred_check
      %p12052 = pneg %p12051
    $region38: #{tpu_custom_call.1} parent=5 // pred_check_branch
      %12054 = sbr.rel (%p12052) target = $region40
    $region39: #{tpu_custom_call.1} parent=5 // pred_region
      %s12055 = ssub.s32 %s10, 2
      // Predicated region
      $region41: #{tpu_custom_call.1} parent=39 // pred_check
        %p12056 = pneg %p86
      $region42: #{tpu_custom_call.1} parent=39 // pred_check_branch
        %12058 = sbr.rel (%p12056) target = $region44
      $region43: #{tpu_custom_call.1} parent=39 // pred_region
        %p12059 = scmp.lt.s32.totalorder %s16, 1
        %s12060 = scalar_select %p12059, %s16, 1
        %s12061 = smul.addr %s12060, 6
        %s12062 = smul.addr %s12061, 4
        %s12063 = scalar_lea.vmem %s2, %s12062
      $region44: #{tpu_custom_call.1} parent=39 // pred_fallthru
        _
      // Predicated region
      $region45: #{tpu_custom_call.1} parent=39 // pred_check
        %p12064 = pneg %p112
      $region46: #{tpu_custom_call.1} parent=39 // pred_check_branch
        %12066 = sbr.rel (%p12064) target = $region48
      $region47: #{tpu_custom_call.1} parent=39 // pred_region
        %p12067 = scmp.lt.s32.totalorder %s16, 1
        %s12068 = scalar_select %p12067, %s16, 1
        %s12069 = smul.addr %s12068, 8
        %s12070 = scalar_lea.vmem %s3, %s12069
      $region48: #{tpu_custom_call.1} parent=39 // pred_fallthru
        _
    $region40: #{tpu_custom_call.1} parent=5 // pred_fallthru
      _
  $region6: #{tpu_custom_call.1} parent=0 // loop_footer
    %s14 = sadd.s32 1, %s10
  $region7: #{tpu_custom_call.1} parent=0 // loop_footer_branch
    %9 = sbr.rel target = $region3
  $region8: #{tpu_custom_call.1} parent=0 // loop_exit
    _

</llo_original>
